<compile_context>
chip_gen: v5e
topology: v5e:2x2
jax: 0.10.0
libtpu: 0.0.40
codegen_flags: <defaults>
</compile_context>

<pallas_src>
import jax
import jax.numpy as jnp
import numpy as np
from jax.experimental import pallas as pl
from jax.experimental.pallas import tpu as pltpu

NUM_CLASSES = 20
TB = 32                        # images per grid step; R = TB*8 = 256 slab rows
MXU_DTYPE = jnp.bfloat16       # MXU operand dtype (f32 accumulation everywhere)


# ----------------------------- fused Pallas kernel -------------------------- #

def _cnn_char_kernel(x1_ref, w1_ref, b1_ref, w2_ref, b2_ref,
                     wf1_ref, bf1_ref, wf2_ref, bf2_ref, o_ref):
    f32 = jnp.float32
    cdt = w2_ref.dtype           # MXU operand dtype
    R = TB * 8                   # slab rows, ordered r = k*TB + image_in_tile

    def mm(a, b):                # MXU matmul, f32 accumulation
        return jnp.dot(a.astype(b.dtype), b, preferred_element_type=f32)

    # ---- conv1 (3x3, 1->16) + ReLU + 2x2 max-pool --------------------------
    # x1_ref[m] holds, for conv rows h = 4k+m, the 3 padded input rows
    # (h, h+1, h+2) concatenated (102 lanes, zero-padded to 128).  w1 packs the
    # 3x3 taps for even and odd output columns, so one matmul yields both
    # column parities; pooling is a max over the 4 row/col parities.
    def conv1_rows(m):
        a = mm(x1_ref[m], w1_ref[...])               # (R, 512)
        return jnp.maximum(a[:, :256], a[:, 256:])   # max over column parity

    b1 = b1_ref[...]
    p1e = jnp.maximum(jnp.maximum(conv1_rows(0), conv1_rows(1)) + b1, 0.0)
    p1o = jnp.maximum(jnp.maximum(conv1_rows(2), conv1_rows(3)) + b1, 0.0)
    # p1e / p1o: pooled rows h' = 2k / 2k+1 at slab row r = k*TB + n,
    # lanes = w'*16 + c                                            -> (R, 256)

    # Vertical neighbours for conv2: one pooled row = TB slab rows.  Edge rows
    # (k==0 / k==7) see the zero padding row -> static zero edge blocks.
    zrow = jnp.zeros((TB, 256), f32)
    prev_o = jnp.concatenate([zrow, p1o[:R - TB]], axis=0)        # row k-1 (odd)
    next_e = jnp.concatenate([p1e[TB:], zrow], axis=0)            # row k+1 (even)

    # Cast conv2 LHS operands to the MXU dtype once (not once per matmul).
    p1e_b, p1o_b = p1e.astype(cdt), p1o.astype(cdt)
    prev_b, next_b = prev_o.astype(cdt), next_e.astype(cdt)

    # ---- conv2 (3x3, 16->32) + ReLU + 2x2 max-pool --------------------------
    def conv2_rows(s0, s1, s2):                      # vertical taps dh = 0,1,2
        a = mm(s0, w2_ref[0]) + mm(s1, w2_ref[1]) + mm(s2, w2_ref[2])  # (R,512)
        return jnp.maximum(a[:, :256], a[:, 256:])   # max over column parity

    a2e = conv2_rows(prev_b, p1e_b, p1o_b)           # even conv2 rows 2k
    a2o = conv2_rows(p1e_b, p1o_b, next_b)           # odd  conv2 rows 2k+1
    p2 = jnp.maximum(jnp.maximum(a2e, a2o) + b2_ref[...], 0.0)     # (R, 256)
    p2b = p2.astype(cdt)
    # p2: slab row r = h''*TB + n, lanes = w''*32 + c

    # ---- flatten + fc1 + ReLU -----------------------------------------------
    # (h, image) row ordering makes the flatten free: the h-th TB-row block of
    # p2 contracts against the h-th (256,128) block of the pre-permuted fc1
    # weight.  8 small matmuls, no redundant work, no selects, no row-sum mm.
    acc = jnp.zeros((TB, 128), f32)
    for h in range(8):
        acc = acc + mm(p2b[h * TB:(h + 1) * TB], wf1_ref[h])
    fc1 = jnp.maximum(acc + bf1_ref[...], 0.0)       # (TB, 128)

    # nn.Dropout(0.5) is the identity at inference.
    # TODO(synk): training-mode stochastic dropout not implemented.

    # ---- fc2 (output zero-padded to 128 lanes for lane-dense stores) --------
    o_ref[...] = (mm(fc1, wf2_ref[...]) + bf2_ref[...]).astype(o_ref.dtype)


# --------------------------- one-time weight prep --------------------------- #

def prepare_params(params):
    """One-time conversion of PyTorch-layout params into the kernel's
    structured weights.  Call once; cnn_char_forward consumes the result."""
    f32 = jnp.float32

    # conv1 structured weight: rows = dh*34 + padded_col (zero-padded 102->128),
    # cols = [even out-col | odd out-col], each block indexed w'*16 + c.
    j = np.arange(34)[:, None, None]
    wc = np.arange(16)[None, :, None]
    dw = np.arange(3)[None, None, :]
    ind_e = (j == 2 * wc + dw).astype(np.float32)               # (34,16,3)
    ind_o = (j == 2 * wc + 1 + dw).astype(np.float32)
    w1r = params["conv1_w"][:, 0, :, :]                         # (co, dh, dw)
    w1e = jnp.einsum("jwd,ohd->hjwo", ind_e, w1r).reshape(102, 256)
    w1o = jnp.einsum("jwd,ohd->hjwo", ind_o, w1r).reshape(102, 256)
    w1 = jnp.pad(jnp.concatenate([w1e, w1o], axis=1),
                 ((0, 26), (0, 0))).astype(MXU_DTYPE)           # (128, 512)
    b1 = jnp.tile(params["conv1_b"], 16).reshape(1, 256).astype(f32)

    # conv2 structured weights: one (256, 512) block per vertical tap dh.
    jj = np.arange(16)[:, None, None]
    wc2 = np.arange(8)[None, :, None]
    ind2_e = (jj == 2 * wc2 + dw - 1).astype(np.float32)        # (16,8,3)
    ind2_o = (jj == 2 * wc2 + dw).astype(np.float32)
    w2_blocks = []
    for dh_i in range(3):
        w2t = params["conv2_w"][:, :, dh_i, :]                  # (co, ci, dw)
        we = jnp.einsum("jwd,ocd->jcwo", ind2_e, w2t).reshape(256, 256)
        wo = jnp.einsum("jwd,ocd->jcwo", ind2_o, w2t).reshape(256, 256)
        w2_blocks.append(jnp.concatenate([we, wo], axis=1))
    w2 = jnp.stack(w2_blocks, axis=0).astype(MXU_DTYPE)         # (3, 256, 512)
    b2 = jnp.tile(params["conv2_b"], 8).reshape(1, 256).astype(f32)

    # fc1 weight split into 8 per-h blocks: wf1[h] rows = w''*32 + c, cols = f.
    wf1 = params["fc1_w"].reshape(128, 32, 8, 8)                # (f, c, h, w)
    wf1 = jnp.transpose(wf1, (2, 3, 1, 0)).reshape(8, 256, 128).astype(MXU_DTYPE)
    bf1 = params["fc1_b"].reshape(1, 128).astype(f32)

    # fc2, zero-padded to 128 output lanes (lane-dense HBM writeback).
    wf2 = jnp.pad(params["fc2_w"].T,
                  ((0, 0), (0, 128 - NUM_CLASSES))).astype(MXU_DTYPE)  # (128,128)
    bf2 = jnp.pad(params["fc2_b"],
                  (0, 128 - NUM_CLASSES)).reshape(1, 128).astype(f32)

    return dict(w1=w1, b1=b1, w2=w2, b2=b2, wf1=wf1, bf1=bf1, wf2=wf2, bf2=bf2)


# ------------------------------- JAX wrapper -------------------------------- #

def cnn_char_forward(prep, x_nchw):
    """Matches CNN_Char.forward for 32x32 single-channel inputs (NCHW)."""
    n = x_nchw.shape[0]
    x = x_nchw.reshape(n, 32, 32).astype(jnp.float32)
    n_pad = ((n + TB - 1) // TB) * TB
    n_tiles = n_pad // TB
    if n_pad != n:
        x = jnp.pad(x, ((0, n_pad - n), (0, 0), (0, 0)))
    xp = jnp.pad(x, ((0, 0), (1, 1), (1, 1)))                   # (n_pad, 34, 34)

    # conv1 input slabs: for m = h mod 4, the 3 padded input rows of conv
    # output row h = 4k+m, concatenated along lanes (102 -> padded to 128).
    slabs = []
    for m in range(4):
        rows = [xp[:, m + dh: m + dh + 29: 4, :] for dh in range(3)]
        slabs.append(jnp.concatenate(rows, axis=-1))            # (n_pad, 8, 102)
    x1 = jnp.stack(slabs, axis=0)                               # (4, n_pad, 8, 102)
    # Reorder rows inside each batch tile to (k, image): conv2 neighbours are
    # +/- TB rows and the fc1 per-h blocks are contiguous.
    x1 = x1.reshape(4, n_tiles, TB, 8, 102)
    x1 = jnp.transpose(x1, (0, 1, 3, 2, 4)).reshape(4, n_pad * 8, 102)
    x1 = jnp.pad(x1, ((0, 0), (0, 0), (0, 26))).astype(MXU_DTYPE)  # lanes -> 128

    full = lambda shape: pl.BlockSpec(shape, lambda i: (0,) * len(shape))
    out = pl.pallas_call(
        _cnn_char_kernel,
        out_shape=jax.ShapeDtypeStruct((n_pad, 128), jnp.float32),
        grid=(n_tiles,),
        in_specs=[
            pl.BlockSpec((4, TB * 8, 128), lambda i: (0, i, 0)),   # x1 (batch-tiled)
            full((128, 512)), full((1, 256)),                      # conv1
            full((3, 256, 512)), full((1, 256)),                   # conv2
            full((8, 256, 128)), full((1, 128)),                   # fc1
            full((128, 128)), full((1, 128)),                      # fc2
        ],
        out_specs=pl.BlockSpec((TB, 128), lambda i: (i, 0)),
        compiler_params=pltpu.CompilerParams(
            dimension_semantics=("parallel",),      # shards tiles over v7x's 2 TCs
            vmem_limit_bytes=32 * 1024 * 1024),
    )(x1, prep["w1"], prep["b1"], prep["w2"], prep["b2"],
      prep["wf1"], prep["bf1"], prep["wf2"], prep["bf2"])
    return out[:n, :NUM_CLASSES]


# --------------------------- params / reference ----------------------------- #

def init_params(key):
    ks = jax.random.split(key, 8)
    s = 0.05
    return dict(
        conv1_w=jax.random.normal(ks[0], (16, 1, 3, 3), jnp.float32) * s,
        conv1_b=jax.random.normal(ks[1], (16,), jnp.float32) * s,
        conv2_w=jax.random.normal(ks[2], (32, 16, 3, 3), jnp.float32) * s,
        conv2_b=jax.random.normal(ks[3], (32,), jnp.float32) * s,
        fc1_w=jax.random.normal(ks[4], (128, 32 * 8 * 8), jnp.float32) * s,
        fc1_b=jax.random.normal(ks[5], (128,), jnp.float32) * s,
        fc2_w=jax.random.normal(ks[6], (NUM_CLASSES, 128), jnp.float32) * s,
        fc2_b=jax.random.normal(ks[7], (NUM_CLASSES,), jnp.float32) * s,
    )


def reference_forward(params, x_nchw):
    """Pure-JAX f32 reference (correctness check only)."""
    x = x_nchw.astype(jnp.float32)

    def conv(x, w, b):
        y = jax.lax.conv_general_dilated(
            x, w, window_strides=(1, 1), padding=((1, 1), (1, 1)),
            dimension_numbers=("NCHW", "OIHW", "NCHW"))
        return jax.nn.relu(y + b[None, :, None, None])

    def pool(x):
        return jax.lax.reduce_window(x, -jnp.inf, jax.lax.max,
                                     (1, 1, 2, 2), (1, 1, 2, 2), "VALID")

    x = pool(conv(x, params["conv1_w"], params["conv1_b"]))
    x = pool(conv(x, params["conv2_w"], params["conv2_b"]))
    x = x.reshape(x.shape[0], -1)
    x = jax.nn.relu(x @ params["fc1_w"].T + params["fc1_b"])
    return x @ params["fc2_w"].T + params["fc2_b"]


if __name__ == "__main__":
    key = jax.random.PRNGKey(0)
    pkey, xkey = jax.random.split(key)
    params = init_params(pkey)
    # Input spatial size must be 32x32 (flatten dim is fixed at 32*8*8).
    x = jax.random.normal(xkey, (2, 1, 32, 32), jnp.float32)

    prep = prepare_params(params)                 # one-time structured weights
    out = jax.block_until_ready(jax.jit(cnn_char_forward)(prep, x))
    assert out.shape == (2, NUM_CLASSES), out.shape

    ref = jax.block_until_ready(reference_forward(params, x))
    err = float(jnp.max(jnp.abs(out - ref)))
    tol = 3e-2 if MXU_DTYPE == jnp.bfloat16 else 2e-3
    assert jnp.allclose(out, ref, atol=tol, rtol=tol), err

    print("KERNEL_OK")
</pallas_src>

<mosaic_0001>
module attributes {stable_mosaic.version = 11 : i64} {
  func.func @_cnn_char_kernel(%arg0: i32, %arg1: memref<4x256x128xbf16, #tpu.memory_space<vmem>>, %arg2: memref<128x512xbf16, #tpu.memory_space<vmem>>, %arg3: memref<1x256xf32, #tpu.memory_space<vmem>>, %arg4: memref<3x256x512xbf16, #tpu.memory_space<vmem>>, %arg5: memref<1x256xf32, #tpu.memory_space<vmem>>, %arg6: memref<8x256x128xbf16, #tpu.memory_space<vmem>>, %arg7: memref<1x128xf32, #tpu.memory_space<vmem>>, %arg8: memref<128x128xbf16, #tpu.memory_space<vmem>>, %arg9: memref<1x128xf32, #tpu.memory_space<vmem>>, %arg10: memref<32x128xf32, #tpu.memory_space<vmem>>) attributes {dimension_semantics = [#tpu.dimension_semantics<parallel>], iteration_bounds = array<i64: 1>, scalar_prefetch = 0 : i64, scratch_operands = 0 : i64, tpu.core_type = #tpu.core_type<tc>, window_params = [{transform_indices = @transform_0, window_bounds = array<i64: 4, 256, 128>}, {pipeline_mode = #tpu.pipeline_mode<synchronous>, transform_indices = @transform_1, window_bounds = array<i64: 128, 512>}, {pipeline_mode = #tpu.pipeline_mode<synchronous>, transform_indices = @transform_2, window_bounds = array<i64: 1, 256>}, {pipeline_mode = #tpu.pipeline_mode<synchronous>, transform_indices = @transform_3, window_bounds = array<i64: 3, 256, 512>}, {pipeline_mode = #tpu.pipeline_mode<synchronous>, transform_indices = @transform_4, window_bounds = array<i64: 1, 256>}, {pipeline_mode = #tpu.pipeline_mode<synchronous>, transform_indices = @transform_5, window_bounds = array<i64: 8, 256, 128>}, {pipeline_mode = #tpu.pipeline_mode<synchronous>, transform_indices = @transform_6, window_bounds = array<i64: 1, 128>}, {pipeline_mode = #tpu.pipeline_mode<synchronous>, transform_indices = @transform_7, window_bounds = array<i64: 128, 128>}, {pipeline_mode = #tpu.pipeline_mode<synchronous>, transform_indices = @transform_8, window_bounds = array<i64: 1, 128>}, {transform_indices = @transform_9, window_bounds = array<i64: 32, 128>}]} {
    %c0 = arith.constant 0 : index
    %c0_0 = arith.constant 0 : index
    %0 = vector.load %arg3[%c0, %c0_0] : memref<1x256xf32, #tpu.memory_space<vmem>>, vector<1x256xf32>
    %c0_1 = arith.constant 0 : index
    %c0_2 = arith.constant 0 : index
    %c0_3 = arith.constant 0 : index
    %1 = vector.load %arg1[%c0_1, %c0_2, %c0_3] : memref<4x256x128xbf16, #tpu.memory_space<vmem>>, vector<1x256x128xbf16>
    %2 = vector.shape_cast %1 : vector<1x256x128xbf16> to vector<256x128xbf16>
    %c0_4 = arith.constant 0 : index
    %c0_5 = arith.constant 0 : index
    %3 = vector.load %arg2[%c0_4, %c0_5] : memref<128x512xbf16, #tpu.memory_space<vmem>>, vector<128x512xbf16>
    %cst = arith.constant dense<0.000000e+00> : vector<256x512xf32>
    %4 = tpu.matmul %2, %3, %cst {dimension_numbers = #tpu.dot_dimension_numbers<[1], [0], [0], [1], [0, 0, 1, 1], [], []>} : vector<256x128xbf16>, vector<128x512xbf16>, vector<256x512xf32> -> vector<256x512xf32>
    %5 = vector.extract_strided_slice %4 {offsets = [0, 0], sizes = [256, 256], strides = [1, 1]} : vector<256x512xf32> to vector<256x256xf32>
    %6 = vector.extract_strided_slice %4 {offsets = [0, 256], sizes = [256, 256], strides = [1, 1]} : vector<256x512xf32> to vector<256x256xf32>
    %7 = arith.maximumf %5, %6 : vector<256x256xf32>
    %c1 = arith.constant 1 : index
    %c0_6 = arith.constant 0 : index
    %c0_7 = arith.constant 0 : index
    %8 = vector.load %arg1[%c1, %c0_6, %c0_7] : memref<4x256x128xbf16, #tpu.memory_space<vmem>>, vector<1x256x128xbf16>
    %9 = vector.shape_cast %8 : vector<1x256x128xbf16> to vector<256x128xbf16>
    %c0_8 = arith.constant 0 : index
    %c0_9 = arith.constant 0 : index
    %10 = vector.load %arg2[%c0_8, %c0_9] : memref<128x512xbf16, #tpu.memory_space<vmem>>, vector<128x512xbf16>
    %cst_10 = arith.constant dense<0.000000e+00> : vector<256x512xf32>
    %11 = tpu.matmul %9, %10, %cst_10 {dimension_numbers = #tpu.dot_dimension_numbers<[1], [0], [0], [1], [0, 0, 1, 1], [], []>} : vector<256x128xbf16>, vector<128x512xbf16>, vector<256x512xf32> -> vector<256x512xf32>
    %12 = vector.extract_strided_slice %11 {offsets = [0, 0], sizes = [256, 256], strides = [1, 1]} : vector<256x512xf32> to vector<256x256xf32>
    %13 = vector.extract_strided_slice %11 {offsets = [0, 256], sizes = [256, 256], strides = [1, 1]} : vector<256x512xf32> to vector<256x256xf32>
    %14 = arith.maximumf %12, %13 : vector<256x256xf32>
    %15 = arith.maximumf %7, %14 : vector<256x256xf32>
    %16 = vector.broadcast %0 : vector<1x256xf32> to vector<256x256xf32>
    %17 = arith.addf %15, %16 : vector<256x256xf32>
    %cst_11 = arith.constant 0.000000e+00 : f32
    %18 = vector.broadcast %cst_11 : f32 to vector<256x256xf32>
    %19 = arith.maximumf %17, %18 : vector<256x256xf32>
    %c2 = arith.constant 2 : index
    %c0_12 = arith.constant 0 : index
    %c0_13 = arith.constant 0 : index
    %20 = vector.load %arg1[%c2, %c0_12, %c0_13] : memref<4x256x128xbf16, #tpu.memory_space<vmem>>, vector<1x256x128xbf16>
    %21 = vector.shape_cast %20 : vector<1x256x128xbf16> to vector<256x128xbf16>
    %c0_14 = arith.constant 0 : index
    %c0_15 = arith.constant 0 : index
    %22 = vector.load %arg2[%c0_14, %c0_15] : memref<128x512xbf16, #tpu.memory_space<vmem>>, vector<128x512xbf16>
    %cst_16 = arith.constant dense<0.000000e+00> : vector<256x512xf32>
    %23 = tpu.matmul %21, %22, %cst_16 {dimension_numbers = #tpu.dot_dimension_numbers<[1], [0], [0], [1], [0, 0, 1, 1], [], []>} : vector<256x128xbf16>, vector<128x512xbf16>, vector<256x512xf32> -> vector<256x512xf32>
    %24 = vector.extract_strided_slice %23 {offsets = [0, 0], sizes = [256, 256], strides = [1, 1]} : vector<256x512xf32> to vector<256x256xf32>
    %25 = vector.extract_strided_slice %23 {offsets = [0, 256], sizes = [256, 256], strides = [1, 1]} : vector<256x512xf32> to vector<256x256xf32>
    %26 = arith.maximumf %24, %25 : vector<256x256xf32>
    %c3 = arith.constant 3 : index
    %c0_17 = arith.constant 0 : index
    %c0_18 = arith.constant 0 : index
    %27 = vector.load %arg1[%c3, %c0_17, %c0_18] : memref<4x256x128xbf16, #tpu.memory_space<vmem>>, vector<1x256x128xbf16>
    %28 = vector.shape_cast %27 : vector<1x256x128xbf16> to vector<256x128xbf16>
    %c0_19 = arith.constant 0 : index
    %c0_20 = arith.constant 0 : index
    %29 = vector.load %arg2[%c0_19, %c0_20] : memref<128x512xbf16, #tpu.memory_space<vmem>>, vector<128x512xbf16>
    %cst_21 = arith.constant dense<0.000000e+00> : vector<256x512xf32>
    %30 = tpu.matmul %28, %29, %cst_21 {dimension_numbers = #tpu.dot_dimension_numbers<[1], [0], [0], [1], [0, 0, 1, 1], [], []>} : vector<256x128xbf16>, vector<128x512xbf16>, vector<256x512xf32> -> vector<256x512xf32>
    %31 = vector.extract_strided_slice %30 {offsets = [0, 0], sizes = [256, 256], strides = [1, 1]} : vector<256x512xf32> to vector<256x256xf32>
    %32 = vector.extract_strided_slice %30 {offsets = [0, 256], sizes = [256, 256], strides = [1, 1]} : vector<256x512xf32> to vector<256x256xf32>
    %33 = arith.maximumf %31, %32 : vector<256x256xf32>
    %34 = arith.maximumf %26, %33 : vector<256x256xf32>
    %35 = vector.broadcast %0 : vector<1x256xf32> to vector<256x256xf32>
    %36 = arith.addf %34, %35 : vector<256x256xf32>
    %cst_22 = arith.constant 0.000000e+00 : f32
    %37 = vector.broadcast %cst_22 : f32 to vector<256x256xf32>
    %38 = arith.maximumf %36, %37 : vector<256x256xf32>
    %cst_23 = arith.constant 0.000000e+00 : f32
    %39 = vector.broadcast %cst_23 : f32 to vector<32x256xf32>
    %40 = vector.extract_strided_slice %38 {offsets = [0, 0], sizes = [224, 256], strides = [1, 1]} : vector<256x256xf32> to vector<224x256xf32>
    %41 = tpu.concatenate %39, %40 in 0 : vector<32x256xf32>, vector<224x256xf32> -> vector<256x256xf32>
    %42 = vector.extract_strided_slice %19 {offsets = [32, 0], sizes = [224, 256], strides = [1, 1]} : vector<256x256xf32> to vector<224x256xf32>
    %43 = tpu.concatenate %42, %39 in 0 : vector<224x256xf32>, vector<32x256xf32> -> vector<256x256xf32>
    %44 = arith.truncf %19 : vector<256x256xf32> to vector<256x256xbf16>
    %45 = arith.truncf %38 : vector<256x256xf32> to vector<256x256xbf16>
    %46 = arith.truncf %41 : vector<256x256xf32> to vector<256x256xbf16>
    %47 = arith.truncf %43 : vector<256x256xf32> to vector<256x256xbf16>
    %c0_24 = arith.constant 0 : index
    %c0_25 = arith.constant 0 : index
    %c0_26 = arith.constant 0 : index
    %48 = vector.load %arg4[%c0_24, %c0_25, %c0_26] : memref<3x256x512xbf16, #tpu.memory_space<vmem>>, vector<1x256x512xbf16>
    %49 = vector.shape_cast %48 : vector<1x256x512xbf16> to vector<256x512xbf16>
    %cst_27 = arith.constant dense<0.000000e+00> : vector<256x512xf32>
    %50 = tpu.matmul %46, %49, %cst_27 {dimension_numbers = #tpu.dot_dimension_numbers<[1], [0], [0], [1], [0, 0, 1, 1], [], []>} : vector<256x256xbf16>, vector<256x512xbf16>, vector<256x512xf32> -> vector<256x512xf32>
    %c1_28 = arith.constant 1 : index
    %c0_29 = arith.constant 0 : index
    %c0_30 = arith.constant 0 : index
    %51 = vector.load %arg4[%c1_28, %c0_29, %c0_30] : memref<3x256x512xbf16, #tpu.memory_space<vmem>>, vector<1x256x512xbf16>
    %52 = vector.shape_cast %51 : vector<1x256x512xbf16> to vector<256x512xbf16>
    %cst_31 = arith.constant dense<0.000000e+00> : vector<256x512xf32>
    %53 = tpu.matmul %44, %52, %cst_31 {dimension_numbers = #tpu.dot_dimension_numbers<[1], [0], [0], [1], [0, 0, 1, 1], [], []>} : vector<256x256xbf16>, vector<256x512xbf16>, vector<256x512xf32> -> vector<256x512xf32>
    %54 = arith.addf %50, %53 : vector<256x512xf32>
    %c2_32 = arith.constant 2 : index
    %c0_33 = arith.constant 0 : index
    %c0_34 = arith.constant 0 : index
    %55 = vector.load %arg4[%c2_32, %c0_33, %c0_34] : memref<3x256x512xbf16, #tpu.memory_space<vmem>>, vector<1x256x512xbf16>
    %56 = vector.shape_cast %55 : vector<1x256x512xbf16> to vector<256x512xbf16>
    %cst_35 = arith.constant dense<0.000000e+00> : vector<256x512xf32>
    %57 = tpu.matmul %45, %56, %cst_35 {dimension_numbers = #tpu.dot_dimension_numbers<[1], [0], [0], [1], [0, 0, 1, 1], [], []>} : vector<256x256xbf16>, vector<256x512xbf16>, vector<256x512xf32> -> vector<256x512xf32>
    %58 = arith.addf %54, %57 : vector<256x512xf32>
    %59 = vector.extract_strided_slice %58 {offsets = [0, 0], sizes = [256, 256], strides = [1, 1]} : vector<256x512xf32> to vector<256x256xf32>
    %60 = vector.extract_strided_slice %58 {offsets = [0, 256], sizes = [256, 256], strides = [1, 1]} : vector<256x512xf32> to vector<256x256xf32>
    %61 = arith.maximumf %59, %60 : vector<256x256xf32>
    %c0_36 = arith.constant 0 : index
    %c0_37 = arith.constant 0 : index
    %c0_38 = arith.constant 0 : index
    %62 = vector.load %arg4[%c0_36, %c0_37, %c0_38] : memref<3x256x512xbf16, #tpu.memory_space<vmem>>, vector<1x256x512xbf16>
    %63 = vector.shape_cast %62 : vector<1x256x512xbf16> to vector<256x512xbf16>
    %cst_39 = arith.constant dense<0.000000e+00> : vector<256x512xf32>
    %64 = tpu.matmul %44, %63, %cst_39 {dimension_numbers = #tpu.dot_dimension_numbers<[1], [0], [0], [1], [0, 0, 1, 1], [], []>} : vector<256x256xbf16>, vector<256x512xbf16>, vector<256x512xf32> -> vector<256x512xf32>
    %c1_40 = arith.constant 1 : index
    %c0_41 = arith.constant 0 : index
    %c0_42 = arith.constant 0 : index
    %65 = vector.load %arg4[%c1_40, %c0_41, %c0_42] : memref<3x256x512xbf16, #tpu.memory_space<vmem>>, vector<1x256x512xbf16>
    %66 = vector.shape_cast %65 : vector<1x256x512xbf16> to vector<256x512xbf16>
    %cst_43 = arith.constant dense<0.000000e+00> : vector<256x512xf32>
    %67 = tpu.matmul %45, %66, %cst_43 {dimension_numbers = #tpu.dot_dimension_numbers<[1], [0], [0], [1], [0, 0, 1, 1], [], []>} : vector<256x256xbf16>, vector<256x512xbf16>, vector<256x512xf32> -> vector<256x512xf32>
    %68 = arith.addf %64, %67 : vector<256x512xf32>
    %c2_44 = arith.constant 2 : index
    %c0_45 = arith.constant 0 : index
    %c0_46 = arith.constant 0 : index
    %69 = vector.load %arg4[%c2_44, %c0_45, %c0_46] : memref<3x256x512xbf16, #tpu.memory_space<vmem>>, vector<1x256x512xbf16>
    %70 = vector.shape_cast %69 : vector<1x256x512xbf16> to vector<256x512xbf16>
    %cst_47 = arith.constant dense<0.000000e+00> : vector<256x512xf32>
    %71 = tpu.matmul %47, %70, %cst_47 {dimension_numbers = #tpu.dot_dimension_numbers<[1], [0], [0], [1], [0, 0, 1, 1], [], []>} : vector<256x256xbf16>, vector<256x512xbf16>, vector<256x512xf32> -> vector<256x512xf32>
    %72 = arith.addf %68, %71 : vector<256x512xf32>
    %73 = vector.extract_strided_slice %72 {offsets = [0, 0], sizes = [256, 256], strides = [1, 1]} : vector<256x512xf32> to vector<256x256xf32>
    %74 = vector.extract_strided_slice %72 {offsets = [0, 256], sizes = [256, 256], strides = [1, 1]} : vector<256x512xf32> to vector<256x256xf32>
    %75 = arith.maximumf %73, %74 : vector<256x256xf32>
    %76 = arith.maximumf %61, %75 : vector<256x256xf32>
    %c0_48 = arith.constant 0 : index
    %c0_49 = arith.constant 0 : index
    %77 = vector.load %arg5[%c0_48, %c0_49] : memref<1x256xf32, #tpu.memory_space<vmem>>, vector<1x256xf32>
    %78 = vector.broadcast %77 : vector<1x256xf32> to vector<256x256xf32>
    %79 = arith.addf %76, %78 : vector<256x256xf32>
    %cst_50 = arith.constant 0.000000e+00 : f32
    %80 = vector.broadcast %cst_50 : f32 to vector<256x256xf32>
    %81 = arith.maximumf %79, %80 : vector<256x256xf32>
    %82 = arith.truncf %81 : vector<256x256xf32> to vector<256x256xbf16>
    %cst_51 = arith.constant 0.000000e+00 : f32
    %83 = vector.broadcast %cst_51 : f32 to vector<32x128xf32>
    %84 = vector.extract_strided_slice %82 {offsets = [0, 0], sizes = [32, 256], strides = [1, 1]} : vector<256x256xbf16> to vector<32x256xbf16>
    %c0_52 = arith.constant 0 : index
    %c0_53 = arith.constant 0 : index
    %c0_54 = arith.constant 0 : index
    %85 = vector.load %arg6[%c0_52, %c0_53, %c0_54] : memref<8x256x128xbf16, #tpu.memory_space<vmem>>, vector<1x256x128xbf16>
    %86 = vector.shape_cast %85 : vector<1x256x128xbf16> to vector<256x128xbf16>
    %cst_55 = arith.constant dense<0.000000e+00> : vector<32x128xf32>
    %87 = tpu.matmul %84, %86, %cst_55 {dimension_numbers = #tpu.dot_dimension_numbers<[1], [0], [0], [1], [0, 0, 1, 1], [], []>} : vector<32x256xbf16>, vector<256x128xbf16>, vector<32x128xf32> -> vector<32x128xf32>
    %88 = arith.addf %83, %87 : vector<32x128xf32>
    %89 = vector.extract_strided_slice %82 {offsets = [32, 0], sizes = [32, 256], strides = [1, 1]} : vector<256x256xbf16> to vector<32x256xbf16>
    %c1_56 = arith.constant 1 : index
    %c0_57 = arith.constant 0 : index
    %c0_58 = arith.constant 0 : index
    %90 = vector.load %arg6[%c1_56, %c0_57, %c0_58] : memref<8x256x128xbf16, #tpu.memory_space<vmem>>, vector<1x256x128xbf16>
    %91 = vector.shape_cast %90 : vector<1x256x128xbf16> to vector<256x128xbf16>
    %cst_59 = arith.constant dense<0.000000e+00> : vector<32x128xf32>
    %92 = tpu.matmul %89, %91, %cst_59 {dimension_numbers = #tpu.dot_dimension_numbers<[1], [0], [0], [1], [0, 0, 1, 1], [], []>} : vector<32x256xbf16>, vector<256x128xbf16>, vector<32x128xf32> -> vector<32x128xf32>
    %93 = arith.addf %88, %92 : vector<32x128xf32>
    %94 = vector.extract_strided_slice %82 {offsets = [64, 0], sizes = [32, 256], strides = [1, 1]} : vector<256x256xbf16> to vector<32x256xbf16>
    %c2_60 = arith.constant 2 : index
    %c0_61 = arith.constant 0 : index
    %c0_62 = arith.constant 0 : index
    %95 = vector.load %arg6[%c2_60, %c0_61, %c0_62] : memref<8x256x128xbf16, #tpu.memory_space<vmem>>, vector<1x256x128xbf16>
    %96 = vector.shape_cast %95 : vector<1x256x128xbf16> to vector<256x128xbf16>
    %cst_63 = arith.constant dense<0.000000e+00> : vector<32x128xf32>
    %97 = tpu.matmul %94, %96, %cst_63 {dimension_numbers = #tpu.dot_dimension_numbers<[1], [0], [0], [1], [0, 0, 1, 1], [], []>} : vector<32x256xbf16>, vector<256x128xbf16>, vector<32x128xf32> -> vector<32x128xf32>
    %98 = arith.addf %93, %97 : vector<32x128xf32>
    %99 = vector.extract_strided_slice %82 {offsets = [96, 0], sizes = [32, 256], strides = [1, 1]} : vector<256x256xbf16> to vector<32x256xbf16>
    %c3_64 = arith.constant 3 : index
    %c0_65 = arith.constant 0 : index
    %c0_66 = arith.constant 0 : index
    %100 = vector.load %arg6[%c3_64, %c0_65, %c0_66] : memref<8x256x128xbf16, #tpu.memory_space<vmem>>, vector<1x256x128xbf16>
    %101 = vector.shape_cast %100 : vector<1x256x128xbf16> to vector<256x128xbf16>
    %cst_67 = arith.constant dense<0.000000e+00> : vector<32x128xf32>
    %102 = tpu.matmul %99, %101, %cst_67 {dimension_numbers = #tpu.dot_dimension_numbers<[1], [0], [0], [1], [0, 0, 1, 1], [], []>} : vector<32x256xbf16>, vector<256x128xbf16>, vector<32x128xf32> -> vector<32x128xf32>
    %103 = arith.addf %98, %102 : vector<32x128xf32>
    %104 = vector.extract_strided_slice %82 {offsets = [128, 0], sizes = [32, 256], strides = [1, 1]} : vector<256x256xbf16> to vector<32x256xbf16>
    %c4 = arith.constant 4 : index
    %c0_68 = arith.constant 0 : index
    %c0_69 = arith.constant 0 : index
    %105 = vector.load %arg6[%c4, %c0_68, %c0_69] : memref<8x256x128xbf16, #tpu.memory_space<vmem>>, vector<1x256x128xbf16>
    %106 = vector.shape_cast %105 : vector<1x256x128xbf16> to vector<256x128xbf16>
    %cst_70 = arith.constant dense<0.000000e+00> : vector<32x128xf32>
    %107 = tpu.matmul %104, %106, %cst_70 {dimension_numbers = #tpu.dot_dimension_numbers<[1], [0], [0], [1], [0, 0, 1, 1], [], []>} : vector<32x256xbf16>, vector<256x128xbf16>, vector<32x128xf32> -> vector<32x128xf32>
    %108 = arith.addf %103, %107 : vector<32x128xf32>
    %109 = vector.extract_strided_slice %82 {offsets = [160, 0], sizes = [32, 256], strides = [1, 1]} : vector<256x256xbf16> to vector<32x256xbf16>
    %c5 = arith.constant 5 : index
    %c0_71 = arith.constant 0 : index
    %c0_72 = arith.constant 0 : index
    %110 = vector.load %arg6[%c5, %c0_71, %c0_72] : memref<8x256x128xbf16, #tpu.memory_space<vmem>>, vector<1x256x128xbf16>
    %111 = vector.shape_cast %110 : vector<1x256x128xbf16> to vector<256x128xbf16>
    %cst_73 = arith.constant dense<0.000000e+00> : vector<32x128xf32>
    %112 = tpu.matmul %109, %111, %cst_73 {dimension_numbers = #tpu.dot_dimension_numbers<[1], [0], [0], [1], [0, 0, 1, 1], [], []>} : vector<32x256xbf16>, vector<256x128xbf16>, vector<32x128xf32> -> vector<32x128xf32>
    %113 = arith.addf %108, %112 : vector<32x128xf32>
    %114 = vector.extract_strided_slice %82 {offsets = [192, 0], sizes = [32, 256], strides = [1, 1]} : vector<256x256xbf16> to vector<32x256xbf16>
    %c6 = arith.constant 6 : index
    %c0_74 = arith.constant 0 : index
    %c0_75 = arith.constant 0 : index
    %115 = vector.load %arg6[%c6, %c0_74, %c0_75] : memref<8x256x128xbf16, #tpu.memory_space<vmem>>, vector<1x256x128xbf16>
    %116 = vector.shape_cast %115 : vector<1x256x128xbf16> to vector<256x128xbf16>
    %cst_76 = arith.constant dense<0.000000e+00> : vector<32x128xf32>
    %117 = tpu.matmul %114, %116, %cst_76 {dimension_numbers = #tpu.dot_dimension_numbers<[1], [0], [0], [1], [0, 0, 1, 1], [], []>} : vector<32x256xbf16>, vector<256x128xbf16>, vector<32x128xf32> -> vector<32x128xf32>
    %118 = arith.addf %113, %117 : vector<32x128xf32>
    %119 = vector.extract_strided_slice %82 {offsets = [224, 0], sizes = [32, 256], strides = [1, 1]} : vector<256x256xbf16> to vector<32x256xbf16>
    %c7 = arith.constant 7 : index
    %c0_77 = arith.constant 0 : index
    %c0_78 = arith.constant 0 : index
    %120 = vector.load %arg6[%c7, %c0_77, %c0_78] : memref<8x256x128xbf16, #tpu.memory_space<vmem>>, vector<1x256x128xbf16>
    %121 = vector.shape_cast %120 : vector<1x256x128xbf16> to vector<256x128xbf16>
    %cst_79 = arith.constant dense<0.000000e+00> : vector<32x128xf32>
    %122 = tpu.matmul %119, %121, %cst_79 {dimension_numbers = #tpu.dot_dimension_numbers<[1], [0], [0], [1], [0, 0, 1, 1], [], []>} : vector<32x256xbf16>, vector<256x128xbf16>, vector<32x128xf32> -> vector<32x128xf32>
    %123 = arith.addf %118, %122 : vector<32x128xf32>
    %c0_80 = arith.constant 0 : index
    %c0_81 = arith.constant 0 : index
    %124 = vector.load %arg7[%c0_80, %c0_81] : memref<1x128xf32, #tpu.memory_space<vmem>>, vector<1x128xf32>
    %125 = vector.broadcast %124 : vector<1x128xf32> to vector<32x128xf32>
    %126 = arith.addf %123, %125 : vector<32x128xf32>
    %cst_82 = arith.constant 0.000000e+00 : f32
    %127 = vector.broadcast %cst_82 : f32 to vector<32x128xf32>
    %128 = arith.maximumf %126, %127 : vector<32x128xf32>
    %c0_83 = arith.constant 0 : index
    %c0_84 = arith.constant 0 : index
    %129 = vector.load %arg8[%c0_83, %c0_84] : memref<128x128xbf16, #tpu.memory_space<vmem>>, vector<128x128xbf16>
    %130 = arith.truncf %128 : vector<32x128xf32> to vector<32x128xbf16>
    %cst_85 = arith.constant dense<0.000000e+00> : vector<32x128xf32>
    %131 = tpu.matmul %130, %129, %cst_85 {dimension_numbers = #tpu.dot_dimension_numbers<[1], [0], [0], [1], [0, 0, 1, 1], [], []>} : vector<32x128xbf16>, vector<128x128xbf16>, vector<32x128xf32> -> vector<32x128xf32>
    %c0_86 = arith.constant 0 : index
    %c0_87 = arith.constant 0 : index
    %132 = vector.load %arg9[%c0_86, %c0_87] : memref<1x128xf32, #tpu.memory_space<vmem>>, vector<1x128xf32>
    %133 = vector.broadcast %132 : vector<1x128xf32> to vector<32x128xf32>
    %134 = arith.addf %131, %133 : vector<32x128xf32>
    %c0_88 = arith.constant 0 : index
    %c0_89 = arith.constant 0 : index
    %135 = vector.load %arg10[%c0_88, %c0_89] : memref<32x128xf32, #tpu.memory_space<vmem>>, vector<32x128xf32>
    tpu.vector_store %arg10[%c0_88, %c0_89], %134 {strides = array<i32>} : memref<32x128xf32, #tpu.memory_space<vmem>>, vector<32x128xf32>,
    return
  }
  func.func @transform_0(%arg0: i32) -> (i32, i32, i32) {
    %c0_i32 = arith.constant 0 : i32
    %c0_i32_0 = arith.constant 0 : i32
    %c0_i32_1 = arith.constant 0 : i32
    return %c0_i32, %arg0, %c0_i32_0 : i32, i32, i32
  }
  func.func @transform_1(%arg0: i32) -> (i32, i32) {
    %c0_i32 = arith.constant 0 : i32
    %c0_i32_0 = arith.constant 0 : i32
    %c0_i32_1 = arith.constant 0 : i32
    return %c0_i32, %c0_i32_0 : i32, i32
  }
  func.func @transform_2(%arg0: i32) -> (i32, i32) {
    %c0_i32 = arith.constant 0 : i32
    %c0_i32_0 = arith.constant 0 : i32
    %c0_i32_1 = arith.constant 0 : i32
    return %c0_i32, %c0_i32_0 : i32, i32
  }
  func.func @transform_3(%arg0: i32) -> (i32, i32, i32) {
    %c0_i32 = arith.constant 0 : i32
    %c0_i32_0 = arith.constant 0 : i32
    %c0_i32_1 = arith.constant 0 : i32
    %c0_i32_2 = arith.constant 0 : i32
    return %c0_i32, %c0_i32_0, %c0_i32_1 : i32, i32, i32
  }
  func.func @transform_4(%arg0: i32) -> (i32, i32) {
    %c0_i32 = arith.constant 0 : i32
    %c0_i32_0 = arith.constant 0 : i32
    %c0_i32_1 = arith.constant 0 : i32
    return %c0_i32, %c0_i32_0 : i32, i32
  }
  func.func @transform_5(%arg0: i32) -> (i32, i32, i32) {
    %c0_i32 = arith.constant 0 : i32
    %c0_i32_0 = arith.constant 0 : i32
    %c0_i32_1 = arith.constant 0 : i32
    %c0_i32_2 = arith.constant 0 : i32
    return %c0_i32, %c0_i32_0, %c0_i32_1 : i32, i32, i32
  }
  func.func @transform_6(%arg0: i32) -> (i32, i32) {
    %c0_i32 = arith.constant 0 : i32
    %c0_i32_0 = arith.constant 0 : i32
    %c0_i32_1 = arith.constant 0 : i32
    return %c0_i32, %c0_i32_0 : i32, i32
  }
  func.func @transform_7(%arg0: i32) -> (i32, i32) {
    %c0_i32 = arith.constant 0 : i32
    %c0_i32_0 = arith.constant 0 : i32
    %c0_i32_1 = arith.constant 0 : i32
    return %c0_i32, %c0_i32_0 : i32, i32
  }
  func.func @transform_8(%arg0: i32) -> (i32, i32) {
    %c0_i32 = arith.constant 0 : i32
    %c0_i32_0 = arith.constant 0 : i32
    %c0_i32_1 = arith.constant 0 : i32
    return %c0_i32, %c0_i32_0 : i32, i32
  }
  func.func @transform_9(%arg0: i32) -> (i32, i32) {
    %c0_i32 = arith.constant 0 : i32
    %c0_i32_0 = arith.constant 0 : i32
    return %arg0, %c0_i32 : i32, i32
  }
}

</mosaic_0001>

<llo_original>
// kernel: cnn_char_forward.1
$region0: #{cnn_char_forward.1}
  #allocation0 [shape = 'u32[]', space=smem, size = 0x4, offset = 0x4, fixed_abs, tag = 'smem constant byte address 0x4 - core index']
  #allocation1 [shape = 'u32[72,128]{1,0:T(1,128)}', space=vmem, size = 0x9000, scoped, tag = 'internal scratch']
  %s0 = inlined_call_operand.vmem [shape: bf16[4,256,128], index: 0, kind: input, shape index: {}]
  %s1 = inlined_call_operand.vmem [shape: bf16[128,512], index: 1, kind: input, shape index: {}]
  %s2 = inlined_call_operand.vmem [shape: f32[1,256], index: 2, kind: input, shape index: {}]
  %s3 = inlined_call_operand.vmem [shape: bf16[3,256,512], index: 3, kind: input, shape index: {}]
  %s4 = inlined_call_operand.vmem [shape: f32[1,256], index: 4, kind: input, shape index: {}]
  %s5 = inlined_call_operand.vmem [shape: bf16[8,256,128], index: 5, kind: input, shape index: {}]
  %s6 = inlined_call_operand.vmem [shape: f32[1,128], index: 6, kind: input, shape index: {}]
  %s7 = inlined_call_operand.vmem [shape: bf16[128,128], index: 7, kind: input, shape index: {}]
  %s8 = inlined_call_operand.vmem [shape: f32[1,128], index: 8, kind: input, shape index: {}]
  %s9 = inlined_call_operand.vmem [shape: f32[32,128], index: 9, kind: output, shape index: {}]
  %s10 = sld [smem:[#allocation0]]
  $region46: #{cnn_char_forward.1} parent=0
    _
  %s12 = ssub.s32 1, %s10
  %s13 = scalar_select 0, %s12, %s10
  // Predicated region
  $region2: #{cnn_char_forward.1} parent=0 // pred_check
    _
  $region3: #{cnn_char_forward.1} parent=0 // pred_check_branch
    %15 = sbr.rel (0) target = $region5
  $region4: #{cnn_char_forward.1} parent=0 // pred_region
    _
  $region5: #{cnn_char_forward.1} parent=0 // pred_fallthru
    _
  // Predicated region
  $region6: #{cnn_char_forward.1} parent=0 // pred_check
    _
  $region7: #{cnn_char_forward.1} parent=0 // pred_check_branch
    %17 = sbr.rel (0) target = $region9
  $region8: #{cnn_char_forward.1} parent=0 // pred_region
    _
  $region9: #{cnn_char_forward.1} parent=0 // pred_fallthru
    _
  // Predicated region
  $region10: #{cnn_char_forward.1} parent=0 // pred_check
    _
  $region11: #{cnn_char_forward.1} parent=0 // pred_check_branch
    %19 = sbr.rel (0) target = $region13
  $region12: #{cnn_char_forward.1} parent=0 // pred_region
    _
  $region13: #{cnn_char_forward.1} parent=0 // pred_fallthru
    _
  // Predicated region
  $region14: #{cnn_char_forward.1} parent=0 // pred_check
    _
  $region15: #{cnn_char_forward.1} parent=0 // pred_check_branch
    %21 = sbr.rel (0) target = $region17
  $region16: #{cnn_char_forward.1} parent=0 // pred_region
    _
  $region17: #{cnn_char_forward.1} parent=0 // pred_fallthru
    _
  // Predicated region
  $region18: #{cnn_char_forward.1} parent=0 // pred_check
    _
  $region19: #{cnn_char_forward.1} parent=0 // pred_check_branch
    %23 = sbr.rel (0) target = $region21
  $region20: #{cnn_char_forward.1} parent=0 // pred_region
    _
  $region21: #{cnn_char_forward.1} parent=0 // pred_fallthru
    _
  // Predicated region
  $region22: #{cnn_char_forward.1} parent=0 // pred_check
    _
  $region23: #{cnn_char_forward.1} parent=0 // pred_check_branch
    %25 = sbr.rel (0) target = $region25
  $region24: #{cnn_char_forward.1} parent=0 // pred_region
    _
  $region25: #{cnn_char_forward.1} parent=0 // pred_fallthru
    _
  // Predicated region
  $region26: #{cnn_char_forward.1} parent=0 // pred_check
    _
  $region27: #{cnn_char_forward.1} parent=0 // pred_check_branch
    %27 = sbr.rel (0) target = $region29
  $region28: #{cnn_char_forward.1} parent=0 // pred_region
    _
  $region29: #{cnn_char_forward.1} parent=0 // pred_fallthru
    _
  // Predicated region
  $region30: #{cnn_char_forward.1} parent=0 // pred_check
    _
  $region31: #{cnn_char_forward.1} parent=0 // pred_check_branch
    %29 = sbr.rel (0) target = $region33
  $region32: #{cnn_char_forward.1} parent=0 // pred_region
    _
  $region33: #{cnn_char_forward.1} parent=0 // pred_fallthru
    _
  // Predicated region
  $region34: #{cnn_char_forward.1} parent=0 // pred_check
    _
  $region35: #{cnn_char_forward.1} parent=0 // pred_check_branch
    %31 = sbr.rel (0) target = $region37
  $region36: #{cnn_char_forward.1} parent=0 // pred_region
    _
  $region37: #{cnn_char_forward.1} parent=0 // pred_fallthru
    _
  %v32 = vld [vmem:[%s2] sm:$0x3]
  %v33 = vld [vmem:[%s0] sm:$0xf]
  %v34 = vld [vmem:[%s0 + $0x4] sm:$0xf]
  %v35 = vld [vmem:[%s0 + $0x8] sm:$0xf]
  %v36 = vld [vmem:[%s0 + $0xc] sm:$0xf]
  %v37 = vld [vmem:[%s0 + $0x10] sm:$0xf]
  %v38 = vld [vmem:[%s0 + $0x14] sm:$0xf]
  %v39 = vld [vmem:[%s0 + $0x18] sm:$0xf]
  %v40 = vld [vmem:[%s0 + $0x1c] sm:$0xf]
  %v41 = vld [vmem:[%s0 + $0x20] sm:$0xf]
  %v42 = vld [vmem:[%s0 + $0x24] sm:$0xf]
  %v43 = vld [vmem:[%s0 + $0x28] sm:$0xf]
  %v44 = vld [vmem:[%s0 + $0x2c] sm:$0xf]
  %v45 = vld [vmem:[%s0 + $0x30] sm:$0xf]
  %v46 = vld [vmem:[%s0 + $0x34] sm:$0xf]
  %v47 = vld [vmem:[%s0 + $0x38] sm:$0xf]
  %v48 = vld [vmem:[%s0 + $0x3c] sm:$0xf]
  %v49 = vld [vmem:[%s0 + $0x40] sm:$0xf]
  %v50 = vld [vmem:[%s0 + $0x44] sm:$0xf]
  %v51 = vld [vmem:[%s0 + $0x48] sm:$0xf]
  %v52 = vld [vmem:[%s0 + $0x4c] sm:$0xf]
  %v53 = vld [vmem:[%s0 + $0x50] sm:$0xf]
  %v54 = vld [vmem:[%s0 + $0x54] sm:$0xf]
  %v55 = vld [vmem:[%s0 + $0x58] sm:$0xf]
  %v56 = vld [vmem:[%s0 + $0x5c] sm:$0xf]
  %v57 = vld [vmem:[%s0 + $0x60] sm:$0xf]
  %v58 = vld [vmem:[%s0 + $0x64] sm:$0xf]
  %v59 = vld [vmem:[%s0 + $0x68] sm:$0xf]
  %v60 = vld [vmem:[%s0 + $0x6c] sm:$0xf]
  %v61 = vld [vmem:[%s0 + $0x70] sm:$0xf]
  %v62 = vld [vmem:[%s0 + $0x74] sm:$0xf]
  %v63 = vld [vmem:[%s0 + $0x78] sm:$0xf]
  %v64 = vld [vmem:[%s0 + $0x7c] sm:$0xf]
  %v65 = vld [vmem:[%s1] sm:$0xff]
  %v66 = vld [vmem:[%s1 + $0x8] sm:$0xff]
  %v67 = vld [vmem:[%s1 + $0x10] sm:$0xff]
  %v68 = vld [vmem:[%s1 + $0x18] sm:$0xff]
  %v69 = vld [vmem:[%s1 + $0x20] sm:$0xff]
  %v70 = vld [vmem:[%s1 + $0x28] sm:$0xff]
  %v71 = vld [vmem:[%s1 + $0x30] sm:$0xff]
  %v72 = vld [vmem:[%s1 + $0x38] sm:$0xff]
  %v73 = vld [vmem:[%s1 + $0x40] sm:$0xff]
  %v74 = vld [vmem:[%s1 + $0x48] sm:$0xff]
  %v75 = vld [vmem:[%s1 + $0x50] sm:$0xff]
  %v76 = vld [vmem:[%s1 + $0x58] sm:$0xff]
  %v77 = vld [vmem:[%s1 + $0x60] sm:$0xff]
  %v78 = vld [vmem:[%s1 + $0x68] sm:$0xff]
  %v79 = vld [vmem:[%s1 + $0x70] sm:$0xff]
  %v80 = vld [vmem:[%s1 + $0x78] sm:$0xff]
  %v81 = vld [vmem:[%s1 + $0x80] sm:$0xff]
  %v82 = vld [vmem:[%s1 + $0x88] sm:$0xff]
  %v83 = vld [vmem:[%s1 + $0x90] sm:$0xff]
  %v84 = vld [vmem:[%s1 + $0x98] sm:$0xff]
  %v85 = vld [vmem:[%s1 + $0xa0] sm:$0xff]
  %v86 = vld [vmem:[%s1 + $0xa8] sm:$0xff]
  %v87 = vld [vmem:[%s1 + $0xb0] sm:$0xff]
  %v88 = vld [vmem:[%s1 + $0xb8] sm:$0xff]
  %v89 = vld [vmem:[%s1 + $0xc0] sm:$0xff]
  %v90 = vld [vmem:[%s1 + $0xc8] sm:$0xff]
  %v91 = vld [vmem:[%s1 + $0xd0] sm:$0xff]
  %v92 = vld [vmem:[%s1 + $0xd8] sm:$0xff]
  %v93 = vld [vmem:[%s1 + $0xe0] sm:$0xff]
  %v94 = vld [vmem:[%s1 + $0xe8] sm:$0xff]
  %v95 = vld [vmem:[%s1 + $0xf0] sm:$0xff]
  %v96 = vld [vmem:[%s1 + $0xf8] sm:$0xff]
  %v129 = vunpack.c.l.b16 %v33
  %v130 = vunpack.c.l.b16 %v34
  %v131 = vunpack.c.l.b16 %v35
  %v132 = vunpack.c.l.b16 %v36
  %v133 = vunpack.c.l.b16 %v37
  %v134 = vunpack.c.l.b16 %v38
  %v135 = vunpack.c.l.b16 %v39
  %v136 = vunpack.c.l.b16 %v40
  %v137 = vunpack.c.l.b16 %v41
  %v138 = vunpack.c.l.b16 %v42
  %v139 = vunpack.c.l.b16 %v43
  %v140 = vunpack.c.l.b16 %v44
  %v141 = vunpack.c.l.b16 %v45
  %v142 = vunpack.c.l.b16 %v46
  %v143 = vunpack.c.l.b16 %v47
  %v144 = vunpack.c.l.b16 %v48
  %v145 = vunpack.c.l.b16 %v49
  %v146 = vunpack.c.l.b16 %v50
  %v147 = vunpack.c.l.b16 %v51
  %v148 = vunpack.c.l.b16 %v52
  %v149 = vunpack.c.l.b16 %v53
  %v150 = vunpack.c.l.b16 %v54
  %v151 = vunpack.c.l.b16 %v55
  %v152 = vunpack.c.l.b16 %v56
  %v153 = vunpack.c.l.b16 %v57
  %v154 = vunpack.c.l.b16 %v58
  %v155 = vunpack.c.l.b16 %v59
  %v156 = vunpack.c.l.b16 %v60
  %v157 = vunpack.c.l.b16 %v61
  %v158 = vunpack.c.l.b16 %v62
  %v159 = vunpack.c.l.b16 %v63
  %v160 = vunpack.c.l.b16 %v64
  %v161 = vpack.c.b16 %v130, %v129
  %v162 = vpack.c.b16 %v132, %v131
  %v163 = vpack.c.b16 %v134, %v133
  %v164 = vpack.c.b16 %v136, %v135
  %v165 = vpack.c.b16 %v138, %v137
  %v166 = vpack.c.b16 %v140, %v139
  %v167 = vpack.c.b16 %v142, %v141
  %v168 = vpack.c.b16 %v144, %v143
  %v169 = vpack.c.b16 %v146, %v145
  %v170 = vpack.c.b16 %v148, %v147
  %v171 = vpack.c.b16 %v150, %v149
  %v172 = vpack.c.b16 %v152, %v151
  %v173 = vpack.c.b16 %v154, %v153
  %v174 = vpack.c.b16 %v156, %v155
  %v175 = vpack.c.b16 %v158, %v157
  %v176 = vpack.c.b16 %v160, %v159
  %v225 = vunpack.c.l.b16 %v65
  %v226 = vunpack.c.h.b16 %v65
  %v227 = vunpack.c.l.b16 %v66
  %v228 = vunpack.c.h.b16 %v66
  %v229 = vunpack.c.l.b16 %v67
  %v230 = vunpack.c.h.b16 %v67
  %v231 = vunpack.c.l.b16 %v68
  %v232 = vunpack.c.h.b16 %v68
  %v233 = vunpack.c.l.b16 %v69
  %v234 = vunpack.c.h.b16 %v69
  %v235 = vunpack.c.l.b16 %v70
  %v236 = vunpack.c.h.b16 %v70
  %v237 = vunpack.c.l.b16 %v71
  %v238 = vunpack.c.h.b16 %v71
  %v239 = vunpack.c.l.b16 %v72
  %v240 = vunpack.c.h.b16 %v72
  %v241 = vunpack.c.l.b16 %v73
  %v242 = vunpack.c.h.b16 %v73
  %v243 = vunpack.c.l.b16 %v74
  %v244 = vunpack.c.h.b16 %v74
  %v245 = vunpack.c.l.b16 %v75
  %v246 = vunpack.c.h.b16 %v75
  %v247 = vunpack.c.l.b16 %v76
  %v248 = vunpack.c.h.b16 %v76
  %v249 = vunpack.c.l.b16 %v77
  %v250 = vunpack.c.h.b16 %v77
  %v251 = vunpack.c.l.b16 %v78
  %v252 = vunpack.c.h.b16 %v78
  %v253 = vunpack.c.l.b16 %v79
  %v254 = vunpack.c.h.b16 %v79
  %v255 = vunpack.c.l.b16 %v80
  %v256 = vunpack.c.h.b16 %v80
  %v257 = vunpack.c.l.b16 %v81
  %v258 = vunpack.c.h.b16 %v81
  %v259 = vunpack.c.l.b16 %v82
  %v260 = vunpack.c.h.b16 %v82
  %v261 = vunpack.c.l.b16 %v83
  %v262 = vunpack.c.h.b16 %v83
  %v263 = vunpack.c.l.b16 %v84
  %v264 = vunpack.c.h.b16 %v84
  %v265 = vunpack.c.l.b16 %v85
  %v266 = vunpack.c.h.b16 %v85
  %v267 = vunpack.c.l.b16 %v86
  %v268 = vunpack.c.h.b16 %v86
  %v269 = vunpack.c.l.b16 %v87
  %v270 = vunpack.c.h.b16 %v87
  %v271 = vunpack.c.l.b16 %v88
  %v272 = vunpack.c.h.b16 %v88
  %v273 = vunpack.c.l.b16 %v89
  %v274 = vunpack.c.h.b16 %v89
  %v275 = vunpack.c.l.b16 %v90
  %v276 = vunpack.c.h.b16 %v90
  %v277 = vunpack.c.l.b16 %v91
  %v278 = vunpack.c.h.b16 %v91
  %v279 = vunpack.c.l.b16 %v92
  %v280 = vunpack.c.h.b16 %v92
  %v281 = vunpack.c.l.b16 %v93
  %v282 = vunpack.c.h.b16 %v93
  %v283 = vunpack.c.l.b16 %v94
  %v284 = vunpack.c.h.b16 %v94
  %v285 = vunpack.c.l.b16 %v95
  %v286 = vunpack.c.h.b16 %v95
  %v287 = vunpack.c.l.b16 %v96
  %v288 = vunpack.c.h.b16 %v96
  %v289 = vpack.c.b16 %v229, %v225
  %v290 = vpack.c.b16 %v230, %v226
  %v291 = vpack.c.b16 %v231, %v227
  %v292 = vpack.c.b16 %v232, %v228
  %v293 = vpack.c.b16 %v237, %v233
  %v294 = vpack.c.b16 %v238, %v234
  %v295 = vpack.c.b16 %v239, %v235
  %v296 = vpack.c.b16 %v240, %v236
  %v297 = vpack.c.b16 %v245, %v241
  %v298 = vpack.c.b16 %v246, %v242
  %v299 = vpack.c.b16 %v247, %v243
  %v300 = vpack.c.b16 %v248, %v244
  %v301 = vpack.c.b16 %v253, %v249
  %v302 = vpack.c.b16 %v254, %v250
  %v303 = vpack.c.b16 %v255, %v251
  %v304 = vpack.c.b16 %v256, %v252
  %v305 = vpack.c.b16 %v261, %v257
  %v306 = vpack.c.b16 %v262, %v258
  %v307 = vpack.c.b16 %v263, %v259
  %v308 = vpack.c.b16 %v264, %v260
  %v309 = vpack.c.b16 %v269, %v265
  %v310 = vpack.c.b16 %v270, %v266
  %v311 = vpack.c.b16 %v271, %v267
  %v312 = vpack.c.b16 %v272, %v268
  %v313 = vpack.c.b16 %v277, %v273
  %v314 = vpack.c.b16 %v278, %v274
  %v315 = vpack.c.b16 %v279, %v275
  %v316 = vpack.c.b16 %v280, %v276
  %v317 = vpack.c.b16 %v285, %v281
  %v318 = vpack.c.b16 %v286, %v282
  %v319 = vpack.c.b16 %v287, %v283
  %v320 = vpack.c.b16 %v288, %v284
  %353 = vmatpush.bf16.msra.mxu0 %v317
  %354 = vmatpush.bf16.msra.mxu0 %v313
  %355 = vmatpush.bf16.msra.mxu0 %v309
  %356 = vmatpush.bf16.msra.mxu0 %v305
  %357 = vmatpush.bf16.msra.mxu0 %v301
  %358 = vmatpush.bf16.msra.mxu0 %v297
  %359 = vmatpush.bf16.msra.mxu0 %v293
  %360 = vmatpush.bf16.msra.mxu0 %v289
  %361 = vmatmul.bf16.gmra.mxu0 %v161
  %v362 = vpop.f32.mrf.mxu0
  %v363 = vadd.f32 0.0, %v362
  %v364 = vpop.f32.mrf.mxu0
  %v365 = vadd.f32 0.0, %v364
  %366 = vmatmul.bf16.gmra.mxu0 %v162
  %v367 = vpop.f32.mrf.mxu0
  %v368 = vadd.f32 0.0, %v367
  %v369 = vpop.f32.mrf.mxu0
  %v370 = vadd.f32 0.0, %v369
  %371 = vmatmul.bf16.gmra.mxu0 %v163
  %v372 = vpop.f32.mrf.mxu0
  %v373 = vadd.f32 0.0, %v372
  %v374 = vpop.f32.mrf.mxu0
  %v375 = vadd.f32 0.0, %v374
  %376 = vmatmul.bf16.gmra.mxu0 %v164
  %v377 = vpop.f32.mrf.mxu0
  %v378 = vadd.f32 0.0, %v377
  %v379 = vpop.f32.mrf.mxu0
  %v380 = vadd.f32 0.0, %v379
  %381 = vmatmul.bf16.gmra.mxu0 %v165
  %v382 = vpop.f32.mrf.mxu0
  %v383 = vadd.f32 0.0, %v382
  %v384 = vpop.f32.mrf.mxu0
  %v385 = vadd.f32 0.0, %v384
  %386 = vmatmul.bf16.gmra.mxu0 %v166
  %v387 = vpop.f32.mrf.mxu0
  %v388 = vadd.f32 0.0, %v387
  %v389 = vpop.f32.mrf.mxu0
  %v390 = vadd.f32 0.0, %v389
  %391 = vmatmul.bf16.gmra.mxu0 %v167
  %v392 = vpop.f32.mrf.mxu0
  %v393 = vadd.f32 0.0, %v392
  %v394 = vpop.f32.mrf.mxu0
  %v395 = vadd.f32 0.0, %v394
  %396 = vmatmul.bf16.gmra.mxu0 %v168
  %v397 = vpop.f32.mrf.mxu0
  %v398 = vadd.f32 0.0, %v397
  %v399 = vpop.f32.mrf.mxu0
  %v400 = vadd.f32 0.0, %v399
  %401 = vmatmul.bf16.gmra.mxu0 %v169
  %v402 = vpop.f32.mrf.mxu0
  %v403 = vadd.f32 0.0, %v402
  %v404 = vpop.f32.mrf.mxu0
  %v405 = vadd.f32 0.0, %v404
  %406 = vmatmul.bf16.gmra.mxu0 %v170
  %v407 = vpop.f32.mrf.mxu0
  %v408 = vadd.f32 0.0, %v407
  %v409 = vpop.f32.mrf.mxu0
  %v410 = vadd.f32 0.0, %v409
  %411 = vmatmul.bf16.gmra.mxu0 %v171
  %v412 = vpop.f32.mrf.mxu0
  %v413 = vadd.f32 0.0, %v412
  %v414 = vpop.f32.mrf.mxu0
  %v415 = vadd.f32 0.0, %v414
  %416 = vmatmul.bf16.gmra.mxu0 %v172
  %v417 = vpop.f32.mrf.mxu0
  %v418 = vadd.f32 0.0, %v417
  %v419 = vpop.f32.mrf.mxu0
  %v420 = vadd.f32 0.0, %v419
  %421 = vmatmul.bf16.gmra.mxu0 %v173
  %v422 = vpop.f32.mrf.mxu0
  %v423 = vadd.f32 0.0, %v422
  %v424 = vpop.f32.mrf.mxu0
  %v425 = vadd.f32 0.0, %v424
  %426 = vmatmul.bf16.gmra.mxu0 %v174
  %v427 = vpop.f32.mrf.mxu0
  %v428 = vadd.f32 0.0, %v427
  %v429 = vpop.f32.mrf.mxu0
  %v430 = vadd.f32 0.0, %v429
  %431 = vmatmul.bf16.gmra.mxu0 %v175
  %v432 = vpop.f32.mrf.mxu0
  %v433 = vadd.f32 0.0, %v432
  %v434 = vpop.f32.mrf.mxu0
  %v435 = vadd.f32 0.0, %v434
  %436 = vmatmul.bf16.gmra.mxu0 %v176
  %v437 = vpop.f32.mrf.mxu0
  %v438 = vadd.f32 0.0, %v437
  %v439 = vpop.f32.mrf.mxu0
  %v440 = vadd.f32 0.0, %v439
  %441 = vdwg.mxu0
  %442 = vmatpush.bf16.msra.mxu0 %v318
  %443 = vmatpush.bf16.msra.mxu0 %v314
  %444 = vmatpush.bf16.msra.mxu0 %v310
  %445 = vmatpush.bf16.msra.mxu0 %v306
  %446 = vmatpush.bf16.msra.mxu0 %v302
  %447 = vmatpush.bf16.msra.mxu0 %v298
  %448 = vmatpush.bf16.msra.mxu0 %v294
  %449 = vmatpush.bf16.msra.mxu0 %v290
  %450 = vmatmul.bf16.gmra.mxu0 %v161
  %v451 = vpop.f32.mrf.mxu0
  %v452 = vadd.f32 0.0, %v451
  %v453 = vpop.f32.mrf.mxu0
  %v454 = vadd.f32 0.0, %v453
  %455 = vmatmul.bf16.gmra.mxu0 %v162
  %v456 = vpop.f32.mrf.mxu0
  %v457 = vadd.f32 0.0, %v456
  %v458 = vpop.f32.mrf.mxu0
  %v459 = vadd.f32 0.0, %v458
  %460 = vmatmul.bf16.gmra.mxu0 %v163
  %v461 = vpop.f32.mrf.mxu0
  %v462 = vadd.f32 0.0, %v461
  %v463 = vpop.f32.mrf.mxu0
  %v464 = vadd.f32 0.0, %v463
  %465 = vmatmul.bf16.gmra.mxu0 %v164
  %v466 = vpop.f32.mrf.mxu0
  %v467 = vadd.f32 0.0, %v466
  %v468 = vpop.f32.mrf.mxu0
  %v469 = vadd.f32 0.0, %v468
  %470 = vmatmul.bf16.gmra.mxu0 %v165
  %v471 = vpop.f32.mrf.mxu0
  %v472 = vadd.f32 0.0, %v471
  %v473 = vpop.f32.mrf.mxu0
  %v474 = vadd.f32 0.0, %v473
  %475 = vmatmul.bf16.gmra.mxu0 %v166
  %v476 = vpop.f32.mrf.mxu0
  %v477 = vadd.f32 0.0, %v476
  %v478 = vpop.f32.mrf.mxu0
  %v479 = vadd.f32 0.0, %v478
  %480 = vmatmul.bf16.gmra.mxu0 %v167
  %v481 = vpop.f32.mrf.mxu0
  %v482 = vadd.f32 0.0, %v481
  %v483 = vpop.f32.mrf.mxu0
  %v484 = vadd.f32 0.0, %v483
  %485 = vmatmul.bf16.gmra.mxu0 %v168
  %v486 = vpop.f32.mrf.mxu0
  %v487 = vadd.f32 0.0, %v486
  %v488 = vpop.f32.mrf.mxu0
  %v489 = vadd.f32 0.0, %v488
  %490 = vmatmul.bf16.gmra.mxu0 %v169
  %v491 = vpop.f32.mrf.mxu0
  %v492 = vadd.f32 0.0, %v491
  %v493 = vpop.f32.mrf.mxu0
  %v494 = vadd.f32 0.0, %v493
  %495 = vmatmul.bf16.gmra.mxu0 %v170
  %v496 = vpop.f32.mrf.mxu0
  %v497 = vadd.f32 0.0, %v496
  %v498 = vpop.f32.mrf.mxu0
  %v499 = vadd.f32 0.0, %v498
  %500 = vmatmul.bf16.gmra.mxu0 %v171
  %v501 = vpop.f32.mrf.mxu0
  %v502 = vadd.f32 0.0, %v501
  %v503 = vpop.f32.mrf.mxu0
  %v504 = vadd.f32 0.0, %v503
  %505 = vmatmul.bf16.gmra.mxu0 %v172
  %v506 = vpop.f32.mrf.mxu0
  %v507 = vadd.f32 0.0, %v506
  %v508 = vpop.f32.mrf.mxu0
  %v509 = vadd.f32 0.0, %v508
  %510 = vmatmul.bf16.gmra.mxu0 %v173
  %v511 = vpop.f32.mrf.mxu0
  %v512 = vadd.f32 0.0, %v511
  %v513 = vpop.f32.mrf.mxu0
  %v514 = vadd.f32 0.0, %v513
  %515 = vmatmul.bf16.gmra.mxu0 %v174
  %v516 = vpop.f32.mrf.mxu0
  %v517 = vadd.f32 0.0, %v516
  %v518 = vpop.f32.mrf.mxu0
  %v519 = vadd.f32 0.0, %v518
  %520 = vmatmul.bf16.gmra.mxu0 %v175
  %v521 = vpop.f32.mrf.mxu0
  %v522 = vadd.f32 0.0, %v521
  %v523 = vpop.f32.mrf.mxu0
  %v524 = vadd.f32 0.0, %v523
  %525 = vmatmul.bf16.gmra.mxu0 %v176
  %v526 = vpop.f32.mrf.mxu0
  %v527 = vadd.f32 0.0, %v526
  %v528 = vpop.f32.mrf.mxu0
  %v529 = vadd.f32 0.0, %v528
  %530 = vdwg.mxu0
  %531 = vmatpush.bf16.msra.mxu0 %v319
  %532 = vmatpush.bf16.msra.mxu0 %v315
  %533 = vmatpush.bf16.msra.mxu0 %v311
  %534 = vmatpush.bf16.msra.mxu0 %v307
  %535 = vmatpush.bf16.msra.mxu0 %v303
  %536 = vmatpush.bf16.msra.mxu0 %v299
  %537 = vmatpush.bf16.msra.mxu0 %v295
  %538 = vmatpush.bf16.msra.mxu0 %v291
  %539 = vmatmul.bf16.gmra.mxu0 %v161
  %v540 = vpop.f32.mrf.mxu0
  %v541 = vadd.f32 0.0, %v540
  %v542 = vpop.f32.mrf.mxu0
  %v543 = vadd.f32 0.0, %v542
  %544 = vmatmul.bf16.gmra.mxu0 %v162
  %v545 = vpop.f32.mrf.mxu0
  %v546 = vadd.f32 0.0, %v545
  %v547 = vpop.f32.mrf.mxu0
  %v548 = vadd.f32 0.0, %v547
  %549 = vmatmul.bf16.gmra.mxu0 %v163
  %v550 = vpop.f32.mrf.mxu0
  %v551 = vadd.f32 0.0, %v550
  %v552 = vpop.f32.mrf.mxu0
  %v553 = vadd.f32 0.0, %v552
  %554 = vmatmul.bf16.gmra.mxu0 %v164
  %v555 = vpop.f32.mrf.mxu0
  %v556 = vadd.f32 0.0, %v555
  %v557 = vpop.f32.mrf.mxu0
  %v558 = vadd.f32 0.0, %v557
  %559 = vmatmul.bf16.gmra.mxu0 %v165
  %v560 = vpop.f32.mrf.mxu0
  %v561 = vadd.f32 0.0, %v560
  %v562 = vpop.f32.mrf.mxu0
  %v563 = vadd.f32 0.0, %v562
  %564 = vmatmul.bf16.gmra.mxu0 %v166
  %v565 = vpop.f32.mrf.mxu0
  %v566 = vadd.f32 0.0, %v565
  %v567 = vpop.f32.mrf.mxu0
  %v568 = vadd.f32 0.0, %v567
  %569 = vmatmul.bf16.gmra.mxu0 %v167
  %v570 = vpop.f32.mrf.mxu0
  %v571 = vadd.f32 0.0, %v570
  %v572 = vpop.f32.mrf.mxu0
  %v573 = vadd.f32 0.0, %v572
  %574 = vmatmul.bf16.gmra.mxu0 %v168
  %v575 = vpop.f32.mrf.mxu0
  %v576 = vadd.f32 0.0, %v575
  %v577 = vpop.f32.mrf.mxu0
  %v578 = vadd.f32 0.0, %v577
  %579 = vmatmul.bf16.gmra.mxu0 %v169
  %v580 = vpop.f32.mrf.mxu0
  %v581 = vadd.f32 0.0, %v580
  %v582 = vpop.f32.mrf.mxu0
  %v583 = vadd.f32 0.0, %v582
  %584 = vmatmul.bf16.gmra.mxu0 %v170
  %v585 = vpop.f32.mrf.mxu0
  %v586 = vadd.f32 0.0, %v585
  %v587 = vpop.f32.mrf.mxu0
  %v588 = vadd.f32 0.0, %v587
  %589 = vmatmul.bf16.gmra.mxu0 %v171
  %v590 = vpop.f32.mrf.mxu0
  %v591 = vadd.f32 0.0, %v590
  %v592 = vpop.f32.mrf.mxu0
  %v593 = vadd.f32 0.0, %v592
  %594 = vmatmul.bf16.gmra.mxu0 %v172
  %v595 = vpop.f32.mrf.mxu0
  %v596 = vadd.f32 0.0, %v595
  %v597 = vpop.f32.mrf.mxu0
  %v598 = vadd.f32 0.0, %v597
  %599 = vmatmul.bf16.gmra.mxu0 %v173
  %v600 = vpop.f32.mrf.mxu0
  %v601 = vadd.f32 0.0, %v600
  %v602 = vpop.f32.mrf.mxu0
  %v603 = vadd.f32 0.0, %v602
  %604 = vmatmul.bf16.gmra.mxu0 %v174
  %v605 = vpop.f32.mrf.mxu0
  %v606 = vadd.f32 0.0, %v605
  %v607 = vpop.f32.mrf.mxu0
  %v608 = vadd.f32 0.0, %v607
  %609 = vmatmul.bf16.gmra.mxu0 %v175
  %v610 = vpop.f32.mrf.mxu0
  %v611 = vadd.f32 0.0, %v610
  %v612 = vpop.f32.mrf.mxu0
  %v613 = vadd.f32 0.0, %v612
  %614 = vmatmul.bf16.gmra.mxu0 %v176
  %v615 = vpop.f32.mrf.mxu0
  %v616 = vadd.f32 0.0, %v615
  %v617 = vpop.f32.mrf.mxu0
  %v618 = vadd.f32 0.0, %v617
  %619 = vdwg.mxu0
  %620 = vmatpush.bf16.msra.mxu0 %v320
  %621 = vmatpush.bf16.msra.mxu0 %v316
  %622 = vmatpush.bf16.msra.mxu0 %v312
  %623 = vmatpush.bf16.msra.mxu0 %v308
  %624 = vmatpush.bf16.msra.mxu0 %v304
  %625 = vmatpush.bf16.msra.mxu0 %v300
  %626 = vmatpush.bf16.msra.mxu0 %v296
  %627 = vmatpush.bf16.msra.mxu0 %v292
  %628 = vmatmul.bf16.gmra.mxu0 %v161
  %v629 = vpop.f32.mrf.mxu0
  %v630 = vadd.f32 0.0, %v629
  %v631 = vpop.f32.mrf.mxu0
  %v632 = vadd.f32 0.0, %v631
  %633 = vmatmul.bf16.gmra.mxu0 %v162
  %v634 = vpop.f32.mrf.mxu0
  %v635 = vadd.f32 0.0, %v634
  %v636 = vpop.f32.mrf.mxu0
  %v637 = vadd.f32 0.0, %v636
  %638 = vmatmul.bf16.gmra.mxu0 %v163
  %v639 = vpop.f32.mrf.mxu0
  %v640 = vadd.f32 0.0, %v639
  %v641 = vpop.f32.mrf.mxu0
  %v642 = vadd.f32 0.0, %v641
  %643 = vmatmul.bf16.gmra.mxu0 %v164
  %v644 = vpop.f32.mrf.mxu0
  %v645 = vadd.f32 0.0, %v644
  %v646 = vpop.f32.mrf.mxu0
  %v647 = vadd.f32 0.0, %v646
  %648 = vmatmul.bf16.gmra.mxu0 %v165
  %v649 = vpop.f32.mrf.mxu0
  %v650 = vadd.f32 0.0, %v649
  %v651 = vpop.f32.mrf.mxu0
  %v652 = vadd.f32 0.0, %v651
  %653 = vmatmul.bf16.gmra.mxu0 %v166
  %v654 = vpop.f32.mrf.mxu0
  %v655 = vadd.f32 0.0, %v654
  %v656 = vpop.f32.mrf.mxu0
  %v657 = vadd.f32 0.0, %v656
  %658 = vmatmul.bf16.gmra.mxu0 %v167
  %v659 = vpop.f32.mrf.mxu0
  %v660 = vadd.f32 0.0, %v659
  %v661 = vpop.f32.mrf.mxu0
  %v662 = vadd.f32 0.0, %v661
  %663 = vmatmul.bf16.gmra.mxu0 %v168
  %v664 = vpop.f32.mrf.mxu0
  %v665 = vadd.f32 0.0, %v664
  %v666 = vpop.f32.mrf.mxu0
  %v667 = vadd.f32 0.0, %v666
  %668 = vmatmul.bf16.gmra.mxu0 %v169
  %v669 = vpop.f32.mrf.mxu0
  %v670 = vadd.f32 0.0, %v669
  %v671 = vpop.f32.mrf.mxu0
  %v672 = vadd.f32 0.0, %v671
  %673 = vmatmul.bf16.gmra.mxu0 %v170
  %v674 = vpop.f32.mrf.mxu0
  %v675 = vadd.f32 0.0, %v674
  %v676 = vpop.f32.mrf.mxu0
  %v677 = vadd.f32 0.0, %v676
  %678 = vmatmul.bf16.gmra.mxu0 %v171
  %v679 = vpop.f32.mrf.mxu0
  %v680 = vadd.f32 0.0, %v679
  %v681 = vpop.f32.mrf.mxu0
  %v682 = vadd.f32 0.0, %v681
  %683 = vmatmul.bf16.gmra.mxu0 %v172
  %v684 = vpop.f32.mrf.mxu0
  %v685 = vadd.f32 0.0, %v684
  %v686 = vpop.f32.mrf.mxu0
  %v687 = vadd.f32 0.0, %v686
  %688 = vmatmul.bf16.gmra.mxu0 %v173
  %v689 = vpop.f32.mrf.mxu0
  %v690 = vadd.f32 0.0, %v689
  %v691 = vpop.f32.mrf.mxu0
  %v692 = vadd.f32 0.0, %v691
  %693 = vmatmul.bf16.gmra.mxu0 %v174
  %v694 = vpop.f32.mrf.mxu0
  %v695 = vadd.f32 0.0, %v694
  %v696 = vpop.f32.mrf.mxu0
  %v697 = vadd.f32 0.0, %v696
  %698 = vmatmul.bf16.gmra.mxu0 %v175
  %v699 = vpop.f32.mrf.mxu0
  %v700 = vadd.f32 0.0, %v699
  %v701 = vpop.f32.mrf.mxu0
  %v702 = vadd.f32 0.0, %v701
  %703 = vmatmul.bf16.gmra.mxu0 %v176
  %v704 = vpop.f32.mrf.mxu0
  %v705 = vadd.f32 0.0, %v704
  %v706 = vpop.f32.mrf.mxu0
  %v707 = vadd.f32 0.0, %v706
  %708 = vdwg.mxu0
  %v709 = vmax.f32 %v363, %v541
  %v710 = vmax.f32 %v452, %v630
  %v711 = vmax.f32 %v365, %v543
  %v712 = vmax.f32 %v454, %v632
  %v713 = vmax.f32 %v368, %v546
  %v714 = vmax.f32 %v457, %v635
  %v715 = vmax.f32 %v370, %v548
  %v716 = vmax.f32 %v459, %v637
  %v717 = vmax.f32 %v373, %v551
  %v718 = vmax.f32 %v462, %v640
  %v719 = vmax.f32 %v375, %v553
  %v720 = vmax.f32 %v464, %v642
  %v721 = vmax.f32 %v378, %v556
  %v722 = vmax.f32 %v467, %v645
  %v723 = vmax.f32 %v380, %v558
  %v724 = vmax.f32 %v469, %v647
  %v725 = vmax.f32 %v383, %v561
  %v726 = vmax.f32 %v472, %v650
  %v727 = vmax.f32 %v385, %v563
  %v728 = vmax.f32 %v474, %v652
  %v729 = vmax.f32 %v388, %v566
  %v730 = vmax.f32 %v477, %v655
  %v731 = vmax.f32 %v390, %v568
  %v732 = vmax.f32 %v479, %v657
  %v733 = vmax.f32 %v393, %v571
  %v734 = vmax.f32 %v482, %v660
  %v735 = vmax.f32 %v395, %v573
  %v736 = vmax.f32 %v484, %v662
  %v737 = vmax.f32 %v398, %v576
  %v738 = vmax.f32 %v487, %v665
  %v739 = vmax.f32 %v400, %v578
  %v740 = vmax.f32 %v489, %v667
  %v741 = vmax.f32 %v403, %v581
  %v742 = vmax.f32 %v492, %v670
  %v743 = vmax.f32 %v405, %v583
  %v744 = vmax.f32 %v494, %v672
  %v745 = vmax.f32 %v408, %v586
  %v746 = vmax.f32 %v497, %v675
  %v747 = vmax.f32 %v410, %v588
  %v748 = vmax.f32 %v499, %v677
  %v749 = vmax.f32 %v413, %v591
  %v750 = vmax.f32 %v502, %v680
  %v751 = vmax.f32 %v415, %v593
  %v752 = vmax.f32 %v504, %v682
  %v753 = vmax.f32 %v418, %v596
  %v754 = vmax.f32 %v507, %v685
  %v755 = vmax.f32 %v420, %v598
  %v756 = vmax.f32 %v509, %v687
  %v757 = vmax.f32 %v423, %v601
  %v758 = vmax.f32 %v512, %v690
  %v759 = vmax.f32 %v425, %v603
  %v760 = vmax.f32 %v514, %v692
  %v761 = vmax.f32 %v428, %v606
  %v762 = vmax.f32 %v517, %v695
  %v763 = vmax.f32 %v430, %v608
  %v764 = vmax.f32 %v519, %v697
  %v765 = vmax.f32 %v433, %v611
  %v766 = vmax.f32 %v522, %v700
  %v767 = vmax.f32 %v435, %v613
  %v768 = vmax.f32 %v524, %v702
  %v769 = vmax.f32 %v438, %v616
  %v770 = vmax.f32 %v527, %v705
  %v771 = vmax.f32 %v440, %v618
  %v772 = vmax.f32 %v529, %v707
  %s773 = scalar_lea.vmem %s0, 128
  %v774 = vld [vmem:[%s773] sm:$0xf]
  %v775 = vld [vmem:[%s773 + $0x4] sm:$0xf]
  %v776 = vld [vmem:[%s773 + $0x8] sm:$0xf]
  %v777 = vld [vmem:[%s773 + $0xc] sm:$0xf]
  %v778 = vld [vmem:[%s773 + $0x10] sm:$0xf]
  %v779 = vld [vmem:[%s773 + $0x14] sm:$0xf]
  %v780 = vld [vmem:[%s773 + $0x18] sm:$0xf]
  %v781 = vld [vmem:[%s773 + $0x1c] sm:$0xf]
  %v782 = vld [vmem:[%s773 + $0x20] sm:$0xf]
  %v783 = vld [vmem:[%s773 + $0x24] sm:$0xf]
  %v784 = vld [vmem:[%s773 + $0x28] sm:$0xf]
  %v785 = vld [vmem:[%s773 + $0x2c] sm:$0xf]
  %v786 = vld [vmem:[%s773 + $0x30] sm:$0xf]
  %v787 = vld [vmem:[%s773 + $0x34] sm:$0xf]
  %v788 = vld [vmem:[%s773 + $0x38] sm:$0xf]
  %v789 = vld [vmem:[%s773 + $0x3c] sm:$0xf]
  %v790 = vld [vmem:[%s773 + $0x40] sm:$0xf]
  %v791 = vld [vmem:[%s773 + $0x44] sm:$0xf]
  %v792 = vld [vmem:[%s773 + $0x48] sm:$0xf]
  %v793 = vld [vmem:[%s773 + $0x4c] sm:$0xf]
  %v794 = vld [vmem:[%s773 + $0x50] sm:$0xf]
  %v795 = vld [vmem:[%s773 + $0x54] sm:$0xf]
  %v796 = vld [vmem:[%s773 + $0x58] sm:$0xf]
  %v797 = vld [vmem:[%s773 + $0x5c] sm:$0xf]
  %v798 = vld [vmem:[%s773 + $0x60] sm:$0xf]
  %v799 = vld [vmem:[%s773 + $0x64] sm:$0xf]
  %v800 = vld [vmem:[%s773 + $0x68] sm:$0xf]
  %v801 = vld [vmem:[%s773 + $0x6c] sm:$0xf]
  %v802 = vld [vmem:[%s773 + $0x70] sm:$0xf]
  %v803 = vld [vmem:[%s773 + $0x74] sm:$0xf]
  %v804 = vld [vmem:[%s773 + $0x78] sm:$0xf]
  %v805 = vld [vmem:[%s773 + $0x7c] sm:$0xf]
  %v838 = vunpack.c.l.b16 %v774
  %v839 = vunpack.c.l.b16 %v775
  %v840 = vunpack.c.l.b16 %v776
  %v841 = vunpack.c.l.b16 %v777
  %v842 = vunpack.c.l.b16 %v778
  %v843 = vunpack.c.l.b16 %v779
  %v844 = vunpack.c.l.b16 %v780
  %v845 = vunpack.c.l.b16 %v781
  %v846 = vunpack.c.l.b16 %v782
  %v847 = vunpack.c.l.b16 %v783
  %v848 = vunpack.c.l.b16 %v784
  %v849 = vunpack.c.l.b16 %v785
  %v850 = vunpack.c.l.b16 %v786
  %v851 = vunpack.c.l.b16 %v787
  %v852 = vunpack.c.l.b16 %v788
  %v853 = vunpack.c.l.b16 %v789
  %v854 = vunpack.c.l.b16 %v790
  %v855 = vunpack.c.l.b16 %v791
  %v856 = vunpack.c.l.b16 %v792
  %v857 = vunpack.c.l.b16 %v793
  %v858 = vunpack.c.l.b16 %v794
  %v859 = vunpack.c.l.b16 %v795
  %v860 = vunpack.c.l.b16 %v796
  %v861 = vunpack.c.l.b16 %v797
  %v862 = vunpack.c.l.b16 %v798
  %v863 = vunpack.c.l.b16 %v799
  %v864 = vunpack.c.l.b16 %v800
  %v865 = vunpack.c.l.b16 %v801
  %v866 = vunpack.c.l.b16 %v802
  %v867 = vunpack.c.l.b16 %v803
  %v868 = vunpack.c.l.b16 %v804
  %v869 = vunpack.c.l.b16 %v805
  %v870 = vpack.c.b16 %v839, %v838
  %v871 = vpack.c.b16 %v841, %v840
  %v872 = vpack.c.b16 %v843, %v842
  %v873 = vpack.c.b16 %v845, %v844
  %v874 = vpack.c.b16 %v847, %v846
  %v875 = vpack.c.b16 %v849, %v848
  %v876 = vpack.c.b16 %v851, %v850
  %v877 = vpack.c.b16 %v853, %v852
  %v878 = vpack.c.b16 %v855, %v854
  %v879 = vpack.c.b16 %v857, %v856
  %v880 = vpack.c.b16 %v859, %v858
  %v881 = vpack.c.b16 %v861, %v860
  %v882 = vpack.c.b16 %v863, %v862
  %v883 = vpack.c.b16 %v865, %v864
  %v884 = vpack.c.b16 %v867, %v866
  %v885 = vpack.c.b16 %v869, %v868
  %902 = vmatpush.bf16.msra.mxu0 %v317
  %903 = vmatpush.bf16.msra.mxu0 %v313
  %904 = vmatpush.bf16.msra.mxu0 %v309
  %905 = vmatpush.bf16.msra.mxu0 %v305
  %906 = vmatpush.bf16.msra.mxu0 %v301
  %907 = vmatpush.bf16.msra.mxu0 %v297
  %908 = vmatpush.bf16.msra.mxu0 %v293
  %909 = vmatpush.bf16.msra.mxu0 %v289
  %910 = vmatmul.bf16.gmra.mxu0 %v870
  %v911 = vpop.f32.mrf.mxu0
  %v912 = vadd.f32 0.0, %v911
  %v913 = vpop.f32.mrf.mxu0
  %v914 = vadd.f32 0.0, %v913
  %915 = vmatmul.bf16.gmra.mxu0 %v871
  %v916 = vpop.f32.mrf.mxu0
  %v917 = vadd.f32 0.0, %v916
  %v918 = vpop.f32.mrf.mxu0
  %v919 = vadd.f32 0.0, %v918
  %920 = vmatmul.bf16.gmra.mxu0 %v872
  %v921 = vpop.f32.mrf.mxu0
  %v922 = vadd.f32 0.0, %v921
  %v923 = vpop.f32.mrf.mxu0
  %v924 = vadd.f32 0.0, %v923
  %925 = vmatmul.bf16.gmra.mxu0 %v873
  %v926 = vpop.f32.mrf.mxu0
  %v927 = vadd.f32 0.0, %v926
  %v928 = vpop.f32.mrf.mxu0
  %v929 = vadd.f32 0.0, %v928
  %930 = vmatmul.bf16.gmra.mxu0 %v874
  %v931 = vpop.f32.mrf.mxu0
  %v932 = vadd.f32 0.0, %v931
  %v933 = vpop.f32.mrf.mxu0
  %v934 = vadd.f32 0.0, %v933
  %935 = vmatmul.bf16.gmra.mxu0 %v875
  %v936 = vpop.f32.mrf.mxu0
  %v937 = vadd.f32 0.0, %v936
  %v938 = vpop.f32.mrf.mxu0
  %v939 = vadd.f32 0.0, %v938
  %940 = vmatmul.bf16.gmra.mxu0 %v876
  %v941 = vpop.f32.mrf.mxu0
  %v942 = vadd.f32 0.0, %v941
  %v943 = vpop.f32.mrf.mxu0
  %v944 = vadd.f32 0.0, %v943
  %945 = vmatmul.bf16.gmra.mxu0 %v877
  %v946 = vpop.f32.mrf.mxu0
  %v947 = vadd.f32 0.0, %v946
  %v948 = vpop.f32.mrf.mxu0
  %v949 = vadd.f32 0.0, %v948
  %950 = vmatmul.bf16.gmra.mxu0 %v878
  %v951 = vpop.f32.mrf.mxu0
  %v952 = vadd.f32 0.0, %v951
  %v953 = vpop.f32.mrf.mxu0
  %v954 = vadd.f32 0.0, %v953
  %955 = vmatmul.bf16.gmra.mxu0 %v879
  %v956 = vpop.f32.mrf.mxu0
  %v957 = vadd.f32 0.0, %v956
  %v958 = vpop.f32.mrf.mxu0
  %v959 = vadd.f32 0.0, %v958
  %960 = vmatmul.bf16.gmra.mxu0 %v880
  %v961 = vpop.f32.mrf.mxu0
  %v962 = vadd.f32 0.0, %v961
  %v963 = vpop.f32.mrf.mxu0
  %v964 = vadd.f32 0.0, %v963
  %965 = vmatmul.bf16.gmra.mxu0 %v881
  %v966 = vpop.f32.mrf.mxu0
  %v967 = vadd.f32 0.0, %v966
  %v968 = vpop.f32.mrf.mxu0
  %v969 = vadd.f32 0.0, %v968
  %970 = vmatmul.bf16.gmra.mxu0 %v882
  %v971 = vpop.f32.mrf.mxu0
  %v972 = vadd.f32 0.0, %v971
  %v973 = vpop.f32.mrf.mxu0
  %v974 = vadd.f32 0.0, %v973
  %975 = vmatmul.bf16.gmra.mxu0 %v883
  %v976 = vpop.f32.mrf.mxu0
  %v977 = vadd.f32 0.0, %v976
  %v978 = vpop.f32.mrf.mxu0
  %v979 = vadd.f32 0.0, %v978
  %980 = vmatmul.bf16.gmra.mxu0 %v884
  %v981 = vpop.f32.mrf.mxu0
  %v982 = vadd.f32 0.0, %v981
  %v983 = vpop.f32.mrf.mxu0
  %v984 = vadd.f32 0.0, %v983
  %985 = vmatmul.bf16.gmra.mxu0 %v885
  %v986 = vpop.f32.mrf.mxu0
  %v987 = vadd.f32 0.0, %v986
  %v988 = vpop.f32.mrf.mxu0
  %v989 = vadd.f32 0.0, %v988
  %990 = vdwg.mxu0
  %991 = vmatpush.bf16.msra.mxu0 %v318
  %992 = vmatpush.bf16.msra.mxu0 %v314
  %993 = vmatpush.bf16.msra.mxu0 %v310
  %994 = vmatpush.bf16.msra.mxu0 %v306
  %995 = vmatpush.bf16.msra.mxu0 %v302
  %996 = vmatpush.bf16.msra.mxu0 %v298
  %997 = vmatpush.bf16.msra.mxu0 %v294
  %998 = vmatpush.bf16.msra.mxu0 %v290
  %999 = vmatmul.bf16.gmra.mxu0 %v870
  %v1000 = vpop.f32.mrf.mxu0
  %v1001 = vadd.f32 0.0, %v1000
  %v1002 = vpop.f32.mrf.mxu0
  %v1003 = vadd.f32 0.0, %v1002
  %1004 = vmatmul.bf16.gmra.mxu0 %v871
  %v1005 = vpop.f32.mrf.mxu0
  %v1006 = vadd.f32 0.0, %v1005
  %v1007 = vpop.f32.mrf.mxu0
  %v1008 = vadd.f32 0.0, %v1007
  %1009 = vmatmul.bf16.gmra.mxu0 %v872
  %v1010 = vpop.f32.mrf.mxu0
  %v1011 = vadd.f32 0.0, %v1010
  %v1012 = vpop.f32.mrf.mxu0
  %v1013 = vadd.f32 0.0, %v1012
  %1014 = vmatmul.bf16.gmra.mxu0 %v873
  %v1015 = vpop.f32.mrf.mxu0
  %v1016 = vadd.f32 0.0, %v1015
  %v1017 = vpop.f32.mrf.mxu0
  %v1018 = vadd.f32 0.0, %v1017
  %1019 = vmatmul.bf16.gmra.mxu0 %v874
  %v1020 = vpop.f32.mrf.mxu0
  %v1021 = vadd.f32 0.0, %v1020
  %v1022 = vpop.f32.mrf.mxu0
  %v1023 = vadd.f32 0.0, %v1022
  %1024 = vmatmul.bf16.gmra.mxu0 %v875
  %v1025 = vpop.f32.mrf.mxu0
  %v1026 = vadd.f32 0.0, %v1025
  %v1027 = vpop.f32.mrf.mxu0
  %v1028 = vadd.f32 0.0, %v1027
  %1029 = vmatmul.bf16.gmra.mxu0 %v876
  %v1030 = vpop.f32.mrf.mxu0
  %v1031 = vadd.f32 0.0, %v1030
  %v1032 = vpop.f32.mrf.mxu0
  %v1033 = vadd.f32 0.0, %v1032
  %1034 = vmatmul.bf16.gmra.mxu0 %v877
  %v1035 = vpop.f32.mrf.mxu0
  %v1036 = vadd.f32 0.0, %v1035
  %v1037 = vpop.f32.mrf.mxu0
  %v1038 = vadd.f32 0.0, %v1037
  %1039 = vmatmul.bf16.gmra.mxu0 %v878
  %v1040 = vpop.f32.mrf.mxu0
  %v1041 = vadd.f32 0.0, %v1040
  %v1042 = vpop.f32.mrf.mxu0
  %v1043 = vadd.f32 0.0, %v1042
  %1044 = vmatmul.bf16.gmra.mxu0 %v879
  %v1045 = vpop.f32.mrf.mxu0
  %v1046 = vadd.f32 0.0, %v1045
  %v1047 = vpop.f32.mrf.mxu0
  %v1048 = vadd.f32 0.0, %v1047
  %1049 = vmatmul.bf16.gmra.mxu0 %v880
  %v1050 = vpop.f32.mrf.mxu0
  %v1051 = vadd.f32 0.0, %v1050
  %v1052 = vpop.f32.mrf.mxu0
  %v1053 = vadd.f32 0.0, %v1052
  %1054 = vmatmul.bf16.gmra.mxu0 %v881
  %v1055 = vpop.f32.mrf.mxu0
  %v1056 = vadd.f32 0.0, %v1055
  %v1057 = vpop.f32.mrf.mxu0
  %v1058 = vadd.f32 0.0, %v1057
  %1059 = vmatmul.bf16.gmra.mxu0 %v882
  %v1060 = vpop.f32.mrf.mxu0
  %v1061 = vadd.f32 0.0, %v1060
  %v1062 = vpop.f32.mrf.mxu0
  %v1063 = vadd.f32 0.0, %v1062
  %1064 = vmatmul.bf16.gmra.mxu0 %v883
  %v1065 = vpop.f32.mrf.mxu0
  %v1066 = vadd.f32 0.0, %v1065
  %v1067 = vpop.f32.mrf.mxu0
  %v1068 = vadd.f32 0.0, %v1067
  %1069 = vmatmul.bf16.gmra.mxu0 %v884
  %v1070 = vpop.f32.mrf.mxu0
  %v1071 = vadd.f32 0.0, %v1070
  %v1072 = vpop.f32.mrf.mxu0
  %v1073 = vadd.f32 0.0, %v1072
  %1074 = vmatmul.bf16.gmra.mxu0 %v885
  %v1075 = vpop.f32.mrf.mxu0
  %v1076 = vadd.f32 0.0, %v1075
  %v1077 = vpop.f32.mrf.mxu0
  %v1078 = vadd.f32 0.0, %v1077
  %1079 = vdwg.mxu0
  %1080 = vmatpush.bf16.msra.mxu0 %v319
  %1081 = vmatpush.bf16.msra.mxu0 %v315
  %1082 = vmatpush.bf16.msra.mxu0 %v311
  %1083 = vmatpush.bf16.msra.mxu0 %v307
  %1084 = vmatpush.bf16.msra.mxu0 %v303
  %1085 = vmatpush.bf16.msra.mxu0 %v299
  %1086 = vmatpush.bf16.msra.mxu0 %v295
  %1087 = vmatpush.bf16.msra.mxu0 %v291
  %1088 = vmatmul.bf16.gmra.mxu0 %v870
  %v1089 = vpop.f32.mrf.mxu0
  %v1090 = vadd.f32 0.0, %v1089
  %v1091 = vpop.f32.mrf.mxu0
  %v1092 = vadd.f32 0.0, %v1091
  %1093 = vmatmul.bf16.gmra.mxu0 %v871
  %v1094 = vpop.f32.mrf.mxu0
  %v1095 = vadd.f32 0.0, %v1094
  %v1096 = vpop.f32.mrf.mxu0
  %v1097 = vadd.f32 0.0, %v1096
  %1098 = vmatmul.bf16.gmra.mxu0 %v872
  %v1099 = vpop.f32.mrf.mxu0
  %v1100 = vadd.f32 0.0, %v1099
  %v1101 = vpop.f32.mrf.mxu0
  %v1102 = vadd.f32 0.0, %v1101
  %1103 = vmatmul.bf16.gmra.mxu0 %v873
  %v1104 = vpop.f32.mrf.mxu0
  %v1105 = vadd.f32 0.0, %v1104
  %v1106 = vpop.f32.mrf.mxu0
  %v1107 = vadd.f32 0.0, %v1106
  %1108 = vmatmul.bf16.gmra.mxu0 %v874
  %v1109 = vpop.f32.mrf.mxu0
  %v1110 = vadd.f32 0.0, %v1109
  %v1111 = vpop.f32.mrf.mxu0
  %v1112 = vadd.f32 0.0, %v1111
  %1113 = vmatmul.bf16.gmra.mxu0 %v875
  %v1114 = vpop.f32.mrf.mxu0
  %v1115 = vadd.f32 0.0, %v1114
  %v1116 = vpop.f32.mrf.mxu0
  %v1117 = vadd.f32 0.0, %v1116
  %1118 = vmatmul.bf16.gmra.mxu0 %v876
  %v1119 = vpop.f32.mrf.mxu0
  %v1120 = vadd.f32 0.0, %v1119
  %v1121 = vpop.f32.mrf.mxu0
  %v1122 = vadd.f32 0.0, %v1121
  %1123 = vmatmul.bf16.gmra.mxu0 %v877
  %v1124 = vpop.f32.mrf.mxu0
  %v1125 = vadd.f32 0.0, %v1124
  %v1126 = vpop.f32.mrf.mxu0
  %v1127 = vadd.f32 0.0, %v1126
  %1128 = vmatmul.bf16.gmra.mxu0 %v878
  %v1129 = vpop.f32.mrf.mxu0
  %v1130 = vadd.f32 0.0, %v1129
  %v1131 = vpop.f32.mrf.mxu0
  %v1132 = vadd.f32 0.0, %v1131
  %1133 = vmatmul.bf16.gmra.mxu0 %v879
  %v1134 = vpop.f32.mrf.mxu0
  %v1135 = vadd.f32 0.0, %v1134
  %v1136 = vpop.f32.mrf.mxu0
  %v1137 = vadd.f32 0.0, %v1136
  %1138 = vmatmul.bf16.gmra.mxu0 %v880
  %v1139 = vpop.f32.mrf.mxu0
  %v1140 = vadd.f32 0.0, %v1139
  %v1141 = vpop.f32.mrf.mxu0
  %v1142 = vadd.f32 0.0, %v1141
  %1143 = vmatmul.bf16.gmra.mxu0 %v881
  %v1144 = vpop.f32.mrf.mxu0
  %v1145 = vadd.f32 0.0, %v1144
  %v1146 = vpop.f32.mrf.mxu0
  %v1147 = vadd.f32 0.0, %v1146
  %1148 = vmatmul.bf16.gmra.mxu0 %v882
  %v1149 = vpop.f32.mrf.mxu0
  %v1150 = vadd.f32 0.0, %v1149
  %v1151 = vpop.f32.mrf.mxu0
  %v1152 = vadd.f32 0.0, %v1151
  %1153 = vmatmul.bf16.gmra.mxu0 %v883
  %v1154 = vpop.f32.mrf.mxu0
  %v1155 = vadd.f32 0.0, %v1154
  %v1156 = vpop.f32.mrf.mxu0
  %v1157 = vadd.f32 0.0, %v1156
  %1158 = vmatmul.bf16.gmra.mxu0 %v884
  %v1159 = vpop.f32.mrf.mxu0
  %v1160 = vadd.f32 0.0, %v1159
  %v1161 = vpop.f32.mrf.mxu0
  %v1162 = vadd.f32 0.0, %v1161
  %1163 = vmatmul.bf16.gmra.mxu0 %v885
  %v1164 = vpop.f32.mrf.mxu0
  %v1165 = vadd.f32 0.0, %v1164
  %v1166 = vpop.f32.mrf.mxu0
  %v1167 = vadd.f32 0.0, %v1166
  %1168 = vdwg.mxu0
  %1169 = vmatpush.bf16.msra.mxu0 %v320
  %1170 = vmatpush.bf16.msra.mxu0 %v316
  %1171 = vmatpush.bf16.msra.mxu0 %v312
  %1172 = vmatpush.bf16.msra.mxu0 %v308
  %1173 = vmatpush.bf16.msra.mxu0 %v304
  %1174 = vmatpush.bf16.msra.mxu0 %v300
  %1175 = vmatpush.bf16.msra.mxu0 %v296
  %1176 = vmatpush.bf16.msra.mxu0 %v292
  %1177 = vmatmul.bf16.gmra.mxu0 %v870
  %v1178 = vpop.f32.mrf.mxu0
  %v1179 = vadd.f32 0.0, %v1178
  %v1180 = vpop.f32.mrf.mxu0
  %v1181 = vadd.f32 0.0, %v1180
  %1182 = vmatmul.bf16.gmra.mxu0 %v871
  %v1183 = vpop.f32.mrf.mxu0
  %v1184 = vadd.f32 0.0, %v1183
  %v1185 = vpop.f32.mrf.mxu0
  %v1186 = vadd.f32 0.0, %v1185
  %1187 = vmatmul.bf16.gmra.mxu0 %v872
  %v1188 = vpop.f32.mrf.mxu0
  %v1189 = vadd.f32 0.0, %v1188
  %v1190 = vpop.f32.mrf.mxu0
  %v1191 = vadd.f32 0.0, %v1190
  %1192 = vmatmul.bf16.gmra.mxu0 %v873
  %v1193 = vpop.f32.mrf.mxu0
  %v1194 = vadd.f32 0.0, %v1193
  %v1195 = vpop.f32.mrf.mxu0
  %v1196 = vadd.f32 0.0, %v1195
  %1197 = vmatmul.bf16.gmra.mxu0 %v874
  %v1198 = vpop.f32.mrf.mxu0
  %v1199 = vadd.f32 0.0, %v1198
  %v1200 = vpop.f32.mrf.mxu0
  %v1201 = vadd.f32 0.0, %v1200
  %1202 = vmatmul.bf16.gmra.mxu0 %v875
  %v1203 = vpop.f32.mrf.mxu0
  %v1204 = vadd.f32 0.0, %v1203
  %v1205 = vpop.f32.mrf.mxu0
  %v1206 = vadd.f32 0.0, %v1205
  %1207 = vmatmul.bf16.gmra.mxu0 %v876
  %v1208 = vpop.f32.mrf.mxu0
  %v1209 = vadd.f32 0.0, %v1208
  %v1210 = vpop.f32.mrf.mxu0
  %v1211 = vadd.f32 0.0, %v1210
  %1212 = vmatmul.bf16.gmra.mxu0 %v877
  %v1213 = vpop.f32.mrf.mxu0
  %v1214 = vadd.f32 0.0, %v1213
  %v1215 = vpop.f32.mrf.mxu0
  %v1216 = vadd.f32 0.0, %v1215
  %1217 = vmatmul.bf16.gmra.mxu0 %v878
  %v1218 = vpop.f32.mrf.mxu0
  %v1219 = vadd.f32 0.0, %v1218
  %v1220 = vpop.f32.mrf.mxu0
  %v1221 = vadd.f32 0.0, %v1220
  %1222 = vmatmul.bf16.gmra.mxu0 %v879
  %v1223 = vpop.f32.mrf.mxu0
  %v1224 = vadd.f32 0.0, %v1223
  %v1225 = vpop.f32.mrf.mxu0
  %v1226 = vadd.f32 0.0, %v1225
  %1227 = vmatmul.bf16.gmra.mxu0 %v880
  %v1228 = vpop.f32.mrf.mxu0
  %v1229 = vadd.f32 0.0, %v1228
  %v1230 = vpop.f32.mrf.mxu0
  %v1231 = vadd.f32 0.0, %v1230
  %1232 = vmatmul.bf16.gmra.mxu0 %v881
  %v1233 = vpop.f32.mrf.mxu0
  %v1234 = vadd.f32 0.0, %v1233
  %v1235 = vpop.f32.mrf.mxu0
  %v1236 = vadd.f32 0.0, %v1235
  %1237 = vmatmul.bf16.gmra.mxu0 %v882
  %v1238 = vpop.f32.mrf.mxu0
  %v1239 = vadd.f32 0.0, %v1238
  %v1240 = vpop.f32.mrf.mxu0
  %v1241 = vadd.f32 0.0, %v1240
  %1242 = vmatmul.bf16.gmra.mxu0 %v883
  %v1243 = vpop.f32.mrf.mxu0
  %v1244 = vadd.f32 0.0, %v1243
  %v1245 = vpop.f32.mrf.mxu0
  %v1246 = vadd.f32 0.0, %v1245
  %1247 = vmatmul.bf16.gmra.mxu0 %v884
  %v1248 = vpop.f32.mrf.mxu0
  %v1249 = vadd.f32 0.0, %v1248
  %v1250 = vpop.f32.mrf.mxu0
  %v1251 = vadd.f32 0.0, %v1250
  %1252 = vmatmul.bf16.gmra.mxu0 %v885
  %v1253 = vpop.f32.mrf.mxu0
  %v1254 = vadd.f32 0.0, %v1253
  %v1255 = vpop.f32.mrf.mxu0
  %v1256 = vadd.f32 0.0, %v1255
  %1257 = vdwg.mxu0
  %v1258 = vmax.f32 %v912, %v1090
  %v1259 = vmax.f32 %v1001, %v1179
  %v1260 = vmax.f32 %v914, %v1092
  %v1261 = vmax.f32 %v1003, %v1181
  %v1262 = vmax.f32 %v917, %v1095
  %v1263 = vmax.f32 %v1006, %v1184
  %v1264 = vmax.f32 %v919, %v1097
  %v1265 = vmax.f32 %v1008, %v1186
  %v1266 = vmax.f32 %v922, %v1100
  %v1267 = vmax.f32 %v1011, %v1189
  %v1268 = vmax.f32 %v924, %v1102
  %v1269 = vmax.f32 %v1013, %v1191
  %v1270 = vmax.f32 %v927, %v1105
  %v1271 = vmax.f32 %v1016, %v1194
  %v1272 = vmax.f32 %v929, %v1107
  %v1273 = vmax.f32 %v1018, %v1196
  %v1274 = vmax.f32 %v932, %v1110
  %v1275 = vmax.f32 %v1021, %v1199
  %v1276 = vmax.f32 %v934, %v1112
  %v1277 = vmax.f32 %v1023, %v1201
  %v1278 = vmax.f32 %v937, %v1115
  %v1279 = vmax.f32 %v1026, %v1204
  %v1280 = vmax.f32 %v939, %v1117
  %v1281 = vmax.f32 %v1028, %v1206
  %v1282 = vmax.f32 %v942, %v1120
  %v1283 = vmax.f32 %v1031, %v1209
  %v1284 = vmax.f32 %v944, %v1122
  %v1285 = vmax.f32 %v1033, %v1211
  %v1286 = vmax.f32 %v947, %v1125
  %v1287 = vmax.f32 %v1036, %v1214
  %v1288 = vmax.f32 %v949, %v1127
  %v1289 = vmax.f32 %v1038, %v1216
  %v1290 = vmax.f32 %v952, %v1130
  %v1291 = vmax.f32 %v1041, %v1219
  %v1292 = vmax.f32 %v954, %v1132
  %v1293 = vmax.f32 %v1043, %v1221
  %v1294 = vmax.f32 %v957, %v1135
  %v1295 = vmax.f32 %v1046, %v1224
  %v1296 = vmax.f32 %v959, %v1137
  %v1297 = vmax.f32 %v1048, %v1226
  %v1298 = vmax.f32 %v962, %v1140
  %v1299 = vmax.f32 %v1051, %v1229
  %v1300 = vmax.f32 %v964, %v1142
  %v1301 = vmax.f32 %v1053, %v1231
  %v1302 = vmax.f32 %v967, %v1145
  %v1303 = vmax.f32 %v1056, %v1234
  %v1304 = vmax.f32 %v969, %v1147
  %v1305 = vmax.f32 %v1058, %v1236
  %v1306 = vmax.f32 %v972, %v1150
  %v1307 = vmax.f32 %v1061, %v1239
  %v1308 = vmax.f32 %v974, %v1152
  %v1309 = vmax.f32 %v1063, %v1241
  %v1310 = vmax.f32 %v977, %v1155
  %v1311 = vmax.f32 %v1066, %v1244
  %v1312 = vmax.f32 %v979, %v1157
  %v1313 = vmax.f32 %v1068, %v1246
  %v1314 = vmax.f32 %v982, %v1160
  %v1315 = vmax.f32 %v1071, %v1249
  %v1316 = vmax.f32 %v984, %v1162
  %v1317 = vmax.f32 %v1073, %v1251
  %v1318 = vmax.f32 %v987, %v1165
  %v1319 = vmax.f32 %v1076, %v1254
  %v1320 = vmax.f32 %v989, %v1167
  %v1321 = vmax.f32 %v1078, %v1256
  %v1322 = vmax.f32 %v709, %v1258
  %v1323 = vmax.f32 %v710, %v1259
  %v1324 = vmax.f32 %v711, %v1260
  %v1325 = vmax.f32 %v712, %v1261
  %v1326 = vmax.f32 %v713, %v1262
  %v1327 = vmax.f32 %v714, %v1263
  %v1328 = vmax.f32 %v715, %v1264
  %v1329 = vmax.f32 %v716, %v1265
  %v1330 = vmax.f32 %v717, %v1266
  %v1331 = vmax.f32 %v718, %v1267
  %v1332 = vmax.f32 %v719, %v1268
  %v1333 = vmax.f32 %v720, %v1269
  %v1334 = vmax.f32 %v721, %v1270
  %v1335 = vmax.f32 %v722, %v1271
  %v1336 = vmax.f32 %v723, %v1272
  %v1337 = vmax.f32 %v724, %v1273
  %v1338 = vmax.f32 %v725, %v1274
  %v1339 = vmax.f32 %v726, %v1275
  %v1340 = vmax.f32 %v727, %v1276
  %v1341 = vmax.f32 %v728, %v1277
  %v1342 = vmax.f32 %v729, %v1278
  %v1343 = vmax.f32 %v730, %v1279
  %v1344 = vmax.f32 %v731, %v1280
  %v1345 = vmax.f32 %v732, %v1281
  %v1346 = vmax.f32 %v733, %v1282
  %v1347 = vmax.f32 %v734, %v1283
  %v1348 = vmax.f32 %v735, %v1284
  %v1349 = vmax.f32 %v736, %v1285
  %v1350 = vmax.f32 %v737, %v1286
  %v1351 = vmax.f32 %v738, %v1287
  %v1352 = vmax.f32 %v739, %v1288
  %v1353 = vmax.f32 %v740, %v1289
  %v1354 = vmax.f32 %v741, %v1290
  %v1355 = vmax.f32 %v742, %v1291
  %v1356 = vmax.f32 %v743, %v1292
  %v1357 = vmax.f32 %v744, %v1293
  %v1358 = vmax.f32 %v745, %v1294
  %v1359 = vmax.f32 %v746, %v1295
  %v1360 = vmax.f32 %v747, %v1296
  %v1361 = vmax.f32 %v748, %v1297
  %v1362 = vmax.f32 %v749, %v1298
  %v1363 = vmax.f32 %v750, %v1299
  %v1364 = vmax.f32 %v751, %v1300
  %v1365 = vmax.f32 %v752, %v1301
  %v1366 = vmax.f32 %v753, %v1302
  %v1367 = vmax.f32 %v754, %v1303
  %v1368 = vmax.f32 %v755, %v1304
  %v1369 = vmax.f32 %v756, %v1305
  %v1370 = vmax.f32 %v757, %v1306
  %v1371 = vmax.f32 %v758, %v1307
  %v1372 = vmax.f32 %v759, %v1308
  %v1373 = vmax.f32 %v760, %v1309
  %v1374 = vmax.f32 %v761, %v1310
  %v1375 = vmax.f32 %v762, %v1311
  %v1376 = vmax.f32 %v763, %v1312
  %v1377 = vmax.f32 %v764, %v1313
  %v1378 = vmax.f32 %v765, %v1314
  %v1379 = vmax.f32 %v766, %v1315
  %v1380 = vmax.f32 %v767, %v1316
  %v1381 = vmax.f32 %v768, %v1317
  %v1382 = vmax.f32 %v769, %v1318
  %v1383 = vmax.f32 %v770, %v1319
  %v1384 = vmax.f32 %v771, %v1320
  %v1385 = vmax.f32 %v772, %v1321
  %v1387 = vperm.slane %v32, 0
  %v1388 = vperm.slane %v32, 1
  %v1391 = vadd.f32 %v1322, %v1387
  %v1392 = vadd.f32 %v1323, %v1388
  %v1393 = vadd.f32 %v1324, %v1387
  %v1394 = vadd.f32 %v1325, %v1388
  %v1395 = vadd.f32 %v1326, %v1387
  %v1396 = vadd.f32 %v1327, %v1388
  %v1397 = vadd.f32 %v1328, %v1387
  %v1398 = vadd.f32 %v1329, %v1388
  %v1399 = vadd.f32 %v1330, %v1387
  %v1400 = vadd.f32 %v1331, %v1388
  %v1401 = vadd.f32 %v1332, %v1387
  %v1402 = vadd.f32 %v1333, %v1388
  %v1403 = vadd.f32 %v1334, %v1387
  %v1404 = vadd.f32 %v1335, %v1388
  %v1405 = vadd.f32 %v1336, %v1387
  %v1406 = vadd.f32 %v1337, %v1388
  %v1407 = vadd.f32 %v1338, %v1387
  %v1408 = vadd.f32 %v1339, %v1388
  %v1409 = vadd.f32 %v1340, %v1387
  %v1410 = vadd.f32 %v1341, %v1388
  %v1411 = vadd.f32 %v1342, %v1387
  %v1412 = vadd.f32 %v1343, %v1388
  %v1413 = vadd.f32 %v1344, %v1387
  %v1414 = vadd.f32 %v1345, %v1388
  %v1415 = vadd.f32 %v1346, %v1387
  %v1416 = vadd.f32 %v1347, %v1388
  %v1417 = vadd.f32 %v1348, %v1387
  %v1418 = vadd.f32 %v1349, %v1388
  %v1419 = vadd.f32 %v1350, %v1387
  %v1420 = vadd.f32 %v1351, %v1388
  %v1421 = vadd.f32 %v1352, %v1387
  %v1422 = vadd.f32 %v1353, %v1388
  %v1423 = vadd.f32 %v1354, %v1387
  %v1424 = vadd.f32 %v1355, %v1388
  %v1425 = vadd.f32 %v1356, %v1387
  %v1426 = vadd.f32 %v1357, %v1388
  %v1427 = vadd.f32 %v1358, %v1387
  %v1428 = vadd.f32 %v1359, %v1388
  %v1429 = vadd.f32 %v1360, %v1387
  %v1430 = vadd.f32 %v1361, %v1388
  %v1431 = vadd.f32 %v1362, %v1387
  %v1432 = vadd.f32 %v1363, %v1388
  %v1433 = vadd.f32 %v1364, %v1387
  %v1434 = vadd.f32 %v1365, %v1388
  %v1435 = vadd.f32 %v1366, %v1387
  %v1436 = vadd.f32 %v1367, %v1388
  %v1437 = vadd.f32 %v1368, %v1387
  %v1438 = vadd.f32 %v1369, %v1388
  %v1439 = vadd.f32 %v1370, %v1387
  %v1440 = vadd.f32 %v1371, %v1388
  %v1441 = vadd.f32 %v1372, %v1387
  %v1442 = vadd.f32 %v1373, %v1388
  %v1443 = vadd.f32 %v1374, %v1387
  %v1444 = vadd.f32 %v1375, %v1388
  %v1445 = vadd.f32 %v1376, %v1387
  %v1446 = vadd.f32 %v1377, %v1388
  %v1447 = vadd.f32 %v1378, %v1387
  %v1448 = vadd.f32 %v1379, %v1388
  %v1449 = vadd.f32 %v1380, %v1387
  %v1450 = vadd.f32 %v1381, %v1388
  %v1451 = vadd.f32 %v1382, %v1387
  %v1452 = vadd.f32 %v1383, %v1388
  %v1453 = vadd.f32 %v1384, %v1387
  %v1454 = vadd.f32 %v1385, %v1388
  %v1455 = vmax.f32 %v1391, 0.0
  %v1456 = vmax.f32 %v1392, 0.0
  %v1457 = vmax.f32 %v1393, 0.0
  %v1458 = vmax.f32 %v1394, 0.0
  %v1459 = vmax.f32 %v1395, 0.0
  %v1460 = vmax.f32 %v1396, 0.0
  %v1461 = vmax.f32 %v1397, 0.0
  %v1462 = vmax.f32 %v1398, 0.0
  %v1463 = vmax.f32 %v1399, 0.0
  %v1464 = vmax.f32 %v1400, 0.0
  %v1465 = vmax.f32 %v1401, 0.0
  %v1466 = vmax.f32 %v1402, 0.0
  %v1467 = vmax.f32 %v1403, 0.0
  %v1468 = vmax.f32 %v1404, 0.0
  %v1469 = vmax.f32 %v1405, 0.0
  %v1470 = vmax.f32 %v1406, 0.0
  %v1471 = vmax.f32 %v1407, 0.0
  %v1472 = vmax.f32 %v1408, 0.0
  %v1473 = vmax.f32 %v1409, 0.0
  %v1474 = vmax.f32 %v1410, 0.0
  %v1475 = vmax.f32 %v1411, 0.0
  %v1476 = vmax.f32 %v1412, 0.0
  %v1477 = vmax.f32 %v1413, 0.0
  %v1478 = vmax.f32 %v1414, 0.0
  %v1479 = vmax.f32 %v1415, 0.0
  %v1480 = vmax.f32 %v1416, 0.0
  %v1481 = vmax.f32 %v1417, 0.0
  %v1482 = vmax.f32 %v1418, 0.0
  %v1483 = vmax.f32 %v1419, 0.0
  %v1484 = vmax.f32 %v1420, 0.0
  %v1485 = vmax.f32 %v1421, 0.0
  %v1486 = vmax.f32 %v1422, 0.0
  %v1487 = vmax.f32 %v1423, 0.0
  %v1488 = vmax.f32 %v1424, 0.0
  %v1489 = vmax.f32 %v1425, 0.0
  %v1490 = vmax.f32 %v1426, 0.0
  %v1491 = vmax.f32 %v1427, 0.0
  %v1492 = vmax.f32 %v1428, 0.0
  %v1493 = vmax.f32 %v1429, 0.0
  %v1494 = vmax.f32 %v1430, 0.0
  %v1495 = vmax.f32 %v1431, 0.0
  %v1496 = vmax.f32 %v1432, 0.0
  %v1497 = vmax.f32 %v1433, 0.0
  %v1498 = vmax.f32 %v1434, 0.0
  %v1499 = vmax.f32 %v1435, 0.0
  %v1500 = vmax.f32 %v1436, 0.0
  %v1501 = vmax.f32 %v1437, 0.0
  %v1502 = vmax.f32 %v1438, 0.0
  %v1503 = vmax.f32 %v1439, 0.0
  %v1504 = vmax.f32 %v1440, 0.0
  %v1505 = vmax.f32 %v1441, 0.0
  %v1506 = vmax.f32 %v1442, 0.0
  %v1507 = vmax.f32 %v1443, 0.0
  %v1508 = vmax.f32 %v1444, 0.0
  %v1509 = vmax.f32 %v1445, 0.0
  %v1510 = vmax.f32 %v1446, 0.0
  %v1511 = vmax.f32 %v1447, 0.0
  %v1512 = vmax.f32 %v1448, 0.0
  %v1513 = vmax.f32 %v1449, 0.0
  %v1514 = vmax.f32 %v1450, 0.0
  %v1515 = vmax.f32 %v1451, 0.0
  %v1516 = vmax.f32 %v1452, 0.0
  %v1517 = vmax.f32 %v1453, 0.0
  %v1518 = vmax.f32 %v1454, 0.0
  %s1519 = scalar_lea.vmem %s0, 256
  %v1520 = vld [vmem:[%s1519] sm:$0xf]
  %v1521 = vld [vmem:[%s1519 + $0x4] sm:$0xf]
  %v1522 = vld [vmem:[%s1519 + $0x8] sm:$0xf]
  %v1523 = vld [vmem:[%s1519 + $0xc] sm:$0xf]
  %v1524 = vld [vmem:[%s1519 + $0x10] sm:$0xf]
  %v1525 = vld [vmem:[%s1519 + $0x14] sm:$0xf]
  %v1526 = vld [vmem:[%s1519 + $0x18] sm:$0xf]
  %v1527 = vld [vmem:[%s1519 + $0x1c] sm:$0xf]
  %v1528 = vld [vmem:[%s1519 + $0x20] sm:$0xf]
  %v1529 = vld [vmem:[%s1519 + $0x24] sm:$0xf]
  %v1530 = vld [vmem:[%s1519 + $0x28] sm:$0xf]
  %v1531 = vld [vmem:[%s1519 + $0x2c] sm:$0xf]
  %v1532 = vld [vmem:[%s1519 + $0x30] sm:$0xf]
  %v1533 = vld [vmem:[%s1519 + $0x34] sm:$0xf]
  %v1534 = vld [vmem:[%s1519 + $0x38] sm:$0xf]
  %v1535 = vld [vmem:[%s1519 + $0x3c] sm:$0xf]
  %v1536 = vld [vmem:[%s1519 + $0x40] sm:$0xf]
  %v1537 = vld [vmem:[%s1519 + $0x44] sm:$0xf]
  %v1538 = vld [vmem:[%s1519 + $0x48] sm:$0xf]
  %v1539 = vld [vmem:[%s1519 + $0x4c] sm:$0xf]
  %v1540 = vld [vmem:[%s1519 + $0x50] sm:$0xf]
  %v1541 = vld [vmem:[%s1519 + $0x54] sm:$0xf]
  %v1542 = vld [vmem:[%s1519 + $0x58] sm:$0xf]
  %v1543 = vld [vmem:[%s1519 + $0x5c] sm:$0xf]
  %v1544 = vld [vmem:[%s1519 + $0x60] sm:$0xf]
  %v1545 = vld [vmem:[%s1519 + $0x64] sm:$0xf]
  %v1546 = vld [vmem:[%s1519 + $0x68] sm:$0xf]
  %v1547 = vld [vmem:[%s1519 + $0x6c] sm:$0xf]
  %v1548 = vld [vmem:[%s1519 + $0x70] sm:$0xf]
  %v1549 = vld [vmem:[%s1519 + $0x74] sm:$0xf]
  %v1550 = vld [vmem:[%s1519 + $0x78] sm:$0xf]
  %v1551 = vld [vmem:[%s1519 + $0x7c] sm:$0xf]
  %v1584 = vunpack.c.l.b16 %v1520
  %v1585 = vunpack.c.l.b16 %v1521
  %v1586 = vunpack.c.l.b16 %v1522
  %v1587 = vunpack.c.l.b16 %v1523
  %v1588 = vunpack.c.l.b16 %v1524
  %v1589 = vunpack.c.l.b16 %v1525
  %v1590 = vunpack.c.l.b16 %v1526
  %v1591 = vunpack.c.l.b16 %v1527
  %v1592 = vunpack.c.l.b16 %v1528
  %v1593 = vunpack.c.l.b16 %v1529
  %v1594 = vunpack.c.l.b16 %v1530
  %v1595 = vunpack.c.l.b16 %v1531
  %v1596 = vunpack.c.l.b16 %v1532
  %v1597 = vunpack.c.l.b16 %v1533
  %v1598 = vunpack.c.l.b16 %v1534
  %v1599 = vunpack.c.l.b16 %v1535
  %v1600 = vunpack.c.l.b16 %v1536
  %v1601 = vunpack.c.l.b16 %v1537
  %v1602 = vunpack.c.l.b16 %v1538
  %v1603 = vunpack.c.l.b16 %v1539
  %v1604 = vunpack.c.l.b16 %v1540
  %v1605 = vunpack.c.l.b16 %v1541
  %v1606 = vunpack.c.l.b16 %v1542
  %v1607 = vunpack.c.l.b16 %v1543
  %v1608 = vunpack.c.l.b16 %v1544
  %v1609 = vunpack.c.l.b16 %v1545
  %v1610 = vunpack.c.l.b16 %v1546
  %v1611 = vunpack.c.l.b16 %v1547
  %v1612 = vunpack.c.l.b16 %v1548
  %v1613 = vunpack.c.l.b16 %v1549
  %v1614 = vunpack.c.l.b16 %v1550
  %v1615 = vunpack.c.l.b16 %v1551
  %v1616 = vpack.c.b16 %v1585, %v1584
  %v1617 = vpack.c.b16 %v1587, %v1586
  %v1618 = vpack.c.b16 %v1589, %v1588
  %v1619 = vpack.c.b16 %v1591, %v1590
  %v1620 = vpack.c.b16 %v1593, %v1592
  %v1621 = vpack.c.b16 %v1595, %v1594
  %v1622 = vpack.c.b16 %v1597, %v1596
  %v1623 = vpack.c.b16 %v1599, %v1598
  %v1624 = vpack.c.b16 %v1601, %v1600
  %v1625 = vpack.c.b16 %v1603, %v1602
  %v1626 = vpack.c.b16 %v1605, %v1604
  %v1627 = vpack.c.b16 %v1607, %v1606
  %v1628 = vpack.c.b16 %v1609, %v1608
  %v1629 = vpack.c.b16 %v1611, %v1610
  %v1630 = vpack.c.b16 %v1613, %v1612
  %v1631 = vpack.c.b16 %v1615, %v1614
  %1648 = vmatpush.bf16.msra.mxu0 %v317
  %1649 = vmatpush.bf16.msra.mxu0 %v313
  %1650 = vmatpush.bf16.msra.mxu0 %v309
  %1651 = vmatpush.bf16.msra.mxu0 %v305
  %1652 = vmatpush.bf16.msra.mxu0 %v301
  %1653 = vmatpush.bf16.msra.mxu0 %v297
  %1654 = vmatpush.bf16.msra.mxu0 %v293
  %1655 = vmatpush.bf16.msra.mxu0 %v289
  %1656 = vmatmul.bf16.gmra.mxu0 %v1616
  %v1657 = vpop.f32.mrf.mxu0
  %v1658 = vadd.f32 0.0, %v1657
  %v1659 = vpop.f32.mrf.mxu0
  %v1660 = vadd.f32 0.0, %v1659
  %1661 = vmatmul.bf16.gmra.mxu0 %v1617
  %v1662 = vpop.f32.mrf.mxu0
  %v1663 = vadd.f32 0.0, %v1662
  %v1664 = vpop.f32.mrf.mxu0
  %v1665 = vadd.f32 0.0, %v1664
  %1666 = vmatmul.bf16.gmra.mxu0 %v1618
  %v1667 = vpop.f32.mrf.mxu0
  %v1668 = vadd.f32 0.0, %v1667
  %v1669 = vpop.f32.mrf.mxu0
  %v1670 = vadd.f32 0.0, %v1669
  %1671 = vmatmul.bf16.gmra.mxu0 %v1619
  %v1672 = vpop.f32.mrf.mxu0
  %v1673 = vadd.f32 0.0, %v1672
  %v1674 = vpop.f32.mrf.mxu0
  %v1675 = vadd.f32 0.0, %v1674
  %1676 = vmatmul.bf16.gmra.mxu0 %v1620
  %v1677 = vpop.f32.mrf.mxu0
  %v1678 = vadd.f32 0.0, %v1677
  %v1679 = vpop.f32.mrf.mxu0
  %v1680 = vadd.f32 0.0, %v1679
  %1681 = vmatmul.bf16.gmra.mxu0 %v1621
  %v1682 = vpop.f32.mrf.mxu0
  %v1683 = vadd.f32 0.0, %v1682
  %v1684 = vpop.f32.mrf.mxu0
  %v1685 = vadd.f32 0.0, %v1684
  %1686 = vmatmul.bf16.gmra.mxu0 %v1622
  %v1687 = vpop.f32.mrf.mxu0
  %v1688 = vadd.f32 0.0, %v1687
  %v1689 = vpop.f32.mrf.mxu0
  %v1690 = vadd.f32 0.0, %v1689
  %1691 = vmatmul.bf16.gmra.mxu0 %v1623
  %v1692 = vpop.f32.mrf.mxu0
  %v1693 = vadd.f32 0.0, %v1692
  %v1694 = vpop.f32.mrf.mxu0
  %v1695 = vadd.f32 0.0, %v1694
  %1696 = vmatmul.bf16.gmra.mxu0 %v1624
  %v1697 = vpop.f32.mrf.mxu0
  %v1698 = vadd.f32 0.0, %v1697
  %v1699 = vpop.f32.mrf.mxu0
  %v1700 = vadd.f32 0.0, %v1699
  %1701 = vmatmul.bf16.gmra.mxu0 %v1625
  %v1702 = vpop.f32.mrf.mxu0
  %v1703 = vadd.f32 0.0, %v1702
  %v1704 = vpop.f32.mrf.mxu0
  %v1705 = vadd.f32 0.0, %v1704
  %1706 = vmatmul.bf16.gmra.mxu0 %v1626
  %v1707 = vpop.f32.mrf.mxu0
  %v1708 = vadd.f32 0.0, %v1707
  %v1709 = vpop.f32.mrf.mxu0
  %v1710 = vadd.f32 0.0, %v1709
  %1711 = vmatmul.bf16.gmra.mxu0 %v1627
  %v1712 = vpop.f32.mrf.mxu0
  %v1713 = vadd.f32 0.0, %v1712
  %v1714 = vpop.f32.mrf.mxu0
  %v1715 = vadd.f32 0.0, %v1714
  %1716 = vmatmul.bf16.gmra.mxu0 %v1628
  %v1717 = vpop.f32.mrf.mxu0
  %v1718 = vadd.f32 0.0, %v1717
  %v1719 = vpop.f32.mrf.mxu0
  %v1720 = vadd.f32 0.0, %v1719
  %1721 = vmatmul.bf16.gmra.mxu0 %v1629
  %v1722 = vpop.f32.mrf.mxu0
  %v1723 = vadd.f32 0.0, %v1722
  %v1724 = vpop.f32.mrf.mxu0
  %v1725 = vadd.f32 0.0, %v1724
  %1726 = vmatmul.bf16.gmra.mxu0 %v1630
  %v1727 = vpop.f32.mrf.mxu0
  %v1728 = vadd.f32 0.0, %v1727
  %v1729 = vpop.f32.mrf.mxu0
  %v1730 = vadd.f32 0.0, %v1729
  %1731 = vmatmul.bf16.gmra.mxu0 %v1631
  %v1732 = vpop.f32.mrf.mxu0
  %v1733 = vadd.f32 0.0, %v1732
  %v1734 = vpop.f32.mrf.mxu0
  %v1735 = vadd.f32 0.0, %v1734
  %1736 = vdwg.mxu0
  %1737 = vmatpush.bf16.msra.mxu0 %v318
  %1738 = vmatpush.bf16.msra.mxu0 %v314
  %1739 = vmatpush.bf16.msra.mxu0 %v310
  %1740 = vmatpush.bf16.msra.mxu0 %v306
  %1741 = vmatpush.bf16.msra.mxu0 %v302
  %1742 = vmatpush.bf16.msra.mxu0 %v298
  %1743 = vmatpush.bf16.msra.mxu0 %v294
  %1744 = vmatpush.bf16.msra.mxu0 %v290
  %1745 = vmatmul.bf16.gmra.mxu0 %v1616
  %v1746 = vpop.f32.mrf.mxu0
  %v1747 = vadd.f32 0.0, %v1746
  %v1748 = vpop.f32.mrf.mxu0
  %v1749 = vadd.f32 0.0, %v1748
  %1750 = vmatmul.bf16.gmra.mxu0 %v1617
  %v1751 = vpop.f32.mrf.mxu0
  %v1752 = vadd.f32 0.0, %v1751
  %v1753 = vpop.f32.mrf.mxu0
  %v1754 = vadd.f32 0.0, %v1753
  %1755 = vmatmul.bf16.gmra.mxu0 %v1618
  %v1756 = vpop.f32.mrf.mxu0
  %v1757 = vadd.f32 0.0, %v1756
  %v1758 = vpop.f32.mrf.mxu0
  %v1759 = vadd.f32 0.0, %v1758
  %1760 = vmatmul.bf16.gmra.mxu0 %v1619
  %v1761 = vpop.f32.mrf.mxu0
  %v1762 = vadd.f32 0.0, %v1761
  %v1763 = vpop.f32.mrf.mxu0
  %v1764 = vadd.f32 0.0, %v1763
  %1765 = vmatmul.bf16.gmra.mxu0 %v1620
  %v1766 = vpop.f32.mrf.mxu0
  %v1767 = vadd.f32 0.0, %v1766
  %v1768 = vpop.f32.mrf.mxu0
  %v1769 = vadd.f32 0.0, %v1768
  %1770 = vmatmul.bf16.gmra.mxu0 %v1621
  %v1771 = vpop.f32.mrf.mxu0
  %v1772 = vadd.f32 0.0, %v1771
  %v1773 = vpop.f32.mrf.mxu0
  %v1774 = vadd.f32 0.0, %v1773
  %1775 = vmatmul.bf16.gmra.mxu0 %v1622
  %v1776 = vpop.f32.mrf.mxu0
  %v1777 = vadd.f32 0.0, %v1776
  %v1778 = vpop.f32.mrf.mxu0
  %v1779 = vadd.f32 0.0, %v1778
  %1780 = vmatmul.bf16.gmra.mxu0 %v1623
  %v1781 = vpop.f32.mrf.mxu0
  %v1782 = vadd.f32 0.0, %v1781
  %v1783 = vpop.f32.mrf.mxu0
  %v1784 = vadd.f32 0.0, %v1783
  %1785 = vmatmul.bf16.gmra.mxu0 %v1624
  %v1786 = vpop.f32.mrf.mxu0
  %v1787 = vadd.f32 0.0, %v1786
  %v1788 = vpop.f32.mrf.mxu0
  %v1789 = vadd.f32 0.0, %v1788
  %1790 = vmatmul.bf16.gmra.mxu0 %v1625
  %v1791 = vpop.f32.mrf.mxu0
  %v1792 = vadd.f32 0.0, %v1791
  %v1793 = vpop.f32.mrf.mxu0
  %v1794 = vadd.f32 0.0, %v1793
  %1795 = vmatmul.bf16.gmra.mxu0 %v1626
  %v1796 = vpop.f32.mrf.mxu0
  %v1797 = vadd.f32 0.0, %v1796
  %v1798 = vpop.f32.mrf.mxu0
  %v1799 = vadd.f32 0.0, %v1798
  %1800 = vmatmul.bf16.gmra.mxu0 %v1627
  %v1801 = vpop.f32.mrf.mxu0
  %v1802 = vadd.f32 0.0, %v1801
  %v1803 = vpop.f32.mrf.mxu0
  %v1804 = vadd.f32 0.0, %v1803
  %1805 = vmatmul.bf16.gmra.mxu0 %v1628
  %v1806 = vpop.f32.mrf.mxu0
  %v1807 = vadd.f32 0.0, %v1806
  %v1808 = vpop.f32.mrf.mxu0
  %v1809 = vadd.f32 0.0, %v1808
  %1810 = vmatmul.bf16.gmra.mxu0 %v1629
  %v1811 = vpop.f32.mrf.mxu0
  %v1812 = vadd.f32 0.0, %v1811
  %v1813 = vpop.f32.mrf.mxu0
  %v1814 = vadd.f32 0.0, %v1813
  %1815 = vmatmul.bf16.gmra.mxu0 %v1630
  %v1816 = vpop.f32.mrf.mxu0
  %v1817 = vadd.f32 0.0, %v1816
  %v1818 = vpop.f32.mrf.mxu0
  %v1819 = vadd.f32 0.0, %v1818
  %1820 = vmatmul.bf16.gmra.mxu0 %v1631
  %v1821 = vpop.f32.mrf.mxu0
  %v1822 = vadd.f32 0.0, %v1821
  %v1823 = vpop.f32.mrf.mxu0
  %v1824 = vadd.f32 0.0, %v1823
  %1825 = vdwg.mxu0
  %1826 = vmatpush.bf16.msra.mxu0 %v319
  %1827 = vmatpush.bf16.msra.mxu0 %v315
  %1828 = vmatpush.bf16.msra.mxu0 %v311
  %1829 = vmatpush.bf16.msra.mxu0 %v307
  %1830 = vmatpush.bf16.msra.mxu0 %v303
  %1831 = vmatpush.bf16.msra.mxu0 %v299
  %1832 = vmatpush.bf16.msra.mxu0 %v295
  %1833 = vmatpush.bf16.msra.mxu0 %v291
  %1834 = vmatmul.bf16.gmra.mxu0 %v1616
  %v1835 = vpop.f32.mrf.mxu0
  %v1836 = vadd.f32 0.0, %v1835
  %v1837 = vpop.f32.mrf.mxu0
  %v1838 = vadd.f32 0.0, %v1837
  %1839 = vmatmul.bf16.gmra.mxu0 %v1617
  %v1840 = vpop.f32.mrf.mxu0
  %v1841 = vadd.f32 0.0, %v1840
  %v1842 = vpop.f32.mrf.mxu0
  %v1843 = vadd.f32 0.0, %v1842
  %1844 = vmatmul.bf16.gmra.mxu0 %v1618
  %v1845 = vpop.f32.mrf.mxu0
  %v1846 = vadd.f32 0.0, %v1845
  %v1847 = vpop.f32.mrf.mxu0
  %v1848 = vadd.f32 0.0, %v1847
  %1849 = vmatmul.bf16.gmra.mxu0 %v1619
  %v1850 = vpop.f32.mrf.mxu0
  %v1851 = vadd.f32 0.0, %v1850
  %v1852 = vpop.f32.mrf.mxu0
  %v1853 = vadd.f32 0.0, %v1852
  %1854 = vmatmul.bf16.gmra.mxu0 %v1620
  %v1855 = vpop.f32.mrf.mxu0
  %v1856 = vadd.f32 0.0, %v1855
  %v1857 = vpop.f32.mrf.mxu0
  %v1858 = vadd.f32 0.0, %v1857
  %1859 = vmatmul.bf16.gmra.mxu0 %v1621
  %v1860 = vpop.f32.mrf.mxu0
  %v1861 = vadd.f32 0.0, %v1860
  %v1862 = vpop.f32.mrf.mxu0
  %v1863 = vadd.f32 0.0, %v1862
  %1864 = vmatmul.bf16.gmra.mxu0 %v1622
  %v1865 = vpop.f32.mrf.mxu0
  %v1866 = vadd.f32 0.0, %v1865
  %v1867 = vpop.f32.mrf.mxu0
  %v1868 = vadd.f32 0.0, %v1867
  %1869 = vmatmul.bf16.gmra.mxu0 %v1623
  %v1870 = vpop.f32.mrf.mxu0
  %v1871 = vadd.f32 0.0, %v1870
  %v1872 = vpop.f32.mrf.mxu0
  %v1873 = vadd.f32 0.0, %v1872
  %1874 = vmatmul.bf16.gmra.mxu0 %v1624
  %v1875 = vpop.f32.mrf.mxu0
  %v1876 = vadd.f32 0.0, %v1875
  %v1877 = vpop.f32.mrf.mxu0
  %v1878 = vadd.f32 0.0, %v1877
  %1879 = vmatmul.bf16.gmra.mxu0 %v1625
  %v1880 = vpop.f32.mrf.mxu0
  %v1881 = vadd.f32 0.0, %v1880
  %v1882 = vpop.f32.mrf.mxu0
  %v1883 = vadd.f32 0.0, %v1882
  %1884 = vmatmul.bf16.gmra.mxu0 %v1626
  %v1885 = vpop.f32.mrf.mxu0
  %v1886 = vadd.f32 0.0, %v1885
  %v1887 = vpop.f32.mrf.mxu0
  %v1888 = vadd.f32 0.0, %v1887
  %1889 = vmatmul.bf16.gmra.mxu0 %v1627
  %v1890 = vpop.f32.mrf.mxu0
  %v1891 = vadd.f32 0.0, %v1890
  %v1892 = vpop.f32.mrf.mxu0
  %v1893 = vadd.f32 0.0, %v1892
  %1894 = vmatmul.bf16.gmra.mxu0 %v1628
  %v1895 = vpop.f32.mrf.mxu0
  %v1896 = vadd.f32 0.0, %v1895
  %v1897 = vpop.f32.mrf.mxu0
  %v1898 = vadd.f32 0.0, %v1897
  %1899 = vmatmul.bf16.gmra.mxu0 %v1629
  %v1900 = vpop.f32.mrf.mxu0
  %v1901 = vadd.f32 0.0, %v1900
  %v1902 = vpop.f32.mrf.mxu0
  %v1903 = vadd.f32 0.0, %v1902
  %1904 = vmatmul.bf16.gmra.mxu0 %v1630
  %v1905 = vpop.f32.mrf.mxu0
  %v1906 = vadd.f32 0.0, %v1905
  %v1907 = vpop.f32.mrf.mxu0
  %v1908 = vadd.f32 0.0, %v1907
  %1909 = vmatmul.bf16.gmra.mxu0 %v1631
  %v1910 = vpop.f32.mrf.mxu0
  %v1911 = vadd.f32 0.0, %v1910
  %v1912 = vpop.f32.mrf.mxu0
  %v1913 = vadd.f32 0.0, %v1912
  %1914 = vdwg.mxu0
  %1915 = vmatpush.bf16.msra.mxu0 %v320
  %1916 = vmatpush.bf16.msra.mxu0 %v316
  %1917 = vmatpush.bf16.msra.mxu0 %v312
  %1918 = vmatpush.bf16.msra.mxu0 %v308
  %1919 = vmatpush.bf16.msra.mxu0 %v304
  %1920 = vmatpush.bf16.msra.mxu0 %v300
  %1921 = vmatpush.bf16.msra.mxu0 %v296
  %1922 = vmatpush.bf16.msra.mxu0 %v292
  %1923 = vmatmul.bf16.gmra.mxu0 %v1616
  %v1924 = vpop.f32.mrf.mxu0
  %v1925 = vadd.f32 0.0, %v1924
  %v1926 = vpop.f32.mrf.mxu0
  %v1927 = vadd.f32 0.0, %v1926
  %1928 = vmatmul.bf16.gmra.mxu0 %v1617
  %v1929 = vpop.f32.mrf.mxu0
  %v1930 = vadd.f32 0.0, %v1929
  %v1931 = vpop.f32.mrf.mxu0
  %v1932 = vadd.f32 0.0, %v1931
  %1933 = vmatmul.bf16.gmra.mxu0 %v1618
  %v1934 = vpop.f32.mrf.mxu0
  %v1935 = vadd.f32 0.0, %v1934
  %v1936 = vpop.f32.mrf.mxu0
  %v1937 = vadd.f32 0.0, %v1936
  %1938 = vmatmul.bf16.gmra.mxu0 %v1619
  %v1939 = vpop.f32.mrf.mxu0
  %v1940 = vadd.f32 0.0, %v1939
  %v1941 = vpop.f32.mrf.mxu0
  %v1942 = vadd.f32 0.0, %v1941
  %1943 = vmatmul.bf16.gmra.mxu0 %v1620
  %v1944 = vpop.f32.mrf.mxu0
  %v1945 = vadd.f32 0.0, %v1944
  %v1946 = vpop.f32.mrf.mxu0
  %v1947 = vadd.f32 0.0, %v1946
  %1948 = vmatmul.bf16.gmra.mxu0 %v1621
  %v1949 = vpop.f32.mrf.mxu0
  %v1950 = vadd.f32 0.0, %v1949
  %v1951 = vpop.f32.mrf.mxu0
  %v1952 = vadd.f32 0.0, %v1951
  %1953 = vmatmul.bf16.gmra.mxu0 %v1622
  %v1954 = vpop.f32.mrf.mxu0
  %v1955 = vadd.f32 0.0, %v1954
  %v1956 = vpop.f32.mrf.mxu0
  %v1957 = vadd.f32 0.0, %v1956
  %1958 = vmatmul.bf16.gmra.mxu0 %v1623
  %v1959 = vpop.f32.mrf.mxu0
  %v1960 = vadd.f32 0.0, %v1959
  %v1961 = vpop.f32.mrf.mxu0
  %v1962 = vadd.f32 0.0, %v1961
  %1963 = vmatmul.bf16.gmra.mxu0 %v1624
  %v1964 = vpop.f32.mrf.mxu0
  %v1965 = vadd.f32 0.0, %v1964
  %v1966 = vpop.f32.mrf.mxu0
  %v1967 = vadd.f32 0.0, %v1966
  %1968 = vmatmul.bf16.gmra.mxu0 %v1625
  %v1969 = vpop.f32.mrf.mxu0
  %v1970 = vadd.f32 0.0, %v1969
  %v1971 = vpop.f32.mrf.mxu0
  %v1972 = vadd.f32 0.0, %v1971
  %1973 = vmatmul.bf16.gmra.mxu0 %v1626
  %v1974 = vpop.f32.mrf.mxu0
  %v1975 = vadd.f32 0.0, %v1974
  %v1976 = vpop.f32.mrf.mxu0
  %v1977 = vadd.f32 0.0, %v1976
  %1978 = vmatmul.bf16.gmra.mxu0 %v1627
  %v1979 = vpop.f32.mrf.mxu0
  %v1980 = vadd.f32 0.0, %v1979
  %v1981 = vpop.f32.mrf.mxu0
  %v1982 = vadd.f32 0.0, %v1981
  %1983 = vmatmul.bf16.gmra.mxu0 %v1628
  %v1984 = vpop.f32.mrf.mxu0
  %v1985 = vadd.f32 0.0, %v1984
  %v1986 = vpop.f32.mrf.mxu0
  %v1987 = vadd.f32 0.0, %v1986
  %1988 = vmatmul.bf16.gmra.mxu0 %v1629
  %v1989 = vpop.f32.mrf.mxu0
  %v1990 = vadd.f32 0.0, %v1989
  %v1991 = vpop.f32.mrf.mxu0
  %v1992 = vadd.f32 0.0, %v1991
  %1993 = vmatmul.bf16.gmra.mxu0 %v1630
  %v1994 = vpop.f32.mrf.mxu0
  %v1995 = vadd.f32 0.0, %v1994
  %v1996 = vpop.f32.mrf.mxu0
  %v1997 = vadd.f32 0.0, %v1996
  %1998 = vmatmul.bf16.gmra.mxu0 %v1631
  %v1999 = vpop.f32.mrf.mxu0
  %v2000 = vadd.f32 0.0, %v1999
  %v2001 = vpop.f32.mrf.mxu0
  %v2002 = vadd.f32 0.0, %v2001
  %2003 = vdwg.mxu0
  %v2004 = vmax.f32 %v1658, %v1836
  %v2005 = vmax.f32 %v1747, %v1925
  %v2006 = vmax.f32 %v1660, %v1838
  %v2007 = vmax.f32 %v1749, %v1927
  %v2008 = vmax.f32 %v1663, %v1841
  %v2009 = vmax.f32 %v1752, %v1930
  %v2010 = vmax.f32 %v1665, %v1843
  %v2011 = vmax.f32 %v1754, %v1932
  %v2012 = vmax.f32 %v1668, %v1846
  %v2013 = vmax.f32 %v1757, %v1935
  %v2014 = vmax.f32 %v1670, %v1848
  %v2015 = vmax.f32 %v1759, %v1937
  %v2016 = vmax.f32 %v1673, %v1851
  %v2017 = vmax.f32 %v1762, %v1940
  %v2018 = vmax.f32 %v1675, %v1853
  %v2019 = vmax.f32 %v1764, %v1942
  %v2020 = vmax.f32 %v1678, %v1856
  %v2021 = vmax.f32 %v1767, %v1945
  %v2022 = vmax.f32 %v1680, %v1858
  %v2023 = vmax.f32 %v1769, %v1947
  %v2024 = vmax.f32 %v1683, %v1861
  %v2025 = vmax.f32 %v1772, %v1950
  %v2026 = vmax.f32 %v1685, %v1863
  %v2027 = vmax.f32 %v1774, %v1952
  %v2028 = vmax.f32 %v1688, %v1866
  %v2029 = vmax.f32 %v1777, %v1955
  %v2030 = vmax.f32 %v1690, %v1868
  %v2031 = vmax.f32 %v1779, %v1957
  %v2032 = vmax.f32 %v1693, %v1871
  %v2033 = vmax.f32 %v1782, %v1960
  %v2034 = vmax.f32 %v1695, %v1873
  %v2035 = vmax.f32 %v1784, %v1962
  %v2036 = vmax.f32 %v1698, %v1876
  %v2037 = vmax.f32 %v1787, %v1965
  %v2038 = vmax.f32 %v1700, %v1878
  %v2039 = vmax.f32 %v1789, %v1967
  %v2040 = vmax.f32 %v1703, %v1881
  %v2041 = vmax.f32 %v1792, %v1970
  %v2042 = vmax.f32 %v1705, %v1883
  %v2043 = vmax.f32 %v1794, %v1972
  %v2044 = vmax.f32 %v1708, %v1886
  %v2045 = vmax.f32 %v1797, %v1975
  %v2046 = vmax.f32 %v1710, %v1888
  %v2047 = vmax.f32 %v1799, %v1977
  %v2048 = vmax.f32 %v1713, %v1891
  %v2049 = vmax.f32 %v1802, %v1980
  %v2050 = vmax.f32 %v1715, %v1893
  %v2051 = vmax.f32 %v1804, %v1982
  %v2052 = vmax.f32 %v1718, %v1896
  %v2053 = vmax.f32 %v1807, %v1985
  %v2054 = vmax.f32 %v1720, %v1898
  %v2055 = vmax.f32 %v1809, %v1987
  %v2056 = vmax.f32 %v1723, %v1901
  %v2057 = vmax.f32 %v1812, %v1990
  %v2058 = vmax.f32 %v1725, %v1903
  %v2059 = vmax.f32 %v1814, %v1992
  %v2060 = vmax.f32 %v1728, %v1906
  %v2061 = vmax.f32 %v1817, %v1995
  %v2062 = vmax.f32 %v1730, %v1908
  %v2063 = vmax.f32 %v1819, %v1997
  %v2064 = vmax.f32 %v1733, %v1911
  %v2065 = vmax.f32 %v1822, %v2000
  %v2066 = vmax.f32 %v1735, %v1913
  %v2067 = vmax.f32 %v1824, %v2002
  %s2068 = scalar_lea.vmem %s0, 384
  %v2069 = vld [vmem:[%s2068] sm:$0xf]
  %v2070 = vld [vmem:[%s2068 + $0x4] sm:$0xf]
  %v2071 = vld [vmem:[%s2068 + $0x8] sm:$0xf]
  %v2072 = vld [vmem:[%s2068 + $0xc] sm:$0xf]
  %v2073 = vld [vmem:[%s2068 + $0x10] sm:$0xf]
  %v2074 = vld [vmem:[%s2068 + $0x14] sm:$0xf]
  %v2075 = vld [vmem:[%s2068 + $0x18] sm:$0xf]
  %v2076 = vld [vmem:[%s2068 + $0x1c] sm:$0xf]
  %v2077 = vld [vmem:[%s2068 + $0x20] sm:$0xf]
  %v2078 = vld [vmem:[%s2068 + $0x24] sm:$0xf]
  %v2079 = vld [vmem:[%s2068 + $0x28] sm:$0xf]
  %v2080 = vld [vmem:[%s2068 + $0x2c] sm:$0xf]
  %v2081 = vld [vmem:[%s2068 + $0x30] sm:$0xf]
  %v2082 = vld [vmem:[%s2068 + $0x34] sm:$0xf]
  %v2083 = vld [vmem:[%s2068 + $0x38] sm:$0xf]
  %v2084 = vld [vmem:[%s2068 + $0x3c] sm:$0xf]
  %v2085 = vld [vmem:[%s2068 + $0x40] sm:$0xf]
  %v2086 = vld [vmem:[%s2068 + $0x44] sm:$0xf]
  %v2087 = vld [vmem:[%s2068 + $0x48] sm:$0xf]
  %v2088 = vld [vmem:[%s2068 + $0x4c] sm:$0xf]
  %v2089 = vld [vmem:[%s2068 + $0x50] sm:$0xf]
  %v2090 = vld [vmem:[%s2068 + $0x54] sm:$0xf]
  %v2091 = vld [vmem:[%s2068 + $0x58] sm:$0xf]
  %v2092 = vld [vmem:[%s2068 + $0x5c] sm:$0xf]
  %v2093 = vld [vmem:[%s2068 + $0x60] sm:$0xf]
  %v2094 = vld [vmem:[%s2068 + $0x64] sm:$0xf]
  %v2095 = vld [vmem:[%s2068 + $0x68] sm:$0xf]
  %v2096 = vld [vmem:[%s2068 + $0x6c] sm:$0xf]
  %v2097 = vld [vmem:[%s2068 + $0x70] sm:$0xf]
  %v2098 = vld [vmem:[%s2068 + $0x74] sm:$0xf]
  %v2099 = vld [vmem:[%s2068 + $0x78] sm:$0xf]
  %v2100 = vld [vmem:[%s2068 + $0x7c] sm:$0xf]
  %v2133 = vunpack.c.l.b16 %v2069
  %v2134 = vunpack.c.l.b16 %v2070
  %v2135 = vunpack.c.l.b16 %v2071
  %v2136 = vunpack.c.l.b16 %v2072
  %v2137 = vunpack.c.l.b16 %v2073
  %v2138 = vunpack.c.l.b16 %v2074
  %v2139 = vunpack.c.l.b16 %v2075
  %v2140 = vunpack.c.l.b16 %v2076
  %v2141 = vunpack.c.l.b16 %v2077
  %v2142 = vunpack.c.l.b16 %v2078
  %v2143 = vunpack.c.l.b16 %v2079
  %v2144 = vunpack.c.l.b16 %v2080
  %v2145 = vunpack.c.l.b16 %v2081
  %v2146 = vunpack.c.l.b16 %v2082
  %v2147 = vunpack.c.l.b16 %v2083
  %v2148 = vunpack.c.l.b16 %v2084
  %v2149 = vunpack.c.l.b16 %v2085
  %v2150 = vunpack.c.l.b16 %v2086
  %v2151 = vunpack.c.l.b16 %v2087
  %v2152 = vunpack.c.l.b16 %v2088
  %v2153 = vunpack.c.l.b16 %v2089
  %v2154 = vunpack.c.l.b16 %v2090
  %v2155 = vunpack.c.l.b16 %v2091
  %v2156 = vunpack.c.l.b16 %v2092
  %v2157 = vunpack.c.l.b16 %v2093
  %v2158 = vunpack.c.l.b16 %v2094
  %v2159 = vunpack.c.l.b16 %v2095
  %v2160 = vunpack.c.l.b16 %v2096
  %v2161 = vunpack.c.l.b16 %v2097
  %v2162 = vunpack.c.l.b16 %v2098
  %v2163 = vunpack.c.l.b16 %v2099
  %v2164 = vunpack.c.l.b16 %v2100
  %v2165 = vpack.c.b16 %v2134, %v2133
  %v2166 = vpack.c.b16 %v2136, %v2135
  %v2167 = vpack.c.b16 %v2138, %v2137
  %v2168 = vpack.c.b16 %v2140, %v2139
  %v2169 = vpack.c.b16 %v2142, %v2141
  %v2170 = vpack.c.b16 %v2144, %v2143
  %v2171 = vpack.c.b16 %v2146, %v2145
  %v2172 = vpack.c.b16 %v2148, %v2147
  %v2173 = vpack.c.b16 %v2150, %v2149
  %v2174 = vpack.c.b16 %v2152, %v2151
  %v2175 = vpack.c.b16 %v2154, %v2153
  %v2176 = vpack.c.b16 %v2156, %v2155
  %v2177 = vpack.c.b16 %v2158, %v2157
  %v2178 = vpack.c.b16 %v2160, %v2159
  %v2179 = vpack.c.b16 %v2162, %v2161
  %v2180 = vpack.c.b16 %v2164, %v2163
  %2197 = vmatpush.bf16.msra.mxu0 %v317
  %2198 = vmatpush.bf16.msra.mxu0 %v313
  %2199 = vmatpush.bf16.msra.mxu0 %v309
  %2200 = vmatpush.bf16.msra.mxu0 %v305
  %2201 = vmatpush.bf16.msra.mxu0 %v301
  %2202 = vmatpush.bf16.msra.mxu0 %v297
  %2203 = vmatpush.bf16.msra.mxu0 %v293
  %2204 = vmatpush.bf16.msra.mxu0 %v289
  %2205 = vmatmul.bf16.gmra.mxu0 %v2165
  %v2206 = vpop.f32.mrf.mxu0
  %v2207 = vadd.f32 0.0, %v2206
  %v2208 = vpop.f32.mrf.mxu0
  %v2209 = vadd.f32 0.0, %v2208
  %2210 = vmatmul.bf16.gmra.mxu0 %v2166
  %v2211 = vpop.f32.mrf.mxu0
  %v2212 = vadd.f32 0.0, %v2211
  %v2213 = vpop.f32.mrf.mxu0
  %v2214 = vadd.f32 0.0, %v2213
  %2215 = vmatmul.bf16.gmra.mxu0 %v2167
  %v2216 = vpop.f32.mrf.mxu0
  %v2217 = vadd.f32 0.0, %v2216
  %v2218 = vpop.f32.mrf.mxu0
  %v2219 = vadd.f32 0.0, %v2218
  %2220 = vmatmul.bf16.gmra.mxu0 %v2168
  %v2221 = vpop.f32.mrf.mxu0
  %v2222 = vadd.f32 0.0, %v2221
  %v2223 = vpop.f32.mrf.mxu0
  %v2224 = vadd.f32 0.0, %v2223
  %2225 = vmatmul.bf16.gmra.mxu0 %v2169
  %v2226 = vpop.f32.mrf.mxu0
  %v2227 = vadd.f32 0.0, %v2226
  %v2228 = vpop.f32.mrf.mxu0
  %v2229 = vadd.f32 0.0, %v2228
  %2230 = vmatmul.bf16.gmra.mxu0 %v2170
  %v2231 = vpop.f32.mrf.mxu0
  %v2232 = vadd.f32 0.0, %v2231
  %v2233 = vpop.f32.mrf.mxu0
  %v2234 = vadd.f32 0.0, %v2233
  %2235 = vmatmul.bf16.gmra.mxu0 %v2171
  %v2236 = vpop.f32.mrf.mxu0
  %v2237 = vadd.f32 0.0, %v2236
  %v2238 = vpop.f32.mrf.mxu0
  %v2239 = vadd.f32 0.0, %v2238
  %2240 = vmatmul.bf16.gmra.mxu0 %v2172
  %v2241 = vpop.f32.mrf.mxu0
  %v2242 = vadd.f32 0.0, %v2241
  %v2243 = vpop.f32.mrf.mxu0
  %v2244 = vadd.f32 0.0, %v2243
  %2245 = vmatmul.bf16.gmra.mxu0 %v2173
  %v2246 = vpop.f32.mrf.mxu0
  %v2247 = vadd.f32 0.0, %v2246
  %v2248 = vpop.f32.mrf.mxu0
  %v2249 = vadd.f32 0.0, %v2248
  %2250 = vmatmul.bf16.gmra.mxu0 %v2174
  %v2251 = vpop.f32.mrf.mxu0
  %v2252 = vadd.f32 0.0, %v2251
  %v2253 = vpop.f32.mrf.mxu0
  %v2254 = vadd.f32 0.0, %v2253
  %2255 = vmatmul.bf16.gmra.mxu0 %v2175
  %v2256 = vpop.f32.mrf.mxu0
  %v2257 = vadd.f32 0.0, %v2256
  %v2258 = vpop.f32.mrf.mxu0
  %v2259 = vadd.f32 0.0, %v2258
  %2260 = vmatmul.bf16.gmra.mxu0 %v2176
  %v2261 = vpop.f32.mrf.mxu0
  %v2262 = vadd.f32 0.0, %v2261
  %v2263 = vpop.f32.mrf.mxu0
  %v2264 = vadd.f32 0.0, %v2263
  %2265 = vmatmul.bf16.gmra.mxu0 %v2177
  %v2266 = vpop.f32.mrf.mxu0
  %v2267 = vadd.f32 0.0, %v2266
  %v2268 = vpop.f32.mrf.mxu0
  %v2269 = vadd.f32 0.0, %v2268
  %2270 = vmatmul.bf16.gmra.mxu0 %v2178
  %v2271 = vpop.f32.mrf.mxu0
  %v2272 = vadd.f32 0.0, %v2271
  %v2273 = vpop.f32.mrf.mxu0
  %v2274 = vadd.f32 0.0, %v2273
  %2275 = vmatmul.bf16.gmra.mxu0 %v2179
  %v2276 = vpop.f32.mrf.mxu0
  %v2277 = vadd.f32 0.0, %v2276
  %v2278 = vpop.f32.mrf.mxu0
  %v2279 = vadd.f32 0.0, %v2278
  %2280 = vmatmul.bf16.gmra.mxu0 %v2180
  %v2281 = vpop.f32.mrf.mxu0
  %v2282 = vadd.f32 0.0, %v2281
  %v2283 = vpop.f32.mrf.mxu0
  %v2284 = vadd.f32 0.0, %v2283
  %2285 = vdwg.mxu0
  %2286 = vmatpush.bf16.msra.mxu0 %v318
  %2287 = vmatpush.bf16.msra.mxu0 %v314
  %2288 = vmatpush.bf16.msra.mxu0 %v310
  %2289 = vmatpush.bf16.msra.mxu0 %v306
  %2290 = vmatpush.bf16.msra.mxu0 %v302
  %2291 = vmatpush.bf16.msra.mxu0 %v298
  %2292 = vmatpush.bf16.msra.mxu0 %v294
  %2293 = vmatpush.bf16.msra.mxu0 %v290
  %2294 = vmatmul.bf16.gmra.mxu0 %v2165
  %v2295 = vpop.f32.mrf.mxu0
  %v2296 = vadd.f32 0.0, %v2295
  %v2297 = vpop.f32.mrf.mxu0
  %v2298 = vadd.f32 0.0, %v2297
  %2299 = vmatmul.bf16.gmra.mxu0 %v2166
  %v2300 = vpop.f32.mrf.mxu0
  %v2301 = vadd.f32 0.0, %v2300
  %v2302 = vpop.f32.mrf.mxu0
  %v2303 = vadd.f32 0.0, %v2302
  %2304 = vmatmul.bf16.gmra.mxu0 %v2167
  %v2305 = vpop.f32.mrf.mxu0
  %v2306 = vadd.f32 0.0, %v2305
  %v2307 = vpop.f32.mrf.mxu0
  %v2308 = vadd.f32 0.0, %v2307
  %2309 = vmatmul.bf16.gmra.mxu0 %v2168
  %v2310 = vpop.f32.mrf.mxu0
  %v2311 = vadd.f32 0.0, %v2310
  %v2312 = vpop.f32.mrf.mxu0
  %v2313 = vadd.f32 0.0, %v2312
  %2314 = vmatmul.bf16.gmra.mxu0 %v2169
  %v2315 = vpop.f32.mrf.mxu0
  %v2316 = vadd.f32 0.0, %v2315
  %v2317 = vpop.f32.mrf.mxu0
  %v2318 = vadd.f32 0.0, %v2317
  %2319 = vmatmul.bf16.gmra.mxu0 %v2170
  %v2320 = vpop.f32.mrf.mxu0
  %v2321 = vadd.f32 0.0, %v2320
  %v2322 = vpop.f32.mrf.mxu0
  %v2323 = vadd.f32 0.0, %v2322
  %2324 = vmatmul.bf16.gmra.mxu0 %v2171
  %v2325 = vpop.f32.mrf.mxu0
  %v2326 = vadd.f32 0.0, %v2325
  %v2327 = vpop.f32.mrf.mxu0
  %v2328 = vadd.f32 0.0, %v2327
  %2329 = vmatmul.bf16.gmra.mxu0 %v2172
  %v2330 = vpop.f32.mrf.mxu0
  %v2331 = vadd.f32 0.0, %v2330
  %v2332 = vpop.f32.mrf.mxu0
  %v2333 = vadd.f32 0.0, %v2332
  %2334 = vmatmul.bf16.gmra.mxu0 %v2173
  %v2335 = vpop.f32.mrf.mxu0
  %v2336 = vadd.f32 0.0, %v2335
  %v2337 = vpop.f32.mrf.mxu0
  %v2338 = vadd.f32 0.0, %v2337
  %2339 = vmatmul.bf16.gmra.mxu0 %v2174
  %v2340 = vpop.f32.mrf.mxu0
  %v2341 = vadd.f32 0.0, %v2340
  %v2342 = vpop.f32.mrf.mxu0
  %v2343 = vadd.f32 0.0, %v2342
  %2344 = vmatmul.bf16.gmra.mxu0 %v2175
  %v2345 = vpop.f32.mrf.mxu0
  %v2346 = vadd.f32 0.0, %v2345
  %v2347 = vpop.f32.mrf.mxu0
  %v2348 = vadd.f32 0.0, %v2347
  %2349 = vmatmul.bf16.gmra.mxu0 %v2176
  %v2350 = vpop.f32.mrf.mxu0
  %v2351 = vadd.f32 0.0, %v2350
  %v2352 = vpop.f32.mrf.mxu0
  %v2353 = vadd.f32 0.0, %v2352
  %2354 = vmatmul.bf16.gmra.mxu0 %v2177
  %v2355 = vpop.f32.mrf.mxu0
  %v2356 = vadd.f32 0.0, %v2355
  %v2357 = vpop.f32.mrf.mxu0
  %v2358 = vadd.f32 0.0, %v2357
  %2359 = vmatmul.bf16.gmra.mxu0 %v2178
  %v2360 = vpop.f32.mrf.mxu0
  %v2361 = vadd.f32 0.0, %v2360
  %v2362 = vpop.f32.mrf.mxu0
  %v2363 = vadd.f32 0.0, %v2362
  %2364 = vmatmul.bf16.gmra.mxu0 %v2179
  %v2365 = vpop.f32.mrf.mxu0
  %v2366 = vadd.f32 0.0, %v2365
  %v2367 = vpop.f32.mrf.mxu0
  %v2368 = vadd.f32 0.0, %v2367
  %2369 = vmatmul.bf16.gmra.mxu0 %v2180
  %v2370 = vpop.f32.mrf.mxu0
  %v2371 = vadd.f32 0.0, %v2370
  %v2372 = vpop.f32.mrf.mxu0
  %v2373 = vadd.f32 0.0, %v2372
  %2374 = vdwg.mxu0
  %2375 = vmatpush.bf16.msra.mxu0 %v319
  %2376 = vmatpush.bf16.msra.mxu0 %v315
  %2377 = vmatpush.bf16.msra.mxu0 %v311
  %2378 = vmatpush.bf16.msra.mxu0 %v307
  %2379 = vmatpush.bf16.msra.mxu0 %v303
  %2380 = vmatpush.bf16.msra.mxu0 %v299
  %2381 = vmatpush.bf16.msra.mxu0 %v295
  %2382 = vmatpush.bf16.msra.mxu0 %v291
  %2383 = vmatmul.bf16.gmra.mxu0 %v2165
  %v2384 = vpop.f32.mrf.mxu0
  %v2385 = vadd.f32 0.0, %v2384
  %v2386 = vpop.f32.mrf.mxu0
  %v2387 = vadd.f32 0.0, %v2386
  %2388 = vmatmul.bf16.gmra.mxu0 %v2166
  %v2389 = vpop.f32.mrf.mxu0
  %v2390 = vadd.f32 0.0, %v2389
  %v2391 = vpop.f32.mrf.mxu0
  %v2392 = vadd.f32 0.0, %v2391
  %2393 = vmatmul.bf16.gmra.mxu0 %v2167
  %v2394 = vpop.f32.mrf.mxu0
  %v2395 = vadd.f32 0.0, %v2394
  %v2396 = vpop.f32.mrf.mxu0
  %v2397 = vadd.f32 0.0, %v2396
  %2398 = vmatmul.bf16.gmra.mxu0 %v2168
  %v2399 = vpop.f32.mrf.mxu0
  %v2400 = vadd.f32 0.0, %v2399
  %v2401 = vpop.f32.mrf.mxu0
  %v2402 = vadd.f32 0.0, %v2401
  %2403 = vmatmul.bf16.gmra.mxu0 %v2169
  %v2404 = vpop.f32.mrf.mxu0
  %v2405 = vadd.f32 0.0, %v2404
  %v2406 = vpop.f32.mrf.mxu0
  %v2407 = vadd.f32 0.0, %v2406
  %2408 = vmatmul.bf16.gmra.mxu0 %v2170
  %v2409 = vpop.f32.mrf.mxu0
  %v2410 = vadd.f32 0.0, %v2409
  %v2411 = vpop.f32.mrf.mxu0
  %v2412 = vadd.f32 0.0, %v2411
  %2413 = vmatmul.bf16.gmra.mxu0 %v2171
  %v2414 = vpop.f32.mrf.mxu0
  %v2415 = vadd.f32 0.0, %v2414
  %v2416 = vpop.f32.mrf.mxu0
  %v2417 = vadd.f32 0.0, %v2416
  %2418 = vmatmul.bf16.gmra.mxu0 %v2172
  %v2419 = vpop.f32.mrf.mxu0
  %v2420 = vadd.f32 0.0, %v2419
  %v2421 = vpop.f32.mrf.mxu0
  %v2422 = vadd.f32 0.0, %v2421
  %2423 = vmatmul.bf16.gmra.mxu0 %v2173
  %v2424 = vpop.f32.mrf.mxu0
  %v2425 = vadd.f32 0.0, %v2424
  %v2426 = vpop.f32.mrf.mxu0
  %v2427 = vadd.f32 0.0, %v2426
  %2428 = vmatmul.bf16.gmra.mxu0 %v2174
  %v2429 = vpop.f32.mrf.mxu0
  %v2430 = vadd.f32 0.0, %v2429
  %v2431 = vpop.f32.mrf.mxu0
  %v2432 = vadd.f32 0.0, %v2431
  %2433 = vmatmul.bf16.gmra.mxu0 %v2175
  %v2434 = vpop.f32.mrf.mxu0
  %v2435 = vadd.f32 0.0, %v2434
  %v2436 = vpop.f32.mrf.mxu0
  %v2437 = vadd.f32 0.0, %v2436
  %2438 = vmatmul.bf16.gmra.mxu0 %v2176
  %v2439 = vpop.f32.mrf.mxu0
  %v2440 = vadd.f32 0.0, %v2439
  %v2441 = vpop.f32.mrf.mxu0
  %v2442 = vadd.f32 0.0, %v2441
  %2443 = vmatmul.bf16.gmra.mxu0 %v2177
  %v2444 = vpop.f32.mrf.mxu0
  %v2445 = vadd.f32 0.0, %v2444
  %v2446 = vpop.f32.mrf.mxu0
  %v2447 = vadd.f32 0.0, %v2446
  %2448 = vmatmul.bf16.gmra.mxu0 %v2178
  %v2449 = vpop.f32.mrf.mxu0
  %v2450 = vadd.f32 0.0, %v2449
  %v2451 = vpop.f32.mrf.mxu0
  %v2452 = vadd.f32 0.0, %v2451
  %2453 = vmatmul.bf16.gmra.mxu0 %v2179
  %v2454 = vpop.f32.mrf.mxu0
  %v2455 = vadd.f32 0.0, %v2454
  %v2456 = vpop.f32.mrf.mxu0
  %v2457 = vadd.f32 0.0, %v2456
  %2458 = vmatmul.bf16.gmra.mxu0 %v2180
  %v2459 = vpop.f32.mrf.mxu0
  %v2460 = vadd.f32 0.0, %v2459
  %v2461 = vpop.f32.mrf.mxu0
  %v2462 = vadd.f32 0.0, %v2461
  %2463 = vdwg.mxu0
  %2464 = vmatpush.bf16.msra.mxu0 %v320
  %2465 = vmatpush.bf16.msra.mxu0 %v316
  %2466 = vmatpush.bf16.msra.mxu0 %v312
  %2467 = vmatpush.bf16.msra.mxu0 %v308
  %2468 = vmatpush.bf16.msra.mxu0 %v304
  %2469 = vmatpush.bf16.msra.mxu0 %v300
  %2470 = vmatpush.bf16.msra.mxu0 %v296
  %2471 = vmatpush.bf16.msra.mxu0 %v292
  %2472 = vmatmul.bf16.gmra.mxu0 %v2165
  %v2473 = vpop.f32.mrf.mxu0
  %v2474 = vadd.f32 0.0, %v2473
  %v2475 = vpop.f32.mrf.mxu0
  %v2476 = vadd.f32 0.0, %v2475
  %2477 = vmatmul.bf16.gmra.mxu0 %v2166
  %v2478 = vpop.f32.mrf.mxu0
  %v2479 = vadd.f32 0.0, %v2478
  %v2480 = vpop.f32.mrf.mxu0
  %v2481 = vadd.f32 0.0, %v2480
  %2482 = vmatmul.bf16.gmra.mxu0 %v2167
  %v2483 = vpop.f32.mrf.mxu0
  %v2484 = vadd.f32 0.0, %v2483
  %v2485 = vpop.f32.mrf.mxu0
  %v2486 = vadd.f32 0.0, %v2485
  %2487 = vmatmul.bf16.gmra.mxu0 %v2168
  %v2488 = vpop.f32.mrf.mxu0
  %v2489 = vadd.f32 0.0, %v2488
  %v2490 = vpop.f32.mrf.mxu0
  %v2491 = vadd.f32 0.0, %v2490
  %2492 = vmatmul.bf16.gmra.mxu0 %v2169
  %v2493 = vpop.f32.mrf.mxu0
  %v2494 = vadd.f32 0.0, %v2493
  %v2495 = vpop.f32.mrf.mxu0
  %v2496 = vadd.f32 0.0, %v2495
  %2497 = vmatmul.bf16.gmra.mxu0 %v2170
  %v2498 = vpop.f32.mrf.mxu0
  %v2499 = vadd.f32 0.0, %v2498
  %v2500 = vpop.f32.mrf.mxu0
  %v2501 = vadd.f32 0.0, %v2500
  %2502 = vmatmul.bf16.gmra.mxu0 %v2171
  %v2503 = vpop.f32.mrf.mxu0
  %v2504 = vadd.f32 0.0, %v2503
  %v2505 = vpop.f32.mrf.mxu0
  %v2506 = vadd.f32 0.0, %v2505
  %2507 = vmatmul.bf16.gmra.mxu0 %v2172
  %v2508 = vpop.f32.mrf.mxu0
  %v2509 = vadd.f32 0.0, %v2508
  %v2510 = vpop.f32.mrf.mxu0
  %v2511 = vadd.f32 0.0, %v2510
  %2512 = vmatmul.bf16.gmra.mxu0 %v2173
  %v2513 = vpop.f32.mrf.mxu0
  %v2514 = vadd.f32 0.0, %v2513
  %v2515 = vpop.f32.mrf.mxu0
  %v2516 = vadd.f32 0.0, %v2515
  %2517 = vmatmul.bf16.gmra.mxu0 %v2174
  %v2518 = vpop.f32.mrf.mxu0
  %v2519 = vadd.f32 0.0, %v2518
  %v2520 = vpop.f32.mrf.mxu0
  %v2521 = vadd.f32 0.0, %v2520
  %2522 = vmatmul.bf16.gmra.mxu0 %v2175
  %v2523 = vpop.f32.mrf.mxu0
  %v2524 = vadd.f32 0.0, %v2523
  %v2525 = vpop.f32.mrf.mxu0
  %v2526 = vadd.f32 0.0, %v2525
  %2527 = vmatmul.bf16.gmra.mxu0 %v2176
  %v2528 = vpop.f32.mrf.mxu0
  %v2529 = vadd.f32 0.0, %v2528
  %v2530 = vpop.f32.mrf.mxu0
  %v2531 = vadd.f32 0.0, %v2530
  %2532 = vmatmul.bf16.gmra.mxu0 %v2177
  %v2533 = vpop.f32.mrf.mxu0
  %v2534 = vadd.f32 0.0, %v2533
  %v2535 = vpop.f32.mrf.mxu0
  %v2536 = vadd.f32 0.0, %v2535
  %2537 = vmatmul.bf16.gmra.mxu0 %v2178
  %v2538 = vpop.f32.mrf.mxu0
  %v2539 = vadd.f32 0.0, %v2538
  %v2540 = vpop.f32.mrf.mxu0
  %v2541 = vadd.f32 0.0, %v2540
  %2542 = vmatmul.bf16.gmra.mxu0 %v2179
  %v2543 = vpop.f32.mrf.mxu0
  %v2544 = vadd.f32 0.0, %v2543
  %v2545 = vpop.f32.mrf.mxu0
  %v2546 = vadd.f32 0.0, %v2545
  %2547 = vmatmul.bf16.gmra.mxu0 %v2180
  %v2548 = vpop.f32.mrf.mxu0
  %v2549 = vadd.f32 0.0, %v2548
  %v2550 = vpop.f32.mrf.mxu0
  %v2551 = vadd.f32 0.0, %v2550
  %2552 = vdwg.mxu0
  %v2553 = vmax.f32 %v2207, %v2385
  %v2554 = vmax.f32 %v2296, %v2474
  %v2555 = vmax.f32 %v2209, %v2387
  %v2556 = vmax.f32 %v2298, %v2476
  %v2557 = vmax.f32 %v2212, %v2390
  %v2558 = vmax.f32 %v2301, %v2479
  %v2559 = vmax.f32 %v2214, %v2392
  %v2560 = vmax.f32 %v2303, %v2481
  %v2561 = vmax.f32 %v2217, %v2395
  %v2562 = vmax.f32 %v2306, %v2484
  %v2563 = vmax.f32 %v2219, %v2397
  %v2564 = vmax.f32 %v2308, %v2486
  %v2565 = vmax.f32 %v2222, %v2400
  %v2566 = vmax.f32 %v2311, %v2489
  %v2567 = vmax.f32 %v2224, %v2402
  %v2568 = vmax.f32 %v2313, %v2491
  %v2569 = vmax.f32 %v2227, %v2405
  %v2570 = vmax.f32 %v2316, %v2494
  %v2571 = vmax.f32 %v2229, %v2407
  %v2572 = vmax.f32 %v2318, %v2496
  %v2573 = vmax.f32 %v2232, %v2410
  %v2574 = vmax.f32 %v2321, %v2499
  %v2575 = vmax.f32 %v2234, %v2412
  %v2576 = vmax.f32 %v2323, %v2501
  %v2577 = vmax.f32 %v2237, %v2415
  %v2578 = vmax.f32 %v2326, %v2504
  %v2579 = vmax.f32 %v2239, %v2417
  %v2580 = vmax.f32 %v2328, %v2506
  %v2581 = vmax.f32 %v2242, %v2420
  %v2582 = vmax.f32 %v2331, %v2509
  %v2583 = vmax.f32 %v2244, %v2422
  %v2584 = vmax.f32 %v2333, %v2511
  %v2585 = vmax.f32 %v2247, %v2425
  %v2586 = vmax.f32 %v2336, %v2514
  %v2587 = vmax.f32 %v2249, %v2427
  %v2588 = vmax.f32 %v2338, %v2516
  %v2589 = vmax.f32 %v2252, %v2430
  %v2590 = vmax.f32 %v2341, %v2519
  %v2591 = vmax.f32 %v2254, %v2432
  %v2592 = vmax.f32 %v2343, %v2521
  %v2593 = vmax.f32 %v2257, %v2435
  %v2594 = vmax.f32 %v2346, %v2524
  %v2595 = vmax.f32 %v2259, %v2437
  %v2596 = vmax.f32 %v2348, %v2526
  %v2597 = vmax.f32 %v2262, %v2440
  %v2598 = vmax.f32 %v2351, %v2529
  %v2599 = vmax.f32 %v2264, %v2442
  %v2600 = vmax.f32 %v2353, %v2531
  %v2601 = vmax.f32 %v2267, %v2445
  %v2602 = vmax.f32 %v2356, %v2534
  %v2603 = vmax.f32 %v2269, %v2447
  %v2604 = vmax.f32 %v2358, %v2536
  %v2605 = vmax.f32 %v2272, %v2450
  %v2606 = vmax.f32 %v2361, %v2539
  %v2607 = vmax.f32 %v2274, %v2452
  %v2608 = vmax.f32 %v2363, %v2541
  %v2609 = vmax.f32 %v2277, %v2455
  %v2610 = vmax.f32 %v2366, %v2544
  %v2611 = vmax.f32 %v2279, %v2457
  %v2612 = vmax.f32 %v2368, %v2546
  %v2613 = vmax.f32 %v2282, %v2460
  %v2614 = vmax.f32 %v2371, %v2549
  %v2615 = vmax.f32 %v2284, %v2462
  %v2616 = vmax.f32 %v2373, %v2551
  %v2617 = vmax.f32 %v2004, %v2553
  %v2618 = vmax.f32 %v2005, %v2554
  %v2619 = vmax.f32 %v2006, %v2555
  %v2620 = vmax.f32 %v2007, %v2556
  %v2621 = vmax.f32 %v2008, %v2557
  %v2622 = vmax.f32 %v2009, %v2558
  %v2623 = vmax.f32 %v2010, %v2559
  %v2624 = vmax.f32 %v2011, %v2560
  %v2625 = vmax.f32 %v2012, %v2561
  %v2626 = vmax.f32 %v2013, %v2562
  %v2627 = vmax.f32 %v2014, %v2563
  %v2628 = vmax.f32 %v2015, %v2564
  %v2629 = vmax.f32 %v2016, %v2565
  %v2630 = vmax.f32 %v2017, %v2566
  %v2631 = vmax.f32 %v2018, %v2567
  %v2632 = vmax.f32 %v2019, %v2568
  %v2633 = vmax.f32 %v2020, %v2569
  %v2634 = vmax.f32 %v2021, %v2570
  %v2635 = vmax.f32 %v2022, %v2571
  %v2636 = vmax.f32 %v2023, %v2572
  %v2637 = vmax.f32 %v2024, %v2573
  %v2638 = vmax.f32 %v2025, %v2574
  %v2639 = vmax.f32 %v2026, %v2575
  %v2640 = vmax.f32 %v2027, %v2576
  %v2641 = vmax.f32 %v2028, %v2577
  %v2642 = vmax.f32 %v2029, %v2578
  %v2643 = vmax.f32 %v2030, %v2579
  %v2644 = vmax.f32 %v2031, %v2580
  %v2645 = vmax.f32 %v2032, %v2581
  %v2646 = vmax.f32 %v2033, %v2582
  %v2647 = vmax.f32 %v2034, %v2583
  %v2648 = vmax.f32 %v2035, %v2584
  %v2649 = vmax.f32 %v2036, %v2585
  %v2650 = vmax.f32 %v2037, %v2586
  %v2651 = vmax.f32 %v2038, %v2587
  %v2652 = vmax.f32 %v2039, %v2588
  %v2653 = vmax.f32 %v2040, %v2589
  %v2654 = vmax.f32 %v2041, %v2590
  %v2655 = vmax.f32 %v2042, %v2591
  %v2656 = vmax.f32 %v2043, %v2592
  %v2657 = vmax.f32 %v2044, %v2593
  %v2658 = vmax.f32 %v2045, %v2594
  %v2659 = vmax.f32 %v2046, %v2595
  %v2660 = vmax.f32 %v2047, %v2596
  %v2661 = vmax.f32 %v2048, %v2597
  %v2662 = vmax.f32 %v2049, %v2598
  %v2663 = vmax.f32 %v2050, %v2599
  %v2664 = vmax.f32 %v2051, %v2600
  %v2665 = vmax.f32 %v2052, %v2601
  %v2666 = vmax.f32 %v2053, %v2602
  %v2667 = vmax.f32 %v2054, %v2603
  %v2668 = vmax.f32 %v2055, %v2604
  %v2669 = vmax.f32 %v2056, %v2605
  %v2670 = vmax.f32 %v2057, %v2606
  %v2671 = vmax.f32 %v2058, %v2607
  %v2672 = vmax.f32 %v2059, %v2608
  %v2673 = vmax.f32 %v2060, %v2609
  %v2674 = vmax.f32 %v2061, %v2610
  %v2675 = vmax.f32 %v2062, %v2611
  %v2676 = vmax.f32 %v2063, %v2612
  %v2677 = vmax.f32 %v2064, %v2613
  %v2678 = vmax.f32 %v2065, %v2614
  %v2679 = vmax.f32 %v2066, %v2615
  %v2680 = vmax.f32 %v2067, %v2616
  %v2681 = vadd.f32 %v2617, %v1387
  %v2682 = vadd.f32 %v2618, %v1388
  %v2683 = vadd.f32 %v2619, %v1387
  %v2684 = vadd.f32 %v2620, %v1388
  %v2685 = vadd.f32 %v2621, %v1387
  %v2686 = vadd.f32 %v2622, %v1388
  %v2687 = vadd.f32 %v2623, %v1387
  %v2688 = vadd.f32 %v2624, %v1388
  %v2689 = vadd.f32 %v2625, %v1387
  %v2690 = vadd.f32 %v2626, %v1388
  %v2691 = vadd.f32 %v2627, %v1387
  %v2692 = vadd.f32 %v2628, %v1388
  %v2693 = vadd.f32 %v2629, %v1387
  %v2694 = vadd.f32 %v2630, %v1388
  %v2695 = vadd.f32 %v2631, %v1387
  %v2696 = vadd.f32 %v2632, %v1388
  %v2697 = vadd.f32 %v2633, %v1387
  %v2698 = vadd.f32 %v2634, %v1388
  %v2699 = vadd.f32 %v2635, %v1387
  %v2700 = vadd.f32 %v2636, %v1388
  %v2701 = vadd.f32 %v2637, %v1387
  %v2702 = vadd.f32 %v2638, %v1388
  %v2703 = vadd.f32 %v2639, %v1387
  %v2704 = vadd.f32 %v2640, %v1388
  %v2705 = vadd.f32 %v2641, %v1387
  %v2706 = vadd.f32 %v2642, %v1388
  %v2707 = vadd.f32 %v2643, %v1387
  %v2708 = vadd.f32 %v2644, %v1388
  %v2709 = vadd.f32 %v2645, %v1387
  %v2710 = vadd.f32 %v2646, %v1388
  %v2711 = vadd.f32 %v2647, %v1387
  %v2712 = vadd.f32 %v2648, %v1388
  %v2713 = vadd.f32 %v2649, %v1387
  %v2714 = vadd.f32 %v2650, %v1388
  %v2715 = vadd.f32 %v2651, %v1387
  %v2716 = vadd.f32 %v2652, %v1388
  %v2717 = vadd.f32 %v2653, %v1387
  %v2718 = vadd.f32 %v2654, %v1388
  %v2719 = vadd.f32 %v2655, %v1387
  %v2720 = vadd.f32 %v2656, %v1388
  %v2721 = vadd.f32 %v2657, %v1387
  %v2722 = vadd.f32 %v2658, %v1388
  %v2723 = vadd.f32 %v2659, %v1387
  %v2724 = vadd.f32 %v2660, %v1388
  %v2725 = vadd.f32 %v2661, %v1387
  %v2726 = vadd.f32 %v2662, %v1388
  %v2727 = vadd.f32 %v2663, %v1387
  %v2728 = vadd.f32 %v2664, %v1388
  %v2729 = vadd.f32 %v2665, %v1387
  %v2730 = vadd.f32 %v2666, %v1388
  %v2731 = vadd.f32 %v2667, %v1387
  %v2732 = vadd.f32 %v2668, %v1388
  %v2733 = vadd.f32 %v2669, %v1387
  %v2734 = vadd.f32 %v2670, %v1388
  %v2735 = vadd.f32 %v2671, %v1387
  %v2736 = vadd.f32 %v2672, %v1388
  %v2737 = vadd.f32 %v2673, %v1387
  %v2738 = vadd.f32 %v2674, %v1388
  %v2739 = vadd.f32 %v2675, %v1387
  %v2740 = vadd.f32 %v2676, %v1388
  %v2741 = vadd.f32 %v2677, %v1387
  %v2742 = vadd.f32 %v2678, %v1388
  %v2743 = vadd.f32 %v2679, %v1387
  %v2744 = vadd.f32 %v2680, %v1388
  %v2745 = vmax.f32 %v2681, 0.0
  %v2746 = vmax.f32 %v2682, 0.0
  %v2747 = vmax.f32 %v2683, 0.0
  %v2748 = vmax.f32 %v2684, 0.0
  %v2749 = vmax.f32 %v2685, 0.0
  %v2750 = vmax.f32 %v2686, 0.0
  %v2751 = vmax.f32 %v2687, 0.0
  %v2752 = vmax.f32 %v2688, 0.0
  %v2753 = vmax.f32 %v2689, 0.0
  %v2754 = vmax.f32 %v2690, 0.0
  %v2755 = vmax.f32 %v2691, 0.0
  %v2756 = vmax.f32 %v2692, 0.0
  %v2757 = vmax.f32 %v2693, 0.0
  %v2758 = vmax.f32 %v2694, 0.0
  %v2759 = vmax.f32 %v2695, 0.0
  %v2760 = vmax.f32 %v2696, 0.0
  %v2761 = vmax.f32 %v2697, 0.0
  %v2762 = vmax.f32 %v2698, 0.0
  %v2763 = vmax.f32 %v2699, 0.0
  %v2764 = vmax.f32 %v2700, 0.0
  %v2765 = vmax.f32 %v2701, 0.0
  %v2766 = vmax.f32 %v2702, 0.0
  %v2767 = vmax.f32 %v2703, 0.0
  %v2768 = vmax.f32 %v2704, 0.0
  %v2769 = vmax.f32 %v2705, 0.0
  %v2770 = vmax.f32 %v2706, 0.0
  %v2771 = vmax.f32 %v2707, 0.0
  %v2772 = vmax.f32 %v2708, 0.0
  %v2773 = vmax.f32 %v2709, 0.0
  %v2774 = vmax.f32 %v2710, 0.0
  %v2775 = vmax.f32 %v2711, 0.0
  %v2776 = vmax.f32 %v2712, 0.0
  %v2777 = vmax.f32 %v2713, 0.0
  %v2778 = vmax.f32 %v2714, 0.0
  %v2779 = vmax.f32 %v2715, 0.0
  %v2780 = vmax.f32 %v2716, 0.0
  %v2781 = vmax.f32 %v2717, 0.0
  %v2782 = vmax.f32 %v2718, 0.0
  %v2783 = vmax.f32 %v2719, 0.0
  %v2784 = vmax.f32 %v2720, 0.0
  %v2785 = vmax.f32 %v2721, 0.0
  %v2786 = vmax.f32 %v2722, 0.0
  %v2787 = vmax.f32 %v2723, 0.0
  %v2788 = vmax.f32 %v2724, 0.0
  %v2789 = vmax.f32 %v2725, 0.0
  %v2790 = vmax.f32 %v2726, 0.0
  %v2791 = vmax.f32 %v2727, 0.0
  %v2792 = vmax.f32 %v2728, 0.0
  %v2793 = vmax.f32 %v2729, 0.0
  %v2794 = vmax.f32 %v2730, 0.0
  %v2795 = vmax.f32 %v2731, 0.0
  %v2796 = vmax.f32 %v2732, 0.0
  %v2797 = vmax.f32 %v2733, 0.0
  %v2798 = vmax.f32 %v2734, 0.0
  %v2799 = vmax.f32 %v2735, 0.0
  %v2800 = vmax.f32 %v2736, 0.0
  %v2801 = vmax.f32 %v2737, 0.0
  %v2802 = vmax.f32 %v2738, 0.0
  %v2803 = vmax.f32 %v2739, 0.0
  %v2804 = vmax.f32 %v2740, 0.0
  %v2805 = vmax.f32 %v2741, 0.0
  %v2806 = vmax.f32 %v2742, 0.0
  %v2807 = vmax.f32 %v2743, 0.0
  %v2808 = vmax.f32 %v2744, 0.0
  %v2809 = vpack.c.bf16 %v1457, %v1455
  %v2810 = vpack.c.bf16 %v1458, %v1456
  %v2811 = vpack.c.bf16 %v1461, %v1459
  %v2812 = vpack.c.bf16 %v1462, %v1460
  %v2813 = vpack.c.bf16 %v1465, %v1463
  %v2814 = vpack.c.bf16 %v1466, %v1464
  %v2815 = vpack.c.bf16 %v1469, %v1467
  %v2816 = vpack.c.bf16 %v1470, %v1468
  %v2817 = vpack.c.bf16 %v1473, %v1471
  %v2818 = vpack.c.bf16 %v1474, %v1472
  %v2819 = vpack.c.bf16 %v1477, %v1475
  %v2820 = vpack.c.bf16 %v1478, %v1476
  %v2821 = vpack.c.bf16 %v1481, %v1479
  %v2822 = vpack.c.bf16 %v1482, %v1480
  %v2823 = vpack.c.bf16 %v1485, %v1483
  %v2824 = vpack.c.bf16 %v1486, %v1484
  %v2825 = vpack.c.bf16 %v1489, %v1487
  %v2826 = vpack.c.bf16 %v1490, %v1488
  %v2827 = vpack.c.bf16 %v1493, %v1491
  %v2828 = vpack.c.bf16 %v1494, %v1492
  %v2829 = vpack.c.bf16 %v1497, %v1495
  %v2830 = vpack.c.bf16 %v1498, %v1496
  %v2831 = vpack.c.bf16 %v1501, %v1499
  %v2832 = vpack.c.bf16 %v1502, %v1500
  %v2833 = vpack.c.bf16 %v1505, %v1503
  %v2834 = vpack.c.bf16 %v1506, %v1504
  %v2835 = vpack.c.bf16 %v1509, %v1507
  %v2836 = vpack.c.bf16 %v1510, %v1508
  %v2837 = vpack.c.bf16 %v1513, %v1511
  %v2838 = vpack.c.bf16 %v1514, %v1512
  %v2839 = vpack.c.bf16 %v1517, %v1515
  %v2840 = vpack.c.bf16 %v1518, %v1516
  %v2841 = vpack.c.bf16 %v2747, %v2745
  %v2842 = vpack.c.bf16 %v2748, %v2746
  %v2843 = vpack.c.bf16 %v2751, %v2749
  %v2844 = vpack.c.bf16 %v2752, %v2750
  %v2845 = vpack.c.bf16 %v2755, %v2753
  %v2846 = vpack.c.bf16 %v2756, %v2754
  %v2847 = vpack.c.bf16 %v2759, %v2757
  %v2848 = vpack.c.bf16 %v2760, %v2758
  %v2849 = vpack.c.bf16 %v2763, %v2761
  %v2850 = vpack.c.bf16 %v2764, %v2762
  %v2851 = vpack.c.bf16 %v2767, %v2765
  %v2852 = vpack.c.bf16 %v2768, %v2766
  %v2853 = vpack.c.bf16 %v2771, %v2769
  %v2854 = vpack.c.bf16 %v2772, %v2770
  %v2855 = vpack.c.bf16 %v2775, %v2773
  %v2856 = vpack.c.bf16 %v2776, %v2774
  %v2857 = vpack.c.bf16 %v2779, %v2777
  %v2858 = vpack.c.bf16 %v2780, %v2778
  %v2859 = vpack.c.bf16 %v2783, %v2781
  %v2860 = vpack.c.bf16 %v2784, %v2782
  %v2861 = vpack.c.bf16 %v2787, %v2785
  %v2862 = vpack.c.bf16 %v2788, %v2786
  %v2863 = vpack.c.bf16 %v2791, %v2789
  %v2864 = vpack.c.bf16 %v2792, %v2790
  %v2865 = vpack.c.bf16 %v2795, %v2793
  %v2866 = vpack.c.bf16 %v2796, %v2794
  %v2867 = vpack.c.bf16 %v2799, %v2797
  %v2868 = vpack.c.bf16 %v2800, %v2798
  %v2869 = vpack.c.bf16 %v2803, %v2801
  %v2870 = vpack.c.bf16 %v2804, %v2802
  %v2871 = vpack.c.bf16 %v2807, %v2805
  %v2872 = vpack.c.bf16 %v2808, %v2806
  %v2873 = vpack.c.bf16 0.0, 0.0
  %v2874 = vld [vmem:[%s3] sm:$0xff]
  %v2875 = vld [vmem:[%s3 + $0x8] sm:$0xff]
  %v2876 = vld [vmem:[%s3 + $0x10] sm:$0xff]
  %v2877 = vld [vmem:[%s3 + $0x18] sm:$0xff]
  %v2878 = vld [vmem:[%s3 + $0x20] sm:$0xff]
  %v2879 = vld [vmem:[%s3 + $0x28] sm:$0xff]
  %v2880 = vld [vmem:[%s3 + $0x30] sm:$0xff]
  %v2881 = vld [vmem:[%s3 + $0x38] sm:$0xff]
  %v2882 = vld [vmem:[%s3 + $0x40] sm:$0xff]
  %v2883 = vld [vmem:[%s3 + $0x48] sm:$0xff]
  %v2884 = vld [vmem:[%s3 + $0x50] sm:$0xff]
  %v2885 = vld [vmem:[%s3 + $0x58] sm:$0xff]
  %v2886 = vld [vmem:[%s3 + $0x60] sm:$0xff]
  %v2887 = vld [vmem:[%s3 + $0x68] sm:$0xff]
  %v2888 = vld [vmem:[%s3 + $0x70] sm:$0xff]
  %v2889 = vld [vmem:[%s3 + $0x78] sm:$0xff]
  %v2890 = vld [vmem:[%s3 + $0x80] sm:$0xff]
  %v2891 = vld [vmem:[%s3 + $0x88] sm:$0xff]
  %v2892 = vld [vmem:[%s3 + $0x90] sm:$0xff]
  %v2893 = vld [vmem:[%s3 + $0x98] sm:$0xff]
  %v2894 = vld [vmem:[%s3 + $0xa0] sm:$0xff]
  %v2895 = vld [vmem:[%s3 + $0xa8] sm:$0xff]
  %v2896 = vld [vmem:[%s3 + $0xb0] sm:$0xff]
  %v2897 = vld [vmem:[%s3 + $0xb8] sm:$0xff]
  %v2898 = vld [vmem:[%s3 + $0xc0] sm:$0xff]
  %v2899 = vld [vmem:[%s3 + $0xc8] sm:$0xff]
  %v2900 = vld [vmem:[%s3 + $0xd0] sm:$0xff]
  %v2901 = vld [vmem:[%s3 + $0xd8] sm:$0xff]
  %v2902 = vld [vmem:[%s3 + $0xe0] sm:$0xff]
  %v2903 = vld [vmem:[%s3 + $0xe8] sm:$0xff]
  %v2904 = vld [vmem:[%s3 + $0xf0] sm:$0xff]
  %v2905 = vld [vmem:[%s3 + $0xf8] sm:$0xff]
  %v2906 = vld [vmem:[%s3 + $0x100] sm:$0xff]
  %v2907 = vld [vmem:[%s3 + $0x108] sm:$0xff]
  %v2908 = vld [vmem:[%s3 + $0x110] sm:$0xff]
  %v2909 = vld [vmem:[%s3 + $0x118] sm:$0xff]
  %v2910 = vld [vmem:[%s3 + $0x120] sm:$0xff]
  %v2911 = vld [vmem:[%s3 + $0x128] sm:$0xff]
  %v2912 = vld [vmem:[%s3 + $0x130] sm:$0xff]
  %v2913 = vld [vmem:[%s3 + $0x138] sm:$0xff]
  %v2914 = vld [vmem:[%s3 + $0x140] sm:$0xff]
  %v2915 = vld [vmem:[%s3 + $0x148] sm:$0xff]
  %v2916 = vld [vmem:[%s3 + $0x150] sm:$0xff]
  %v2917 = vld [vmem:[%s3 + $0x158] sm:$0xff]
  %v2918 = vld [vmem:[%s3 + $0x160] sm:$0xff]
  %v2919 = vld [vmem:[%s3 + $0x168] sm:$0xff]
  %v2920 = vld [vmem:[%s3 + $0x170] sm:$0xff]
  %v2921 = vld [vmem:[%s3 + $0x178] sm:$0xff]
  %v2922 = vld [vmem:[%s3 + $0x180] sm:$0xff]
  %v2923 = vld [vmem:[%s3 + $0x188] sm:$0xff]
  %v2924 = vld [vmem:[%s3 + $0x190] sm:$0xff]
  %v2925 = vld [vmem:[%s3 + $0x198] sm:$0xff]
  %v2926 = vld [vmem:[%s3 + $0x1a0] sm:$0xff]
  %v2927 = vld [vmem:[%s3 + $0x1a8] sm:$0xff]
  %v2928 = vld [vmem:[%s3 + $0x1b0] sm:$0xff]
  %v2929 = vld [vmem:[%s3 + $0x1b8] sm:$0xff]
  %v2930 = vld [vmem:[%s3 + $0x1c0] sm:$0xff]
  %v2931 = vld [vmem:[%s3 + $0x1c8] sm:$0xff]
  %v2932 = vld [vmem:[%s3 + $0x1d0] sm:$0xff]
  %v2933 = vld [vmem:[%s3 + $0x1d8] sm:$0xff]
  %v2934 = vld [vmem:[%s3 + $0x1e0] sm:$0xff]
  %v2935 = vld [vmem:[%s3 + $0x1e8] sm:$0xff]
  %v2936 = vld [vmem:[%s3 + $0x1f0] sm:$0xff]
  %v2937 = vld [vmem:[%s3 + $0x1f8] sm:$0xff]
  %s2938 = scalar_lea.vmem %s3, 512
  %v2939 = vld [vmem:[%s2938] sm:$0xff]
  %v2940 = vld [vmem:[%s2938 + $0x8] sm:$0xff]
  %v2941 = vld [vmem:[%s2938 + $0x10] sm:$0xff]
  %v2942 = vld [vmem:[%s2938 + $0x18] sm:$0xff]
  %v2943 = vld [vmem:[%s2938 + $0x20] sm:$0xff]
  %v2944 = vld [vmem:[%s2938 + $0x28] sm:$0xff]
  %v2945 = vld [vmem:[%s2938 + $0x30] sm:$0xff]
  %v2946 = vld [vmem:[%s2938 + $0x38] sm:$0xff]
  %v2947 = vld [vmem:[%s2938 + $0x40] sm:$0xff]
  %v2948 = vld [vmem:[%s2938 + $0x48] sm:$0xff]
  %v2949 = vld [vmem:[%s2938 + $0x50] sm:$0xff]
  %v2950 = vld [vmem:[%s2938 + $0x58] sm:$0xff]
  %v2951 = vld [vmem:[%s2938 + $0x60] sm:$0xff]
  %v2952 = vld [vmem:[%s2938 + $0x68] sm:$0xff]
  %v2953 = vld [vmem:[%s2938 + $0x70] sm:$0xff]
  %v2954 = vld [vmem:[%s2938 + $0x78] sm:$0xff]
  %v2955 = vld [vmem:[%s2938 + $0x80] sm:$0xff]
  %v2956 = vld [vmem:[%s2938 + $0x88] sm:$0xff]
  %v2957 = vld [vmem:[%s2938 + $0x90] sm:$0xff]
  %v2958 = vld [vmem:[%s2938 + $0x98] sm:$0xff]
  %v2959 = vld [vmem:[%s2938 + $0xa0] sm:$0xff]
  %v2960 = vld [vmem:[%s2938 + $0xa8] sm:$0xff]
  %v2961 = vld [vmem:[%s2938 + $0xb0] sm:$0xff]
  %v2962 = vld [vmem:[%s2938 + $0xb8] sm:$0xff]
  %v2963 = vld [vmem:[%s2938 + $0xc0] sm:$0xff]
  %v2964 = vld [vmem:[%s2938 + $0xc8] sm:$0xff]
  %v2965 = vld [vmem:[%s2938 + $0xd0] sm:$0xff]
  %v2966 = vld [vmem:[%s2938 + $0xd8] sm:$0xff]
  %v2967 = vld [vmem:[%s2938 + $0xe0] sm:$0xff]
  %v2968 = vld [vmem:[%s2938 + $0xe8] sm:$0xff]
  %v2969 = vld [vmem:[%s2938 + $0xf0] sm:$0xff]
  %v2970 = vld [vmem:[%s2938 + $0xf8] sm:$0xff]
  %v2971 = vld [vmem:[%s2938 + $0x100] sm:$0xff]
  %v2972 = vld [vmem:[%s2938 + $0x108] sm:$0xff]
  %v2973 = vld [vmem:[%s2938 + $0x110] sm:$0xff]
  %v2974 = vld [vmem:[%s2938 + $0x118] sm:$0xff]
  %v2975 = vld [vmem:[%s2938 + $0x120] sm:$0xff]
  %v2976 = vld [vmem:[%s2938 + $0x128] sm:$0xff]
  %v2977 = vld [vmem:[%s2938 + $0x130] sm:$0xff]
  %v2978 = vld [vmem:[%s2938 + $0x138] sm:$0xff]
  %v2979 = vld [vmem:[%s2938 + $0x140] sm:$0xff]
  %v2980 = vld [vmem:[%s2938 + $0x148] sm:$0xff]
  %v2981 = vld [vmem:[%s2938 + $0x150] sm:$0xff]
  %v2982 = vld [vmem:[%s2938 + $0x158] sm:$0xff]
  %v2983 = vld [vmem:[%s2938 + $0x160] sm:$0xff]
  %v2984 = vld [vmem:[%s2938 + $0x168] sm:$0xff]
  %v2985 = vld [vmem:[%s2938 + $0x170] sm:$0xff]
  %v2986 = vld [vmem:[%s2938 + $0x178] sm:$0xff]
  %v2987 = vld [vmem:[%s2938 + $0x180] sm:$0xff]
  %v2988 = vld [vmem:[%s2938 + $0x188] sm:$0xff]
  %v2989 = vld [vmem:[%s2938 + $0x190] sm:$0xff]
  %v2990 = vld [vmem:[%s2938 + $0x198] sm:$0xff]
  %v2991 = vld [vmem:[%s2938 + $0x1a0] sm:$0xff]
  %v2992 = vld [vmem:[%s2938 + $0x1a8] sm:$0xff]
  %v2993 = vld [vmem:[%s2938 + $0x1b0] sm:$0xff]
  %v2994 = vld [vmem:[%s2938 + $0x1b8] sm:$0xff]
  %v2995 = vld [vmem:[%s2938 + $0x1c0] sm:$0xff]
  %v2996 = vld [vmem:[%s2938 + $0x1c8] sm:$0xff]
  %v2997 = vld [vmem:[%s2938 + $0x1d0] sm:$0xff]
  %v2998 = vld [vmem:[%s2938 + $0x1d8] sm:$0xff]
  %v2999 = vld [vmem:[%s2938 + $0x1e0] sm:$0xff]
  %v3000 = vld [vmem:[%s2938 + $0x1e8] sm:$0xff]
  %v3001 = vld [vmem:[%s2938 + $0x1f0] sm:$0xff]
  %v3002 = vld [vmem:[%s2938 + $0x1f8] sm:$0xff]
  %v3067 = vunpack.c.l.b16 %v2939
  %v3068 = vunpack.c.h.b16 %v2939
  %v3069 = vunpack.c.l.b16 %v2940
  %v3070 = vunpack.c.h.b16 %v2940
  %v3071 = vunpack.c.l.b16 %v2941
  %v3072 = vunpack.c.h.b16 %v2941
  %v3073 = vunpack.c.l.b16 %v2942
  %v3074 = vunpack.c.h.b16 %v2942
  %v3075 = vunpack.c.l.b16 %v2943
  %v3076 = vunpack.c.h.b16 %v2943
  %v3077 = vunpack.c.l.b16 %v2944
  %v3078 = vunpack.c.h.b16 %v2944
  %v3079 = vunpack.c.l.b16 %v2945
  %v3080 = vunpack.c.h.b16 %v2945
  %v3081 = vunpack.c.l.b16 %v2946
  %v3082 = vunpack.c.h.b16 %v2946
  %v3083 = vunpack.c.l.b16 %v2947
  %v3084 = vunpack.c.h.b16 %v2947
  %v3085 = vunpack.c.l.b16 %v2948
  %v3086 = vunpack.c.h.b16 %v2948
  %v3087 = vunpack.c.l.b16 %v2949
  %v3088 = vunpack.c.h.b16 %v2949
  %v3089 = vunpack.c.l.b16 %v2950
  %v3090 = vunpack.c.h.b16 %v2950
  %v3091 = vunpack.c.l.b16 %v2951
  %v3092 = vunpack.c.h.b16 %v2951
  %v3093 = vunpack.c.l.b16 %v2952
  %v3094 = vunpack.c.h.b16 %v2952
  %v3095 = vunpack.c.l.b16 %v2953
  %v3096 = vunpack.c.h.b16 %v2953
  %v3097 = vunpack.c.l.b16 %v2954
  %v3098 = vunpack.c.h.b16 %v2954
  %v3099 = vunpack.c.l.b16 %v2955
  %v3100 = vunpack.c.h.b16 %v2955
  %v3101 = vunpack.c.l.b16 %v2956
  %v3102 = vunpack.c.h.b16 %v2956
  %v3103 = vunpack.c.l.b16 %v2957
  %v3104 = vunpack.c.h.b16 %v2957
  %v3105 = vunpack.c.l.b16 %v2958
  %v3106 = vunpack.c.h.b16 %v2958
  %v3107 = vunpack.c.l.b16 %v2959
  %v3108 = vunpack.c.h.b16 %v2959
  %v3109 = vunpack.c.l.b16 %v2960
  %v3110 = vunpack.c.h.b16 %v2960
  %v3111 = vunpack.c.l.b16 %v2961
  %v3112 = vunpack.c.h.b16 %v2961
  %v3113 = vunpack.c.l.b16 %v2962
  %v3114 = vunpack.c.h.b16 %v2962
  %v3115 = vunpack.c.l.b16 %v2963
  %v3116 = vunpack.c.h.b16 %v2963
  %v3117 = vunpack.c.l.b16 %v2964
  %v3118 = vunpack.c.h.b16 %v2964
  %v3119 = vunpack.c.l.b16 %v2965
  %v3120 = vunpack.c.h.b16 %v2965
  %v3121 = vunpack.c.l.b16 %v2966
  %v3122 = vunpack.c.h.b16 %v2966
  %v3123 = vunpack.c.l.b16 %v2967
  %v3124 = vunpack.c.h.b16 %v2967
  %v3125 = vunpack.c.l.b16 %v2968
  %v3126 = vunpack.c.h.b16 %v2968
  %v3127 = vunpack.c.l.b16 %v2969
  %v3128 = vunpack.c.h.b16 %v2969
  %v3129 = vunpack.c.l.b16 %v2970
  %v3130 = vunpack.c.h.b16 %v2970
  %v3131 = vunpack.c.l.b16 %v2971
  %v3132 = vunpack.c.h.b16 %v2971
  %v3133 = vunpack.c.l.b16 %v2972
  %v3134 = vunpack.c.h.b16 %v2972
  %v3135 = vunpack.c.l.b16 %v2973
  %v3136 = vunpack.c.h.b16 %v2973
  %v3137 = vunpack.c.l.b16 %v2974
  %v3138 = vunpack.c.h.b16 %v2974
  %v3139 = vunpack.c.l.b16 %v2975
  %v3140 = vunpack.c.h.b16 %v2975
  %v3141 = vunpack.c.l.b16 %v2976
  %v3142 = vunpack.c.h.b16 %v2976
  %v3143 = vunpack.c.l.b16 %v2977
  %v3144 = vunpack.c.h.b16 %v2977
  %v3145 = vunpack.c.l.b16 %v2978
  %v3146 = vunpack.c.h.b16 %v2978
  %v3147 = vunpack.c.l.b16 %v2979
  %v3148 = vunpack.c.h.b16 %v2979
  %v3149 = vunpack.c.l.b16 %v2980
  %v3150 = vunpack.c.h.b16 %v2980
  %v3151 = vunpack.c.l.b16 %v2981
  %v3152 = vunpack.c.h.b16 %v2981
  %v3153 = vunpack.c.l.b16 %v2982
  %v3154 = vunpack.c.h.b16 %v2982
  %v3155 = vunpack.c.l.b16 %v2983
  %v3156 = vunpack.c.h.b16 %v2983
  %v3157 = vunpack.c.l.b16 %v2984
  %v3158 = vunpack.c.h.b16 %v2984
  %v3159 = vunpack.c.l.b16 %v2985
  %v3160 = vunpack.c.h.b16 %v2985
  %v3161 = vunpack.c.l.b16 %v2986
  %v3162 = vunpack.c.h.b16 %v2986
  %v3163 = vunpack.c.l.b16 %v2987
  %v3164 = vunpack.c.h.b16 %v2987
  %v3165 = vunpack.c.l.b16 %v2988
  %v3166 = vunpack.c.h.b16 %v2988
  %v3167 = vunpack.c.l.b16 %v2989
  %v3168 = vunpack.c.h.b16 %v2989
  %v3169 = vunpack.c.l.b16 %v2990
  %v3170 = vunpack.c.h.b16 %v2990
  %v3171 = vunpack.c.l.b16 %v2991
  %v3172 = vunpack.c.h.b16 %v2991
  %v3173 = vunpack.c.l.b16 %v2992
  %v3174 = vunpack.c.h.b16 %v2992
  %v3175 = vunpack.c.l.b16 %v2993
  %v3176 = vunpack.c.h.b16 %v2993
  %v3177 = vunpack.c.l.b16 %v2994
  %v3178 = vunpack.c.h.b16 %v2994
  %v3179 = vunpack.c.l.b16 %v2995
  %v3180 = vunpack.c.h.b16 %v2995
  %v3181 = vunpack.c.l.b16 %v2996
  %v3182 = vunpack.c.h.b16 %v2996
  %v3183 = vunpack.c.l.b16 %v2997
  %v3184 = vunpack.c.h.b16 %v2997
  %v3185 = vunpack.c.l.b16 %v2998
  %v3186 = vunpack.c.h.b16 %v2998
  %v3187 = vunpack.c.l.b16 %v2999
  %v3188 = vunpack.c.h.b16 %v2999
  %v3189 = vunpack.c.l.b16 %v3000
  %v3190 = vunpack.c.h.b16 %v3000
  %v3191 = vunpack.c.l.b16 %v3001
  %v3192 = vunpack.c.h.b16 %v3001
  %v3193 = vunpack.c.l.b16 %v3002
  %v3194 = vunpack.c.h.b16 %v3002
  %v3195 = vpack.c.b16 %v3071, %v3067
  %v3196 = vpack.c.b16 %v3072, %v3068
  %v3197 = vpack.c.b16 %v3073, %v3069
  %v3198 = vpack.c.b16 %v3074, %v3070
  %v3199 = vpack.c.b16 %v3079, %v3075
  %v3200 = vpack.c.b16 %v3080, %v3076
  %v3201 = vpack.c.b16 %v3081, %v3077
  %v3202 = vpack.c.b16 %v3082, %v3078
  %v3203 = vpack.c.b16 %v3087, %v3083
  %v3204 = vpack.c.b16 %v3088, %v3084
  %v3205 = vpack.c.b16 %v3089, %v3085
  %v3206 = vpack.c.b16 %v3090, %v3086
  %v3207 = vpack.c.b16 %v3095, %v3091
  %v3208 = vpack.c.b16 %v3096, %v3092
  %v3209 = vpack.c.b16 %v3097, %v3093
  %v3210 = vpack.c.b16 %v3098, %v3094
  %v3211 = vpack.c.b16 %v3103, %v3099
  %v3212 = vpack.c.b16 %v3104, %v3100
  %v3213 = vpack.c.b16 %v3105, %v3101
  %v3214 = vpack.c.b16 %v3106, %v3102
  %v3215 = vpack.c.b16 %v3111, %v3107
  %v3216 = vpack.c.b16 %v3112, %v3108
  %v3217 = vpack.c.b16 %v3113, %v3109
  %v3218 = vpack.c.b16 %v3114, %v3110
  %v3219 = vpack.c.b16 %v3119, %v3115
  %v3220 = vpack.c.b16 %v3120, %v3116
  %v3221 = vpack.c.b16 %v3121, %v3117
  %v3222 = vpack.c.b16 %v3122, %v3118
  %v3223 = vpack.c.b16 %v3127, %v3123
  %v3224 = vpack.c.b16 %v3128, %v3124
  %v3225 = vpack.c.b16 %v3129, %v3125
  %v3226 = vpack.c.b16 %v3130, %v3126
  %v3227 = vpack.c.b16 %v3135, %v3131
  %v3228 = vpack.c.b16 %v3136, %v3132
  %v3229 = vpack.c.b16 %v3137, %v3133
  %v3230 = vpack.c.b16 %v3138, %v3134
  %v3231 = vpack.c.b16 %v3143, %v3139
  %v3232 = vpack.c.b16 %v3144, %v3140
  %v3233 = vpack.c.b16 %v3145, %v3141
  %v3234 = vpack.c.b16 %v3146, %v3142
  %v3235 = vpack.c.b16 %v3151, %v3147
  %v3236 = vpack.c.b16 %v3152, %v3148
  %v3237 = vpack.c.b16 %v3153, %v3149
  %v3238 = vpack.c.b16 %v3154, %v3150
  %v3239 = vpack.c.b16 %v3159, %v3155
  %v3240 = vpack.c.b16 %v3160, %v3156
  %v3241 = vpack.c.b16 %v3161, %v3157
  %v3242 = vpack.c.b16 %v3162, %v3158
  %v3243 = vpack.c.b16 %v3167, %v3163
  %v3244 = vpack.c.b16 %v3168, %v3164
  %v3245 = vpack.c.b16 %v3169, %v3165
  %v3246 = vpack.c.b16 %v3170, %v3166
  %v3247 = vpack.c.b16 %v3175, %v3171
  %v3248 = vpack.c.b16 %v3176, %v3172
  %v3249 = vpack.c.b16 %v3177, %v3173
  %v3250 = vpack.c.b16 %v3178, %v3174
  %v3251 = vpack.c.b16 %v3183, %v3179
  %v3252 = vpack.c.b16 %v3184, %v3180
  %v3253 = vpack.c.b16 %v3185, %v3181
  %v3254 = vpack.c.b16 %v3186, %v3182
  %v3255 = vpack.c.b16 %v3191, %v3187
  %v3256 = vpack.c.b16 %v3192, %v3188
  %v3257 = vpack.c.b16 %v3193, %v3189
  %v3258 = vpack.c.b16 %v3194, %v3190
  %3323 = vmatpush.bf16.msra.mxu0 %v3223
  %3324 = vmatpush.bf16.msra.mxu0 %v3219
  %3325 = vmatpush.bf16.msra.mxu0 %v3215
  %3326 = vmatpush.bf16.msra.mxu0 %v3211
  %3327 = vmatpush.bf16.msra.mxu0 %v3207
  %3328 = vmatpush.bf16.msra.mxu0 %v3203
  %3329 = vmatpush.bf16.msra.mxu0 %v3199
  %3330 = vmatpush.bf16.msra.mxu0 %v3195
  %3331 = vmatmul.bf16.gmra.mxu0 %v2809
  %v3332 = vpop.f32.mrf.mxu0
  %v3333 = vadd.f32 0.0, %v3332
  %v3334 = vpop.f32.mrf.mxu0
  %v3335 = vadd.f32 0.0, %v3334
  %3336 = vmatmul.bf16.gmra.mxu0 %v2811
  %v3337 = vpop.f32.mrf.mxu0
  %v3338 = vadd.f32 0.0, %v3337
  %v3339 = vpop.f32.mrf.mxu0
  %v3340 = vadd.f32 0.0, %v3339
  %3341 = vmatmul.bf16.gmra.mxu0 %v2813
  %v3342 = vpop.f32.mrf.mxu0
  %v3343 = vadd.f32 0.0, %v3342
  %v3344 = vpop.f32.mrf.mxu0
  %v3345 = vadd.f32 0.0, %v3344
  %3346 = vmatmul.bf16.gmra.mxu0 %v2815
  %v3347 = vpop.f32.mrf.mxu0
  %v3348 = vadd.f32 0.0, %v3347
  %v3349 = vpop.f32.mrf.mxu0
  %v3350 = vadd.f32 0.0, %v3349
  %3351 = vmatmul.bf16.gmra.mxu0 %v2817
  %v3352 = vpop.f32.mrf.mxu0
  %v3353 = vadd.f32 0.0, %v3352
  %v3354 = vpop.f32.mrf.mxu0
  %v3355 = vadd.f32 0.0, %v3354
  %3356 = vmatmul.bf16.gmra.mxu0 %v2819
  %v3357 = vpop.f32.mrf.mxu0
  %v3358 = vadd.f32 0.0, %v3357
  %v3359 = vpop.f32.mrf.mxu0
  %v3360 = vadd.f32 0.0, %v3359
  %3361 = vmatmul.bf16.gmra.mxu0 %v2821
  %v3362 = vpop.f32.mrf.mxu0
  %v3363 = vadd.f32 0.0, %v3362
  %v3364 = vpop.f32.mrf.mxu0
  %v3365 = vadd.f32 0.0, %v3364
  %3366 = vmatmul.bf16.gmra.mxu0 %v2823
  %v3367 = vpop.f32.mrf.mxu0
  %v3368 = vadd.f32 0.0, %v3367
  %v3369 = vpop.f32.mrf.mxu0
  %v3370 = vadd.f32 0.0, %v3369
  %3371 = vmatmul.bf16.gmra.mxu0 %v2825
  %v3372 = vpop.f32.mrf.mxu0
  %v3373 = vadd.f32 0.0, %v3372
  %v3374 = vpop.f32.mrf.mxu0
  %v3375 = vadd.f32 0.0, %v3374
  %3376 = vmatmul.bf16.gmra.mxu0 %v2827
  %v3377 = vpop.f32.mrf.mxu0
  %v3378 = vadd.f32 0.0, %v3377
  %v3379 = vpop.f32.mrf.mxu0
  %v3380 = vadd.f32 0.0, %v3379
  %3381 = vmatmul.bf16.gmra.mxu0 %v2829
  %v3382 = vpop.f32.mrf.mxu0
  %v3383 = vadd.f32 0.0, %v3382
  %v3384 = vpop.f32.mrf.mxu0
  %v3385 = vadd.f32 0.0, %v3384
  %3386 = vmatmul.bf16.gmra.mxu0 %v2831
  %v3387 = vpop.f32.mrf.mxu0
  %v3388 = vadd.f32 0.0, %v3387
  %v3389 = vpop.f32.mrf.mxu0
  %v3390 = vadd.f32 0.0, %v3389
  %3391 = vmatmul.bf16.gmra.mxu0 %v2833
  %v3392 = vpop.f32.mrf.mxu0
  %v3393 = vadd.f32 0.0, %v3392
  %v3394 = vpop.f32.mrf.mxu0
  %v3395 = vadd.f32 0.0, %v3394
  %3396 = vmatmul.bf16.gmra.mxu0 %v2835
  %v3397 = vpop.f32.mrf.mxu0
  %v3398 = vadd.f32 0.0, %v3397
  %v3399 = vpop.f32.mrf.mxu0
  %v3400 = vadd.f32 0.0, %v3399
  %3401 = vmatmul.bf16.gmra.mxu0 %v2837
  %v3402 = vpop.f32.mrf.mxu0
  %v3403 = vadd.f32 0.0, %v3402
  %v3404 = vpop.f32.mrf.mxu0
  %v3405 = vadd.f32 0.0, %v3404
  %3406 = vmatmul.bf16.gmra.mxu0 %v2839
  %v3407 = vpop.f32.mrf.mxu0
  %v3408 = vadd.f32 0.0, %v3407
  %v3409 = vpop.f32.mrf.mxu0
  %v3410 = vadd.f32 0.0, %v3409
  %3411 = vdwg.mxu0
  %3412 = vmatpush.bf16.msra.mxu0 %v3255
  %3413 = vmatpush.bf16.msra.mxu0 %v3251
  %3414 = vmatpush.bf16.msra.mxu0 %v3247
  %3415 = vmatpush.bf16.msra.mxu0 %v3243
  %3416 = vmatpush.bf16.msra.mxu0 %v3239
  %3417 = vmatpush.bf16.msra.mxu0 %v3235
  %3418 = vmatpush.bf16.msra.mxu0 %v3231
  %3419 = vmatpush.bf16.msra.mxu0 %v3227
  %3420 = vmatmul.bf16.gmra.mxu0 %v2810
  %v3421 = vpop.f32.mrf.mxu0
  %v3422 = vadd.f32 %v3333, %v3421
  %v3423 = vpop.f32.mrf.mxu0
  %v3424 = vadd.f32 %v3335, %v3423
  %3425 = vmatmul.bf16.gmra.mxu0 %v2812
  %v3426 = vpop.f32.mrf.mxu0
  %v3427 = vadd.f32 %v3338, %v3426
  %v3428 = vpop.f32.mrf.mxu0
  %v3429 = vadd.f32 %v3340, %v3428
  %3430 = vmatmul.bf16.gmra.mxu0 %v2814
  %v3431 = vpop.f32.mrf.mxu0
  %v3432 = vadd.f32 %v3343, %v3431
  %v3433 = vpop.f32.mrf.mxu0
  %v3434 = vadd.f32 %v3345, %v3433
  %3435 = vmatmul.bf16.gmra.mxu0 %v2816
  %v3436 = vpop.f32.mrf.mxu0
  %v3437 = vadd.f32 %v3348, %v3436
  %v3438 = vpop.f32.mrf.mxu0
  %v3439 = vadd.f32 %v3350, %v3438
  %3440 = vmatmul.bf16.gmra.mxu0 %v2818
  %v3441 = vpop.f32.mrf.mxu0
  %v3442 = vadd.f32 %v3353, %v3441
  %v3443 = vpop.f32.mrf.mxu0
  %v3444 = vadd.f32 %v3355, %v3443
  %3445 = vmatmul.bf16.gmra.mxu0 %v2820
  %v3446 = vpop.f32.mrf.mxu0
  %v3447 = vadd.f32 %v3358, %v3446
  %v3448 = vpop.f32.mrf.mxu0
  %v3449 = vadd.f32 %v3360, %v3448
  %3450 = vmatmul.bf16.gmra.mxu0 %v2822
  %v3451 = vpop.f32.mrf.mxu0
  %v3452 = vadd.f32 %v3363, %v3451
  %v3453 = vpop.f32.mrf.mxu0
  %v3454 = vadd.f32 %v3365, %v3453
  %3455 = vmatmul.bf16.gmra.mxu0 %v2824
  %v3456 = vpop.f32.mrf.mxu0
  %v3457 = vadd.f32 %v3368, %v3456
  %v3458 = vpop.f32.mrf.mxu0
  %v3459 = vadd.f32 %v3370, %v3458
  %3460 = vmatmul.bf16.gmra.mxu0 %v2826
  %v3461 = vpop.f32.mrf.mxu0
  %v3462 = vadd.f32 %v3373, %v3461
  %v3463 = vpop.f32.mrf.mxu0
  %v3464 = vadd.f32 %v3375, %v3463
  %3465 = vmatmul.bf16.gmra.mxu0 %v2828
  %v3466 = vpop.f32.mrf.mxu0
  %v3467 = vadd.f32 %v3378, %v3466
  %v3468 = vpop.f32.mrf.mxu0
  %v3469 = vadd.f32 %v3380, %v3468
  %3470 = vmatmul.bf16.gmra.mxu0 %v2830
  %v3471 = vpop.f32.mrf.mxu0
  %v3472 = vadd.f32 %v3383, %v3471
  %v3473 = vpop.f32.mrf.mxu0
  %v3474 = vadd.f32 %v3385, %v3473
  %3475 = vmatmul.bf16.gmra.mxu0 %v2832
  %v3476 = vpop.f32.mrf.mxu0
  %v3477 = vadd.f32 %v3388, %v3476
  %v3478 = vpop.f32.mrf.mxu0
  %v3479 = vadd.f32 %v3390, %v3478
  %3480 = vmatmul.bf16.gmra.mxu0 %v2834
  %v3481 = vpop.f32.mrf.mxu0
  %v3482 = vadd.f32 %v3393, %v3481
  %v3483 = vpop.f32.mrf.mxu0
  %v3484 = vadd.f32 %v3395, %v3483
  %3485 = vmatmul.bf16.gmra.mxu0 %v2836
  %v3486 = vpop.f32.mrf.mxu0
  %v3487 = vadd.f32 %v3398, %v3486
  %v3488 = vpop.f32.mrf.mxu0
  %v3489 = vadd.f32 %v3400, %v3488
  %3490 = vmatmul.bf16.gmra.mxu0 %v2838
  %v3491 = vpop.f32.mrf.mxu0
  %v3492 = vadd.f32 %v3403, %v3491
  %v3493 = vpop.f32.mrf.mxu0
  %v3494 = vadd.f32 %v3405, %v3493
  %3495 = vmatmul.bf16.gmra.mxu0 %v2840
  %v3496 = vpop.f32.mrf.mxu0
  %v3497 = vadd.f32 %v3408, %v3496
  %v3498 = vpop.f32.mrf.mxu0
  %v3499 = vadd.f32 %v3410, %v3498
  %3500 = vdwg.mxu0
  %3501 = vmatpush.bf16.msra.mxu0 %v3224
  %3502 = vmatpush.bf16.msra.mxu0 %v3220
  %3503 = vmatpush.bf16.msra.mxu0 %v3216
  %3504 = vmatpush.bf16.msra.mxu0 %v3212
  %3505 = vmatpush.bf16.msra.mxu0 %v3208
  %3506 = vmatpush.bf16.msra.mxu0 %v3204
  %3507 = vmatpush.bf16.msra.mxu0 %v3200
  %3508 = vmatpush.bf16.msra.mxu0 %v3196
  %3509 = vmatmul.bf16.gmra.mxu0 %v2809
  %v3510 = vpop.f32.mrf.mxu0
  %v3511 = vadd.f32 0.0, %v3510
  %v3512 = vpop.f32.mrf.mxu0
  %v3513 = vadd.f32 0.0, %v3512
  %3514 = vmatmul.bf16.gmra.mxu0 %v2811
  %v3515 = vpop.f32.mrf.mxu0
  %v3516 = vadd.f32 0.0, %v3515
  %v3517 = vpop.f32.mrf.mxu0
  %v3518 = vadd.f32 0.0, %v3517
  %3519 = vmatmul.bf16.gmra.mxu0 %v2813
  %v3520 = vpop.f32.mrf.mxu0
  %v3521 = vadd.f32 0.0, %v3520
  %v3522 = vpop.f32.mrf.mxu0
  %v3523 = vadd.f32 0.0, %v3522
  %3524 = vmatmul.bf16.gmra.mxu0 %v2815
  %v3525 = vpop.f32.mrf.mxu0
  %v3526 = vadd.f32 0.0, %v3525
  %v3527 = vpop.f32.mrf.mxu0
  %v3528 = vadd.f32 0.0, %v3527
  %3529 = vmatmul.bf16.gmra.mxu0 %v2817
  %v3530 = vpop.f32.mrf.mxu0
  %v3531 = vadd.f32 0.0, %v3530
  %v3532 = vpop.f32.mrf.mxu0
  %v3533 = vadd.f32 0.0, %v3532
  %3534 = vmatmul.bf16.gmra.mxu0 %v2819
  %v3535 = vpop.f32.mrf.mxu0
  %v3536 = vadd.f32 0.0, %v3535
  %v3537 = vpop.f32.mrf.mxu0
  %v3538 = vadd.f32 0.0, %v3537
  %3539 = vmatmul.bf16.gmra.mxu0 %v2821
  %v3540 = vpop.f32.mrf.mxu0
  %v3541 = vadd.f32 0.0, %v3540
  %v3542 = vpop.f32.mrf.mxu0
  %v3543 = vadd.f32 0.0, %v3542
  %3544 = vmatmul.bf16.gmra.mxu0 %v2823
  %v3545 = vpop.f32.mrf.mxu0
  %v3546 = vadd.f32 0.0, %v3545
  %v3547 = vpop.f32.mrf.mxu0
  %v3548 = vadd.f32 0.0, %v3547
  %3549 = vmatmul.bf16.gmra.mxu0 %v2825
  %v3550 = vpop.f32.mrf.mxu0
  %v3551 = vadd.f32 0.0, %v3550
  %v3552 = vpop.f32.mrf.mxu0
  %v3553 = vadd.f32 0.0, %v3552
  %3554 = vmatmul.bf16.gmra.mxu0 %v2827
  %v3555 = vpop.f32.mrf.mxu0
  %v3556 = vadd.f32 0.0, %v3555
  %v3557 = vpop.f32.mrf.mxu0
  %v3558 = vadd.f32 0.0, %v3557
  %3559 = vmatmul.bf16.gmra.mxu0 %v2829
  %v3560 = vpop.f32.mrf.mxu0
  %v3561 = vadd.f32 0.0, %v3560
  %v3562 = vpop.f32.mrf.mxu0
  %v3563 = vadd.f32 0.0, %v3562
  %3564 = vmatmul.bf16.gmra.mxu0 %v2831
  %v3565 = vpop.f32.mrf.mxu0
  %v3566 = vadd.f32 0.0, %v3565
  %v3567 = vpop.f32.mrf.mxu0
  %v3568 = vadd.f32 0.0, %v3567
  %3569 = vmatmul.bf16.gmra.mxu0 %v2833
  %v3570 = vpop.f32.mrf.mxu0
  %v3571 = vadd.f32 0.0, %v3570
  %v3572 = vpop.f32.mrf.mxu0
  %v3573 = vadd.f32 0.0, %v3572
  %3574 = vmatmul.bf16.gmra.mxu0 %v2835
  %v3575 = vpop.f32.mrf.mxu0
  %v3576 = vadd.f32 0.0, %v3575
  %v3577 = vpop.f32.mrf.mxu0
  %v3578 = vadd.f32 0.0, %v3577
  %3579 = vmatmul.bf16.gmra.mxu0 %v2837
  %v3580 = vpop.f32.mrf.mxu0
  %v3581 = vadd.f32 0.0, %v3580
  %v3582 = vpop.f32.mrf.mxu0
  %v3583 = vadd.f32 0.0, %v3582
  %3584 = vmatmul.bf16.gmra.mxu0 %v2839
  %v3585 = vpop.f32.mrf.mxu0
  %v3586 = vadd.f32 0.0, %v3585
  %v3587 = vpop.f32.mrf.mxu0
  %v3588 = vadd.f32 0.0, %v3587
  %3589 = vdwg.mxu0
  %3590 = vmatpush.bf16.msra.mxu0 %v3256
  %3591 = vmatpush.bf16.msra.mxu0 %v3252
  %3592 = vmatpush.bf16.msra.mxu0 %v3248
  %3593 = vmatpush.bf16.msra.mxu0 %v3244
  %3594 = vmatpush.bf16.msra.mxu0 %v3240
  %3595 = vmatpush.bf16.msra.mxu0 %v3236
  %3596 = vmatpush.bf16.msra.mxu0 %v3232
  %3597 = vmatpush.bf16.msra.mxu0 %v3228
  %3598 = vmatmul.bf16.gmra.mxu0 %v2810
  %v3599 = vpop.f32.mrf.mxu0
  %v3600 = vadd.f32 %v3511, %v3599
  %v3601 = vpop.f32.mrf.mxu0
  %v3602 = vadd.f32 %v3513, %v3601
  %3603 = vmatmul.bf16.gmra.mxu0 %v2812
  %v3604 = vpop.f32.mrf.mxu0
  %v3605 = vadd.f32 %v3516, %v3604
  %v3606 = vpop.f32.mrf.mxu0
  %v3607 = vadd.f32 %v3518, %v3606
  %3608 = vmatmul.bf16.gmra.mxu0 %v2814
  %v3609 = vpop.f32.mrf.mxu0
  %v3610 = vadd.f32 %v3521, %v3609
  %v3611 = vpop.f32.mrf.mxu0
  %v3612 = vadd.f32 %v3523, %v3611
  %3613 = vmatmul.bf16.gmra.mxu0 %v2816
  %v3614 = vpop.f32.mrf.mxu0
  %v3615 = vadd.f32 %v3526, %v3614
  %v3616 = vpop.f32.mrf.mxu0
  %v3617 = vadd.f32 %v3528, %v3616
  %3618 = vmatmul.bf16.gmra.mxu0 %v2818
  %v3619 = vpop.f32.mrf.mxu0
  %v3620 = vadd.f32 %v3531, %v3619
  %v3621 = vpop.f32.mrf.mxu0
  %v3622 = vadd.f32 %v3533, %v3621
  %3623 = vmatmul.bf16.gmra.mxu0 %v2820
  %v3624 = vpop.f32.mrf.mxu0
  %v3625 = vadd.f32 %v3536, %v3624
  %v3626 = vpop.f32.mrf.mxu0
  %v3627 = vadd.f32 %v3538, %v3626
  %3628 = vmatmul.bf16.gmra.mxu0 %v2822
  %v3629 = vpop.f32.mrf.mxu0
  %v3630 = vadd.f32 %v3541, %v3629
  %v3631 = vpop.f32.mrf.mxu0
  %v3632 = vadd.f32 %v3543, %v3631
  %3633 = vmatmul.bf16.gmra.mxu0 %v2824
  %v3634 = vpop.f32.mrf.mxu0
  %v3635 = vadd.f32 %v3546, %v3634
  %v3636 = vpop.f32.mrf.mxu0
  %v3637 = vadd.f32 %v3548, %v3636
  %3638 = vmatmul.bf16.gmra.mxu0 %v2826
  %v3639 = vpop.f32.mrf.mxu0
  %v3640 = vadd.f32 %v3551, %v3639
  %v3641 = vpop.f32.mrf.mxu0
  %v3642 = vadd.f32 %v3553, %v3641
  %3643 = vmatmul.bf16.gmra.mxu0 %v2828
  %v3644 = vpop.f32.mrf.mxu0
  %v3645 = vadd.f32 %v3556, %v3644
  %v3646 = vpop.f32.mrf.mxu0
  %v3647 = vadd.f32 %v3558, %v3646
  %3648 = vmatmul.bf16.gmra.mxu0 %v2830
  %v3649 = vpop.f32.mrf.mxu0
  %v3650 = vadd.f32 %v3561, %v3649
  %v3651 = vpop.f32.mrf.mxu0
  %v3652 = vadd.f32 %v3563, %v3651
  %3653 = vmatmul.bf16.gmra.mxu0 %v2832
  %v3654 = vpop.f32.mrf.mxu0
  %v3655 = vadd.f32 %v3566, %v3654
  %v3656 = vpop.f32.mrf.mxu0
  %v3657 = vadd.f32 %v3568, %v3656
  %3658 = vmatmul.bf16.gmra.mxu0 %v2834
  %v3659 = vpop.f32.mrf.mxu0
  %v3660 = vadd.f32 %v3571, %v3659
  %v3661 = vpop.f32.mrf.mxu0
  %v3662 = vadd.f32 %v3573, %v3661
  %3663 = vmatmul.bf16.gmra.mxu0 %v2836
  %v3664 = vpop.f32.mrf.mxu0
  %v3665 = vadd.f32 %v3576, %v3664
  %v3666 = vpop.f32.mrf.mxu0
  %v3667 = vadd.f32 %v3578, %v3666
  %3668 = vmatmul.bf16.gmra.mxu0 %v2838
  %v3669 = vpop.f32.mrf.mxu0
  %v3670 = vadd.f32 %v3581, %v3669
  %v3671 = vpop.f32.mrf.mxu0
  %v3672 = vadd.f32 %v3583, %v3671
  %3673 = vmatmul.bf16.gmra.mxu0 %v2840
  %v3674 = vpop.f32.mrf.mxu0
  %v3675 = vadd.f32 %v3586, %v3674
  %v3676 = vpop.f32.mrf.mxu0
  %v3677 = vadd.f32 %v3588, %v3676
  %3678 = vdwg.mxu0
  %3679 = vmatpush.bf16.msra.mxu0 %v3225
  %3680 = vmatpush.bf16.msra.mxu0 %v3221
  %3681 = vmatpush.bf16.msra.mxu0 %v3217
  %3682 = vmatpush.bf16.msra.mxu0 %v3213
  %3683 = vmatpush.bf16.msra.mxu0 %v3209
  %3684 = vmatpush.bf16.msra.mxu0 %v3205
  %3685 = vmatpush.bf16.msra.mxu0 %v3201
  %3686 = vmatpush.bf16.msra.mxu0 %v3197
  %3687 = vmatmul.bf16.gmra.mxu0 %v2809
  %v3688 = vpop.f32.mrf.mxu0
  %v3689 = vadd.f32 0.0, %v3688
  %v3690 = vpop.f32.mrf.mxu0
  %v3691 = vadd.f32 0.0, %v3690
  %3692 = vmatmul.bf16.gmra.mxu0 %v2811
  %v3693 = vpop.f32.mrf.mxu0
  %v3694 = vadd.f32 0.0, %v3693
  %v3695 = vpop.f32.mrf.mxu0
  %v3696 = vadd.f32 0.0, %v3695
  %3697 = vmatmul.bf16.gmra.mxu0 %v2813
  %v3698 = vpop.f32.mrf.mxu0
  %v3699 = vadd.f32 0.0, %v3698
  %v3700 = vpop.f32.mrf.mxu0
  %v3701 = vadd.f32 0.0, %v3700
  %3702 = vmatmul.bf16.gmra.mxu0 %v2815
  %v3703 = vpop.f32.mrf.mxu0
  %v3704 = vadd.f32 0.0, %v3703
  %v3705 = vpop.f32.mrf.mxu0
  %v3706 = vadd.f32 0.0, %v3705
  %3707 = vmatmul.bf16.gmra.mxu0 %v2817
  %v3708 = vpop.f32.mrf.mxu0
  %v3709 = vadd.f32 0.0, %v3708
  %v3710 = vpop.f32.mrf.mxu0
  %v3711 = vadd.f32 0.0, %v3710
  %3712 = vmatmul.bf16.gmra.mxu0 %v2819
  %v3713 = vpop.f32.mrf.mxu0
  %v3714 = vadd.f32 0.0, %v3713
  %v3715 = vpop.f32.mrf.mxu0
  %v3716 = vadd.f32 0.0, %v3715
  %3717 = vmatmul.bf16.gmra.mxu0 %v2821
  %v3718 = vpop.f32.mrf.mxu0
  %v3719 = vadd.f32 0.0, %v3718
  %v3720 = vpop.f32.mrf.mxu0
  %v3721 = vadd.f32 0.0, %v3720
  %3722 = vmatmul.bf16.gmra.mxu0 %v2823
  %v3723 = vpop.f32.mrf.mxu0
  %v3724 = vadd.f32 0.0, %v3723
  %v3725 = vpop.f32.mrf.mxu0
  %v3726 = vadd.f32 0.0, %v3725
  %3727 = vmatmul.bf16.gmra.mxu0 %v2825
  %v3728 = vpop.f32.mrf.mxu0
  %v3729 = vadd.f32 0.0, %v3728
  %v3730 = vpop.f32.mrf.mxu0
  %v3731 = vadd.f32 0.0, %v3730
  %3732 = vmatmul.bf16.gmra.mxu0 %v2827
  %v3733 = vpop.f32.mrf.mxu0
  %v3734 = vadd.f32 0.0, %v3733
  %v3735 = vpop.f32.mrf.mxu0
  %v3736 = vadd.f32 0.0, %v3735
  %3737 = vmatmul.bf16.gmra.mxu0 %v2829
  %v3738 = vpop.f32.mrf.mxu0
  %v3739 = vadd.f32 0.0, %v3738
  %v3740 = vpop.f32.mrf.mxu0
  %v3741 = vadd.f32 0.0, %v3740
  %3742 = vmatmul.bf16.gmra.mxu0 %v2831
  %v3743 = vpop.f32.mrf.mxu0
  %v3744 = vadd.f32 0.0, %v3743
  %v3745 = vpop.f32.mrf.mxu0
  %v3746 = vadd.f32 0.0, %v3745
  %3747 = vmatmul.bf16.gmra.mxu0 %v2833
  %v3748 = vpop.f32.mrf.mxu0
  %v3749 = vadd.f32 0.0, %v3748
  %v3750 = vpop.f32.mrf.mxu0
  %v3751 = vadd.f32 0.0, %v3750
  %3752 = vmatmul.bf16.gmra.mxu0 %v2835
  %v3753 = vpop.f32.mrf.mxu0
  %v3754 = vadd.f32 0.0, %v3753
  %v3755 = vpop.f32.mrf.mxu0
  %v3756 = vadd.f32 0.0, %v3755
  %3757 = vmatmul.bf16.gmra.mxu0 %v2837
  %v3758 = vpop.f32.mrf.mxu0
  %v3759 = vadd.f32 0.0, %v3758
  %v3760 = vpop.f32.mrf.mxu0
  %v3761 = vadd.f32 0.0, %v3760
  %3762 = vmatmul.bf16.gmra.mxu0 %v2839
  %v3763 = vpop.f32.mrf.mxu0
  %v3764 = vadd.f32 0.0, %v3763
  %v3765 = vpop.f32.mrf.mxu0
  %v3766 = vadd.f32 0.0, %v3765
  %3767 = vdwg.mxu0
  %3768 = vmatpush.bf16.msra.mxu0 %v3257
  %3769 = vmatpush.bf16.msra.mxu0 %v3253
  %3770 = vmatpush.bf16.msra.mxu0 %v3249
  %3771 = vmatpush.bf16.msra.mxu0 %v3245
  %3772 = vmatpush.bf16.msra.mxu0 %v3241
  %3773 = vmatpush.bf16.msra.mxu0 %v3237
  %3774 = vmatpush.bf16.msra.mxu0 %v3233
  %3775 = vmatpush.bf16.msra.mxu0 %v3229
  %3776 = vmatmul.bf16.gmra.mxu0 %v2810
  %v3777 = vpop.f32.mrf.mxu0
  %v3778 = vadd.f32 %v3689, %v3777
  %v3779 = vpop.f32.mrf.mxu0
  %v3780 = vadd.f32 %v3691, %v3779
  %3781 = vmatmul.bf16.gmra.mxu0 %v2812
  %v3782 = vpop.f32.mrf.mxu0
  %v3783 = vadd.f32 %v3694, %v3782
  %v3784 = vpop.f32.mrf.mxu0
  %v3785 = vadd.f32 %v3696, %v3784
  %3786 = vmatmul.bf16.gmra.mxu0 %v2814
  %v3787 = vpop.f32.mrf.mxu0
  %v3788 = vadd.f32 %v3699, %v3787
  %v3789 = vpop.f32.mrf.mxu0
  %v3790 = vadd.f32 %v3701, %v3789
  %3791 = vmatmul.bf16.gmra.mxu0 %v2816
  %v3792 = vpop.f32.mrf.mxu0
  %v3793 = vadd.f32 %v3704, %v3792
  %v3794 = vpop.f32.mrf.mxu0
  %v3795 = vadd.f32 %v3706, %v3794
  %3796 = vmatmul.bf16.gmra.mxu0 %v2818
  %v3797 = vpop.f32.mrf.mxu0
  %v3798 = vadd.f32 %v3709, %v3797
  %v3799 = vpop.f32.mrf.mxu0
  %v3800 = vadd.f32 %v3711, %v3799
  %3801 = vmatmul.bf16.gmra.mxu0 %v2820
  %v3802 = vpop.f32.mrf.mxu0
  %v3803 = vadd.f32 %v3714, %v3802
  %v3804 = vpop.f32.mrf.mxu0
  %v3805 = vadd.f32 %v3716, %v3804
  %3806 = vmatmul.bf16.gmra.mxu0 %v2822
  %v3807 = vpop.f32.mrf.mxu0
  %v3808 = vadd.f32 %v3719, %v3807
  %v3809 = vpop.f32.mrf.mxu0
  %v3810 = vadd.f32 %v3721, %v3809
  %3811 = vmatmul.bf16.gmra.mxu0 %v2824
  %v3812 = vpop.f32.mrf.mxu0
  %v3813 = vadd.f32 %v3724, %v3812
  %v3814 = vpop.f32.mrf.mxu0
  %v3815 = vadd.f32 %v3726, %v3814
  %3816 = vmatmul.bf16.gmra.mxu0 %v2826
  %v3817 = vpop.f32.mrf.mxu0
  %v3818 = vadd.f32 %v3729, %v3817
  %v3819 = vpop.f32.mrf.mxu0
  %v3820 = vadd.f32 %v3731, %v3819
  %3821 = vmatmul.bf16.gmra.mxu0 %v2828
  %v3822 = vpop.f32.mrf.mxu0
  %v3823 = vadd.f32 %v3734, %v3822
  %v3824 = vpop.f32.mrf.mxu0
  %v3825 = vadd.f32 %v3736, %v3824
  %3826 = vmatmul.bf16.gmra.mxu0 %v2830
  %v3827 = vpop.f32.mrf.mxu0
  %v3828 = vadd.f32 %v3739, %v3827
  %v3829 = vpop.f32.mrf.mxu0
  %v3830 = vadd.f32 %v3741, %v3829
  %3831 = vmatmul.bf16.gmra.mxu0 %v2832
  %v3832 = vpop.f32.mrf.mxu0
  %v3833 = vadd.f32 %v3744, %v3832
  %v3834 = vpop.f32.mrf.mxu0
  %v3835 = vadd.f32 %v3746, %v3834
  %3836 = vmatmul.bf16.gmra.mxu0 %v2834
  %v3837 = vpop.f32.mrf.mxu0
  %v3838 = vadd.f32 %v3749, %v3837
  %v3839 = vpop.f32.mrf.mxu0
  %v3840 = vadd.f32 %v3751, %v3839
  %3841 = vmatmul.bf16.gmra.mxu0 %v2836
  %v3842 = vpop.f32.mrf.mxu0
  %v3843 = vadd.f32 %v3754, %v3842
  %v3844 = vpop.f32.mrf.mxu0
  %v3845 = vadd.f32 %v3756, %v3844
  %3846 = vmatmul.bf16.gmra.mxu0 %v2838
  %v3847 = vpop.f32.mrf.mxu0
  %v3848 = vadd.f32 %v3759, %v3847
  %v3849 = vpop.f32.mrf.mxu0
  %v3850 = vadd.f32 %v3761, %v3849
  %3851 = vmatmul.bf16.gmra.mxu0 %v2840
  %v3852 = vpop.f32.mrf.mxu0
  %v3853 = vadd.f32 %v3764, %v3852
  %v3854 = vpop.f32.mrf.mxu0
  %v3855 = vadd.f32 %v3766, %v3854
  %3856 = vdwg.mxu0
  %3857 = vmatpush.bf16.msra.mxu0 %v3226
  %3858 = vmatpush.bf16.msra.mxu0 %v3222
  %3859 = vmatpush.bf16.msra.mxu0 %v3218
  %3860 = vmatpush.bf16.msra.mxu0 %v3214
  %3861 = vmatpush.bf16.msra.mxu0 %v3210
  %3862 = vmatpush.bf16.msra.mxu0 %v3206
  %3863 = vmatpush.bf16.msra.mxu0 %v3202
  %3864 = vmatpush.bf16.msra.mxu0 %v3198
  %3865 = vmatmul.bf16.gmra.mxu0 %v2809
  %v3866 = vpop.f32.mrf.mxu0
  %v3867 = vadd.f32 0.0, %v3866
  %v3868 = vpop.f32.mrf.mxu0
  %v3869 = vadd.f32 0.0, %v3868
  %3870 = vmatmul.bf16.gmra.mxu0 %v2811
  %v3871 = vpop.f32.mrf.mxu0
  %v3872 = vadd.f32 0.0, %v3871
  %v3873 = vpop.f32.mrf.mxu0
  %v3874 = vadd.f32 0.0, %v3873
  %3875 = vmatmul.bf16.gmra.mxu0 %v2813
  %v3876 = vpop.f32.mrf.mxu0
  %v3877 = vadd.f32 0.0, %v3876
  %v3878 = vpop.f32.mrf.mxu0
  %v3879 = vadd.f32 0.0, %v3878
  %3880 = vmatmul.bf16.gmra.mxu0 %v2815
  %v3881 = vpop.f32.mrf.mxu0
  %v3882 = vadd.f32 0.0, %v3881
  %v3883 = vpop.f32.mrf.mxu0
  %v3884 = vadd.f32 0.0, %v3883
  %3885 = vmatmul.bf16.gmra.mxu0 %v2817
  %v3886 = vpop.f32.mrf.mxu0
  %v3887 = vadd.f32 0.0, %v3886
  %v3888 = vpop.f32.mrf.mxu0
  %v3889 = vadd.f32 0.0, %v3888
  %3890 = vmatmul.bf16.gmra.mxu0 %v2819
  %v3891 = vpop.f32.mrf.mxu0
  %v3892 = vadd.f32 0.0, %v3891
  %v3893 = vpop.f32.mrf.mxu0
  %v3894 = vadd.f32 0.0, %v3893
  %3895 = vmatmul.bf16.gmra.mxu0 %v2821
  %v3896 = vpop.f32.mrf.mxu0
  %v3897 = vadd.f32 0.0, %v3896
  %v3898 = vpop.f32.mrf.mxu0
  %v3899 = vadd.f32 0.0, %v3898
  %3900 = vmatmul.bf16.gmra.mxu0 %v2823
  %v3901 = vpop.f32.mrf.mxu0
  %v3902 = vadd.f32 0.0, %v3901
  %v3903 = vpop.f32.mrf.mxu0
  %v3904 = vadd.f32 0.0, %v3903
  %3905 = vmatmul.bf16.gmra.mxu0 %v2825
  %v3906 = vpop.f32.mrf.mxu0
  %v3907 = vadd.f32 0.0, %v3906
  %v3908 = vpop.f32.mrf.mxu0
  %v3909 = vadd.f32 0.0, %v3908
  %3910 = vmatmul.bf16.gmra.mxu0 %v2827
  %v3911 = vpop.f32.mrf.mxu0
  %v3912 = vadd.f32 0.0, %v3911
  %v3913 = vpop.f32.mrf.mxu0
  %v3914 = vadd.f32 0.0, %v3913
  %3915 = vmatmul.bf16.gmra.mxu0 %v2829
  %v3916 = vpop.f32.mrf.mxu0
  %v3917 = vadd.f32 0.0, %v3916
  %v3918 = vpop.f32.mrf.mxu0
  %v3919 = vadd.f32 0.0, %v3918
  %3920 = vmatmul.bf16.gmra.mxu0 %v2831
  %v3921 = vpop.f32.mrf.mxu0
  %v3922 = vadd.f32 0.0, %v3921
  %v3923 = vpop.f32.mrf.mxu0
  %v3924 = vadd.f32 0.0, %v3923
  %3925 = vmatmul.bf16.gmra.mxu0 %v2833
  %v3926 = vpop.f32.mrf.mxu0
  %v3927 = vadd.f32 0.0, %v3926
  %v3928 = vpop.f32.mrf.mxu0
  %v3929 = vadd.f32 0.0, %v3928
  %3930 = vmatmul.bf16.gmra.mxu0 %v2835
  %v3931 = vpop.f32.mrf.mxu0
  %v3932 = vadd.f32 0.0, %v3931
  %v3933 = vpop.f32.mrf.mxu0
  %v3934 = vadd.f32 0.0, %v3933
  %3935 = vmatmul.bf16.gmra.mxu0 %v2837
  %v3936 = vpop.f32.mrf.mxu0
  %v3937 = vadd.f32 0.0, %v3936
  %v3938 = vpop.f32.mrf.mxu0
  %v3939 = vadd.f32 0.0, %v3938
  %3940 = vmatmul.bf16.gmra.mxu0 %v2839
  %v3941 = vpop.f32.mrf.mxu0
  %v3942 = vadd.f32 0.0, %v3941
  %v3943 = vpop.f32.mrf.mxu0
  %v3944 = vadd.f32 0.0, %v3943
  %3945 = vdwg.mxu0
  %3946 = vmatpush.bf16.msra.mxu0 %v3258
  %3947 = vmatpush.bf16.msra.mxu0 %v3254
  %3948 = vmatpush.bf16.msra.mxu0 %v3250
  %3949 = vmatpush.bf16.msra.mxu0 %v3246
  %3950 = vmatpush.bf16.msra.mxu0 %v3242
  %3951 = vmatpush.bf16.msra.mxu0 %v3238
  %3952 = vmatpush.bf16.msra.mxu0 %v3234
  %3953 = vmatpush.bf16.msra.mxu0 %v3230
  %3954 = vmatmul.bf16.gmra.mxu0 %v2810
  %v3955 = vpop.f32.mrf.mxu0
  %v3956 = vadd.f32 %v3867, %v3955
  %v3957 = vpop.f32.mrf.mxu0
  %v3958 = vadd.f32 %v3869, %v3957
  %3959 = vmatmul.bf16.gmra.mxu0 %v2812
  %v3960 = vpop.f32.mrf.mxu0
  %v3961 = vadd.f32 %v3872, %v3960
  %v3962 = vpop.f32.mrf.mxu0
  %v3963 = vadd.f32 %v3874, %v3962
  %3964 = vmatmul.bf16.gmra.mxu0 %v2814
  %v3965 = vpop.f32.mrf.mxu0
  %v3966 = vadd.f32 %v3877, %v3965
  %v3967 = vpop.f32.mrf.mxu0
  %v3968 = vadd.f32 %v3879, %v3967
  %3969 = vmatmul.bf16.gmra.mxu0 %v2816
  %v3970 = vpop.f32.mrf.mxu0
  %v3971 = vadd.f32 %v3882, %v3970
  %v3972 = vpop.f32.mrf.mxu0
  %v3973 = vadd.f32 %v3884, %v3972
  %3974 = vmatmul.bf16.gmra.mxu0 %v2818
  %v3975 = vpop.f32.mrf.mxu0
  %v3976 = vadd.f32 %v3887, %v3975
  %v3977 = vpop.f32.mrf.mxu0
  %v3978 = vadd.f32 %v3889, %v3977
  %3979 = vmatmul.bf16.gmra.mxu0 %v2820
  %v3980 = vpop.f32.mrf.mxu0
  %v3981 = vadd.f32 %v3892, %v3980
  %v3982 = vpop.f32.mrf.mxu0
  %v3983 = vadd.f32 %v3894, %v3982
  %3984 = vmatmul.bf16.gmra.mxu0 %v2822
  %v3985 = vpop.f32.mrf.mxu0
  %v3986 = vadd.f32 %v3897, %v3985
  %v3987 = vpop.f32.mrf.mxu0
  %v3988 = vadd.f32 %v3899, %v3987
  %3989 = vmatmul.bf16.gmra.mxu0 %v2824
  %v3990 = vpop.f32.mrf.mxu0
  %v3991 = vadd.f32 %v3902, %v3990
  %v3992 = vpop.f32.mrf.mxu0
  %v3993 = vadd.f32 %v3904, %v3992
  %3994 = vmatmul.bf16.gmra.mxu0 %v2826
  %v3995 = vpop.f32.mrf.mxu0
  %v3996 = vadd.f32 %v3907, %v3995
  %v3997 = vpop.f32.mrf.mxu0
  %v3998 = vadd.f32 %v3909, %v3997
  %3999 = vmatmul.bf16.gmra.mxu0 %v2828
  %v4000 = vpop.f32.mrf.mxu0
  %v4001 = vadd.f32 %v3912, %v4000
  %v4002 = vpop.f32.mrf.mxu0
  %v4003 = vadd.f32 %v3914, %v4002
  %4004 = vmatmul.bf16.gmra.mxu0 %v2830
  %v4005 = vpop.f32.mrf.mxu0
  %v4006 = vadd.f32 %v3917, %v4005
  %v4007 = vpop.f32.mrf.mxu0
  %v4008 = vadd.f32 %v3919, %v4007
  %4009 = vmatmul.bf16.gmra.mxu0 %v2832
  %v4010 = vpop.f32.mrf.mxu0
  %v4011 = vadd.f32 %v3922, %v4010
  %v4012 = vpop.f32.mrf.mxu0
  %v4013 = vadd.f32 %v3924, %v4012
  %4014 = vmatmul.bf16.gmra.mxu0 %v2834
  %v4015 = vpop.f32.mrf.mxu0
  %v4016 = vadd.f32 %v3927, %v4015
  %v4017 = vpop.f32.mrf.mxu0
  %v4018 = vadd.f32 %v3929, %v4017
  %4019 = vmatmul.bf16.gmra.mxu0 %v2836
  %v4020 = vpop.f32.mrf.mxu0
  %v4021 = vadd.f32 %v3932, %v4020
  %v4022 = vpop.f32.mrf.mxu0
  %v4023 = vadd.f32 %v3934, %v4022
  %4024 = vmatmul.bf16.gmra.mxu0 %v2838
  %v4025 = vpop.f32.mrf.mxu0
  %v4026 = vadd.f32 %v3937, %v4025
  %v4027 = vpop.f32.mrf.mxu0
  %v4028 = vadd.f32 %v3939, %v4027
  %4029 = vmatmul.bf16.gmra.mxu0 %v2840
  %v4030 = vpop.f32.mrf.mxu0
  %v4031 = vadd.f32 %v3942, %v4030
  %v4032 = vpop.f32.mrf.mxu0
  %v4033 = vadd.f32 %v3944, %v4032
  %4034 = vdwg.mxu0
  %v4099 = vunpack.c.l.b16 %v2874
  %v4100 = vunpack.c.h.b16 %v2874
  %v4101 = vunpack.c.l.b16 %v2875
  %v4102 = vunpack.c.h.b16 %v2875
  %v4103 = vunpack.c.l.b16 %v2876
  %v4104 = vunpack.c.h.b16 %v2876
  %v4105 = vunpack.c.l.b16 %v2877
  %v4106 = vunpack.c.h.b16 %v2877
  %v4107 = vunpack.c.l.b16 %v2878
  %v4108 = vunpack.c.h.b16 %v2878
  %v4109 = vunpack.c.l.b16 %v2879
  %v4110 = vunpack.c.h.b16 %v2879
  %v4111 = vunpack.c.l.b16 %v2880
  %v4112 = vunpack.c.h.b16 %v2880
  %v4113 = vunpack.c.l.b16 %v2881
  %v4114 = vunpack.c.h.b16 %v2881
  %v4115 = vunpack.c.l.b16 %v2882
  %v4116 = vunpack.c.h.b16 %v2882
  %v4117 = vunpack.c.l.b16 %v2883
  %v4118 = vunpack.c.h.b16 %v2883
  %v4119 = vunpack.c.l.b16 %v2884
  %v4120 = vunpack.c.h.b16 %v2884
  %v4121 = vunpack.c.l.b16 %v2885
  %v4122 = vunpack.c.h.b16 %v2885
  %v4123 = vunpack.c.l.b16 %v2886
  %v4124 = vunpack.c.h.b16 %v2886
  %v4125 = vunpack.c.l.b16 %v2887
  %v4126 = vunpack.c.h.b16 %v2887
  %v4127 = vunpack.c.l.b16 %v2888
  %v4128 = vunpack.c.h.b16 %v2888
  %v4129 = vunpack.c.l.b16 %v2889
  %v4130 = vunpack.c.h.b16 %v2889
  %v4131 = vunpack.c.l.b16 %v2890
  %v4132 = vunpack.c.h.b16 %v2890
  %v4133 = vunpack.c.l.b16 %v2891
  %v4134 = vunpack.c.h.b16 %v2891
  %v4135 = vunpack.c.l.b16 %v2892
  %v4136 = vunpack.c.h.b16 %v2892
  %v4137 = vunpack.c.l.b16 %v2893
  %v4138 = vunpack.c.h.b16 %v2893
  %v4139 = vunpack.c.l.b16 %v2894
  %v4140 = vunpack.c.h.b16 %v2894
  %v4141 = vunpack.c.l.b16 %v2895
  %v4142 = vunpack.c.h.b16 %v2895
  %v4143 = vunpack.c.l.b16 %v2896
  %v4144 = vunpack.c.h.b16 %v2896
  %v4145 = vunpack.c.l.b16 %v2897
  %v4146 = vunpack.c.h.b16 %v2897
  %v4147 = vunpack.c.l.b16 %v2898
  %v4148 = vunpack.c.h.b16 %v2898
  %v4149 = vunpack.c.l.b16 %v2899
  %v4150 = vunpack.c.h.b16 %v2899
  %v4151 = vunpack.c.l.b16 %v2900
  %v4152 = vunpack.c.h.b16 %v2900
  %v4153 = vunpack.c.l.b16 %v2901
  %v4154 = vunpack.c.h.b16 %v2901
  %v4155 = vunpack.c.l.b16 %v2902
  %v4156 = vunpack.c.h.b16 %v2902
  %v4157 = vunpack.c.l.b16 %v2903
  %v4158 = vunpack.c.h.b16 %v2903
  %v4159 = vunpack.c.l.b16 %v2904
  %v4160 = vunpack.c.h.b16 %v2904
  %v4161 = vunpack.c.l.b16 %v2905
  %v4162 = vunpack.c.h.b16 %v2905
  %v4163 = vunpack.c.l.b16 %v2906
  %v4164 = vunpack.c.h.b16 %v2906
  %v4165 = vunpack.c.l.b16 %v2907
  %v4166 = vunpack.c.h.b16 %v2907
  %v4167 = vunpack.c.l.b16 %v2908
  %v4168 = vunpack.c.h.b16 %v2908
  %v4169 = vunpack.c.l.b16 %v2909
  %v4170 = vunpack.c.h.b16 %v2909
  %v4171 = vunpack.c.l.b16 %v2910
  %v4172 = vunpack.c.h.b16 %v2910
  %v4173 = vunpack.c.l.b16 %v2911
  %v4174 = vunpack.c.h.b16 %v2911
  %v4175 = vunpack.c.l.b16 %v2912
  %v4176 = vunpack.c.h.b16 %v2912
  %v4177 = vunpack.c.l.b16 %v2913
  %v4178 = vunpack.c.h.b16 %v2913
  %v4179 = vunpack.c.l.b16 %v2914
  %v4180 = vunpack.c.h.b16 %v2914
  %v4181 = vunpack.c.l.b16 %v2915
  %v4182 = vunpack.c.h.b16 %v2915
  %v4183 = vunpack.c.l.b16 %v2916
  %v4184 = vunpack.c.h.b16 %v2916
  %v4185 = vunpack.c.l.b16 %v2917
  %v4186 = vunpack.c.h.b16 %v2917
  %v4187 = vunpack.c.l.b16 %v2918
  %v4188 = vunpack.c.h.b16 %v2918
  %v4189 = vunpack.c.l.b16 %v2919
  %v4190 = vunpack.c.h.b16 %v2919
  %v4191 = vunpack.c.l.b16 %v2920
  %v4192 = vunpack.c.h.b16 %v2920
  %v4193 = vunpack.c.l.b16 %v2921
  %v4194 = vunpack.c.h.b16 %v2921
  %v4195 = vunpack.c.l.b16 %v2922
  %v4196 = vunpack.c.h.b16 %v2922
  %v4197 = vunpack.c.l.b16 %v2923
  %v4198 = vunpack.c.h.b16 %v2923
  %v4199 = vunpack.c.l.b16 %v2924
  %v4200 = vunpack.c.h.b16 %v2924
  %v4201 = vunpack.c.l.b16 %v2925
  %v4202 = vunpack.c.h.b16 %v2925
  %v4203 = vunpack.c.l.b16 %v2926
  %v4204 = vunpack.c.h.b16 %v2926
  %v4205 = vunpack.c.l.b16 %v2927
  %v4206 = vunpack.c.h.b16 %v2927
  %v4207 = vunpack.c.l.b16 %v2928
  %v4208 = vunpack.c.h.b16 %v2928
  %v4209 = vunpack.c.l.b16 %v2929
  %v4210 = vunpack.c.h.b16 %v2929
  %v4211 = vunpack.c.l.b16 %v2930
  %v4212 = vunpack.c.h.b16 %v2930
  %v4213 = vunpack.c.l.b16 %v2931
  %v4214 = vunpack.c.h.b16 %v2931
  %v4215 = vunpack.c.l.b16 %v2932
  %v4216 = vunpack.c.h.b16 %v2932
  %v4217 = vunpack.c.l.b16 %v2933
  %v4218 = vunpack.c.h.b16 %v2933
  %v4219 = vunpack.c.l.b16 %v2934
  %v4220 = vunpack.c.h.b16 %v2934
  %v4221 = vunpack.c.l.b16 %v2935
  %v4222 = vunpack.c.h.b16 %v2935
  %v4223 = vunpack.c.l.b16 %v2936
  %v4224 = vunpack.c.h.b16 %v2936
  %v4225 = vunpack.c.l.b16 %v2937
  %v4226 = vunpack.c.h.b16 %v2937
  %v4227 = vpack.c.b16 %v4103, %v4099
  %v4228 = vpack.c.b16 %v4104, %v4100
  %v4229 = vpack.c.b16 %v4105, %v4101
  %v4230 = vpack.c.b16 %v4106, %v4102
  %v4231 = vpack.c.b16 %v4111, %v4107
  %v4232 = vpack.c.b16 %v4112, %v4108
  %v4233 = vpack.c.b16 %v4113, %v4109
  %v4234 = vpack.c.b16 %v4114, %v4110
  %v4235 = vpack.c.b16 %v4119, %v4115
  %v4236 = vpack.c.b16 %v4120, %v4116
  %v4237 = vpack.c.b16 %v4121, %v4117
  %v4238 = vpack.c.b16 %v4122, %v4118
  %v4239 = vpack.c.b16 %v4127, %v4123
  %v4240 = vpack.c.b16 %v4128, %v4124
  %v4241 = vpack.c.b16 %v4129, %v4125
  %v4242 = vpack.c.b16 %v4130, %v4126
  %v4243 = vpack.c.b16 %v4135, %v4131
  %v4244 = vpack.c.b16 %v4136, %v4132
  %v4245 = vpack.c.b16 %v4137, %v4133
  %v4246 = vpack.c.b16 %v4138, %v4134
  %v4247 = vpack.c.b16 %v4143, %v4139
  %v4248 = vpack.c.b16 %v4144, %v4140
  %v4249 = vpack.c.b16 %v4145, %v4141
  %v4250 = vpack.c.b16 %v4146, %v4142
  %v4251 = vpack.c.b16 %v4151, %v4147
  %v4252 = vpack.c.b16 %v4152, %v4148
  %v4253 = vpack.c.b16 %v4153, %v4149
  %v4254 = vpack.c.b16 %v4154, %v4150
  %v4255 = vpack.c.b16 %v4159, %v4155
  %v4256 = vpack.c.b16 %v4160, %v4156
  %v4257 = vpack.c.b16 %v4161, %v4157
  %v4258 = vpack.c.b16 %v4162, %v4158
  %v4259 = vpack.c.b16 %v4167, %v4163
  %v4260 = vpack.c.b16 %v4168, %v4164
  %v4261 = vpack.c.b16 %v4169, %v4165
  %v4262 = vpack.c.b16 %v4170, %v4166
  %v4263 = vpack.c.b16 %v4175, %v4171
  %v4264 = vpack.c.b16 %v4176, %v4172
  %v4265 = vpack.c.b16 %v4177, %v4173
  %v4266 = vpack.c.b16 %v4178, %v4174
  %v4267 = vpack.c.b16 %v4183, %v4179
  %v4268 = vpack.c.b16 %v4184, %v4180
  %v4269 = vpack.c.b16 %v4185, %v4181
  %v4270 = vpack.c.b16 %v4186, %v4182
  %v4271 = vpack.c.b16 %v4191, %v4187
  %v4272 = vpack.c.b16 %v4192, %v4188
  %v4273 = vpack.c.b16 %v4193, %v4189
  %v4274 = vpack.c.b16 %v4194, %v4190
  %v4275 = vpack.c.b16 %v4199, %v4195
  %v4276 = vpack.c.b16 %v4200, %v4196
  %v4277 = vpack.c.b16 %v4201, %v4197
  %v4278 = vpack.c.b16 %v4202, %v4198
  %v4279 = vpack.c.b16 %v4207, %v4203
  %v4280 = vpack.c.b16 %v4208, %v4204
  %v4281 = vpack.c.b16 %v4209, %v4205
  %v4282 = vpack.c.b16 %v4210, %v4206
  %v4283 = vpack.c.b16 %v4215, %v4211
  %v4284 = vpack.c.b16 %v4216, %v4212
  %v4285 = vpack.c.b16 %v4217, %v4213
  %v4286 = vpack.c.b16 %v4218, %v4214
  %v4287 = vpack.c.b16 %v4223, %v4219
  %v4288 = vpack.c.b16 %v4224, %v4220
  %v4289 = vpack.c.b16 %v4225, %v4221
  %v4290 = vpack.c.b16 %v4226, %v4222
  %4355 = vmatpush.bf16.msra.mxu0 %v4255
  %4356 = vmatpush.bf16.msra.mxu0 %v4251
  %4357 = vmatpush.bf16.msra.mxu0 %v4247
  %4358 = vmatpush.bf16.msra.mxu0 %v4243
  %4359 = vmatpush.bf16.msra.mxu0 %v4239
  %4360 = vmatpush.bf16.msra.mxu0 %v4235
  %4361 = vmatpush.bf16.msra.mxu0 %v4231
  %4362 = vmatpush.bf16.msra.mxu0 %v4227
  %4363 = vmatmul.bf16.gmra.mxu0 %v2873
  %v4364 = vpop.f32.mrf.mxu0
  %v4365 = vadd.f32 %v3422, %v4364
  %v4366 = vpop.f32.mrf.mxu0
  %v4367 = vadd.f32 %v3424, %v4366
  %4368 = vmatmul.bf16.gmra.mxu0 %v2873
  %v4369 = vpop.f32.mrf.mxu0
  %v4370 = vadd.f32 %v3427, %v4369
  %v4371 = vpop.f32.mrf.mxu0
  %v4372 = vadd.f32 %v3429, %v4371
  %4373 = vmatmul.bf16.gmra.mxu0 %v2841
  %v4374 = vpop.f32.mrf.mxu0
  %v4375 = vadd.f32 %v3432, %v4374
  %v4376 = vpop.f32.mrf.mxu0
  %v4377 = vadd.f32 %v3434, %v4376
  %4378 = vmatmul.bf16.gmra.mxu0 %v2843
  %v4379 = vpop.f32.mrf.mxu0
  %v4380 = vadd.f32 %v3437, %v4379
  %v4381 = vpop.f32.mrf.mxu0
  %v4382 = vadd.f32 %v3439, %v4381
  %4383 = vmatmul.bf16.gmra.mxu0 %v2845
  %v4384 = vpop.f32.mrf.mxu0
  %v4385 = vadd.f32 %v3442, %v4384
  %v4386 = vpop.f32.mrf.mxu0
  %v4387 = vadd.f32 %v3444, %v4386
  %4388 = vmatmul.bf16.gmra.mxu0 %v2847
  %v4389 = vpop.f32.mrf.mxu0
  %v4390 = vadd.f32 %v3447, %v4389
  %v4391 = vpop.f32.mrf.mxu0
  %v4392 = vadd.f32 %v3449, %v4391
  %4393 = vmatmul.bf16.gmra.mxu0 %v2849
  %v4394 = vpop.f32.mrf.mxu0
  %v4395 = vadd.f32 %v3452, %v4394
  %v4396 = vpop.f32.mrf.mxu0
  %v4397 = vadd.f32 %v3454, %v4396
  %4398 = vmatmul.bf16.gmra.mxu0 %v2851
  %v4399 = vpop.f32.mrf.mxu0
  %v4400 = vadd.f32 %v3457, %v4399
  %v4401 = vpop.f32.mrf.mxu0
  %v4402 = vadd.f32 %v3459, %v4401
  %4403 = vmatmul.bf16.gmra.mxu0 %v2853
  %v4404 = vpop.f32.mrf.mxu0
  %v4405 = vadd.f32 %v3462, %v4404
  %v4406 = vpop.f32.mrf.mxu0
  %v4407 = vadd.f32 %v3464, %v4406
  %4408 = vmatmul.bf16.gmra.mxu0 %v2855
  %v4409 = vpop.f32.mrf.mxu0
  %v4410 = vadd.f32 %v3467, %v4409
  %v4411 = vpop.f32.mrf.mxu0
  %v4412 = vadd.f32 %v3469, %v4411
  %4413 = vmatmul.bf16.gmra.mxu0 %v2857
  %v4414 = vpop.f32.mrf.mxu0
  %v4415 = vadd.f32 %v3472, %v4414
  %v4416 = vpop.f32.mrf.mxu0
  %v4417 = vadd.f32 %v3474, %v4416
  %4418 = vmatmul.bf16.gmra.mxu0 %v2859
  %v4419 = vpop.f32.mrf.mxu0
  %v4420 = vadd.f32 %v3477, %v4419
  %v4421 = vpop.f32.mrf.mxu0
  %v4422 = vadd.f32 %v3479, %v4421
  %4423 = vmatmul.bf16.gmra.mxu0 %v2861
  %v4424 = vpop.f32.mrf.mxu0
  %v4425 = vadd.f32 %v3482, %v4424
  %v4426 = vpop.f32.mrf.mxu0
  %v4427 = vadd.f32 %v3484, %v4426
  %4428 = vmatmul.bf16.gmra.mxu0 %v2863
  %v4429 = vpop.f32.mrf.mxu0
  %v4430 = vadd.f32 %v3487, %v4429
  %v4431 = vpop.f32.mrf.mxu0
  %v4432 = vadd.f32 %v3489, %v4431
  %4433 = vmatmul.bf16.gmra.mxu0 %v2865
  %v4434 = vpop.f32.mrf.mxu0
  %v4435 = vadd.f32 %v3492, %v4434
  %v4436 = vpop.f32.mrf.mxu0
  %v4437 = vadd.f32 %v3494, %v4436
  %4438 = vmatmul.bf16.gmra.mxu0 %v2867
  %v4439 = vpop.f32.mrf.mxu0
  %v4440 = vadd.f32 %v3497, %v4439
  %v4441 = vpop.f32.mrf.mxu0
  %v4442 = vadd.f32 %v3499, %v4441
  %4443 = vdwg.mxu0
  %4444 = vmatpush.bf16.msra.mxu0 %v4287
  %4445 = vmatpush.bf16.msra.mxu0 %v4283
  %4446 = vmatpush.bf16.msra.mxu0 %v4279
  %4447 = vmatpush.bf16.msra.mxu0 %v4275
  %4448 = vmatpush.bf16.msra.mxu0 %v4271
  %4449 = vmatpush.bf16.msra.mxu0 %v4267
  %4450 = vmatpush.bf16.msra.mxu0 %v4263
  %4451 = vmatpush.bf16.msra.mxu0 %v4259
  %4452 = vmatmul.bf16.gmra.mxu0 %v2873
  %v4453 = vpop.f32.mrf.mxu0
  %v4454 = vadd.f32 %v4365, %v4453
  %v4455 = vpop.f32.mrf.mxu0
  %v4456 = vadd.f32 %v4367, %v4455
  %4457 = vmatmul.bf16.gmra.mxu0 %v2873
  %v4458 = vpop.f32.mrf.mxu0
  %v4459 = vadd.f32 %v4370, %v4458
  %v4460 = vpop.f32.mrf.mxu0
  %v4461 = vadd.f32 %v4372, %v4460
  %4462 = vmatmul.bf16.gmra.mxu0 %v2842
  %v4463 = vpop.f32.mrf.mxu0
  %v4464 = vadd.f32 %v4375, %v4463
  %v4465 = vpop.f32.mrf.mxu0
  %v4466 = vadd.f32 %v4377, %v4465
  %4467 = vmatmul.bf16.gmra.mxu0 %v2844
  %v4468 = vpop.f32.mrf.mxu0
  %v4469 = vadd.f32 %v4380, %v4468
  %v4470 = vpop.f32.mrf.mxu0
  %v4471 = vadd.f32 %v4382, %v4470
  %4472 = vmatmul.bf16.gmra.mxu0 %v2846
  %v4473 = vpop.f32.mrf.mxu0
  %v4474 = vadd.f32 %v4385, %v4473
  %v4475 = vpop.f32.mrf.mxu0
  %v4476 = vadd.f32 %v4387, %v4475
  %4477 = vmatmul.bf16.gmra.mxu0 %v2848
  %v4478 = vpop.f32.mrf.mxu0
  %v4479 = vadd.f32 %v4390, %v4478
  %v4480 = vpop.f32.mrf.mxu0
  %v4481 = vadd.f32 %v4392, %v4480
  %4482 = vmatmul.bf16.gmra.mxu0 %v2850
  %v4483 = vpop.f32.mrf.mxu0
  %v4484 = vadd.f32 %v4395, %v4483
  %v4485 = vpop.f32.mrf.mxu0
  %v4486 = vadd.f32 %v4397, %v4485
  %4487 = vmatmul.bf16.gmra.mxu0 %v2852
  %v4488 = vpop.f32.mrf.mxu0
  %v4489 = vadd.f32 %v4400, %v4488
  %v4490 = vpop.f32.mrf.mxu0
  %v4491 = vadd.f32 %v4402, %v4490
  %4492 = vmatmul.bf16.gmra.mxu0 %v2854
  %v4493 = vpop.f32.mrf.mxu0
  %v4494 = vadd.f32 %v4405, %v4493
  %v4495 = vpop.f32.mrf.mxu0
  %v4496 = vadd.f32 %v4407, %v4495
  %4497 = vmatmul.bf16.gmra.mxu0 %v2856
  %v4498 = vpop.f32.mrf.mxu0
  %v4499 = vadd.f32 %v4410, %v4498
  %v4500 = vpop.f32.mrf.mxu0
  %v4501 = vadd.f32 %v4412, %v4500
  %4502 = vmatmul.bf16.gmra.mxu0 %v2858
  %v4503 = vpop.f32.mrf.mxu0
  %v4504 = vadd.f32 %v4415, %v4503
  %v4505 = vpop.f32.mrf.mxu0
  %v4506 = vadd.f32 %v4417, %v4505
  %4507 = vmatmul.bf16.gmra.mxu0 %v2860
  %v4508 = vpop.f32.mrf.mxu0
  %v4509 = vadd.f32 %v4420, %v4508
  %v4510 = vpop.f32.mrf.mxu0
  %v4511 = vadd.f32 %v4422, %v4510
  %4512 = vmatmul.bf16.gmra.mxu0 %v2862
  %v4513 = vpop.f32.mrf.mxu0
  %v4514 = vadd.f32 %v4425, %v4513
  %v4515 = vpop.f32.mrf.mxu0
  %v4516 = vadd.f32 %v4427, %v4515
  %4517 = vmatmul.bf16.gmra.mxu0 %v2864
  %v4518 = vpop.f32.mrf.mxu0
  %v4519 = vadd.f32 %v4430, %v4518
  %v4520 = vpop.f32.mrf.mxu0
  %v4521 = vadd.f32 %v4432, %v4520
  %4522 = vmatmul.bf16.gmra.mxu0 %v2866
  %v4523 = vpop.f32.mrf.mxu0
  %v4524 = vadd.f32 %v4435, %v4523
  %v4525 = vpop.f32.mrf.mxu0
  %v4526 = vadd.f32 %v4437, %v4525
  %4527 = vmatmul.bf16.gmra.mxu0 %v2868
  %v4528 = vpop.f32.mrf.mxu0
  %v4529 = vadd.f32 %v4440, %v4528
  %v4530 = vpop.f32.mrf.mxu0
  %v4531 = vadd.f32 %v4442, %v4530
  %4532 = vdwg.mxu0
  %4533 = vmatpush.bf16.msra.mxu0 %v4256
  %4534 = vmatpush.bf16.msra.mxu0 %v4252
  %4535 = vmatpush.bf16.msra.mxu0 %v4248
  %4536 = vmatpush.bf16.msra.mxu0 %v4244
  %4537 = vmatpush.bf16.msra.mxu0 %v4240
  %4538 = vmatpush.bf16.msra.mxu0 %v4236
  %4539 = vmatpush.bf16.msra.mxu0 %v4232
  %4540 = vmatpush.bf16.msra.mxu0 %v4228
  %4541 = vmatmul.bf16.gmra.mxu0 %v2873
  %v4542 = vpop.f32.mrf.mxu0
  %v4543 = vadd.f32 %v3600, %v4542
  %v4544 = vpop.f32.mrf.mxu0
  %v4545 = vadd.f32 %v3602, %v4544
  %4546 = vmatmul.bf16.gmra.mxu0 %v2873
  %v4547 = vpop.f32.mrf.mxu0
  %v4548 = vadd.f32 %v3605, %v4547
  %v4549 = vpop.f32.mrf.mxu0
  %v4550 = vadd.f32 %v3607, %v4549
  %4551 = vmatmul.bf16.gmra.mxu0 %v2841
  %v4552 = vpop.f32.mrf.mxu0
  %v4553 = vadd.f32 %v3610, %v4552
  %v4554 = vpop.f32.mrf.mxu0
  %v4555 = vadd.f32 %v3612, %v4554
  %4556 = vmatmul.bf16.gmra.mxu0 %v2843
  %v4557 = vpop.f32.mrf.mxu0
  %v4558 = vadd.f32 %v3615, %v4557
  %v4559 = vpop.f32.mrf.mxu0
  %v4560 = vadd.f32 %v3617, %v4559
  %4561 = vmatmul.bf16.gmra.mxu0 %v2845
  %v4562 = vpop.f32.mrf.mxu0
  %v4563 = vadd.f32 %v3620, %v4562
  %v4564 = vpop.f32.mrf.mxu0
  %v4565 = vadd.f32 %v3622, %v4564
  %4566 = vmatmul.bf16.gmra.mxu0 %v2847
  %v4567 = vpop.f32.mrf.mxu0
  %v4568 = vadd.f32 %v3625, %v4567
  %v4569 = vpop.f32.mrf.mxu0
  %v4570 = vadd.f32 %v3627, %v4569
  %4571 = vmatmul.bf16.gmra.mxu0 %v2849
  %v4572 = vpop.f32.mrf.mxu0
  %v4573 = vadd.f32 %v3630, %v4572
  %v4574 = vpop.f32.mrf.mxu0
  %v4575 = vadd.f32 %v3632, %v4574
  %4576 = vmatmul.bf16.gmra.mxu0 %v2851
  %v4577 = vpop.f32.mrf.mxu0
  %v4578 = vadd.f32 %v3635, %v4577
  %v4579 = vpop.f32.mrf.mxu0
  %v4580 = vadd.f32 %v3637, %v4579
  %4581 = vmatmul.bf16.gmra.mxu0 %v2853
  %v4582 = vpop.f32.mrf.mxu0
  %v4583 = vadd.f32 %v3640, %v4582
  %v4584 = vpop.f32.mrf.mxu0
  %v4585 = vadd.f32 %v3642, %v4584
  %4586 = vmatmul.bf16.gmra.mxu0 %v2855
  %v4587 = vpop.f32.mrf.mxu0
  %v4588 = vadd.f32 %v3645, %v4587
  %v4589 = vpop.f32.mrf.mxu0
  %v4590 = vadd.f32 %v3647, %v4589
  %4591 = vmatmul.bf16.gmra.mxu0 %v2857
  %v4592 = vpop.f32.mrf.mxu0
  %v4593 = vadd.f32 %v3650, %v4592
  %v4594 = vpop.f32.mrf.mxu0
  %v4595 = vadd.f32 %v3652, %v4594
  %4596 = vmatmul.bf16.gmra.mxu0 %v2859
  %v4597 = vpop.f32.mrf.mxu0
  %v4598 = vadd.f32 %v3655, %v4597
  %v4599 = vpop.f32.mrf.mxu0
  %v4600 = vadd.f32 %v3657, %v4599
  %4601 = vmatmul.bf16.gmra.mxu0 %v2861
  %v4602 = vpop.f32.mrf.mxu0
  %v4603 = vadd.f32 %v3660, %v4602
  %v4604 = vpop.f32.mrf.mxu0
  %v4605 = vadd.f32 %v3662, %v4604
  %4606 = vmatmul.bf16.gmra.mxu0 %v2863
  %v4607 = vpop.f32.mrf.mxu0
  %v4608 = vadd.f32 %v3665, %v4607
  %v4609 = vpop.f32.mrf.mxu0
  %v4610 = vadd.f32 %v3667, %v4609
  %4611 = vmatmul.bf16.gmra.mxu0 %v2865
  %v4612 = vpop.f32.mrf.mxu0
  %v4613 = vadd.f32 %v3670, %v4612
  %v4614 = vpop.f32.mrf.mxu0
  %v4615 = vadd.f32 %v3672, %v4614
  %4616 = vmatmul.bf16.gmra.mxu0 %v2867
  %v4617 = vpop.f32.mrf.mxu0
  %v4618 = vadd.f32 %v3675, %v4617
  %v4619 = vpop.f32.mrf.mxu0
  %v4620 = vadd.f32 %v3677, %v4619
  %4621 = vdwg.mxu0
  %4622 = vmatpush.bf16.msra.mxu0 %v4288
  %4623 = vmatpush.bf16.msra.mxu0 %v4284
  %4624 = vmatpush.bf16.msra.mxu0 %v4280
  %4625 = vmatpush.bf16.msra.mxu0 %v4276
  %4626 = vmatpush.bf16.msra.mxu0 %v4272
  %4627 = vmatpush.bf16.msra.mxu0 %v4268
  %4628 = vmatpush.bf16.msra.mxu0 %v4264
  %4629 = vmatpush.bf16.msra.mxu0 %v4260
  %4630 = vmatmul.bf16.gmra.mxu0 %v2873
  %v4631 = vpop.f32.mrf.mxu0
  %v4632 = vadd.f32 %v4543, %v4631
  %v4633 = vpop.f32.mrf.mxu0
  %v4634 = vadd.f32 %v4545, %v4633
  %4635 = vmatmul.bf16.gmra.mxu0 %v2873
  %v4636 = vpop.f32.mrf.mxu0
  %v4637 = vadd.f32 %v4548, %v4636
  %v4638 = vpop.f32.mrf.mxu0
  %v4639 = vadd.f32 %v4550, %v4638
  %4640 = vmatmul.bf16.gmra.mxu0 %v2842
  %v4641 = vpop.f32.mrf.mxu0
  %v4642 = vadd.f32 %v4553, %v4641
  %v4643 = vpop.f32.mrf.mxu0
  %v4644 = vadd.f32 %v4555, %v4643
  %4645 = vmatmul.bf16.gmra.mxu0 %v2844
  %v4646 = vpop.f32.mrf.mxu0
  %v4647 = vadd.f32 %v4558, %v4646
  %v4648 = vpop.f32.mrf.mxu0
  %v4649 = vadd.f32 %v4560, %v4648
  %4650 = vmatmul.bf16.gmra.mxu0 %v2846
  %v4651 = vpop.f32.mrf.mxu0
  %v4652 = vadd.f32 %v4563, %v4651
  %v4653 = vpop.f32.mrf.mxu0
  %v4654 = vadd.f32 %v4565, %v4653
  %4655 = vmatmul.bf16.gmra.mxu0 %v2848
  %v4656 = vpop.f32.mrf.mxu0
  %v4657 = vadd.f32 %v4568, %v4656
  %v4658 = vpop.f32.mrf.mxu0
  %v4659 = vadd.f32 %v4570, %v4658
  %4660 = vmatmul.bf16.gmra.mxu0 %v2850
  %v4661 = vpop.f32.mrf.mxu0
  %v4662 = vadd.f32 %v4573, %v4661
  %v4663 = vpop.f32.mrf.mxu0
  %v4664 = vadd.f32 %v4575, %v4663
  %4665 = vmatmul.bf16.gmra.mxu0 %v2852
  %v4666 = vpop.f32.mrf.mxu0
  %v4667 = vadd.f32 %v4578, %v4666
  %v4668 = vpop.f32.mrf.mxu0
  %v4669 = vadd.f32 %v4580, %v4668
  %4670 = vmatmul.bf16.gmra.mxu0 %v2854
  %v4671 = vpop.f32.mrf.mxu0
  %v4672 = vadd.f32 %v4583, %v4671
  %v4673 = vpop.f32.mrf.mxu0
  %v4674 = vadd.f32 %v4585, %v4673
  %4675 = vmatmul.bf16.gmra.mxu0 %v2856
  %v4676 = vpop.f32.mrf.mxu0
  %v4677 = vadd.f32 %v4588, %v4676
  %v4678 = vpop.f32.mrf.mxu0
  %v4679 = vadd.f32 %v4590, %v4678
  %4680 = vmatmul.bf16.gmra.mxu0 %v2858
  %v4681 = vpop.f32.mrf.mxu0
  %v4682 = vadd.f32 %v4593, %v4681
  %v4683 = vpop.f32.mrf.mxu0
  %v4684 = vadd.f32 %v4595, %v4683
  %4685 = vmatmul.bf16.gmra.mxu0 %v2860
  %v4686 = vpop.f32.mrf.mxu0
  %v4687 = vadd.f32 %v4598, %v4686
  %v4688 = vpop.f32.mrf.mxu0
  %v4689 = vadd.f32 %v4600, %v4688
  %4690 = vmatmul.bf16.gmra.mxu0 %v2862
  %v4691 = vpop.f32.mrf.mxu0
  %v4692 = vadd.f32 %v4603, %v4691
  %v4693 = vpop.f32.mrf.mxu0
  %v4694 = vadd.f32 %v4605, %v4693
  %4695 = vmatmul.bf16.gmra.mxu0 %v2864
  %v4696 = vpop.f32.mrf.mxu0
  %v4697 = vadd.f32 %v4608, %v4696
  %v4698 = vpop.f32.mrf.mxu0
  %v4699 = vadd.f32 %v4610, %v4698
  %4700 = vmatmul.bf16.gmra.mxu0 %v2866
  %v4701 = vpop.f32.mrf.mxu0
  %v4702 = vadd.f32 %v4613, %v4701
  %v4703 = vpop.f32.mrf.mxu0
  %v4704 = vadd.f32 %v4615, %v4703
  %4705 = vmatmul.bf16.gmra.mxu0 %v2868
  %v4706 = vpop.f32.mrf.mxu0
  %v4707 = vadd.f32 %v4618, %v4706
  %v4708 = vpop.f32.mrf.mxu0
  %v4709 = vadd.f32 %v4620, %v4708
  %4710 = vdwg.mxu0
  %4711 = vmatpush.bf16.msra.mxu0 %v4257
  %4712 = vmatpush.bf16.msra.mxu0 %v4253
  %4713 = vmatpush.bf16.msra.mxu0 %v4249
  %4714 = vmatpush.bf16.msra.mxu0 %v4245
  %4715 = vmatpush.bf16.msra.mxu0 %v4241
  %4716 = vmatpush.bf16.msra.mxu0 %v4237
  %4717 = vmatpush.bf16.msra.mxu0 %v4233
  %4718 = vmatpush.bf16.msra.mxu0 %v4229
  %4719 = vmatmul.bf16.gmra.mxu0 %v2873
  %v4720 = vpop.f32.mrf.mxu0
  %v4721 = vadd.f32 %v3778, %v4720
  %v4722 = vpop.f32.mrf.mxu0
  %v4723 = vadd.f32 %v3780, %v4722
  %4724 = vmatmul.bf16.gmra.mxu0 %v2873
  %v4725 = vpop.f32.mrf.mxu0
  %v4726 = vadd.f32 %v3783, %v4725
  %v4727 = vpop.f32.mrf.mxu0
  %v4728 = vadd.f32 %v3785, %v4727
  %4729 = vmatmul.bf16.gmra.mxu0 %v2841
  %v4730 = vpop.f32.mrf.mxu0
  %v4731 = vadd.f32 %v3788, %v4730
  %v4732 = vpop.f32.mrf.mxu0
  %v4733 = vadd.f32 %v3790, %v4732
  %4734 = vmatmul.bf16.gmra.mxu0 %v2843
  %v4735 = vpop.f32.mrf.mxu0
  %v4736 = vadd.f32 %v3793, %v4735
  %v4737 = vpop.f32.mrf.mxu0
  %v4738 = vadd.f32 %v3795, %v4737
  %4739 = vmatmul.bf16.gmra.mxu0 %v2845
  %v4740 = vpop.f32.mrf.mxu0
  %v4741 = vadd.f32 %v3798, %v4740
  %v4742 = vpop.f32.mrf.mxu0
  %v4743 = vadd.f32 %v3800, %v4742
  %4744 = vmatmul.bf16.gmra.mxu0 %v2847
  %v4745 = vpop.f32.mrf.mxu0
  %v4746 = vadd.f32 %v3803, %v4745
  %v4747 = vpop.f32.mrf.mxu0
  %v4748 = vadd.f32 %v3805, %v4747
  %4749 = vmatmul.bf16.gmra.mxu0 %v2849
  %v4750 = vpop.f32.mrf.mxu0
  %v4751 = vadd.f32 %v3808, %v4750
  %v4752 = vpop.f32.mrf.mxu0
  %v4753 = vadd.f32 %v3810, %v4752
  %4754 = vmatmul.bf16.gmra.mxu0 %v2851
  %v4755 = vpop.f32.mrf.mxu0
  %v4756 = vadd.f32 %v3813, %v4755
  %v4757 = vpop.f32.mrf.mxu0
  %v4758 = vadd.f32 %v3815, %v4757
  %4759 = vmatmul.bf16.gmra.mxu0 %v2853
  %v4760 = vpop.f32.mrf.mxu0
  %v4761 = vadd.f32 %v3818, %v4760
  %v4762 = vpop.f32.mrf.mxu0
  %v4763 = vadd.f32 %v3820, %v4762
  %4764 = vmatmul.bf16.gmra.mxu0 %v2855
  %v4765 = vpop.f32.mrf.mxu0
  %v4766 = vadd.f32 %v3823, %v4765
  %v4767 = vpop.f32.mrf.mxu0
  %v4768 = vadd.f32 %v3825, %v4767
  %4769 = vmatmul.bf16.gmra.mxu0 %v2857
  %v4770 = vpop.f32.mrf.mxu0
  %v4771 = vadd.f32 %v3828, %v4770
  %v4772 = vpop.f32.mrf.mxu0
  %v4773 = vadd.f32 %v3830, %v4772
  %4774 = vmatmul.bf16.gmra.mxu0 %v2859
  %v4775 = vpop.f32.mrf.mxu0
  %v4776 = vadd.f32 %v3833, %v4775
  %v4777 = vpop.f32.mrf.mxu0
  %v4778 = vadd.f32 %v3835, %v4777
  %4779 = vmatmul.bf16.gmra.mxu0 %v2861
  %v4780 = vpop.f32.mrf.mxu0
  %v4781 = vadd.f32 %v3838, %v4780
  %v4782 = vpop.f32.mrf.mxu0
  %v4783 = vadd.f32 %v3840, %v4782
  %4784 = vmatmul.bf16.gmra.mxu0 %v2863
  %v4785 = vpop.f32.mrf.mxu0
  %v4786 = vadd.f32 %v3843, %v4785
  %v4787 = vpop.f32.mrf.mxu0
  %v4788 = vadd.f32 %v3845, %v4787
  %4789 = vmatmul.bf16.gmra.mxu0 %v2865
  %v4790 = vpop.f32.mrf.mxu0
  %v4791 = vadd.f32 %v3848, %v4790
  %v4792 = vpop.f32.mrf.mxu0
  %v4793 = vadd.f32 %v3850, %v4792
  %4794 = vmatmul.bf16.gmra.mxu0 %v2867
  %v4795 = vpop.f32.mrf.mxu0
  %v4796 = vadd.f32 %v3853, %v4795
  %v4797 = vpop.f32.mrf.mxu0
  %v4798 = vadd.f32 %v3855, %v4797
  %4799 = vdwg.mxu0
  %4800 = vmatpush.bf16.msra.mxu0 %v4289
  %4801 = vmatpush.bf16.msra.mxu0 %v4285
  %4802 = vmatpush.bf16.msra.mxu0 %v4281
  %4803 = vmatpush.bf16.msra.mxu0 %v4277
  %4804 = vmatpush.bf16.msra.mxu0 %v4273
  %4805 = vmatpush.bf16.msra.mxu0 %v4269
  %4806 = vmatpush.bf16.msra.mxu0 %v4265
  %4807 = vmatpush.bf16.msra.mxu0 %v4261
  %4808 = vmatmul.bf16.gmra.mxu0 %v2873
  %v4809 = vpop.f32.mrf.mxu0
  %v4810 = vadd.f32 %v4721, %v4809
  %v4811 = vpop.f32.mrf.mxu0
  %v4812 = vadd.f32 %v4723, %v4811
  %4813 = vmatmul.bf16.gmra.mxu0 %v2873
  %v4814 = vpop.f32.mrf.mxu0
  %v4815 = vadd.f32 %v4726, %v4814
  %v4816 = vpop.f32.mrf.mxu0
  %v4817 = vadd.f32 %v4728, %v4816
  %4818 = vmatmul.bf16.gmra.mxu0 %v2842
  %v4819 = vpop.f32.mrf.mxu0
  %v4820 = vadd.f32 %v4731, %v4819
  %v4821 = vpop.f32.mrf.mxu0
  %v4822 = vadd.f32 %v4733, %v4821
  %4823 = vmatmul.bf16.gmra.mxu0 %v2844
  %v4824 = vpop.f32.mrf.mxu0
  %v4825 = vadd.f32 %v4736, %v4824
  %v4826 = vpop.f32.mrf.mxu0
  %v4827 = vadd.f32 %v4738, %v4826
  %4828 = vmatmul.bf16.gmra.mxu0 %v2846
  %v4829 = vpop.f32.mrf.mxu0
  %v4830 = vadd.f32 %v4741, %v4829
  %v4831 = vpop.f32.mrf.mxu0
  %v4832 = vadd.f32 %v4743, %v4831
  %4833 = vmatmul.bf16.gmra.mxu0 %v2848
  %v4834 = vpop.f32.mrf.mxu0
  %v4835 = vadd.f32 %v4746, %v4834
  %v4836 = vpop.f32.mrf.mxu0
  %v4837 = vadd.f32 %v4748, %v4836
  %4838 = vmatmul.bf16.gmra.mxu0 %v2850
  %v4839 = vpop.f32.mrf.mxu0
  %v4840 = vadd.f32 %v4751, %v4839
  %v4841 = vpop.f32.mrf.mxu0
  %v4842 = vadd.f32 %v4753, %v4841
  %4843 = vmatmul.bf16.gmra.mxu0 %v2852
  %v4844 = vpop.f32.mrf.mxu0
  %v4845 = vadd.f32 %v4756, %v4844
  %v4846 = vpop.f32.mrf.mxu0
  %v4847 = vadd.f32 %v4758, %v4846
  %4848 = vmatmul.bf16.gmra.mxu0 %v2854
  %v4849 = vpop.f32.mrf.mxu0
  %v4850 = vadd.f32 %v4761, %v4849
  %v4851 = vpop.f32.mrf.mxu0
  %v4852 = vadd.f32 %v4763, %v4851
  %4853 = vmatmul.bf16.gmra.mxu0 %v2856
  %v4854 = vpop.f32.mrf.mxu0
  %v4855 = vadd.f32 %v4766, %v4854
  %v4856 = vpop.f32.mrf.mxu0
  %v4857 = vadd.f32 %v4768, %v4856
  %4858 = vmatmul.bf16.gmra.mxu0 %v2858
  %v4859 = vpop.f32.mrf.mxu0
  %v4860 = vadd.f32 %v4771, %v4859
  %v4861 = vpop.f32.mrf.mxu0
  %v4862 = vadd.f32 %v4773, %v4861
  %4863 = vmatmul.bf16.gmra.mxu0 %v2860
  %v4864 = vpop.f32.mrf.mxu0
  %v4865 = vadd.f32 %v4776, %v4864
  %v4866 = vpop.f32.mrf.mxu0
  %v4867 = vadd.f32 %v4778, %v4866
  %4868 = vmatmul.bf16.gmra.mxu0 %v2862
  %v4869 = vpop.f32.mrf.mxu0
  %v4870 = vadd.f32 %v4781, %v4869
  %v4871 = vpop.f32.mrf.mxu0
  %v4872 = vadd.f32 %v4783, %v4871
  %4873 = vmatmul.bf16.gmra.mxu0 %v2864
  %v4874 = vpop.f32.mrf.mxu0
  %v4875 = vadd.f32 %v4786, %v4874
  %v4876 = vpop.f32.mrf.mxu0
  %v4877 = vadd.f32 %v4788, %v4876
  %4878 = vmatmul.bf16.gmra.mxu0 %v2866
  %v4879 = vpop.f32.mrf.mxu0
  %v4880 = vadd.f32 %v4791, %v4879
  %v4881 = vpop.f32.mrf.mxu0
  %v4882 = vadd.f32 %v4793, %v4881
  %4883 = vmatmul.bf16.gmra.mxu0 %v2868
  %v4884 = vpop.f32.mrf.mxu0
  %v4885 = vadd.f32 %v4796, %v4884
  %v4886 = vpop.f32.mrf.mxu0
  %v4887 = vadd.f32 %v4798, %v4886
  %4888 = vdwg.mxu0
  %4889 = vmatpush.bf16.msra.mxu0 %v4258
  %4890 = vmatpush.bf16.msra.mxu0 %v4254
  %4891 = vmatpush.bf16.msra.mxu0 %v4250
  %4892 = vmatpush.bf16.msra.mxu0 %v4246
  %4893 = vmatpush.bf16.msra.mxu0 %v4242
  %4894 = vmatpush.bf16.msra.mxu0 %v4238
  %4895 = vmatpush.bf16.msra.mxu0 %v4234
  %4896 = vmatpush.bf16.msra.mxu0 %v4230
  %4897 = vmatmul.bf16.gmra.mxu0 %v2873
  %v4898 = vpop.f32.mrf.mxu0
  %v4899 = vadd.f32 %v3956, %v4898
  %v4900 = vpop.f32.mrf.mxu0
  %v4901 = vadd.f32 %v3958, %v4900
  %4902 = vmatmul.bf16.gmra.mxu0 %v2873
  %v4903 = vpop.f32.mrf.mxu0
  %v4904 = vadd.f32 %v3961, %v4903
  %v4905 = vpop.f32.mrf.mxu0
  %v4906 = vadd.f32 %v3963, %v4905
  %4907 = vmatmul.bf16.gmra.mxu0 %v2841
  %v4908 = vpop.f32.mrf.mxu0
  %v4909 = vadd.f32 %v3966, %v4908
  %v4910 = vpop.f32.mrf.mxu0
  %v4911 = vadd.f32 %v3968, %v4910
  %4912 = vmatmul.bf16.gmra.mxu0 %v2843
  %v4913 = vpop.f32.mrf.mxu0
  %v4914 = vadd.f32 %v3971, %v4913
  %v4915 = vpop.f32.mrf.mxu0
  %v4916 = vadd.f32 %v3973, %v4915
  %4917 = vmatmul.bf16.gmra.mxu0 %v2845
  %v4918 = vpop.f32.mrf.mxu0
  %v4919 = vadd.f32 %v3976, %v4918
  %v4920 = vpop.f32.mrf.mxu0
  %v4921 = vadd.f32 %v3978, %v4920
  %4922 = vmatmul.bf16.gmra.mxu0 %v2847
  %v4923 = vpop.f32.mrf.mxu0
  %v4924 = vadd.f32 %v3981, %v4923
  %v4925 = vpop.f32.mrf.mxu0
  %v4926 = vadd.f32 %v3983, %v4925
  %4927 = vmatmul.bf16.gmra.mxu0 %v2849
  %v4928 = vpop.f32.mrf.mxu0
  %v4929 = vadd.f32 %v3986, %v4928
  %v4930 = vpop.f32.mrf.mxu0
  %v4931 = vadd.f32 %v3988, %v4930
  %4932 = vmatmul.bf16.gmra.mxu0 %v2851
  %v4933 = vpop.f32.mrf.mxu0
  %v4934 = vadd.f32 %v3991, %v4933
  %v4935 = vpop.f32.mrf.mxu0
  %v4936 = vadd.f32 %v3993, %v4935
  %4937 = vmatmul.bf16.gmra.mxu0 %v2853
  %v4938 = vpop.f32.mrf.mxu0
  %v4939 = vadd.f32 %v3996, %v4938
  %v4940 = vpop.f32.mrf.mxu0
  %v4941 = vadd.f32 %v3998, %v4940
  %4942 = vmatmul.bf16.gmra.mxu0 %v2855
  %v4943 = vpop.f32.mrf.mxu0
  %v4944 = vadd.f32 %v4001, %v4943
  %v4945 = vpop.f32.mrf.mxu0
  %v4946 = vadd.f32 %v4003, %v4945
  %4947 = vmatmul.bf16.gmra.mxu0 %v2857
  %v4948 = vpop.f32.mrf.mxu0
  %v4949 = vadd.f32 %v4006, %v4948
  %v4950 = vpop.f32.mrf.mxu0
  %v4951 = vadd.f32 %v4008, %v4950
  %4952 = vmatmul.bf16.gmra.mxu0 %v2859
  %v4953 = vpop.f32.mrf.mxu0
  %v4954 = vadd.f32 %v4011, %v4953
  %v4955 = vpop.f32.mrf.mxu0
  %v4956 = vadd.f32 %v4013, %v4955
  %4957 = vmatmul.bf16.gmra.mxu0 %v2861
  %v4958 = vpop.f32.mrf.mxu0
  %v4959 = vadd.f32 %v4016, %v4958
  %v4960 = vpop.f32.mrf.mxu0
  %v4961 = vadd.f32 %v4018, %v4960
  %4962 = vmatmul.bf16.gmra.mxu0 %v2863
  %v4963 = vpop.f32.mrf.mxu0
  %v4964 = vadd.f32 %v4021, %v4963
  %v4965 = vpop.f32.mrf.mxu0
  %v4966 = vadd.f32 %v4023, %v4965
  %4967 = vmatmul.bf16.gmra.mxu0 %v2865
  %v4968 = vpop.f32.mrf.mxu0
  %v4969 = vadd.f32 %v4026, %v4968
  %v4970 = vpop.f32.mrf.mxu0
  %v4971 = vadd.f32 %v4028, %v4970
  %4972 = vmatmul.bf16.gmra.mxu0 %v2867
  %v4973 = vpop.f32.mrf.mxu0
  %v4974 = vadd.f32 %v4031, %v4973
  %v4975 = vpop.f32.mrf.mxu0
  %v4976 = vadd.f32 %v4033, %v4975
  %4977 = vdwg.mxu0
  %4978 = vmatpush.bf16.msra.mxu0 %v4290
  %4979 = vmatpush.bf16.msra.mxu0 %v4286
  %4980 = vmatpush.bf16.msra.mxu0 %v4282
  %4981 = vmatpush.bf16.msra.mxu0 %v4278
  %4982 = vmatpush.bf16.msra.mxu0 %v4274
  %4983 = vmatpush.bf16.msra.mxu0 %v4270
  %4984 = vmatpush.bf16.msra.mxu0 %v4266
  %4985 = vmatpush.bf16.msra.mxu0 %v4262
  %4986 = vmatmul.bf16.gmra.mxu0 %v2873
  %v4987 = vpop.f32.mrf.mxu0
  %v4988 = vadd.f32 %v4899, %v4987
  %v4989 = vpop.f32.mrf.mxu0
  %v4990 = vadd.f32 %v4901, %v4989
  %4991 = vmatmul.bf16.gmra.mxu0 %v2873
  %v4992 = vpop.f32.mrf.mxu0
  %v4993 = vadd.f32 %v4904, %v4992
  %v4994 = vpop.f32.mrf.mxu0
  %v4995 = vadd.f32 %v4906, %v4994
  %4996 = vmatmul.bf16.gmra.mxu0 %v2842
  %v4997 = vpop.f32.mrf.mxu0
  %v4998 = vadd.f32 %v4909, %v4997
  %v4999 = vpop.f32.mrf.mxu0
  %v5000 = vadd.f32 %v4911, %v4999
  %5001 = vmatmul.bf16.gmra.mxu0 %v2844
  %v5002 = vpop.f32.mrf.mxu0
  %v5003 = vadd.f32 %v4914, %v5002
  %v5004 = vpop.f32.mrf.mxu0
  %v5005 = vadd.f32 %v4916, %v5004
  %5006 = vmatmul.bf16.gmra.mxu0 %v2846
  %v5007 = vpop.f32.mrf.mxu0
  %v5008 = vadd.f32 %v4919, %v5007
  %v5009 = vpop.f32.mrf.mxu0
  %v5010 = vadd.f32 %v4921, %v5009
  %5011 = vmatmul.bf16.gmra.mxu0 %v2848
  %v5012 = vpop.f32.mrf.mxu0
  %v5013 = vadd.f32 %v4924, %v5012
  %v5014 = vpop.f32.mrf.mxu0
  %v5015 = vadd.f32 %v4926, %v5014
  %5016 = vmatmul.bf16.gmra.mxu0 %v2850
  %v5017 = vpop.f32.mrf.mxu0
  %v5018 = vadd.f32 %v4929, %v5017
  %v5019 = vpop.f32.mrf.mxu0
  %v5020 = vadd.f32 %v4931, %v5019
  %5021 = vmatmul.bf16.gmra.mxu0 %v2852
  %v5022 = vpop.f32.mrf.mxu0
  %v5023 = vadd.f32 %v4934, %v5022
  %v5024 = vpop.f32.mrf.mxu0
  %v5025 = vadd.f32 %v4936, %v5024
  %5026 = vmatmul.bf16.gmra.mxu0 %v2854
  %v5027 = vpop.f32.mrf.mxu0
  %v5028 = vadd.f32 %v4939, %v5027
  %v5029 = vpop.f32.mrf.mxu0
  %v5030 = vadd.f32 %v4941, %v5029
  %5031 = vmatmul.bf16.gmra.mxu0 %v2856
  %v5032 = vpop.f32.mrf.mxu0
  %v5033 = vadd.f32 %v4944, %v5032
  %v5034 = vpop.f32.mrf.mxu0
  %v5035 = vadd.f32 %v4946, %v5034
  %5036 = vmatmul.bf16.gmra.mxu0 %v2858
  %v5037 = vpop.f32.mrf.mxu0
  %v5038 = vadd.f32 %v4949, %v5037
  %v5039 = vpop.f32.mrf.mxu0
  %v5040 = vadd.f32 %v4951, %v5039
  %5041 = vmatmul.bf16.gmra.mxu0 %v2860
  %v5042 = vpop.f32.mrf.mxu0
  %v5043 = vadd.f32 %v4954, %v5042
  %v5044 = vpop.f32.mrf.mxu0
  %v5045 = vadd.f32 %v4956, %v5044
  %5046 = vmatmul.bf16.gmra.mxu0 %v2862
  %v5047 = vpop.f32.mrf.mxu0
  %v5048 = vadd.f32 %v4959, %v5047
  %v5049 = vpop.f32.mrf.mxu0
  %v5050 = vadd.f32 %v4961, %v5049
  %5051 = vmatmul.bf16.gmra.mxu0 %v2864
  %v5052 = vpop.f32.mrf.mxu0
  %v5053 = vadd.f32 %v4964, %v5052
  %v5054 = vpop.f32.mrf.mxu0
  %v5055 = vadd.f32 %v4966, %v5054
  %5056 = vmatmul.bf16.gmra.mxu0 %v2866
  %v5057 = vpop.f32.mrf.mxu0
  %v5058 = vadd.f32 %v4969, %v5057
  %v5059 = vpop.f32.mrf.mxu0
  %v5060 = vadd.f32 %v4971, %v5059
  %5061 = vmatmul.bf16.gmra.mxu0 %v2868
  %v5062 = vpop.f32.mrf.mxu0
  %v5063 = vadd.f32 %v4974, %v5062
  %v5064 = vpop.f32.mrf.mxu0
  %v5065 = vadd.f32 %v4976, %v5064
  %5066 = vdwg.mxu0
  %s5067 = scalar_lea.vmem %s3, 1024
  %v5068 = vld [vmem:[%s5067] sm:$0xff]
  %v5069 = vld [vmem:[%s5067 + $0x8] sm:$0xff]
  %v5070 = vld [vmem:[%s5067 + $0x10] sm:$0xff]
  %v5071 = vld [vmem:[%s5067 + $0x18] sm:$0xff]
  %v5072 = vld [vmem:[%s5067 + $0x20] sm:$0xff]
  %v5073 = vld [vmem:[%s5067 + $0x28] sm:$0xff]
  %v5074 = vld [vmem:[%s5067 + $0x30] sm:$0xff]
  %v5075 = vld [vmem:[%s5067 + $0x38] sm:$0xff]
  %v5076 = vld [vmem:[%s5067 + $0x40] sm:$0xff]
  %v5077 = vld [vmem:[%s5067 + $0x48] sm:$0xff]
  %v5078 = vld [vmem:[%s5067 + $0x50] sm:$0xff]
  %v5079 = vld [vmem:[%s5067 + $0x58] sm:$0xff]
  %v5080 = vld [vmem:[%s5067 + $0x60] sm:$0xff]
  %v5081 = vld [vmem:[%s5067 + $0x68] sm:$0xff]
  %v5082 = vld [vmem:[%s5067 + $0x70] sm:$0xff]
  %v5083 = vld [vmem:[%s5067 + $0x78] sm:$0xff]
  %v5084 = vld [vmem:[%s5067 + $0x80] sm:$0xff]
  %v5085 = vld [vmem:[%s5067 + $0x88] sm:$0xff]
  %v5086 = vld [vmem:[%s5067 + $0x90] sm:$0xff]
  %v5087 = vld [vmem:[%s5067 + $0x98] sm:$0xff]
  %v5088 = vld [vmem:[%s5067 + $0xa0] sm:$0xff]
  %v5089 = vld [vmem:[%s5067 + $0xa8] sm:$0xff]
  %v5090 = vld [vmem:[%s5067 + $0xb0] sm:$0xff]
  %v5091 = vld [vmem:[%s5067 + $0xb8] sm:$0xff]
  %v5092 = vld [vmem:[%s5067 + $0xc0] sm:$0xff]
  %v5093 = vld [vmem:[%s5067 + $0xc8] sm:$0xff]
  %v5094 = vld [vmem:[%s5067 + $0xd0] sm:$0xff]
  %v5095 = vld [vmem:[%s5067 + $0xd8] sm:$0xff]
  %v5096 = vld [vmem:[%s5067 + $0xe0] sm:$0xff]
  %v5097 = vld [vmem:[%s5067 + $0xe8] sm:$0xff]
  %v5098 = vld [vmem:[%s5067 + $0xf0] sm:$0xff]
  %v5099 = vld [vmem:[%s5067 + $0xf8] sm:$0xff]
  %v5100 = vld [vmem:[%s5067 + $0x100] sm:$0xff]
  %v5101 = vld [vmem:[%s5067 + $0x108] sm:$0xff]
  %v5102 = vld [vmem:[%s5067 + $0x110] sm:$0xff]
  %v5103 = vld [vmem:[%s5067 + $0x118] sm:$0xff]
  %v5104 = vld [vmem:[%s5067 + $0x120] sm:$0xff]
  %v5105 = vld [vmem:[%s5067 + $0x128] sm:$0xff]
  %v5106 = vld [vmem:[%s5067 + $0x130] sm:$0xff]
  %v5107 = vld [vmem:[%s5067 + $0x138] sm:$0xff]
  %v5108 = vld [vmem:[%s5067 + $0x140] sm:$0xff]
  %v5109 = vld [vmem:[%s5067 + $0x148] sm:$0xff]
  %v5110 = vld [vmem:[%s5067 + $0x150] sm:$0xff]
  %v5111 = vld [vmem:[%s5067 + $0x158] sm:$0xff]
  %v5112 = vld [vmem:[%s5067 + $0x160] sm:$0xff]
  %v5113 = vld [vmem:[%s5067 + $0x168] sm:$0xff]
  %v5114 = vld [vmem:[%s5067 + $0x170] sm:$0xff]
  %v5115 = vld [vmem:[%s5067 + $0x178] sm:$0xff]
  %v5116 = vld [vmem:[%s5067 + $0x180] sm:$0xff]
  %v5117 = vld [vmem:[%s5067 + $0x188] sm:$0xff]
  %v5118 = vld [vmem:[%s5067 + $0x190] sm:$0xff]
  %v5119 = vld [vmem:[%s5067 + $0x198] sm:$0xff]
  %v5120 = vld [vmem:[%s5067 + $0x1a0] sm:$0xff]
  %v5121 = vld [vmem:[%s5067 + $0x1a8] sm:$0xff]
  %v5122 = vld [vmem:[%s5067 + $0x1b0] sm:$0xff]
  %v5123 = vld [vmem:[%s5067 + $0x1b8] sm:$0xff]
  %v5124 = vld [vmem:[%s5067 + $0x1c0] sm:$0xff]
  %v5125 = vld [vmem:[%s5067 + $0x1c8] sm:$0xff]
  %v5126 = vld [vmem:[%s5067 + $0x1d0] sm:$0xff]
  %v5127 = vld [vmem:[%s5067 + $0x1d8] sm:$0xff]
  %v5128 = vld [vmem:[%s5067 + $0x1e0] sm:$0xff]
  %v5129 = vld [vmem:[%s5067 + $0x1e8] sm:$0xff]
  %v5130 = vld [vmem:[%s5067 + $0x1f0] sm:$0xff]
  %v5131 = vld [vmem:[%s5067 + $0x1f8] sm:$0xff]
  %v5196 = vunpack.c.l.b16 %v5068
  %v5197 = vunpack.c.h.b16 %v5068
  %v5198 = vunpack.c.l.b16 %v5069
  %v5199 = vunpack.c.h.b16 %v5069
  %v5200 = vunpack.c.l.b16 %v5070
  %v5201 = vunpack.c.h.b16 %v5070
  %v5202 = vunpack.c.l.b16 %v5071
  %v5203 = vunpack.c.h.b16 %v5071
  %v5204 = vunpack.c.l.b16 %v5072
  %v5205 = vunpack.c.h.b16 %v5072
  %v5206 = vunpack.c.l.b16 %v5073
  %v5207 = vunpack.c.h.b16 %v5073
  %v5208 = vunpack.c.l.b16 %v5074
  %v5209 = vunpack.c.h.b16 %v5074
  %v5210 = vunpack.c.l.b16 %v5075
  %v5211 = vunpack.c.h.b16 %v5075
  %v5212 = vunpack.c.l.b16 %v5076
  %v5213 = vunpack.c.h.b16 %v5076
  %v5214 = vunpack.c.l.b16 %v5077
  %v5215 = vunpack.c.h.b16 %v5077
  %v5216 = vunpack.c.l.b16 %v5078
  %v5217 = vunpack.c.h.b16 %v5078
  %v5218 = vunpack.c.l.b16 %v5079
  %v5219 = vunpack.c.h.b16 %v5079
  %v5220 = vunpack.c.l.b16 %v5080
  %v5221 = vunpack.c.h.b16 %v5080
  %v5222 = vunpack.c.l.b16 %v5081
  %v5223 = vunpack.c.h.b16 %v5081
  %v5224 = vunpack.c.l.b16 %v5082
  %v5225 = vunpack.c.h.b16 %v5082
  %v5226 = vunpack.c.l.b16 %v5083
  %v5227 = vunpack.c.h.b16 %v5083
  %v5228 = vunpack.c.l.b16 %v5084
  %v5229 = vunpack.c.h.b16 %v5084
  %v5230 = vunpack.c.l.b16 %v5085
  %v5231 = vunpack.c.h.b16 %v5085
  %v5232 = vunpack.c.l.b16 %v5086
  %v5233 = vunpack.c.h.b16 %v5086
  %v5234 = vunpack.c.l.b16 %v5087
  %v5235 = vunpack.c.h.b16 %v5087
  %v5236 = vunpack.c.l.b16 %v5088
  %v5237 = vunpack.c.h.b16 %v5088
  %v5238 = vunpack.c.l.b16 %v5089
  %v5239 = vunpack.c.h.b16 %v5089
  %v5240 = vunpack.c.l.b16 %v5090
  %v5241 = vunpack.c.h.b16 %v5090
  %v5242 = vunpack.c.l.b16 %v5091
  %v5243 = vunpack.c.h.b16 %v5091
  %v5244 = vunpack.c.l.b16 %v5092
  %v5245 = vunpack.c.h.b16 %v5092
  %v5246 = vunpack.c.l.b16 %v5093
  %v5247 = vunpack.c.h.b16 %v5093
  %v5248 = vunpack.c.l.b16 %v5094
  %v5249 = vunpack.c.h.b16 %v5094
  %v5250 = vunpack.c.l.b16 %v5095
  %v5251 = vunpack.c.h.b16 %v5095
  %v5252 = vunpack.c.l.b16 %v5096
  %v5253 = vunpack.c.h.b16 %v5096
  %v5254 = vunpack.c.l.b16 %v5097
  %v5255 = vunpack.c.h.b16 %v5097
  %v5256 = vunpack.c.l.b16 %v5098
  %v5257 = vunpack.c.h.b16 %v5098
  %v5258 = vunpack.c.l.b16 %v5099
  %v5259 = vunpack.c.h.b16 %v5099
  %v5260 = vunpack.c.l.b16 %v5100
  %v5261 = vunpack.c.h.b16 %v5100
  %v5262 = vunpack.c.l.b16 %v5101
  %v5263 = vunpack.c.h.b16 %v5101
  %v5264 = vunpack.c.l.b16 %v5102
  %v5265 = vunpack.c.h.b16 %v5102
  %v5266 = vunpack.c.l.b16 %v5103
  %v5267 = vunpack.c.h.b16 %v5103
  %v5268 = vunpack.c.l.b16 %v5104
  %v5269 = vunpack.c.h.b16 %v5104
  %v5270 = vunpack.c.l.b16 %v5105
  %v5271 = vunpack.c.h.b16 %v5105
  %v5272 = vunpack.c.l.b16 %v5106
  %v5273 = vunpack.c.h.b16 %v5106
  %v5274 = vunpack.c.l.b16 %v5107
  %v5275 = vunpack.c.h.b16 %v5107
  %v5276 = vunpack.c.l.b16 %v5108
  %v5277 = vunpack.c.h.b16 %v5108
  %v5278 = vunpack.c.l.b16 %v5109
  %v5279 = vunpack.c.h.b16 %v5109
  %v5280 = vunpack.c.l.b16 %v5110
  %v5281 = vunpack.c.h.b16 %v5110
  %v5282 = vunpack.c.l.b16 %v5111
  %v5283 = vunpack.c.h.b16 %v5111
  %v5284 = vunpack.c.l.b16 %v5112
  %v5285 = vunpack.c.h.b16 %v5112
  %v5286 = vunpack.c.l.b16 %v5113
  %v5287 = vunpack.c.h.b16 %v5113
  %v5288 = vunpack.c.l.b16 %v5114
  %v5289 = vunpack.c.h.b16 %v5114
  %v5290 = vunpack.c.l.b16 %v5115
  %v5291 = vunpack.c.h.b16 %v5115
  %v5292 = vunpack.c.l.b16 %v5116
  %v5293 = vunpack.c.h.b16 %v5116
  %v5294 = vunpack.c.l.b16 %v5117
  %v5295 = vunpack.c.h.b16 %v5117
  %v5296 = vunpack.c.l.b16 %v5118
  %v5297 = vunpack.c.h.b16 %v5118
  %v5298 = vunpack.c.l.b16 %v5119
  %v5299 = vunpack.c.h.b16 %v5119
  %v5300 = vunpack.c.l.b16 %v5120
  %v5301 = vunpack.c.h.b16 %v5120
  %v5302 = vunpack.c.l.b16 %v5121
  %v5303 = vunpack.c.h.b16 %v5121
  %v5304 = vunpack.c.l.b16 %v5122
  %v5305 = vunpack.c.h.b16 %v5122
  %v5306 = vunpack.c.l.b16 %v5123
  %v5307 = vunpack.c.h.b16 %v5123
  %v5308 = vunpack.c.l.b16 %v5124
  %v5309 = vunpack.c.h.b16 %v5124
  %v5310 = vunpack.c.l.b16 %v5125
  %v5311 = vunpack.c.h.b16 %v5125
  %v5312 = vunpack.c.l.b16 %v5126
  %v5313 = vunpack.c.h.b16 %v5126
  %v5314 = vunpack.c.l.b16 %v5127
  %v5315 = vunpack.c.h.b16 %v5127
  %v5316 = vunpack.c.l.b16 %v5128
  %v5317 = vunpack.c.h.b16 %v5128
  %v5318 = vunpack.c.l.b16 %v5129
  %v5319 = vunpack.c.h.b16 %v5129
  %v5320 = vunpack.c.l.b16 %v5130
  %v5321 = vunpack.c.h.b16 %v5130
  %v5322 = vunpack.c.l.b16 %v5131
  %v5323 = vunpack.c.h.b16 %v5131
  %v5324 = vpack.c.b16 %v5200, %v5196
  %v5325 = vpack.c.b16 %v5201, %v5197
  %v5326 = vpack.c.b16 %v5202, %v5198
  %v5327 = vpack.c.b16 %v5203, %v5199
  %v5328 = vpack.c.b16 %v5208, %v5204
  %v5329 = vpack.c.b16 %v5209, %v5205
  %v5330 = vpack.c.b16 %v5210, %v5206
  %v5331 = vpack.c.b16 %v5211, %v5207
  %v5332 = vpack.c.b16 %v5216, %v5212
  %v5333 = vpack.c.b16 %v5217, %v5213
  %v5334 = vpack.c.b16 %v5218, %v5214
  %v5335 = vpack.c.b16 %v5219, %v5215
  %v5336 = vpack.c.b16 %v5224, %v5220
  %v5337 = vpack.c.b16 %v5225, %v5221
  %v5338 = vpack.c.b16 %v5226, %v5222
  %v5339 = vpack.c.b16 %v5227, %v5223
  %v5340 = vpack.c.b16 %v5232, %v5228
  %v5341 = vpack.c.b16 %v5233, %v5229
  %v5342 = vpack.c.b16 %v5234, %v5230
  %v5343 = vpack.c.b16 %v5235, %v5231
  %v5344 = vpack.c.b16 %v5240, %v5236
  %v5345 = vpack.c.b16 %v5241, %v5237
  %v5346 = vpack.c.b16 %v5242, %v5238
  %v5347 = vpack.c.b16 %v5243, %v5239
  %v5348 = vpack.c.b16 %v5248, %v5244
  %v5349 = vpack.c.b16 %v5249, %v5245
  %v5350 = vpack.c.b16 %v5250, %v5246
  %v5351 = vpack.c.b16 %v5251, %v5247
  %v5352 = vpack.c.b16 %v5256, %v5252
  %v5353 = vpack.c.b16 %v5257, %v5253
  %v5354 = vpack.c.b16 %v5258, %v5254
  %v5355 = vpack.c.b16 %v5259, %v5255
  %v5356 = vpack.c.b16 %v5264, %v5260
  %v5357 = vpack.c.b16 %v5265, %v5261
  %v5358 = vpack.c.b16 %v5266, %v5262
  %v5359 = vpack.c.b16 %v5267, %v5263
  %v5360 = vpack.c.b16 %v5272, %v5268
  %v5361 = vpack.c.b16 %v5273, %v5269
  %v5362 = vpack.c.b16 %v5274, %v5270
  %v5363 = vpack.c.b16 %v5275, %v5271
  %v5364 = vpack.c.b16 %v5280, %v5276
  %v5365 = vpack.c.b16 %v5281, %v5277
  %v5366 = vpack.c.b16 %v5282, %v5278
  %v5367 = vpack.c.b16 %v5283, %v5279
  %v5368 = vpack.c.b16 %v5288, %v5284
  %v5369 = vpack.c.b16 %v5289, %v5285
  %v5370 = vpack.c.b16 %v5290, %v5286
  %v5371 = vpack.c.b16 %v5291, %v5287
  %v5372 = vpack.c.b16 %v5296, %v5292
  %v5373 = vpack.c.b16 %v5297, %v5293
  %v5374 = vpack.c.b16 %v5298, %v5294
  %v5375 = vpack.c.b16 %v5299, %v5295
  %v5376 = vpack.c.b16 %v5304, %v5300
  %v5377 = vpack.c.b16 %v5305, %v5301
  %v5378 = vpack.c.b16 %v5306, %v5302
  %v5379 = vpack.c.b16 %v5307, %v5303
  %v5380 = vpack.c.b16 %v5312, %v5308
  %v5381 = vpack.c.b16 %v5313, %v5309
  %v5382 = vpack.c.b16 %v5314, %v5310
  %v5383 = vpack.c.b16 %v5315, %v5311
  %v5384 = vpack.c.b16 %v5320, %v5316
  %v5385 = vpack.c.b16 %v5321, %v5317
  %v5386 = vpack.c.b16 %v5322, %v5318
  %v5387 = vpack.c.b16 %v5323, %v5319
  %5452 = vmatpush.bf16.msra.mxu0 %v5352
  %5453 = vmatpush.bf16.msra.mxu0 %v5348
  %5454 = vmatpush.bf16.msra.mxu0 %v5344
  %5455 = vmatpush.bf16.msra.mxu0 %v5340
  %5456 = vmatpush.bf16.msra.mxu0 %v5336
  %5457 = vmatpush.bf16.msra.mxu0 %v5332
  %5458 = vmatpush.bf16.msra.mxu0 %v5328
  %5459 = vmatpush.bf16.msra.mxu0 %v5324
  %5460 = vmatmul.bf16.gmra.mxu0 %v2841
  %v5461 = vpop.f32.mrf.mxu0
  %v5462 = vadd.f32 0.0, %v5461
  %v5463 = vpop.f32.mrf.mxu0
  %v5464 = vadd.f32 0.0, %v5463
  %5465 = vmatmul.bf16.gmra.mxu0 %v2843
  %v5466 = vpop.f32.mrf.mxu0
  %v5467 = vadd.f32 0.0, %v5466
  %v5468 = vpop.f32.mrf.mxu0
  %v5469 = vadd.f32 0.0, %v5468
  %5470 = vmatmul.bf16.gmra.mxu0 %v2845
  %v5471 = vpop.f32.mrf.mxu0
  %v5472 = vadd.f32 0.0, %v5471
  %v5473 = vpop.f32.mrf.mxu0
  %v5474 = vadd.f32 0.0, %v5473
  %5475 = vmatmul.bf16.gmra.mxu0 %v2847
  %v5476 = vpop.f32.mrf.mxu0
  %v5477 = vadd.f32 0.0, %v5476
  %v5478 = vpop.f32.mrf.mxu0
  %v5479 = vadd.f32 0.0, %v5478
  %5480 = vmatmul.bf16.gmra.mxu0 %v2849
  %v5481 = vpop.f32.mrf.mxu0
  %v5482 = vadd.f32 0.0, %v5481
  %v5483 = vpop.f32.mrf.mxu0
  %v5484 = vadd.f32 0.0, %v5483
  %5485 = vmatmul.bf16.gmra.mxu0 %v2851
  %v5486 = vpop.f32.mrf.mxu0
  %v5487 = vadd.f32 0.0, %v5486
  %v5488 = vpop.f32.mrf.mxu0
  %v5489 = vadd.f32 0.0, %v5488
  %5490 = vmatmul.bf16.gmra.mxu0 %v2853
  %v5491 = vpop.f32.mrf.mxu0
  %v5492 = vadd.f32 0.0, %v5491
  %v5493 = vpop.f32.mrf.mxu0
  %v5494 = vadd.f32 0.0, %v5493
  %5495 = vmatmul.bf16.gmra.mxu0 %v2855
  %v5496 = vpop.f32.mrf.mxu0
  %v5497 = vadd.f32 0.0, %v5496
  %v5498 = vpop.f32.mrf.mxu0
  %v5499 = vadd.f32 0.0, %v5498
  %5500 = vmatmul.bf16.gmra.mxu0 %v2857
  %v5501 = vpop.f32.mrf.mxu0
  %v5502 = vadd.f32 0.0, %v5501
  %v5503 = vpop.f32.mrf.mxu0
  %v5504 = vadd.f32 0.0, %v5503
  %5505 = vmatmul.bf16.gmra.mxu0 %v2859
  %v5506 = vpop.f32.mrf.mxu0
  %v5507 = vadd.f32 0.0, %v5506
  %v5508 = vpop.f32.mrf.mxu0
  %v5509 = vadd.f32 0.0, %v5508
  %5510 = vmatmul.bf16.gmra.mxu0 %v2861
  %v5511 = vpop.f32.mrf.mxu0
  %v5512 = vadd.f32 0.0, %v5511
  %v5513 = vpop.f32.mrf.mxu0
  %v5514 = vadd.f32 0.0, %v5513
  %5515 = vmatmul.bf16.gmra.mxu0 %v2863
  %v5516 = vpop.f32.mrf.mxu0
  %v5517 = vadd.f32 0.0, %v5516
  %v5518 = vpop.f32.mrf.mxu0
  %v5519 = vadd.f32 0.0, %v5518
  %5520 = vmatmul.bf16.gmra.mxu0 %v2865
  %v5521 = vpop.f32.mrf.mxu0
  %v5522 = vadd.f32 0.0, %v5521
  %v5523 = vpop.f32.mrf.mxu0
  %v5524 = vadd.f32 0.0, %v5523
  %5525 = vmatmul.bf16.gmra.mxu0 %v2867
  %v5526 = vpop.f32.mrf.mxu0
  %v5527 = vadd.f32 0.0, %v5526
  %v5528 = vpop.f32.mrf.mxu0
  %v5529 = vadd.f32 0.0, %v5528
  %5530 = vmatmul.bf16.gmra.mxu0 %v2869
  %v5531 = vpop.f32.mrf.mxu0
  %v5532 = vadd.f32 0.0, %v5531
  %v5533 = vpop.f32.mrf.mxu0
  %v5534 = vadd.f32 0.0, %v5533
  %5535 = vmatmul.bf16.gmra.mxu0 %v2871
  %v5536 = vpop.f32.mrf.mxu0
  %v5537 = vadd.f32 0.0, %v5536
  %v5538 = vpop.f32.mrf.mxu0
  %v5539 = vadd.f32 0.0, %v5538
  %5540 = vdwg.mxu0
  %5541 = vmatpush.bf16.msra.mxu0 %v5384
  %5542 = vmatpush.bf16.msra.mxu0 %v5380
  %5543 = vmatpush.bf16.msra.mxu0 %v5376
  %5544 = vmatpush.bf16.msra.mxu0 %v5372
  %5545 = vmatpush.bf16.msra.mxu0 %v5368
  %5546 = vmatpush.bf16.msra.mxu0 %v5364
  %5547 = vmatpush.bf16.msra.mxu0 %v5360
  %5548 = vmatpush.bf16.msra.mxu0 %v5356
  %5549 = vmatmul.bf16.gmra.mxu0 %v2842
  %v5550 = vpop.f32.mrf.mxu0
  %v5551 = vadd.f32 %v5462, %v5550
  %v5552 = vpop.f32.mrf.mxu0
  %v5553 = vadd.f32 %v5464, %v5552
  %5554 = vmatmul.bf16.gmra.mxu0 %v2844
  %v5555 = vpop.f32.mrf.mxu0
  %v5556 = vadd.f32 %v5467, %v5555
  %v5557 = vpop.f32.mrf.mxu0
  %v5558 = vadd.f32 %v5469, %v5557
  %5559 = vmatmul.bf16.gmra.mxu0 %v2846
  %v5560 = vpop.f32.mrf.mxu0
  %v5561 = vadd.f32 %v5472, %v5560
  %v5562 = vpop.f32.mrf.mxu0
  %v5563 = vadd.f32 %v5474, %v5562
  %5564 = vmatmul.bf16.gmra.mxu0 %v2848
  %v5565 = vpop.f32.mrf.mxu0
  %v5566 = vadd.f32 %v5477, %v5565
  %v5567 = vpop.f32.mrf.mxu0
  %v5568 = vadd.f32 %v5479, %v5567
  %5569 = vmatmul.bf16.gmra.mxu0 %v2850
  %v5570 = vpop.f32.mrf.mxu0
  %v5571 = vadd.f32 %v5482, %v5570
  %v5572 = vpop.f32.mrf.mxu0
  %v5573 = vadd.f32 %v5484, %v5572
  %5574 = vmatmul.bf16.gmra.mxu0 %v2852
  %v5575 = vpop.f32.mrf.mxu0
  %v5576 = vadd.f32 %v5487, %v5575
  %v5577 = vpop.f32.mrf.mxu0
  %v5578 = vadd.f32 %v5489, %v5577
  %5579 = vmatmul.bf16.gmra.mxu0 %v2854
  %v5580 = vpop.f32.mrf.mxu0
  %v5581 = vadd.f32 %v5492, %v5580
  %v5582 = vpop.f32.mrf.mxu0
  %v5583 = vadd.f32 %v5494, %v5582
  %5584 = vmatmul.bf16.gmra.mxu0 %v2856
  %v5585 = vpop.f32.mrf.mxu0
  %v5586 = vadd.f32 %v5497, %v5585
  %v5587 = vpop.f32.mrf.mxu0
  %v5588 = vadd.f32 %v5499, %v5587
  %5589 = vmatmul.bf16.gmra.mxu0 %v2858
  %v5590 = vpop.f32.mrf.mxu0
  %v5591 = vadd.f32 %v5502, %v5590
  %v5592 = vpop.f32.mrf.mxu0
  %v5593 = vadd.f32 %v5504, %v5592
  %5594 = vmatmul.bf16.gmra.mxu0 %v2860
  %v5595 = vpop.f32.mrf.mxu0
  %v5596 = vadd.f32 %v5507, %v5595
  %v5597 = vpop.f32.mrf.mxu0
  %v5598 = vadd.f32 %v5509, %v5597
  %5599 = vmatmul.bf16.gmra.mxu0 %v2862
  %v5600 = vpop.f32.mrf.mxu0
  %v5601 = vadd.f32 %v5512, %v5600
  %v5602 = vpop.f32.mrf.mxu0
  %v5603 = vadd.f32 %v5514, %v5602
  %5604 = vmatmul.bf16.gmra.mxu0 %v2864
  %v5605 = vpop.f32.mrf.mxu0
  %v5606 = vadd.f32 %v5517, %v5605
  %v5607 = vpop.f32.mrf.mxu0
  %v5608 = vadd.f32 %v5519, %v5607
  %5609 = vmatmul.bf16.gmra.mxu0 %v2866
  %v5610 = vpop.f32.mrf.mxu0
  %v5611 = vadd.f32 %v5522, %v5610
  %v5612 = vpop.f32.mrf.mxu0
  %v5613 = vadd.f32 %v5524, %v5612
  %5614 = vmatmul.bf16.gmra.mxu0 %v2868
  %v5615 = vpop.f32.mrf.mxu0
  %v5616 = vadd.f32 %v5527, %v5615
  %v5617 = vpop.f32.mrf.mxu0
  %v5618 = vadd.f32 %v5529, %v5617
  %5619 = vmatmul.bf16.gmra.mxu0 %v2870
  %v5620 = vpop.f32.mrf.mxu0
  %v5621 = vadd.f32 %v5532, %v5620
  %v5622 = vpop.f32.mrf.mxu0
  %v5623 = vadd.f32 %v5534, %v5622
  %5624 = vmatmul.bf16.gmra.mxu0 %v2872
  %v5625 = vpop.f32.mrf.mxu0
  %v5626 = vadd.f32 %v5537, %v5625
  %v5627 = vpop.f32.mrf.mxu0
  %v5628 = vadd.f32 %v5539, %v5627
  %5629 = vdwg.mxu0
  %5630 = vmatpush.bf16.msra.mxu0 %v5353
  %5631 = vmatpush.bf16.msra.mxu0 %v5349
  %5632 = vmatpush.bf16.msra.mxu0 %v5345
  %5633 = vmatpush.bf16.msra.mxu0 %v5341
  %5634 = vmatpush.bf16.msra.mxu0 %v5337
  %5635 = vmatpush.bf16.msra.mxu0 %v5333
  %5636 = vmatpush.bf16.msra.mxu0 %v5329
  %5637 = vmatpush.bf16.msra.mxu0 %v5325
  %5638 = vmatmul.bf16.gmra.mxu0 %v2841
  %v5639 = vpop.f32.mrf.mxu0
  %v5640 = vadd.f32 0.0, %v5639
  %v5641 = vpop.f32.mrf.mxu0
  %v5642 = vadd.f32 0.0, %v5641
  %5643 = vmatmul.bf16.gmra.mxu0 %v2843
  %v5644 = vpop.f32.mrf.mxu0
  %v5645 = vadd.f32 0.0, %v5644
  %v5646 = vpop.f32.mrf.mxu0
  %v5647 = vadd.f32 0.0, %v5646
  %5648 = vmatmul.bf16.gmra.mxu0 %v2845
  %v5649 = vpop.f32.mrf.mxu0
  %v5650 = vadd.f32 0.0, %v5649
  %v5651 = vpop.f32.mrf.mxu0
  %v5652 = vadd.f32 0.0, %v5651
  %5653 = vmatmul.bf16.gmra.mxu0 %v2847
  %v5654 = vpop.f32.mrf.mxu0
  %v5655 = vadd.f32 0.0, %v5654
  %v5656 = vpop.f32.mrf.mxu0
  %v5657 = vadd.f32 0.0, %v5656
  %5658 = vmatmul.bf16.gmra.mxu0 %v2849
  %v5659 = vpop.f32.mrf.mxu0
  %v5660 = vadd.f32 0.0, %v5659
  %v5661 = vpop.f32.mrf.mxu0
  %v5662 = vadd.f32 0.0, %v5661
  %5663 = vmatmul.bf16.gmra.mxu0 %v2851
  %v5664 = vpop.f32.mrf.mxu0
  %v5665 = vadd.f32 0.0, %v5664
  %v5666 = vpop.f32.mrf.mxu0
  %v5667 = vadd.f32 0.0, %v5666
  %5668 = vmatmul.bf16.gmra.mxu0 %v2853
  %v5669 = vpop.f32.mrf.mxu0
  %v5670 = vadd.f32 0.0, %v5669
  %v5671 = vpop.f32.mrf.mxu0
  %v5672 = vadd.f32 0.0, %v5671
  %5673 = vmatmul.bf16.gmra.mxu0 %v2855
  %v5674 = vpop.f32.mrf.mxu0
  %v5675 = vadd.f32 0.0, %v5674
  %v5676 = vpop.f32.mrf.mxu0
  %v5677 = vadd.f32 0.0, %v5676
  %5678 = vmatmul.bf16.gmra.mxu0 %v2857
  %v5679 = vpop.f32.mrf.mxu0
  %v5680 = vadd.f32 0.0, %v5679
  %v5681 = vpop.f32.mrf.mxu0
  %v5682 = vadd.f32 0.0, %v5681
  %5683 = vmatmul.bf16.gmra.mxu0 %v2859
  %v5684 = vpop.f32.mrf.mxu0
  %v5685 = vadd.f32 0.0, %v5684
  %v5686 = vpop.f32.mrf.mxu0
  %v5687 = vadd.f32 0.0, %v5686
  %5688 = vmatmul.bf16.gmra.mxu0 %v2861
  %v5689 = vpop.f32.mrf.mxu0
  %v5690 = vadd.f32 0.0, %v5689
  %v5691 = vpop.f32.mrf.mxu0
  %v5692 = vadd.f32 0.0, %v5691
  %5693 = vmatmul.bf16.gmra.mxu0 %v2863
  %v5694 = vpop.f32.mrf.mxu0
  %v5695 = vadd.f32 0.0, %v5694
  %v5696 = vpop.f32.mrf.mxu0
  %v5697 = vadd.f32 0.0, %v5696
  %5698 = vmatmul.bf16.gmra.mxu0 %v2865
  %v5699 = vpop.f32.mrf.mxu0
  %v5700 = vadd.f32 0.0, %v5699
  %v5701 = vpop.f32.mrf.mxu0
  %v5702 = vadd.f32 0.0, %v5701
  %5703 = vmatmul.bf16.gmra.mxu0 %v2867
  %v5704 = vpop.f32.mrf.mxu0
  %v5705 = vadd.f32 0.0, %v5704
  %v5706 = vpop.f32.mrf.mxu0
  %v5707 = vadd.f32 0.0, %v5706
  %5708 = vmatmul.bf16.gmra.mxu0 %v2869
  %v5709 = vpop.f32.mrf.mxu0
  %v5710 = vadd.f32 0.0, %v5709
  %v5711 = vpop.f32.mrf.mxu0
  %v5712 = vadd.f32 0.0, %v5711
  %5713 = vmatmul.bf16.gmra.mxu0 %v2871
  %v5714 = vpop.f32.mrf.mxu0
  %v5715 = vadd.f32 0.0, %v5714
  %v5716 = vpop.f32.mrf.mxu0
  %v5717 = vadd.f32 0.0, %v5716
  %5718 = vdwg.mxu0
  %5719 = vmatpush.bf16.msra.mxu0 %v5385
  %5720 = vmatpush.bf16.msra.mxu0 %v5381
  %5721 = vmatpush.bf16.msra.mxu0 %v5377
  %5722 = vmatpush.bf16.msra.mxu0 %v5373
  %5723 = vmatpush.bf16.msra.mxu0 %v5369
  %5724 = vmatpush.bf16.msra.mxu0 %v5365
  %5725 = vmatpush.bf16.msra.mxu0 %v5361
  %5726 = vmatpush.bf16.msra.mxu0 %v5357
  %5727 = vmatmul.bf16.gmra.mxu0 %v2842
  %v5728 = vpop.f32.mrf.mxu0
  %v5729 = vadd.f32 %v5640, %v5728
  %v5730 = vpop.f32.mrf.mxu0
  %v5731 = vadd.f32 %v5642, %v5730
  %5732 = vmatmul.bf16.gmra.mxu0 %v2844
  %v5733 = vpop.f32.mrf.mxu0
  %v5734 = vadd.f32 %v5645, %v5733
  %v5735 = vpop.f32.mrf.mxu0
  %v5736 = vadd.f32 %v5647, %v5735
  %5737 = vmatmul.bf16.gmra.mxu0 %v2846
  %v5738 = vpop.f32.mrf.mxu0
  %v5739 = vadd.f32 %v5650, %v5738
  %v5740 = vpop.f32.mrf.mxu0
  %v5741 = vadd.f32 %v5652, %v5740
  %5742 = vmatmul.bf16.gmra.mxu0 %v2848
  %v5743 = vpop.f32.mrf.mxu0
  %v5744 = vadd.f32 %v5655, %v5743
  %v5745 = vpop.f32.mrf.mxu0
  %v5746 = vadd.f32 %v5657, %v5745
  %5747 = vmatmul.bf16.gmra.mxu0 %v2850
  %v5748 = vpop.f32.mrf.mxu0
  %v5749 = vadd.f32 %v5660, %v5748
  %v5750 = vpop.f32.mrf.mxu0
  %v5751 = vadd.f32 %v5662, %v5750
  %5752 = vmatmul.bf16.gmra.mxu0 %v2852
  %v5753 = vpop.f32.mrf.mxu0
  %v5754 = vadd.f32 %v5665, %v5753
  %v5755 = vpop.f32.mrf.mxu0
  %v5756 = vadd.f32 %v5667, %v5755
  %5757 = vmatmul.bf16.gmra.mxu0 %v2854
  %v5758 = vpop.f32.mrf.mxu0
  %v5759 = vadd.f32 %v5670, %v5758
  %v5760 = vpop.f32.mrf.mxu0
  %v5761 = vadd.f32 %v5672, %v5760
  %5762 = vmatmul.bf16.gmra.mxu0 %v2856
  %v5763 = vpop.f32.mrf.mxu0
  %v5764 = vadd.f32 %v5675, %v5763
  %v5765 = vpop.f32.mrf.mxu0
  %v5766 = vadd.f32 %v5677, %v5765
  %5767 = vmatmul.bf16.gmra.mxu0 %v2858
  %v5768 = vpop.f32.mrf.mxu0
  %v5769 = vadd.f32 %v5680, %v5768
  %v5770 = vpop.f32.mrf.mxu0
  %v5771 = vadd.f32 %v5682, %v5770
  %5772 = vmatmul.bf16.gmra.mxu0 %v2860
  %v5773 = vpop.f32.mrf.mxu0
  %v5774 = vadd.f32 %v5685, %v5773
  %v5775 = vpop.f32.mrf.mxu0
  %v5776 = vadd.f32 %v5687, %v5775
  %5777 = vmatmul.bf16.gmra.mxu0 %v2862
  %v5778 = vpop.f32.mrf.mxu0
  %v5779 = vadd.f32 %v5690, %v5778
  %v5780 = vpop.f32.mrf.mxu0
  %v5781 = vadd.f32 %v5692, %v5780
  %5782 = vmatmul.bf16.gmra.mxu0 %v2864
  %v5783 = vpop.f32.mrf.mxu0
  %v5784 = vadd.f32 %v5695, %v5783
  %v5785 = vpop.f32.mrf.mxu0
  %v5786 = vadd.f32 %v5697, %v5785
  %5787 = vmatmul.bf16.gmra.mxu0 %v2866
  %v5788 = vpop.f32.mrf.mxu0
  %v5789 = vadd.f32 %v5700, %v5788
  %v5790 = vpop.f32.mrf.mxu0
  %v5791 = vadd.f32 %v5702, %v5790
  %5792 = vmatmul.bf16.gmra.mxu0 %v2868
  %v5793 = vpop.f32.mrf.mxu0
  %v5794 = vadd.f32 %v5705, %v5793
  %v5795 = vpop.f32.mrf.mxu0
  %v5796 = vadd.f32 %v5707, %v5795
  %5797 = vmatmul.bf16.gmra.mxu0 %v2870
  %v5798 = vpop.f32.mrf.mxu0
  %v5799 = vadd.f32 %v5710, %v5798
  %v5800 = vpop.f32.mrf.mxu0
  %v5801 = vadd.f32 %v5712, %v5800
  %5802 = vmatmul.bf16.gmra.mxu0 %v2872
  %v5803 = vpop.f32.mrf.mxu0
  %v5804 = vadd.f32 %v5715, %v5803
  %v5805 = vpop.f32.mrf.mxu0
  %v5806 = vadd.f32 %v5717, %v5805
  %5807 = vdwg.mxu0
  %5808 = vmatpush.bf16.msra.mxu0 %v5354
  %5809 = vmatpush.bf16.msra.mxu0 %v5350
  %5810 = vmatpush.bf16.msra.mxu0 %v5346
  %5811 = vmatpush.bf16.msra.mxu0 %v5342
  %5812 = vmatpush.bf16.msra.mxu0 %v5338
  %5813 = vmatpush.bf16.msra.mxu0 %v5334
  %5814 = vmatpush.bf16.msra.mxu0 %v5330
  %5815 = vmatpush.bf16.msra.mxu0 %v5326
  %5816 = vmatmul.bf16.gmra.mxu0 %v2841
  %v5817 = vpop.f32.mrf.mxu0
  %v5818 = vadd.f32 0.0, %v5817
  %v5819 = vpop.f32.mrf.mxu0
  %v5820 = vadd.f32 0.0, %v5819
  %5821 = vmatmul.bf16.gmra.mxu0 %v2843
  %v5822 = vpop.f32.mrf.mxu0
  %v5823 = vadd.f32 0.0, %v5822
  %v5824 = vpop.f32.mrf.mxu0
  %v5825 = vadd.f32 0.0, %v5824
  %5826 = vmatmul.bf16.gmra.mxu0 %v2845
  %v5827 = vpop.f32.mrf.mxu0
  %v5828 = vadd.f32 0.0, %v5827
  %v5829 = vpop.f32.mrf.mxu0
  %v5830 = vadd.f32 0.0, %v5829
  %5831 = vmatmul.bf16.gmra.mxu0 %v2847
  %v5832 = vpop.f32.mrf.mxu0
  %v5833 = vadd.f32 0.0, %v5832
  %v5834 = vpop.f32.mrf.mxu0
  %v5835 = vadd.f32 0.0, %v5834
  %5836 = vmatmul.bf16.gmra.mxu0 %v2849
  %v5837 = vpop.f32.mrf.mxu0
  %v5838 = vadd.f32 0.0, %v5837
  %v5839 = vpop.f32.mrf.mxu0
  %v5840 = vadd.f32 0.0, %v5839
  %5841 = vmatmul.bf16.gmra.mxu0 %v2851
  %v5842 = vpop.f32.mrf.mxu0
  %v5843 = vadd.f32 0.0, %v5842
  %v5844 = vpop.f32.mrf.mxu0
  %v5845 = vadd.f32 0.0, %v5844
  %5846 = vmatmul.bf16.gmra.mxu0 %v2853
  %v5847 = vpop.f32.mrf.mxu0
  %v5848 = vadd.f32 0.0, %v5847
  %v5849 = vpop.f32.mrf.mxu0
  %v5850 = vadd.f32 0.0, %v5849
  %5851 = vmatmul.bf16.gmra.mxu0 %v2855
  %v5852 = vpop.f32.mrf.mxu0
  %v5853 = vadd.f32 0.0, %v5852
  %v5854 = vpop.f32.mrf.mxu0
  %v5855 = vadd.f32 0.0, %v5854
  %5856 = vmatmul.bf16.gmra.mxu0 %v2857
  %v5857 = vpop.f32.mrf.mxu0
  %v5858 = vadd.f32 0.0, %v5857
  %v5859 = vpop.f32.mrf.mxu0
  %v5860 = vadd.f32 0.0, %v5859
  %5861 = vmatmul.bf16.gmra.mxu0 %v2859
  %v5862 = vpop.f32.mrf.mxu0
  %v5863 = vadd.f32 0.0, %v5862
  %v5864 = vpop.f32.mrf.mxu0
  %v5865 = vadd.f32 0.0, %v5864
  %5866 = vmatmul.bf16.gmra.mxu0 %v2861
  %v5867 = vpop.f32.mrf.mxu0
  %v5868 = vadd.f32 0.0, %v5867
  %v5869 = vpop.f32.mrf.mxu0
  %v5870 = vadd.f32 0.0, %v5869
  %5871 = vmatmul.bf16.gmra.mxu0 %v2863
  %v5872 = vpop.f32.mrf.mxu0
  %v5873 = vadd.f32 0.0, %v5872
  %v5874 = vpop.f32.mrf.mxu0
  %v5875 = vadd.f32 0.0, %v5874
  %5876 = vmatmul.bf16.gmra.mxu0 %v2865
  %v5877 = vpop.f32.mrf.mxu0
  %v5878 = vadd.f32 0.0, %v5877
  %v5879 = vpop.f32.mrf.mxu0
  %v5880 = vadd.f32 0.0, %v5879
  %5881 = vmatmul.bf16.gmra.mxu0 %v2867
  %v5882 = vpop.f32.mrf.mxu0
  %v5883 = vadd.f32 0.0, %v5882
  %v5884 = vpop.f32.mrf.mxu0
  %v5885 = vadd.f32 0.0, %v5884
  %5886 = vmatmul.bf16.gmra.mxu0 %v2869
  %v5887 = vpop.f32.mrf.mxu0
  %v5888 = vadd.f32 0.0, %v5887
  %v5889 = vpop.f32.mrf.mxu0
  %v5890 = vadd.f32 0.0, %v5889
  %5891 = vmatmul.bf16.gmra.mxu0 %v2871
  %v5892 = vpop.f32.mrf.mxu0
  %v5893 = vadd.f32 0.0, %v5892
  %v5894 = vpop.f32.mrf.mxu0
  %v5895 = vadd.f32 0.0, %v5894
  %5896 = vdwg.mxu0
  %5897 = vmatpush.bf16.msra.mxu0 %v5386
  %5898 = vmatpush.bf16.msra.mxu0 %v5382
  %5899 = vmatpush.bf16.msra.mxu0 %v5378
  %5900 = vmatpush.bf16.msra.mxu0 %v5374
  %5901 = vmatpush.bf16.msra.mxu0 %v5370
  %5902 = vmatpush.bf16.msra.mxu0 %v5366
  %5903 = vmatpush.bf16.msra.mxu0 %v5362
  %5904 = vmatpush.bf16.msra.mxu0 %v5358
  %5905 = vmatmul.bf16.gmra.mxu0 %v2842
  %v5906 = vpop.f32.mrf.mxu0
  %v5907 = vadd.f32 %v5818, %v5906
  %v5908 = vpop.f32.mrf.mxu0
  %v5909 = vadd.f32 %v5820, %v5908
  %5910 = vmatmul.bf16.gmra.mxu0 %v2844
  %v5911 = vpop.f32.mrf.mxu0
  %v5912 = vadd.f32 %v5823, %v5911
  %v5913 = vpop.f32.mrf.mxu0
  %v5914 = vadd.f32 %v5825, %v5913
  %5915 = vmatmul.bf16.gmra.mxu0 %v2846
  %v5916 = vpop.f32.mrf.mxu0
  %v5917 = vadd.f32 %v5828, %v5916
  %v5918 = vpop.f32.mrf.mxu0
  %v5919 = vadd.f32 %v5830, %v5918
  %5920 = vmatmul.bf16.gmra.mxu0 %v2848
  %v5921 = vpop.f32.mrf.mxu0
  %v5922 = vadd.f32 %v5833, %v5921
  %v5923 = vpop.f32.mrf.mxu0
  %v5924 = vadd.f32 %v5835, %v5923
  %5925 = vmatmul.bf16.gmra.mxu0 %v2850
  %v5926 = vpop.f32.mrf.mxu0
  %v5927 = vadd.f32 %v5838, %v5926
  %v5928 = vpop.f32.mrf.mxu0
  %v5929 = vadd.f32 %v5840, %v5928
  %5930 = vmatmul.bf16.gmra.mxu0 %v2852
  %v5931 = vpop.f32.mrf.mxu0
  %v5932 = vadd.f32 %v5843, %v5931
  %v5933 = vpop.f32.mrf.mxu0
  %v5934 = vadd.f32 %v5845, %v5933
  %5935 = vmatmul.bf16.gmra.mxu0 %v2854
  %v5936 = vpop.f32.mrf.mxu0
  %v5937 = vadd.f32 %v5848, %v5936
  %v5938 = vpop.f32.mrf.mxu0
  %v5939 = vadd.f32 %v5850, %v5938
  %5940 = vmatmul.bf16.gmra.mxu0 %v2856
  %v5941 = vpop.f32.mrf.mxu0
  %v5942 = vadd.f32 %v5853, %v5941
  %v5943 = vpop.f32.mrf.mxu0
  %v5944 = vadd.f32 %v5855, %v5943
  %5945 = vmatmul.bf16.gmra.mxu0 %v2858
  %v5946 = vpop.f32.mrf.mxu0
  %v5947 = vadd.f32 %v5858, %v5946
  %v5948 = vpop.f32.mrf.mxu0
  %v5949 = vadd.f32 %v5860, %v5948
  %5950 = vmatmul.bf16.gmra.mxu0 %v2860
  %v5951 = vpop.f32.mrf.mxu0
  %v5952 = vadd.f32 %v5863, %v5951
  %v5953 = vpop.f32.mrf.mxu0
  %v5954 = vadd.f32 %v5865, %v5953
  %5955 = vmatmul.bf16.gmra.mxu0 %v2862
  %v5956 = vpop.f32.mrf.mxu0
  %v5957 = vadd.f32 %v5868, %v5956
  %v5958 = vpop.f32.mrf.mxu0
  %v5959 = vadd.f32 %v5870, %v5958
  %5960 = vmatmul.bf16.gmra.mxu0 %v2864
  %v5961 = vpop.f32.mrf.mxu0
  %v5962 = vadd.f32 %v5873, %v5961
  %v5963 = vpop.f32.mrf.mxu0
  %v5964 = vadd.f32 %v5875, %v5963
  %5965 = vmatmul.bf16.gmra.mxu0 %v2866
  %v5966 = vpop.f32.mrf.mxu0
  %v5967 = vadd.f32 %v5878, %v5966
  %v5968 = vpop.f32.mrf.mxu0
  %v5969 = vadd.f32 %v5880, %v5968
  %5970 = vmatmul.bf16.gmra.mxu0 %v2868
  %v5971 = vpop.f32.mrf.mxu0
  %v5972 = vadd.f32 %v5883, %v5971
  %v5973 = vpop.f32.mrf.mxu0
  %v5974 = vadd.f32 %v5885, %v5973
  %5975 = vmatmul.bf16.gmra.mxu0 %v2870
  %v5976 = vpop.f32.mrf.mxu0
  %v5977 = vadd.f32 %v5888, %v5976
  %v5978 = vpop.f32.mrf.mxu0
  %v5979 = vadd.f32 %v5890, %v5978
  %5980 = vmatmul.bf16.gmra.mxu0 %v2872
  %v5981 = vpop.f32.mrf.mxu0
  %v5982 = vadd.f32 %v5893, %v5981
  %v5983 = vpop.f32.mrf.mxu0
  %v5984 = vadd.f32 %v5895, %v5983
  %5985 = vdwg.mxu0
  %5986 = vmatpush.bf16.msra.mxu0 %v5355
  %5987 = vmatpush.bf16.msra.mxu0 %v5351
  %5988 = vmatpush.bf16.msra.mxu0 %v5347
  %5989 = vmatpush.bf16.msra.mxu0 %v5343
  %5990 = vmatpush.bf16.msra.mxu0 %v5339
  %5991 = vmatpush.bf16.msra.mxu0 %v5335
  %5992 = vmatpush.bf16.msra.mxu0 %v5331
  %5993 = vmatpush.bf16.msra.mxu0 %v5327
  %5994 = vmatmul.bf16.gmra.mxu0 %v2841
  %v5995 = vpop.f32.mrf.mxu0
  %v5996 = vadd.f32 0.0, %v5995
  %v5997 = vpop.f32.mrf.mxu0
  %v5998 = vadd.f32 0.0, %v5997
  %5999 = vmatmul.bf16.gmra.mxu0 %v2843
  %v6000 = vpop.f32.mrf.mxu0
  %v6001 = vadd.f32 0.0, %v6000
  %v6002 = vpop.f32.mrf.mxu0
  %v6003 = vadd.f32 0.0, %v6002
  %6004 = vmatmul.bf16.gmra.mxu0 %v2845
  %v6005 = vpop.f32.mrf.mxu0
  %v6006 = vadd.f32 0.0, %v6005
  %v6007 = vpop.f32.mrf.mxu0
  %v6008 = vadd.f32 0.0, %v6007
  %6009 = vmatmul.bf16.gmra.mxu0 %v2847
  %v6010 = vpop.f32.mrf.mxu0
  %v6011 = vadd.f32 0.0, %v6010
  %v6012 = vpop.f32.mrf.mxu0
  %v6013 = vadd.f32 0.0, %v6012
  %6014 = vmatmul.bf16.gmra.mxu0 %v2849
  %v6015 = vpop.f32.mrf.mxu0
  %v6016 = vadd.f32 0.0, %v6015
  %v6017 = vpop.f32.mrf.mxu0
  %v6018 = vadd.f32 0.0, %v6017
  %6019 = vmatmul.bf16.gmra.mxu0 %v2851
  %v6020 = vpop.f32.mrf.mxu0
  %v6021 = vadd.f32 0.0, %v6020
  %v6022 = vpop.f32.mrf.mxu0
  %v6023 = vadd.f32 0.0, %v6022
  %6024 = vmatmul.bf16.gmra.mxu0 %v2853
  %v6025 = vpop.f32.mrf.mxu0
  %v6026 = vadd.f32 0.0, %v6025
  %v6027 = vpop.f32.mrf.mxu0
  %v6028 = vadd.f32 0.0, %v6027
  %6029 = vmatmul.bf16.gmra.mxu0 %v2855
  %v6030 = vpop.f32.mrf.mxu0
  %v6031 = vadd.f32 0.0, %v6030
  %v6032 = vpop.f32.mrf.mxu0
  %v6033 = vadd.f32 0.0, %v6032
  %6034 = vmatmul.bf16.gmra.mxu0 %v2857
  %v6035 = vpop.f32.mrf.mxu0
  %v6036 = vadd.f32 0.0, %v6035
  %v6037 = vpop.f32.mrf.mxu0
  %v6038 = vadd.f32 0.0, %v6037
  %6039 = vmatmul.bf16.gmra.mxu0 %v2859
  %v6040 = vpop.f32.mrf.mxu0
  %v6041 = vadd.f32 0.0, %v6040
  %v6042 = vpop.f32.mrf.mxu0
  %v6043 = vadd.f32 0.0, %v6042
  %6044 = vmatmul.bf16.gmra.mxu0 %v2861
  %v6045 = vpop.f32.mrf.mxu0
  %v6046 = vadd.f32 0.0, %v6045
  %v6047 = vpop.f32.mrf.mxu0
  %v6048 = vadd.f32 0.0, %v6047
  %6049 = vmatmul.bf16.gmra.mxu0 %v2863
  %v6050 = vpop.f32.mrf.mxu0
  %v6051 = vadd.f32 0.0, %v6050
  %v6052 = vpop.f32.mrf.mxu0
  %v6053 = vadd.f32 0.0, %v6052
  %6054 = vmatmul.bf16.gmra.mxu0 %v2865
  %v6055 = vpop.f32.mrf.mxu0
  %v6056 = vadd.f32 0.0, %v6055
  %v6057 = vpop.f32.mrf.mxu0
  %v6058 = vadd.f32 0.0, %v6057
  %6059 = vmatmul.bf16.gmra.mxu0 %v2867
  %v6060 = vpop.f32.mrf.mxu0
  %v6061 = vadd.f32 0.0, %v6060
  %v6062 = vpop.f32.mrf.mxu0
  %v6063 = vadd.f32 0.0, %v6062
  %6064 = vmatmul.bf16.gmra.mxu0 %v2869
  %v6065 = vpop.f32.mrf.mxu0
  %v6066 = vadd.f32 0.0, %v6065
  %v6067 = vpop.f32.mrf.mxu0
  %v6068 = vadd.f32 0.0, %v6067
  %6069 = vmatmul.bf16.gmra.mxu0 %v2871
  %v6070 = vpop.f32.mrf.mxu0
  %v6071 = vadd.f32 0.0, %v6070
  %v6072 = vpop.f32.mrf.mxu0
  %v6073 = vadd.f32 0.0, %v6072
  %6074 = vdwg.mxu0
  %6075 = vmatpush.bf16.msra.mxu0 %v5387
  %6076 = vmatpush.bf16.msra.mxu0 %v5383
  %6077 = vmatpush.bf16.msra.mxu0 %v5379
  %6078 = vmatpush.bf16.msra.mxu0 %v5375
  %6079 = vmatpush.bf16.msra.mxu0 %v5371
  %6080 = vmatpush.bf16.msra.mxu0 %v5367
  %6081 = vmatpush.bf16.msra.mxu0 %v5363
  %6082 = vmatpush.bf16.msra.mxu0 %v5359
  %6083 = vmatmul.bf16.gmra.mxu0 %v2842
  %v6084 = vpop.f32.mrf.mxu0
  %v6085 = vadd.f32 %v5996, %v6084
  %v6086 = vpop.f32.mrf.mxu0
  %v6087 = vadd.f32 %v5998, %v6086
  %6088 = vmatmul.bf16.gmra.mxu0 %v2844
  %v6089 = vpop.f32.mrf.mxu0
  %v6090 = vadd.f32 %v6001, %v6089
  %v6091 = vpop.f32.mrf.mxu0
  %v6092 = vadd.f32 %v6003, %v6091
  %6093 = vmatmul.bf16.gmra.mxu0 %v2846
  %v6094 = vpop.f32.mrf.mxu0
  %v6095 = vadd.f32 %v6006, %v6094
  %v6096 = vpop.f32.mrf.mxu0
  %v6097 = vadd.f32 %v6008, %v6096
  %6098 = vmatmul.bf16.gmra.mxu0 %v2848
  %v6099 = vpop.f32.mrf.mxu0
  %v6100 = vadd.f32 %v6011, %v6099
  %v6101 = vpop.f32.mrf.mxu0
  %v6102 = vadd.f32 %v6013, %v6101
  %6103 = vmatmul.bf16.gmra.mxu0 %v2850
  %v6104 = vpop.f32.mrf.mxu0
  %v6105 = vadd.f32 %v6016, %v6104
  %v6106 = vpop.f32.mrf.mxu0
  %v6107 = vadd.f32 %v6018, %v6106
  %6108 = vmatmul.bf16.gmra.mxu0 %v2852
  %v6109 = vpop.f32.mrf.mxu0
  %v6110 = vadd.f32 %v6021, %v6109
  %v6111 = vpop.f32.mrf.mxu0
  %v6112 = vadd.f32 %v6023, %v6111
  %6113 = vmatmul.bf16.gmra.mxu0 %v2854
  %v6114 = vpop.f32.mrf.mxu0
  %v6115 = vadd.f32 %v6026, %v6114
  %v6116 = vpop.f32.mrf.mxu0
  %v6117 = vadd.f32 %v6028, %v6116
  %6118 = vmatmul.bf16.gmra.mxu0 %v2856
  %v6119 = vpop.f32.mrf.mxu0
  %v6120 = vadd.f32 %v6031, %v6119
  %v6121 = vpop.f32.mrf.mxu0
  %v6122 = vadd.f32 %v6033, %v6121
  %6123 = vmatmul.bf16.gmra.mxu0 %v2858
  %v6124 = vpop.f32.mrf.mxu0
  %v6125 = vadd.f32 %v6036, %v6124
  %v6126 = vpop.f32.mrf.mxu0
  %v6127 = vadd.f32 %v6038, %v6126
  %6128 = vmatmul.bf16.gmra.mxu0 %v2860
  %v6129 = vpop.f32.mrf.mxu0
  %v6130 = vadd.f32 %v6041, %v6129
  %v6131 = vpop.f32.mrf.mxu0
  %v6132 = vadd.f32 %v6043, %v6131
  %6133 = vmatmul.bf16.gmra.mxu0 %v2862
  %v6134 = vpop.f32.mrf.mxu0
  %v6135 = vadd.f32 %v6046, %v6134
  %v6136 = vpop.f32.mrf.mxu0
  %v6137 = vadd.f32 %v6048, %v6136
  %6138 = vmatmul.bf16.gmra.mxu0 %v2864
  %v6139 = vpop.f32.mrf.mxu0
  %v6140 = vadd.f32 %v6051, %v6139
  %v6141 = vpop.f32.mrf.mxu0
  %v6142 = vadd.f32 %v6053, %v6141
  %6143 = vmatmul.bf16.gmra.mxu0 %v2866
  %v6144 = vpop.f32.mrf.mxu0
  %v6145 = vadd.f32 %v6056, %v6144
  %v6146 = vpop.f32.mrf.mxu0
  %v6147 = vadd.f32 %v6058, %v6146
  %6148 = vmatmul.bf16.gmra.mxu0 %v2868
  %v6149 = vpop.f32.mrf.mxu0
  %v6150 = vadd.f32 %v6061, %v6149
  %v6151 = vpop.f32.mrf.mxu0
  %v6152 = vadd.f32 %v6063, %v6151
  %6153 = vmatmul.bf16.gmra.mxu0 %v2870
  %v6154 = vpop.f32.mrf.mxu0
  %v6155 = vadd.f32 %v6066, %v6154
  %v6156 = vpop.f32.mrf.mxu0
  %v6157 = vadd.f32 %v6068, %v6156
  %6158 = vmatmul.bf16.gmra.mxu0 %v2872
  %v6159 = vpop.f32.mrf.mxu0
  %v6160 = vadd.f32 %v6071, %v6159
  %v6161 = vpop.f32.mrf.mxu0
  %v6162 = vadd.f32 %v6073, %v6161
  %6163 = vdwg.mxu0
  %v6164 = vadd.f32 %v4454, %v5551
  %v6165 = vadd.f32 %v4632, %v5729
  %v6166 = vadd.f32 %v4810, %v5907
  %v6167 = vadd.f32 %v4988, %v6085
  %v6168 = vadd.f32 %v4456, %v5553
  %v6169 = vadd.f32 %v4634, %v5731
  %v6170 = vadd.f32 %v4812, %v5909
  %v6171 = vadd.f32 %v4990, %v6087
  %v6172 = vadd.f32 %v4459, %v5556
  %v6173 = vadd.f32 %v4637, %v5734
  %v6174 = vadd.f32 %v4815, %v5912
  %v6175 = vadd.f32 %v4993, %v6090
  %v6176 = vadd.f32 %v4461, %v5558
  %v6177 = vadd.f32 %v4639, %v5736
  %v6178 = vadd.f32 %v4817, %v5914
  %v6179 = vadd.f32 %v4995, %v6092
  %v6180 = vadd.f32 %v4464, %v5561
  %v6181 = vadd.f32 %v4642, %v5739
  %v6182 = vadd.f32 %v4820, %v5917
  %v6183 = vadd.f32 %v4998, %v6095
  %v6184 = vadd.f32 %v4466, %v5563
  %v6185 = vadd.f32 %v4644, %v5741
  %v6186 = vadd.f32 %v4822, %v5919
  %v6187 = vadd.f32 %v5000, %v6097
  %v6188 = vadd.f32 %v4469, %v5566
  %v6189 = vadd.f32 %v4647, %v5744
  %v6190 = vadd.f32 %v4825, %v5922
  %v6191 = vadd.f32 %v5003, %v6100
  %v6192 = vadd.f32 %v4471, %v5568
  %v6193 = vadd.f32 %v4649, %v5746
  %v6194 = vadd.f32 %v4827, %v5924
  %v6195 = vadd.f32 %v5005, %v6102
  %v6196 = vadd.f32 %v4474, %v5571
  %v6197 = vadd.f32 %v4652, %v5749
  %v6198 = vadd.f32 %v4830, %v5927
  %v6199 = vadd.f32 %v5008, %v6105
  %v6200 = vadd.f32 %v4476, %v5573
  %v6201 = vadd.f32 %v4654, %v5751
  %v6202 = vadd.f32 %v4832, %v5929
  %v6203 = vadd.f32 %v5010, %v6107
  %v6204 = vadd.f32 %v4479, %v5576
  %v6205 = vadd.f32 %v4657, %v5754
  %v6206 = vadd.f32 %v4835, %v5932
  %v6207 = vadd.f32 %v5013, %v6110
  %v6208 = vadd.f32 %v4481, %v5578
  %v6209 = vadd.f32 %v4659, %v5756
  %v6210 = vadd.f32 %v4837, %v5934
  %v6211 = vadd.f32 %v5015, %v6112
  %v6212 = vadd.f32 %v4484, %v5581
  %v6213 = vadd.f32 %v4662, %v5759
  %v6214 = vadd.f32 %v4840, %v5937
  %v6215 = vadd.f32 %v5018, %v6115
  %v6216 = vadd.f32 %v4486, %v5583
  %v6217 = vadd.f32 %v4664, %v5761
  %v6218 = vadd.f32 %v4842, %v5939
  %v6219 = vadd.f32 %v5020, %v6117
  %v6220 = vadd.f32 %v4489, %v5586
  %v6221 = vadd.f32 %v4667, %v5764
  %v6222 = vadd.f32 %v4845, %v5942
  %v6223 = vadd.f32 %v5023, %v6120
  %v6224 = vadd.f32 %v4491, %v5588
  %v6225 = vadd.f32 %v4669, %v5766
  %v6226 = vadd.f32 %v4847, %v5944
  %v6227 = vadd.f32 %v5025, %v6122
  %v6228 = vadd.f32 %v4494, %v5591
  %v6229 = vadd.f32 %v4672, %v5769
  %v6230 = vadd.f32 %v4850, %v5947
  %v6231 = vadd.f32 %v5028, %v6125
  %v6232 = vadd.f32 %v4496, %v5593
  %v6233 = vadd.f32 %v4674, %v5771
  %v6234 = vadd.f32 %v4852, %v5949
  %v6235 = vadd.f32 %v5030, %v6127
  %v6236 = vadd.f32 %v4499, %v5596
  %v6237 = vadd.f32 %v4677, %v5774
  %v6238 = vadd.f32 %v4855, %v5952
  %v6239 = vadd.f32 %v5033, %v6130
  %v6240 = vadd.f32 %v4501, %v5598
  %v6241 = vadd.f32 %v4679, %v5776
  %v6242 = vadd.f32 %v4857, %v5954
  %v6243 = vadd.f32 %v5035, %v6132
  %v6244 = vadd.f32 %v4504, %v5601
  %v6245 = vadd.f32 %v4682, %v5779
  %v6246 = vadd.f32 %v4860, %v5957
  %v6247 = vadd.f32 %v5038, %v6135
  %v6248 = vadd.f32 %v4506, %v5603
  %v6249 = vadd.f32 %v4684, %v5781
  %v6250 = vadd.f32 %v4862, %v5959
  %v6251 = vadd.f32 %v5040, %v6137
  %v6252 = vadd.f32 %v4509, %v5606
  %v6253 = vadd.f32 %v4687, %v5784
  %v6254 = vadd.f32 %v4865, %v5962
  %v6255 = vadd.f32 %v5043, %v6140
  %v6256 = vadd.f32 %v4511, %v5608
  %v6257 = vadd.f32 %v4689, %v5786
  %v6258 = vadd.f32 %v4867, %v5964
  %v6259 = vadd.f32 %v5045, %v6142
  %v6260 = vadd.f32 %v4514, %v5611
  %v6261 = vadd.f32 %v4692, %v5789
  %v6262 = vadd.f32 %v4870, %v5967
  %v6263 = vadd.f32 %v5048, %v6145
  %v6264 = vadd.f32 %v4516, %v5613
  %v6265 = vadd.f32 %v4694, %v5791
  %v6266 = vadd.f32 %v4872, %v5969
  %v6267 = vadd.f32 %v5050, %v6147
  %v6268 = vadd.f32 %v4519, %v5616
  %v6269 = vadd.f32 %v4697, %v5794
  %v6270 = vadd.f32 %v4875, %v5972
  %v6271 = vadd.f32 %v5053, %v6150
  %v6272 = vadd.f32 %v4521, %v5618
  %v6273 = vadd.f32 %v4699, %v5796
  %v6274 = vadd.f32 %v4877, %v5974
  %v6275 = vadd.f32 %v5055, %v6152
  %v6276 = vadd.f32 %v4524, %v5621
  %v6277 = vadd.f32 %v4702, %v5799
  %v6278 = vadd.f32 %v4880, %v5977
  %v6279 = vadd.f32 %v5058, %v6155
  %v6280 = vadd.f32 %v4526, %v5623
  %v6281 = vadd.f32 %v4704, %v5801
  %v6282 = vadd.f32 %v4882, %v5979
  %v6283 = vadd.f32 %v5060, %v6157
  %v6284 = vadd.f32 %v4529, %v5626
  %v6285 = vadd.f32 %v4707, %v5804
  %v6286 = vadd.f32 %v4885, %v5982
  %v6287 = vadd.f32 %v5063, %v6160
  %v6288 = vadd.f32 %v4531, %v5628
  %v6289 = vadd.f32 %v4709, %v5806
  %v6290 = vadd.f32 %v4887, %v5984
  %v6291 = vadd.f32 %v5065, %v6162
  %v6292 = vmax.f32 %v6164, %v6166
  %v6293 = vmax.f32 %v6165, %v6167
  %v6294 = vmax.f32 %v6168, %v6170
  %v6295 = vmax.f32 %v6169, %v6171
  %v6296 = vmax.f32 %v6172, %v6174
  %v6297 = vmax.f32 %v6173, %v6175
  %v6298 = vmax.f32 %v6176, %v6178
  %v6299 = vmax.f32 %v6177, %v6179
  %v6300 = vmax.f32 %v6180, %v6182
  %v6301 = vmax.f32 %v6181, %v6183
  %v6302 = vmax.f32 %v6184, %v6186
  %v6303 = vmax.f32 %v6185, %v6187
  %v6304 = vmax.f32 %v6188, %v6190
  %v6305 = vmax.f32 %v6189, %v6191
  %v6306 = vmax.f32 %v6192, %v6194
  %v6307 = vmax.f32 %v6193, %v6195
  %v6308 = vmax.f32 %v6196, %v6198
  %v6309 = vmax.f32 %v6197, %v6199
  %v6310 = vmax.f32 %v6200, %v6202
  %v6311 = vmax.f32 %v6201, %v6203
  %v6312 = vmax.f32 %v6204, %v6206
  %v6313 = vmax.f32 %v6205, %v6207
  %v6314 = vmax.f32 %v6208, %v6210
  %v6315 = vmax.f32 %v6209, %v6211
  %v6316 = vmax.f32 %v6212, %v6214
  %v6317 = vmax.f32 %v6213, %v6215
  %v6318 = vmax.f32 %v6216, %v6218
  %v6319 = vmax.f32 %v6217, %v6219
  %v6320 = vmax.f32 %v6220, %v6222
  %v6321 = vmax.f32 %v6221, %v6223
  %v6322 = vmax.f32 %v6224, %v6226
  %v6323 = vmax.f32 %v6225, %v6227
  %v6324 = vmax.f32 %v6228, %v6230
  %v6325 = vmax.f32 %v6229, %v6231
  %v6326 = vmax.f32 %v6232, %v6234
  %v6327 = vmax.f32 %v6233, %v6235
  %v6328 = vmax.f32 %v6236, %v6238
  %v6329 = vmax.f32 %v6237, %v6239
  %v6330 = vmax.f32 %v6240, %v6242
  %v6331 = vmax.f32 %v6241, %v6243
  %v6332 = vmax.f32 %v6244, %v6246
  %v6333 = vmax.f32 %v6245, %v6247
  %v6334 = vmax.f32 %v6248, %v6250
  %v6335 = vmax.f32 %v6249, %v6251
  %v6336 = vmax.f32 %v6252, %v6254
  %v6337 = vmax.f32 %v6253, %v6255
  %v6338 = vmax.f32 %v6256, %v6258
  %v6339 = vmax.f32 %v6257, %v6259
  %v6340 = vmax.f32 %v6260, %v6262
  %v6341 = vmax.f32 %v6261, %v6263
  %v6342 = vmax.f32 %v6264, %v6266
  %v6343 = vmax.f32 %v6265, %v6267
  %v6344 = vmax.f32 %v6268, %v6270
  %v6345 = vmax.f32 %v6269, %v6271
  %v6346 = vmax.f32 %v6272, %v6274
  %v6347 = vmax.f32 %v6273, %v6275
  %v6348 = vmax.f32 %v6276, %v6278
  %v6349 = vmax.f32 %v6277, %v6279
  %v6350 = vmax.f32 %v6280, %v6282
  %v6351 = vmax.f32 %v6281, %v6283
  %v6352 = vmax.f32 %v6284, %v6286
  %v6353 = vmax.f32 %v6285, %v6287
  %v6354 = vmax.f32 %v6288, %v6290
  %v6355 = vmax.f32 %v6289, %v6291
  %6356 = vmatpush.bf16.msra.mxu0 %v3223
  %6357 = vmatpush.bf16.msra.mxu0 %v3219
  %6358 = vmatpush.bf16.msra.mxu0 %v3215
  %6359 = vmatpush.bf16.msra.mxu0 %v3211
  %6360 = vmatpush.bf16.msra.mxu0 %v3207
  %6361 = vmatpush.bf16.msra.mxu0 %v3203
  %6362 = vmatpush.bf16.msra.mxu0 %v3199
  %6363 = vmatpush.bf16.msra.mxu0 %v3195
  %6364 = vmatmul.bf16.gmra.mxu0 %v2841
  %v6365 = vpop.f32.mrf.mxu0
  %v6366 = vadd.f32 0.0, %v6365
  %v6367 = vpop.f32.mrf.mxu0
  %v6368 = vadd.f32 0.0, %v6367
  %6369 = vmatmul.bf16.gmra.mxu0 %v2843
  %v6370 = vpop.f32.mrf.mxu0
  %v6371 = vadd.f32 0.0, %v6370
  %v6372 = vpop.f32.mrf.mxu0
  %v6373 = vadd.f32 0.0, %v6372
  %6374 = vmatmul.bf16.gmra.mxu0 %v2845
  %v6375 = vpop.f32.mrf.mxu0
  %v6376 = vadd.f32 0.0, %v6375
  %v6377 = vpop.f32.mrf.mxu0
  %v6378 = vadd.f32 0.0, %v6377
  %6379 = vmatmul.bf16.gmra.mxu0 %v2847
  %v6380 = vpop.f32.mrf.mxu0
  %v6381 = vadd.f32 0.0, %v6380
  %v6382 = vpop.f32.mrf.mxu0
  %v6383 = vadd.f32 0.0, %v6382
  %6384 = vmatmul.bf16.gmra.mxu0 %v2849
  %v6385 = vpop.f32.mrf.mxu0
  %v6386 = vadd.f32 0.0, %v6385
  %v6387 = vpop.f32.mrf.mxu0
  %v6388 = vadd.f32 0.0, %v6387
  %6389 = vmatmul.bf16.gmra.mxu0 %v2851
  %v6390 = vpop.f32.mrf.mxu0
  %v6391 = vadd.f32 0.0, %v6390
  %v6392 = vpop.f32.mrf.mxu0
  %v6393 = vadd.f32 0.0, %v6392
  %6394 = vmatmul.bf16.gmra.mxu0 %v2853
  %v6395 = vpop.f32.mrf.mxu0
  %v6396 = vadd.f32 0.0, %v6395
  %v6397 = vpop.f32.mrf.mxu0
  %v6398 = vadd.f32 0.0, %v6397
  %6399 = vmatmul.bf16.gmra.mxu0 %v2855
  %v6400 = vpop.f32.mrf.mxu0
  %v6401 = vadd.f32 0.0, %v6400
  %v6402 = vpop.f32.mrf.mxu0
  %v6403 = vadd.f32 0.0, %v6402
  %6404 = vmatmul.bf16.gmra.mxu0 %v2857
  %v6405 = vpop.f32.mrf.mxu0
  %v6406 = vadd.f32 0.0, %v6405
  %v6407 = vpop.f32.mrf.mxu0
  %v6408 = vadd.f32 0.0, %v6407
  %6409 = vmatmul.bf16.gmra.mxu0 %v2859
  %v6410 = vpop.f32.mrf.mxu0
  %v6411 = vadd.f32 0.0, %v6410
  %v6412 = vpop.f32.mrf.mxu0
  %v6413 = vadd.f32 0.0, %v6412
  %6414 = vmatmul.bf16.gmra.mxu0 %v2861
  %v6415 = vpop.f32.mrf.mxu0
  %v6416 = vadd.f32 0.0, %v6415
  %v6417 = vpop.f32.mrf.mxu0
  %v6418 = vadd.f32 0.0, %v6417
  %6419 = vmatmul.bf16.gmra.mxu0 %v2863
  %v6420 = vpop.f32.mrf.mxu0
  %v6421 = vadd.f32 0.0, %v6420
  %v6422 = vpop.f32.mrf.mxu0
  %v6423 = vadd.f32 0.0, %v6422
  %6424 = vmatmul.bf16.gmra.mxu0 %v2865
  %v6425 = vpop.f32.mrf.mxu0
  %v6426 = vadd.f32 0.0, %v6425
  %v6427 = vpop.f32.mrf.mxu0
  %v6428 = vadd.f32 0.0, %v6427
  %6429 = vmatmul.bf16.gmra.mxu0 %v2867
  %v6430 = vpop.f32.mrf.mxu0
  %v6431 = vadd.f32 0.0, %v6430
  %v6432 = vpop.f32.mrf.mxu0
  %v6433 = vadd.f32 0.0, %v6432
  %6434 = vmatmul.bf16.gmra.mxu0 %v2869
  %v6435 = vpop.f32.mrf.mxu0
  %v6436 = vadd.f32 0.0, %v6435
  %v6437 = vpop.f32.mrf.mxu0
  %v6438 = vadd.f32 0.0, %v6437
  %6439 = vmatmul.bf16.gmra.mxu0 %v2871
  %v6440 = vpop.f32.mrf.mxu0
  %v6441 = vadd.f32 0.0, %v6440
  %v6442 = vpop.f32.mrf.mxu0
  %v6443 = vadd.f32 0.0, %v6442
  %6444 = vdwg.mxu0
  %6445 = vmatpush.bf16.msra.mxu0 %v3255
  %6446 = vmatpush.bf16.msra.mxu0 %v3251
  %6447 = vmatpush.bf16.msra.mxu0 %v3247
  %6448 = vmatpush.bf16.msra.mxu0 %v3243
  %6449 = vmatpush.bf16.msra.mxu0 %v3239
  %6450 = vmatpush.bf16.msra.mxu0 %v3235
  %6451 = vmatpush.bf16.msra.mxu0 %v3231
  %6452 = vmatpush.bf16.msra.mxu0 %v3227
  %6453 = vmatmul.bf16.gmra.mxu0 %v2842
  %v6454 = vpop.f32.mrf.mxu0
  %v6455 = vadd.f32 %v6366, %v6454
  %v6456 = vpop.f32.mrf.mxu0
  %v6457 = vadd.f32 %v6368, %v6456
  %6458 = vmatmul.bf16.gmra.mxu0 %v2844
  %v6459 = vpop.f32.mrf.mxu0
  %v6460 = vadd.f32 %v6371, %v6459
  %v6461 = vpop.f32.mrf.mxu0
  %v6462 = vadd.f32 %v6373, %v6461
  %6463 = vmatmul.bf16.gmra.mxu0 %v2846
  %v6464 = vpop.f32.mrf.mxu0
  %v6465 = vadd.f32 %v6376, %v6464
  %v6466 = vpop.f32.mrf.mxu0
  %v6467 = vadd.f32 %v6378, %v6466
  %6468 = vmatmul.bf16.gmra.mxu0 %v2848
  %v6469 = vpop.f32.mrf.mxu0
  %v6470 = vadd.f32 %v6381, %v6469
  %v6471 = vpop.f32.mrf.mxu0
  %v6472 = vadd.f32 %v6383, %v6471
  %6473 = vmatmul.bf16.gmra.mxu0 %v2850
  %v6474 = vpop.f32.mrf.mxu0
  %v6475 = vadd.f32 %v6386, %v6474
  %v6476 = vpop.f32.mrf.mxu0
  %v6477 = vadd.f32 %v6388, %v6476
  %6478 = vmatmul.bf16.gmra.mxu0 %v2852
  %v6479 = vpop.f32.mrf.mxu0
  %v6480 = vadd.f32 %v6391, %v6479
  %v6481 = vpop.f32.mrf.mxu0
  %v6482 = vadd.f32 %v6393, %v6481
  %6483 = vmatmul.bf16.gmra.mxu0 %v2854
  %v6484 = vpop.f32.mrf.mxu0
  %v6485 = vadd.f32 %v6396, %v6484
  %v6486 = vpop.f32.mrf.mxu0
  %v6487 = vadd.f32 %v6398, %v6486
  %6488 = vmatmul.bf16.gmra.mxu0 %v2856
  %v6489 = vpop.f32.mrf.mxu0
  %v6490 = vadd.f32 %v6401, %v6489
  %v6491 = vpop.f32.mrf.mxu0
  %v6492 = vadd.f32 %v6403, %v6491
  %6493 = vmatmul.bf16.gmra.mxu0 %v2858
  %v6494 = vpop.f32.mrf.mxu0
  %v6495 = vadd.f32 %v6406, %v6494
  %v6496 = vpop.f32.mrf.mxu0
  %v6497 = vadd.f32 %v6408, %v6496
  %6498 = vmatmul.bf16.gmra.mxu0 %v2860
  %v6499 = vpop.f32.mrf.mxu0
  %v6500 = vadd.f32 %v6411, %v6499
  %v6501 = vpop.f32.mrf.mxu0
  %v6502 = vadd.f32 %v6413, %v6501
  %6503 = vmatmul.bf16.gmra.mxu0 %v2862
  %v6504 = vpop.f32.mrf.mxu0
  %v6505 = vadd.f32 %v6416, %v6504
  %v6506 = vpop.f32.mrf.mxu0
  %v6507 = vadd.f32 %v6418, %v6506
  %6508 = vmatmul.bf16.gmra.mxu0 %v2864
  %v6509 = vpop.f32.mrf.mxu0
  %v6510 = vadd.f32 %v6421, %v6509
  %v6511 = vpop.f32.mrf.mxu0
  %v6512 = vadd.f32 %v6423, %v6511
  %6513 = vmatmul.bf16.gmra.mxu0 %v2866
  %v6514 = vpop.f32.mrf.mxu0
  %v6515 = vadd.f32 %v6426, %v6514
  %v6516 = vpop.f32.mrf.mxu0
  %v6517 = vadd.f32 %v6428, %v6516
  %6518 = vmatmul.bf16.gmra.mxu0 %v2868
  %v6519 = vpop.f32.mrf.mxu0
  %v6520 = vadd.f32 %v6431, %v6519
  %v6521 = vpop.f32.mrf.mxu0
  %v6522 = vadd.f32 %v6433, %v6521
  %6523 = vmatmul.bf16.gmra.mxu0 %v2870
  %v6524 = vpop.f32.mrf.mxu0
  %v6525 = vadd.f32 %v6436, %v6524
  %v6526 = vpop.f32.mrf.mxu0
  %v6527 = vadd.f32 %v6438, %v6526
  %6528 = vmatmul.bf16.gmra.mxu0 %v2872
  %v6529 = vpop.f32.mrf.mxu0
  %v6530 = vadd.f32 %v6441, %v6529
  %v6531 = vpop.f32.mrf.mxu0
  %v6532 = vadd.f32 %v6443, %v6531
  %6533 = vdwg.mxu0
  %6534 = vmatpush.bf16.msra.mxu0 %v3224
  %6535 = vmatpush.bf16.msra.mxu0 %v3220
  %6536 = vmatpush.bf16.msra.mxu0 %v3216
  %6537 = vmatpush.bf16.msra.mxu0 %v3212
  %6538 = vmatpush.bf16.msra.mxu0 %v3208
  %6539 = vmatpush.bf16.msra.mxu0 %v3204
  %6540 = vmatpush.bf16.msra.mxu0 %v3200
  %6541 = vmatpush.bf16.msra.mxu0 %v3196
  %6542 = vmatmul.bf16.gmra.mxu0 %v2841
  %v6543 = vpop.f32.mrf.mxu0
  %v6544 = vadd.f32 0.0, %v6543
  %v6545 = vpop.f32.mrf.mxu0
  %v6546 = vadd.f32 0.0, %v6545
  %6547 = vmatmul.bf16.gmra.mxu0 %v2843
  %v6548 = vpop.f32.mrf.mxu0
  %v6549 = vadd.f32 0.0, %v6548
  %v6550 = vpop.f32.mrf.mxu0
  %v6551 = vadd.f32 0.0, %v6550
  %6552 = vmatmul.bf16.gmra.mxu0 %v2845
  %v6553 = vpop.f32.mrf.mxu0
  %v6554 = vadd.f32 0.0, %v6553
  %v6555 = vpop.f32.mrf.mxu0
  %v6556 = vadd.f32 0.0, %v6555
  %6557 = vmatmul.bf16.gmra.mxu0 %v2847
  %v6558 = vpop.f32.mrf.mxu0
  %v6559 = vadd.f32 0.0, %v6558
  %v6560 = vpop.f32.mrf.mxu0
  %v6561 = vadd.f32 0.0, %v6560
  %6562 = vmatmul.bf16.gmra.mxu0 %v2849
  %v6563 = vpop.f32.mrf.mxu0
  %v6564 = vadd.f32 0.0, %v6563
  %v6565 = vpop.f32.mrf.mxu0
  %v6566 = vadd.f32 0.0, %v6565
  %6567 = vmatmul.bf16.gmra.mxu0 %v2851
  %v6568 = vpop.f32.mrf.mxu0
  %v6569 = vadd.f32 0.0, %v6568
  %v6570 = vpop.f32.mrf.mxu0
  %v6571 = vadd.f32 0.0, %v6570
  %6572 = vmatmul.bf16.gmra.mxu0 %v2853
  %v6573 = vpop.f32.mrf.mxu0
  %v6574 = vadd.f32 0.0, %v6573
  %v6575 = vpop.f32.mrf.mxu0
  %v6576 = vadd.f32 0.0, %v6575
  %6577 = vmatmul.bf16.gmra.mxu0 %v2855
  %v6578 = vpop.f32.mrf.mxu0
  %v6579 = vadd.f32 0.0, %v6578
  %v6580 = vpop.f32.mrf.mxu0
  %v6581 = vadd.f32 0.0, %v6580
  %6582 = vmatmul.bf16.gmra.mxu0 %v2857
  %v6583 = vpop.f32.mrf.mxu0
  %v6584 = vadd.f32 0.0, %v6583
  %v6585 = vpop.f32.mrf.mxu0
  %v6586 = vadd.f32 0.0, %v6585
  %6587 = vmatmul.bf16.gmra.mxu0 %v2859
  %v6588 = vpop.f32.mrf.mxu0
  %v6589 = vadd.f32 0.0, %v6588
  %v6590 = vpop.f32.mrf.mxu0
  %v6591 = vadd.f32 0.0, %v6590
  %6592 = vmatmul.bf16.gmra.mxu0 %v2861
  %v6593 = vpop.f32.mrf.mxu0
  %v6594 = vadd.f32 0.0, %v6593
  %v6595 = vpop.f32.mrf.mxu0
  %v6596 = vadd.f32 0.0, %v6595
  %6597 = vmatmul.bf16.gmra.mxu0 %v2863
  %v6598 = vpop.f32.mrf.mxu0
  %v6599 = vadd.f32 0.0, %v6598
  %v6600 = vpop.f32.mrf.mxu0
  %v6601 = vadd.f32 0.0, %v6600
  %6602 = vmatmul.bf16.gmra.mxu0 %v2865
  %v6603 = vpop.f32.mrf.mxu0
  %v6604 = vadd.f32 0.0, %v6603
  %v6605 = vpop.f32.mrf.mxu0
  %v6606 = vadd.f32 0.0, %v6605
  %6607 = vmatmul.bf16.gmra.mxu0 %v2867
  %v6608 = vpop.f32.mrf.mxu0
  %v6609 = vadd.f32 0.0, %v6608
  %v6610 = vpop.f32.mrf.mxu0
  %v6611 = vadd.f32 0.0, %v6610
  %6612 = vmatmul.bf16.gmra.mxu0 %v2869
  %v6613 = vpop.f32.mrf.mxu0
  %v6614 = vadd.f32 0.0, %v6613
  %v6615 = vpop.f32.mrf.mxu0
  %v6616 = vadd.f32 0.0, %v6615
  %6617 = vmatmul.bf16.gmra.mxu0 %v2871
  %v6618 = vpop.f32.mrf.mxu0
  %v6619 = vadd.f32 0.0, %v6618
  %v6620 = vpop.f32.mrf.mxu0
  %v6621 = vadd.f32 0.0, %v6620
  %6622 = vdwg.mxu0
  %6623 = vmatpush.bf16.msra.mxu0 %v3256
  %6624 = vmatpush.bf16.msra.mxu0 %v3252
  %6625 = vmatpush.bf16.msra.mxu0 %v3248
  %6626 = vmatpush.bf16.msra.mxu0 %v3244
  %6627 = vmatpush.bf16.msra.mxu0 %v3240
  %6628 = vmatpush.bf16.msra.mxu0 %v3236
  %6629 = vmatpush.bf16.msra.mxu0 %v3232
  %6630 = vmatpush.bf16.msra.mxu0 %v3228
  %6631 = vmatmul.bf16.gmra.mxu0 %v2842
  %v6632 = vpop.f32.mrf.mxu0
  %v6633 = vadd.f32 %v6544, %v6632
  %v6634 = vpop.f32.mrf.mxu0
  %v6635 = vadd.f32 %v6546, %v6634
  %6636 = vmatmul.bf16.gmra.mxu0 %v2844
  %v6637 = vpop.f32.mrf.mxu0
  %v6638 = vadd.f32 %v6549, %v6637
  %v6639 = vpop.f32.mrf.mxu0
  %v6640 = vadd.f32 %v6551, %v6639
  %6641 = vmatmul.bf16.gmra.mxu0 %v2846
  %v6642 = vpop.f32.mrf.mxu0
  %v6643 = vadd.f32 %v6554, %v6642
  %v6644 = vpop.f32.mrf.mxu0
  %v6645 = vadd.f32 %v6556, %v6644
  %6646 = vmatmul.bf16.gmra.mxu0 %v2848
  %v6647 = vpop.f32.mrf.mxu0
  %v6648 = vadd.f32 %v6559, %v6647
  %v6649 = vpop.f32.mrf.mxu0
  %v6650 = vadd.f32 %v6561, %v6649
  %6651 = vmatmul.bf16.gmra.mxu0 %v2850
  %v6652 = vpop.f32.mrf.mxu0
  %v6653 = vadd.f32 %v6564, %v6652
  %v6654 = vpop.f32.mrf.mxu0
  %v6655 = vadd.f32 %v6566, %v6654
  %6656 = vmatmul.bf16.gmra.mxu0 %v2852
  %v6657 = vpop.f32.mrf.mxu0
  %v6658 = vadd.f32 %v6569, %v6657
  %v6659 = vpop.f32.mrf.mxu0
  %v6660 = vadd.f32 %v6571, %v6659
  %6661 = vmatmul.bf16.gmra.mxu0 %v2854
  %v6662 = vpop.f32.mrf.mxu0
  %v6663 = vadd.f32 %v6574, %v6662
  %v6664 = vpop.f32.mrf.mxu0
  %v6665 = vadd.f32 %v6576, %v6664
  %6666 = vmatmul.bf16.gmra.mxu0 %v2856
  %v6667 = vpop.f32.mrf.mxu0
  %v6668 = vadd.f32 %v6579, %v6667
  %v6669 = vpop.f32.mrf.mxu0
  %v6670 = vadd.f32 %v6581, %v6669
  %6671 = vmatmul.bf16.gmra.mxu0 %v2858
  %v6672 = vpop.f32.mrf.mxu0
  %v6673 = vadd.f32 %v6584, %v6672
  %v6674 = vpop.f32.mrf.mxu0
  %v6675 = vadd.f32 %v6586, %v6674
  %6676 = vmatmul.bf16.gmra.mxu0 %v2860
  %v6677 = vpop.f32.mrf.mxu0
  %v6678 = vadd.f32 %v6589, %v6677
  %v6679 = vpop.f32.mrf.mxu0
  %v6680 = vadd.f32 %v6591, %v6679
  %6681 = vmatmul.bf16.gmra.mxu0 %v2862
  %v6682 = vpop.f32.mrf.mxu0
  %v6683 = vadd.f32 %v6594, %v6682
  %v6684 = vpop.f32.mrf.mxu0
  %v6685 = vadd.f32 %v6596, %v6684
  %6686 = vmatmul.bf16.gmra.mxu0 %v2864
  %v6687 = vpop.f32.mrf.mxu0
  %v6688 = vadd.f32 %v6599, %v6687
  %v6689 = vpop.f32.mrf.mxu0
  %v6690 = vadd.f32 %v6601, %v6689
  %6691 = vmatmul.bf16.gmra.mxu0 %v2866
  %v6692 = vpop.f32.mrf.mxu0
  %v6693 = vadd.f32 %v6604, %v6692
  %v6694 = vpop.f32.mrf.mxu0
  %v6695 = vadd.f32 %v6606, %v6694
  %6696 = vmatmul.bf16.gmra.mxu0 %v2868
  %v6697 = vpop.f32.mrf.mxu0
  %v6698 = vadd.f32 %v6609, %v6697
  %v6699 = vpop.f32.mrf.mxu0
  %v6700 = vadd.f32 %v6611, %v6699
  %6701 = vmatmul.bf16.gmra.mxu0 %v2870
  %v6702 = vpop.f32.mrf.mxu0
  %v6703 = vadd.f32 %v6614, %v6702
  %v6704 = vpop.f32.mrf.mxu0
  %v6705 = vadd.f32 %v6616, %v6704
  %6706 = vmatmul.bf16.gmra.mxu0 %v2872
  %v6707 = vpop.f32.mrf.mxu0
  %v6708 = vadd.f32 %v6619, %v6707
  %v6709 = vpop.f32.mrf.mxu0
  %v6710 = vadd.f32 %v6621, %v6709
  %6711 = vdwg.mxu0
  %6712 = vmatpush.bf16.msra.mxu0 %v3225
  %6713 = vmatpush.bf16.msra.mxu0 %v3221
  %6714 = vmatpush.bf16.msra.mxu0 %v3217
  %6715 = vmatpush.bf16.msra.mxu0 %v3213
  %6716 = vmatpush.bf16.msra.mxu0 %v3209
  %6717 = vmatpush.bf16.msra.mxu0 %v3205
  %6718 = vmatpush.bf16.msra.mxu0 %v3201
  %6719 = vmatpush.bf16.msra.mxu0 %v3197
  %6720 = vmatmul.bf16.gmra.mxu0 %v2841
  %v6721 = vpop.f32.mrf.mxu0
  %v6722 = vadd.f32 0.0, %v6721
  %v6723 = vpop.f32.mrf.mxu0
  %v6724 = vadd.f32 0.0, %v6723
  %6725 = vmatmul.bf16.gmra.mxu0 %v2843
  %v6726 = vpop.f32.mrf.mxu0
  %v6727 = vadd.f32 0.0, %v6726
  %v6728 = vpop.f32.mrf.mxu0
  %v6729 = vadd.f32 0.0, %v6728
  %6730 = vmatmul.bf16.gmra.mxu0 %v2845
  %v6731 = vpop.f32.mrf.mxu0
  %v6732 = vadd.f32 0.0, %v6731
  %v6733 = vpop.f32.mrf.mxu0
  %v6734 = vadd.f32 0.0, %v6733
  %6735 = vmatmul.bf16.gmra.mxu0 %v2847
  %v6736 = vpop.f32.mrf.mxu0
  %v6737 = vadd.f32 0.0, %v6736
  %v6738 = vpop.f32.mrf.mxu0
  %v6739 = vadd.f32 0.0, %v6738
  %6740 = vmatmul.bf16.gmra.mxu0 %v2849
  %v6741 = vpop.f32.mrf.mxu0
  %v6742 = vadd.f32 0.0, %v6741
  %v6743 = vpop.f32.mrf.mxu0
  %v6744 = vadd.f32 0.0, %v6743
  %6745 = vmatmul.bf16.gmra.mxu0 %v2851
  %v6746 = vpop.f32.mrf.mxu0
  %v6747 = vadd.f32 0.0, %v6746
  %v6748 = vpop.f32.mrf.mxu0
  %v6749 = vadd.f32 0.0, %v6748
  %6750 = vmatmul.bf16.gmra.mxu0 %v2853
  %v6751 = vpop.f32.mrf.mxu0
  %v6752 = vadd.f32 0.0, %v6751
  %v6753 = vpop.f32.mrf.mxu0
  %v6754 = vadd.f32 0.0, %v6753
  %6755 = vmatmul.bf16.gmra.mxu0 %v2855
  %v6756 = vpop.f32.mrf.mxu0
  %v6757 = vadd.f32 0.0, %v6756
  %v6758 = vpop.f32.mrf.mxu0
  %v6759 = vadd.f32 0.0, %v6758
  %6760 = vmatmul.bf16.gmra.mxu0 %v2857
  %v6761 = vpop.f32.mrf.mxu0
  %v6762 = vadd.f32 0.0, %v6761
  %v6763 = vpop.f32.mrf.mxu0
  %v6764 = vadd.f32 0.0, %v6763
  %6765 = vmatmul.bf16.gmra.mxu0 %v2859
  %v6766 = vpop.f32.mrf.mxu0
  %v6767 = vadd.f32 0.0, %v6766
  %v6768 = vpop.f32.mrf.mxu0
  %v6769 = vadd.f32 0.0, %v6768
  %6770 = vmatmul.bf16.gmra.mxu0 %v2861
  %v6771 = vpop.f32.mrf.mxu0
  %v6772 = vadd.f32 0.0, %v6771
  %v6773 = vpop.f32.mrf.mxu0
  %v6774 = vadd.f32 0.0, %v6773
  %6775 = vmatmul.bf16.gmra.mxu0 %v2863
  %v6776 = vpop.f32.mrf.mxu0
  %v6777 = vadd.f32 0.0, %v6776
  %v6778 = vpop.f32.mrf.mxu0
  %v6779 = vadd.f32 0.0, %v6778
  %6780 = vmatmul.bf16.gmra.mxu0 %v2865
  %v6781 = vpop.f32.mrf.mxu0
  %v6782 = vadd.f32 0.0, %v6781
  %v6783 = vpop.f32.mrf.mxu0
  %v6784 = vadd.f32 0.0, %v6783
  %6785 = vmatmul.bf16.gmra.mxu0 %v2867
  %v6786 = vpop.f32.mrf.mxu0
  %v6787 = vadd.f32 0.0, %v6786
  %v6788 = vpop.f32.mrf.mxu0
  %v6789 = vadd.f32 0.0, %v6788
  %6790 = vmatmul.bf16.gmra.mxu0 %v2869
  %v6791 = vpop.f32.mrf.mxu0
  %v6792 = vadd.f32 0.0, %v6791
  %v6793 = vpop.f32.mrf.mxu0
  %v6794 = vadd.f32 0.0, %v6793
  %6795 = vmatmul.bf16.gmra.mxu0 %v2871
  %v6796 = vpop.f32.mrf.mxu0
  %v6797 = vadd.f32 0.0, %v6796
  %v6798 = vpop.f32.mrf.mxu0
  %v6799 = vadd.f32 0.0, %v6798
  %6800 = vdwg.mxu0
  %6801 = vmatpush.bf16.msra.mxu0 %v3257
  %6802 = vmatpush.bf16.msra.mxu0 %v3253
  %6803 = vmatpush.bf16.msra.mxu0 %v3249
  %6804 = vmatpush.bf16.msra.mxu0 %v3245
  %6805 = vmatpush.bf16.msra.mxu0 %v3241
  %6806 = vmatpush.bf16.msra.mxu0 %v3237
  %6807 = vmatpush.bf16.msra.mxu0 %v3233
  %6808 = vmatpush.bf16.msra.mxu0 %v3229
  %6809 = vmatmul.bf16.gmra.mxu0 %v2842
  %v6810 = vpop.f32.mrf.mxu0
  %v6811 = vadd.f32 %v6722, %v6810
  %v6812 = vpop.f32.mrf.mxu0
  %v6813 = vadd.f32 %v6724, %v6812
  %6814 = vmatmul.bf16.gmra.mxu0 %v2844
  %v6815 = vpop.f32.mrf.mxu0
  %v6816 = vadd.f32 %v6727, %v6815
  %v6817 = vpop.f32.mrf.mxu0
  %v6818 = vadd.f32 %v6729, %v6817
  %6819 = vmatmul.bf16.gmra.mxu0 %v2846
  %v6820 = vpop.f32.mrf.mxu0
  %v6821 = vadd.f32 %v6732, %v6820
  %v6822 = vpop.f32.mrf.mxu0
  %v6823 = vadd.f32 %v6734, %v6822
  %6824 = vmatmul.bf16.gmra.mxu0 %v2848
  %v6825 = vpop.f32.mrf.mxu0
  %v6826 = vadd.f32 %v6737, %v6825
  %v6827 = vpop.f32.mrf.mxu0
  %v6828 = vadd.f32 %v6739, %v6827
  %6829 = vmatmul.bf16.gmra.mxu0 %v2850
  %v6830 = vpop.f32.mrf.mxu0
  %v6831 = vadd.f32 %v6742, %v6830
  %v6832 = vpop.f32.mrf.mxu0
  %v6833 = vadd.f32 %v6744, %v6832
  %6834 = vmatmul.bf16.gmra.mxu0 %v2852
  %v6835 = vpop.f32.mrf.mxu0
  %v6836 = vadd.f32 %v6747, %v6835
  %v6837 = vpop.f32.mrf.mxu0
  %v6838 = vadd.f32 %v6749, %v6837
  %6839 = vmatmul.bf16.gmra.mxu0 %v2854
  %v6840 = vpop.f32.mrf.mxu0
  %v6841 = vadd.f32 %v6752, %v6840
  %v6842 = vpop.f32.mrf.mxu0
  %v6843 = vadd.f32 %v6754, %v6842
  %6844 = vmatmul.bf16.gmra.mxu0 %v2856
  %v6845 = vpop.f32.mrf.mxu0
  %v6846 = vadd.f32 %v6757, %v6845
  %v6847 = vpop.f32.mrf.mxu0
  %v6848 = vadd.f32 %v6759, %v6847
  %6849 = vmatmul.bf16.gmra.mxu0 %v2858
  %v6850 = vpop.f32.mrf.mxu0
  %v6851 = vadd.f32 %v6762, %v6850
  %v6852 = vpop.f32.mrf.mxu0
  %v6853 = vadd.f32 %v6764, %v6852
  %6854 = vmatmul.bf16.gmra.mxu0 %v2860
  %v6855 = vpop.f32.mrf.mxu0
  %v6856 = vadd.f32 %v6767, %v6855
  %v6857 = vpop.f32.mrf.mxu0
  %v6858 = vadd.f32 %v6769, %v6857
  %6859 = vmatmul.bf16.gmra.mxu0 %v2862
  %v6860 = vpop.f32.mrf.mxu0
  %v6861 = vadd.f32 %v6772, %v6860
  %v6862 = vpop.f32.mrf.mxu0
  %v6863 = vadd.f32 %v6774, %v6862
  %6864 = vmatmul.bf16.gmra.mxu0 %v2864
  %v6865 = vpop.f32.mrf.mxu0
  %v6866 = vadd.f32 %v6777, %v6865
  %v6867 = vpop.f32.mrf.mxu0
  %v6868 = vadd.f32 %v6779, %v6867
  %6869 = vmatmul.bf16.gmra.mxu0 %v2866
  %v6870 = vpop.f32.mrf.mxu0
  %v6871 = vadd.f32 %v6782, %v6870
  %v6872 = vpop.f32.mrf.mxu0
  %v6873 = vadd.f32 %v6784, %v6872
  %6874 = vmatmul.bf16.gmra.mxu0 %v2868
  %v6875 = vpop.f32.mrf.mxu0
  %v6876 = vadd.f32 %v6787, %v6875
  %v6877 = vpop.f32.mrf.mxu0
  %v6878 = vadd.f32 %v6789, %v6877
  %6879 = vmatmul.bf16.gmra.mxu0 %v2870
  %v6880 = vpop.f32.mrf.mxu0
  %v6881 = vadd.f32 %v6792, %v6880
  %v6882 = vpop.f32.mrf.mxu0
  %v6883 = vadd.f32 %v6794, %v6882
  %6884 = vmatmul.bf16.gmra.mxu0 %v2872
  %v6885 = vpop.f32.mrf.mxu0
  %v6886 = vadd.f32 %v6797, %v6885
  %v6887 = vpop.f32.mrf.mxu0
  %v6888 = vadd.f32 %v6799, %v6887
  %6889 = vdwg.mxu0
  %6890 = vmatpush.bf16.msra.mxu0 %v3226
  %6891 = vmatpush.bf16.msra.mxu0 %v3222
  %6892 = vmatpush.bf16.msra.mxu0 %v3218
  %6893 = vmatpush.bf16.msra.mxu0 %v3214
  %6894 = vmatpush.bf16.msra.mxu0 %v3210
  %6895 = vmatpush.bf16.msra.mxu0 %v3206
  %6896 = vmatpush.bf16.msra.mxu0 %v3202
  %6897 = vmatpush.bf16.msra.mxu0 %v3198
  %6898 = vmatmul.bf16.gmra.mxu0 %v2841
  %v6899 = vpop.f32.mrf.mxu0
  %v6900 = vadd.f32 0.0, %v6899
  %v6901 = vpop.f32.mrf.mxu0
  %v6902 = vadd.f32 0.0, %v6901
  %6903 = vmatmul.bf16.gmra.mxu0 %v2843
  %v6904 = vpop.f32.mrf.mxu0
  %v6905 = vadd.f32 0.0, %v6904
  %v6906 = vpop.f32.mrf.mxu0
  %v6907 = vadd.f32 0.0, %v6906
  %6908 = vmatmul.bf16.gmra.mxu0 %v2845
  %v6909 = vpop.f32.mrf.mxu0
  %v6910 = vadd.f32 0.0, %v6909
  %v6911 = vpop.f32.mrf.mxu0
  %v6912 = vadd.f32 0.0, %v6911
  %6913 = vmatmul.bf16.gmra.mxu0 %v2847
  %v6914 = vpop.f32.mrf.mxu0
  %v6915 = vadd.f32 0.0, %v6914
  %v6916 = vpop.f32.mrf.mxu0
  %v6917 = vadd.f32 0.0, %v6916
  %6918 = vmatmul.bf16.gmra.mxu0 %v2849
  %v6919 = vpop.f32.mrf.mxu0
  %v6920 = vadd.f32 0.0, %v6919
  %v6921 = vpop.f32.mrf.mxu0
  %v6922 = vadd.f32 0.0, %v6921
  %6923 = vmatmul.bf16.gmra.mxu0 %v2851
  %v6924 = vpop.f32.mrf.mxu0
  %v6925 = vadd.f32 0.0, %v6924
  %v6926 = vpop.f32.mrf.mxu0
  %v6927 = vadd.f32 0.0, %v6926
  %6928 = vmatmul.bf16.gmra.mxu0 %v2853
  %v6929 = vpop.f32.mrf.mxu0
  %v6930 = vadd.f32 0.0, %v6929
  %v6931 = vpop.f32.mrf.mxu0
  %v6932 = vadd.f32 0.0, %v6931
  %6933 = vmatmul.bf16.gmra.mxu0 %v2855
  %v6934 = vpop.f32.mrf.mxu0
  %v6935 = vadd.f32 0.0, %v6934
  %v6936 = vpop.f32.mrf.mxu0
  %v6937 = vadd.f32 0.0, %v6936
  %6938 = vmatmul.bf16.gmra.mxu0 %v2857
  %v6939 = vpop.f32.mrf.mxu0
  %v6940 = vadd.f32 0.0, %v6939
  %v6941 = vpop.f32.mrf.mxu0
  %v6942 = vadd.f32 0.0, %v6941
  %6943 = vmatmul.bf16.gmra.mxu0 %v2859
  %v6944 = vpop.f32.mrf.mxu0
  %v6945 = vadd.f32 0.0, %v6944
  %v6946 = vpop.f32.mrf.mxu0
  %v6947 = vadd.f32 0.0, %v6946
  %6948 = vmatmul.bf16.gmra.mxu0 %v2861
  %v6949 = vpop.f32.mrf.mxu0
  %v6950 = vadd.f32 0.0, %v6949
  %v6951 = vpop.f32.mrf.mxu0
  %v6952 = vadd.f32 0.0, %v6951
  %6953 = vmatmul.bf16.gmra.mxu0 %v2863
  %v6954 = vpop.f32.mrf.mxu0
  %v6955 = vadd.f32 0.0, %v6954
  %v6956 = vpop.f32.mrf.mxu0
  %v6957 = vadd.f32 0.0, %v6956
  %6958 = vmatmul.bf16.gmra.mxu0 %v2865
  %v6959 = vpop.f32.mrf.mxu0
  %v6960 = vadd.f32 0.0, %v6959
  %v6961 = vpop.f32.mrf.mxu0
  %v6962 = vadd.f32 0.0, %v6961
  %6963 = vmatmul.bf16.gmra.mxu0 %v2867
  %v6964 = vpop.f32.mrf.mxu0
  %v6965 = vadd.f32 0.0, %v6964
  %v6966 = vpop.f32.mrf.mxu0
  %v6967 = vadd.f32 0.0, %v6966
  %6968 = vmatmul.bf16.gmra.mxu0 %v2869
  %v6969 = vpop.f32.mrf.mxu0
  %v6970 = vadd.f32 0.0, %v6969
  %v6971 = vpop.f32.mrf.mxu0
  %v6972 = vadd.f32 0.0, %v6971
  %6973 = vmatmul.bf16.gmra.mxu0 %v2871
  %v6974 = vpop.f32.mrf.mxu0
  %v6975 = vadd.f32 0.0, %v6974
  %v6976 = vpop.f32.mrf.mxu0
  %v6977 = vadd.f32 0.0, %v6976
  %6978 = vdwg.mxu0
  %6979 = vmatpush.bf16.msra.mxu0 %v3258
  %6980 = vmatpush.bf16.msra.mxu0 %v3254
  %6981 = vmatpush.bf16.msra.mxu0 %v3250
  %6982 = vmatpush.bf16.msra.mxu0 %v3246
  %6983 = vmatpush.bf16.msra.mxu0 %v3242
  %6984 = vmatpush.bf16.msra.mxu0 %v3238
  %6985 = vmatpush.bf16.msra.mxu0 %v3234
  %6986 = vmatpush.bf16.msra.mxu0 %v3230
  %6987 = vmatmul.bf16.gmra.mxu0 %v2842
  %v6988 = vpop.f32.mrf.mxu0
  %v6989 = vadd.f32 %v6900, %v6988
  %v6990 = vpop.f32.mrf.mxu0
  %v6991 = vadd.f32 %v6902, %v6990
  %6992 = vmatmul.bf16.gmra.mxu0 %v2844
  %v6993 = vpop.f32.mrf.mxu0
  %v6994 = vadd.f32 %v6905, %v6993
  %v6995 = vpop.f32.mrf.mxu0
  %v6996 = vadd.f32 %v6907, %v6995
  %6997 = vmatmul.bf16.gmra.mxu0 %v2846
  %v6998 = vpop.f32.mrf.mxu0
  %v6999 = vadd.f32 %v6910, %v6998
  %v7000 = vpop.f32.mrf.mxu0
  %v7001 = vadd.f32 %v6912, %v7000
  %7002 = vmatmul.bf16.gmra.mxu0 %v2848
  %v7003 = vpop.f32.mrf.mxu0
  %v7004 = vadd.f32 %v6915, %v7003
  %v7005 = vpop.f32.mrf.mxu0
  %v7006 = vadd.f32 %v6917, %v7005
  %7007 = vmatmul.bf16.gmra.mxu0 %v2850
  %v7008 = vpop.f32.mrf.mxu0
  %v7009 = vadd.f32 %v6920, %v7008
  %v7010 = vpop.f32.mrf.mxu0
  %v7011 = vadd.f32 %v6922, %v7010
  %7012 = vmatmul.bf16.gmra.mxu0 %v2852
  %v7013 = vpop.f32.mrf.mxu0
  %v7014 = vadd.f32 %v6925, %v7013
  %v7015 = vpop.f32.mrf.mxu0
  %v7016 = vadd.f32 %v6927, %v7015
  %7017 = vmatmul.bf16.gmra.mxu0 %v2854
  %v7018 = vpop.f32.mrf.mxu0
  %v7019 = vadd.f32 %v6930, %v7018
  %v7020 = vpop.f32.mrf.mxu0
  %v7021 = vadd.f32 %v6932, %v7020
  %7022 = vmatmul.bf16.gmra.mxu0 %v2856
  %v7023 = vpop.f32.mrf.mxu0
  %v7024 = vadd.f32 %v6935, %v7023
  %v7025 = vpop.f32.mrf.mxu0
  %v7026 = vadd.f32 %v6937, %v7025
  %7027 = vmatmul.bf16.gmra.mxu0 %v2858
  %v7028 = vpop.f32.mrf.mxu0
  %v7029 = vadd.f32 %v6940, %v7028
  %v7030 = vpop.f32.mrf.mxu0
  %v7031 = vadd.f32 %v6942, %v7030
  %7032 = vmatmul.bf16.gmra.mxu0 %v2860
  %v7033 = vpop.f32.mrf.mxu0
  %v7034 = vadd.f32 %v6945, %v7033
  %v7035 = vpop.f32.mrf.mxu0
  %v7036 = vadd.f32 %v6947, %v7035
  %7037 = vmatmul.bf16.gmra.mxu0 %v2862
  %v7038 = vpop.f32.mrf.mxu0
  %v7039 = vadd.f32 %v6950, %v7038
  %v7040 = vpop.f32.mrf.mxu0
  %v7041 = vadd.f32 %v6952, %v7040
  %7042 = vmatmul.bf16.gmra.mxu0 %v2864
  %v7043 = vpop.f32.mrf.mxu0
  %v7044 = vadd.f32 %v6955, %v7043
  %v7045 = vpop.f32.mrf.mxu0
  %v7046 = vadd.f32 %v6957, %v7045
  %7047 = vmatmul.bf16.gmra.mxu0 %v2866
  %v7048 = vpop.f32.mrf.mxu0
  %v7049 = vadd.f32 %v6960, %v7048
  %v7050 = vpop.f32.mrf.mxu0
  %v7051 = vadd.f32 %v6962, %v7050
  %7052 = vmatmul.bf16.gmra.mxu0 %v2868
  %v7053 = vpop.f32.mrf.mxu0
  %v7054 = vadd.f32 %v6965, %v7053
  %v7055 = vpop.f32.mrf.mxu0
  %v7056 = vadd.f32 %v6967, %v7055
  %7057 = vmatmul.bf16.gmra.mxu0 %v2870
  %v7058 = vpop.f32.mrf.mxu0
  %v7059 = vadd.f32 %v6970, %v7058
  %v7060 = vpop.f32.mrf.mxu0
  %v7061 = vadd.f32 %v6972, %v7060
  %7062 = vmatmul.bf16.gmra.mxu0 %v2872
  %v7063 = vpop.f32.mrf.mxu0
  %v7064 = vadd.f32 %v6975, %v7063
  %v7065 = vpop.f32.mrf.mxu0
  %v7066 = vadd.f32 %v6977, %v7065
  %7067 = vdwg.mxu0
  %7068 = vmatpush.bf16.msra.mxu0 %v4255
  %7069 = vmatpush.bf16.msra.mxu0 %v4251
  %7070 = vmatpush.bf16.msra.mxu0 %v4247
  %7071 = vmatpush.bf16.msra.mxu0 %v4243
  %7072 = vmatpush.bf16.msra.mxu0 %v4239
  %7073 = vmatpush.bf16.msra.mxu0 %v4235
  %7074 = vmatpush.bf16.msra.mxu0 %v4231
  %7075 = vmatpush.bf16.msra.mxu0 %v4227
  %7076 = vmatmul.bf16.gmra.mxu0 %v2809
  %v7077 = vpop.f32.mrf.mxu0
  %v7078 = vadd.f32 %v6455, %v7077
  %v7079 = vpop.f32.mrf.mxu0
  %v7080 = vadd.f32 %v6457, %v7079
  %7081 = vmatmul.bf16.gmra.mxu0 %v2811
  %v7082 = vpop.f32.mrf.mxu0
  %v7083 = vadd.f32 %v6460, %v7082
  %v7084 = vpop.f32.mrf.mxu0
  %v7085 = vadd.f32 %v6462, %v7084
  %7086 = vmatmul.bf16.gmra.mxu0 %v2813
  %v7087 = vpop.f32.mrf.mxu0
  %v7088 = vadd.f32 %v6465, %v7087
  %v7089 = vpop.f32.mrf.mxu0
  %v7090 = vadd.f32 %v6467, %v7089
  %7091 = vmatmul.bf16.gmra.mxu0 %v2815
  %v7092 = vpop.f32.mrf.mxu0
  %v7093 = vadd.f32 %v6470, %v7092
  %v7094 = vpop.f32.mrf.mxu0
  %v7095 = vadd.f32 %v6472, %v7094
  %7096 = vmatmul.bf16.gmra.mxu0 %v2817
  %v7097 = vpop.f32.mrf.mxu0
  %v7098 = vadd.f32 %v6475, %v7097
  %v7099 = vpop.f32.mrf.mxu0
  %v7100 = vadd.f32 %v6477, %v7099
  %7101 = vmatmul.bf16.gmra.mxu0 %v2819
  %v7102 = vpop.f32.mrf.mxu0
  %v7103 = vadd.f32 %v6480, %v7102
  %v7104 = vpop.f32.mrf.mxu0
  %v7105 = vadd.f32 %v6482, %v7104
  %7106 = vmatmul.bf16.gmra.mxu0 %v2821
  %v7107 = vpop.f32.mrf.mxu0
  %v7108 = vadd.f32 %v6485, %v7107
  %v7109 = vpop.f32.mrf.mxu0
  %v7110 = vadd.f32 %v6487, %v7109
  %7111 = vmatmul.bf16.gmra.mxu0 %v2823
  %v7112 = vpop.f32.mrf.mxu0
  %v7113 = vadd.f32 %v6490, %v7112
  %v7114 = vpop.f32.mrf.mxu0
  %v7115 = vadd.f32 %v6492, %v7114
  %7116 = vmatmul.bf16.gmra.mxu0 %v2825
  %v7117 = vpop.f32.mrf.mxu0
  %v7118 = vadd.f32 %v6495, %v7117
  %v7119 = vpop.f32.mrf.mxu0
  %v7120 = vadd.f32 %v6497, %v7119
  %7121 = vmatmul.bf16.gmra.mxu0 %v2827
  %v7122 = vpop.f32.mrf.mxu0
  %v7123 = vadd.f32 %v6500, %v7122
  %v7124 = vpop.f32.mrf.mxu0
  %v7125 = vadd.f32 %v6502, %v7124
  %7126 = vmatmul.bf16.gmra.mxu0 %v2829
  %v7127 = vpop.f32.mrf.mxu0
  %v7128 = vadd.f32 %v6505, %v7127
  %v7129 = vpop.f32.mrf.mxu0
  %v7130 = vadd.f32 %v6507, %v7129
  %7131 = vmatmul.bf16.gmra.mxu0 %v2831
  %v7132 = vpop.f32.mrf.mxu0
  %v7133 = vadd.f32 %v6510, %v7132
  %v7134 = vpop.f32.mrf.mxu0
  %v7135 = vadd.f32 %v6512, %v7134
  %7136 = vmatmul.bf16.gmra.mxu0 %v2833
  %v7137 = vpop.f32.mrf.mxu0
  %v7138 = vadd.f32 %v6515, %v7137
  %v7139 = vpop.f32.mrf.mxu0
  %v7140 = vadd.f32 %v6517, %v7139
  %7141 = vmatmul.bf16.gmra.mxu0 %v2835
  %v7142 = vpop.f32.mrf.mxu0
  %v7143 = vadd.f32 %v6520, %v7142
  %v7144 = vpop.f32.mrf.mxu0
  %v7145 = vadd.f32 %v6522, %v7144
  %7146 = vmatmul.bf16.gmra.mxu0 %v2837
  %v7147 = vpop.f32.mrf.mxu0
  %v7148 = vadd.f32 %v6525, %v7147
  %v7149 = vpop.f32.mrf.mxu0
  %v7150 = vadd.f32 %v6527, %v7149
  %7151 = vmatmul.bf16.gmra.mxu0 %v2839
  %v7152 = vpop.f32.mrf.mxu0
  %v7153 = vadd.f32 %v6530, %v7152
  %v7154 = vpop.f32.mrf.mxu0
  %v7155 = vadd.f32 %v6532, %v7154
  %7156 = vdwg.mxu0
  %7157 = vmatpush.bf16.msra.mxu0 %v4287
  %7158 = vmatpush.bf16.msra.mxu0 %v4283
  %7159 = vmatpush.bf16.msra.mxu0 %v4279
  %7160 = vmatpush.bf16.msra.mxu0 %v4275
  %7161 = vmatpush.bf16.msra.mxu0 %v4271
  %7162 = vmatpush.bf16.msra.mxu0 %v4267
  %7163 = vmatpush.bf16.msra.mxu0 %v4263
  %7164 = vmatpush.bf16.msra.mxu0 %v4259
  %7165 = vmatmul.bf16.gmra.mxu0 %v2810
  %v7166 = vpop.f32.mrf.mxu0
  %v7167 = vadd.f32 %v7078, %v7166
  %v7168 = vpop.f32.mrf.mxu0
  %v7169 = vadd.f32 %v7080, %v7168
  %7170 = vmatmul.bf16.gmra.mxu0 %v2812
  %v7171 = vpop.f32.mrf.mxu0
  %v7172 = vadd.f32 %v7083, %v7171
  %v7173 = vpop.f32.mrf.mxu0
  %v7174 = vadd.f32 %v7085, %v7173
  %7175 = vmatmul.bf16.gmra.mxu0 %v2814
  %v7176 = vpop.f32.mrf.mxu0
  %v7177 = vadd.f32 %v7088, %v7176
  %v7178 = vpop.f32.mrf.mxu0
  %v7179 = vadd.f32 %v7090, %v7178
  %7180 = vmatmul.bf16.gmra.mxu0 %v2816
  %v7181 = vpop.f32.mrf.mxu0
  %v7182 = vadd.f32 %v7093, %v7181
  %v7183 = vpop.f32.mrf.mxu0
  %v7184 = vadd.f32 %v7095, %v7183
  %7185 = vmatmul.bf16.gmra.mxu0 %v2818
  %v7186 = vpop.f32.mrf.mxu0
  %v7187 = vadd.f32 %v7098, %v7186
  %v7188 = vpop.f32.mrf.mxu0
  %v7189 = vadd.f32 %v7100, %v7188
  %7190 = vmatmul.bf16.gmra.mxu0 %v2820
  %v7191 = vpop.f32.mrf.mxu0
  %v7192 = vadd.f32 %v7103, %v7191
  %v7193 = vpop.f32.mrf.mxu0
  %v7194 = vadd.f32 %v7105, %v7193
  %7195 = vmatmul.bf16.gmra.mxu0 %v2822
  %v7196 = vpop.f32.mrf.mxu0
  %v7197 = vadd.f32 %v7108, %v7196
  %v7198 = vpop.f32.mrf.mxu0
  %v7199 = vadd.f32 %v7110, %v7198
  %7200 = vmatmul.bf16.gmra.mxu0 %v2824
  %v7201 = vpop.f32.mrf.mxu0
  %v7202 = vadd.f32 %v7113, %v7201
  %v7203 = vpop.f32.mrf.mxu0
  %v7204 = vadd.f32 %v7115, %v7203
  %7205 = vmatmul.bf16.gmra.mxu0 %v2826
  %v7206 = vpop.f32.mrf.mxu0
  %v7207 = vadd.f32 %v7118, %v7206
  %v7208 = vpop.f32.mrf.mxu0
  %v7209 = vadd.f32 %v7120, %v7208
  %7210 = vmatmul.bf16.gmra.mxu0 %v2828
  %v7211 = vpop.f32.mrf.mxu0
  %v7212 = vadd.f32 %v7123, %v7211
  %v7213 = vpop.f32.mrf.mxu0
  %v7214 = vadd.f32 %v7125, %v7213
  %7215 = vmatmul.bf16.gmra.mxu0 %v2830
  %v7216 = vpop.f32.mrf.mxu0
  %v7217 = vadd.f32 %v7128, %v7216
  %v7218 = vpop.f32.mrf.mxu0
  %v7219 = vadd.f32 %v7130, %v7218
  %7220 = vmatmul.bf16.gmra.mxu0 %v2832
  %v7221 = vpop.f32.mrf.mxu0
  %v7222 = vadd.f32 %v7133, %v7221
  %v7223 = vpop.f32.mrf.mxu0
  %v7224 = vadd.f32 %v7135, %v7223
  %7225 = vmatmul.bf16.gmra.mxu0 %v2834
  %v7226 = vpop.f32.mrf.mxu0
  %v7227 = vadd.f32 %v7138, %v7226
  %v7228 = vpop.f32.mrf.mxu0
  %v7229 = vadd.f32 %v7140, %v7228
  %7230 = vmatmul.bf16.gmra.mxu0 %v2836
  %v7231 = vpop.f32.mrf.mxu0
  %v7232 = vadd.f32 %v7143, %v7231
  %v7233 = vpop.f32.mrf.mxu0
  %v7234 = vadd.f32 %v7145, %v7233
  %7235 = vmatmul.bf16.gmra.mxu0 %v2838
  %v7236 = vpop.f32.mrf.mxu0
  %v7237 = vadd.f32 %v7148, %v7236
  %v7238 = vpop.f32.mrf.mxu0
  %v7239 = vadd.f32 %v7150, %v7238
  %7240 = vmatmul.bf16.gmra.mxu0 %v2840
  %v7241 = vpop.f32.mrf.mxu0
  %v7242 = vadd.f32 %v7153, %v7241
  %v7243 = vpop.f32.mrf.mxu0
  %v7244 = vadd.f32 %v7155, %v7243
  %7245 = vdwg.mxu0
  %7246 = vmatpush.bf16.msra.mxu0 %v4256
  %7247 = vmatpush.bf16.msra.mxu0 %v4252
  %7248 = vmatpush.bf16.msra.mxu0 %v4248
  %7249 = vmatpush.bf16.msra.mxu0 %v4244
  %7250 = vmatpush.bf16.msra.mxu0 %v4240
  %7251 = vmatpush.bf16.msra.mxu0 %v4236
  %7252 = vmatpush.bf16.msra.mxu0 %v4232
  %7253 = vmatpush.bf16.msra.mxu0 %v4228
  %7254 = vmatmul.bf16.gmra.mxu0 %v2809
  %v7255 = vpop.f32.mrf.mxu0
  %v7256 = vadd.f32 %v6633, %v7255
  %v7257 = vpop.f32.mrf.mxu0
  %v7258 = vadd.f32 %v6635, %v7257
  %7259 = vmatmul.bf16.gmra.mxu0 %v2811
  %v7260 = vpop.f32.mrf.mxu0
  %v7261 = vadd.f32 %v6638, %v7260
  %v7262 = vpop.f32.mrf.mxu0
  %v7263 = vadd.f32 %v6640, %v7262
  %7264 = vmatmul.bf16.gmra.mxu0 %v2813
  %v7265 = vpop.f32.mrf.mxu0
  %v7266 = vadd.f32 %v6643, %v7265
  %v7267 = vpop.f32.mrf.mxu0
  %v7268 = vadd.f32 %v6645, %v7267
  %7269 = vmatmul.bf16.gmra.mxu0 %v2815
  %v7270 = vpop.f32.mrf.mxu0
  %v7271 = vadd.f32 %v6648, %v7270
  %v7272 = vpop.f32.mrf.mxu0
  %v7273 = vadd.f32 %v6650, %v7272
  %7274 = vmatmul.bf16.gmra.mxu0 %v2817
  %v7275 = vpop.f32.mrf.mxu0
  %v7276 = vadd.f32 %v6653, %v7275
  %v7277 = vpop.f32.mrf.mxu0
  %v7278 = vadd.f32 %v6655, %v7277
  %7279 = vmatmul.bf16.gmra.mxu0 %v2819
  %v7280 = vpop.f32.mrf.mxu0
  %v7281 = vadd.f32 %v6658, %v7280
  %v7282 = vpop.f32.mrf.mxu0
  %v7283 = vadd.f32 %v6660, %v7282
  %7284 = vmatmul.bf16.gmra.mxu0 %v2821
  %v7285 = vpop.f32.mrf.mxu0
  %v7286 = vadd.f32 %v6663, %v7285
  %v7287 = vpop.f32.mrf.mxu0
  %v7288 = vadd.f32 %v6665, %v7287
  %7289 = vmatmul.bf16.gmra.mxu0 %v2823
  %v7290 = vpop.f32.mrf.mxu0
  %v7291 = vadd.f32 %v6668, %v7290
  %v7292 = vpop.f32.mrf.mxu0
  %v7293 = vadd.f32 %v6670, %v7292
  %7294 = vmatmul.bf16.gmra.mxu0 %v2825
  %v7295 = vpop.f32.mrf.mxu0
  %v7296 = vadd.f32 %v6673, %v7295
  %v7297 = vpop.f32.mrf.mxu0
  %v7298 = vadd.f32 %v6675, %v7297
  %7299 = vmatmul.bf16.gmra.mxu0 %v2827
  %v7300 = vpop.f32.mrf.mxu0
  %v7301 = vadd.f32 %v6678, %v7300
  %v7302 = vpop.f32.mrf.mxu0
  %v7303 = vadd.f32 %v6680, %v7302
  %7304 = vmatmul.bf16.gmra.mxu0 %v2829
  %v7305 = vpop.f32.mrf.mxu0
  %v7306 = vadd.f32 %v6683, %v7305
  %v7307 = vpop.f32.mrf.mxu0
  %v7308 = vadd.f32 %v6685, %v7307
  %7309 = vmatmul.bf16.gmra.mxu0 %v2831
  %v7310 = vpop.f32.mrf.mxu0
  %v7311 = vadd.f32 %v6688, %v7310
  %v7312 = vpop.f32.mrf.mxu0
  %v7313 = vadd.f32 %v6690, %v7312
  %7314 = vmatmul.bf16.gmra.mxu0 %v2833
  %v7315 = vpop.f32.mrf.mxu0
  %v7316 = vadd.f32 %v6693, %v7315
  %v7317 = vpop.f32.mrf.mxu0
  %v7318 = vadd.f32 %v6695, %v7317
  %7319 = vmatmul.bf16.gmra.mxu0 %v2835
  %v7320 = vpop.f32.mrf.mxu0
  %v7321 = vadd.f32 %v6698, %v7320
  %v7322 = vpop.f32.mrf.mxu0
  %v7323 = vadd.f32 %v6700, %v7322
  %7324 = vmatmul.bf16.gmra.mxu0 %v2837
  %v7325 = vpop.f32.mrf.mxu0
  %v7326 = vadd.f32 %v6703, %v7325
  %v7327 = vpop.f32.mrf.mxu0
  %v7328 = vadd.f32 %v6705, %v7327
  %7329 = vmatmul.bf16.gmra.mxu0 %v2839
  %v7330 = vpop.f32.mrf.mxu0
  %v7331 = vadd.f32 %v6708, %v7330
  %v7332 = vpop.f32.mrf.mxu0
  %v7333 = vadd.f32 %v6710, %v7332
  %7334 = vdwg.mxu0
  %7335 = vmatpush.bf16.msra.mxu0 %v4288
  %7336 = vmatpush.bf16.msra.mxu0 %v4284
  %7337 = vmatpush.bf16.msra.mxu0 %v4280
  %7338 = vmatpush.bf16.msra.mxu0 %v4276
  %7339 = vmatpush.bf16.msra.mxu0 %v4272
  %7340 = vmatpush.bf16.msra.mxu0 %v4268
  %7341 = vmatpush.bf16.msra.mxu0 %v4264
  %7342 = vmatpush.bf16.msra.mxu0 %v4260
  %7343 = vmatmul.bf16.gmra.mxu0 %v2810
  %v7344 = vpop.f32.mrf.mxu0
  %v7345 = vadd.f32 %v7256, %v7344
  %v7346 = vpop.f32.mrf.mxu0
  %v7347 = vadd.f32 %v7258, %v7346
  %7348 = vmatmul.bf16.gmra.mxu0 %v2812
  %v7349 = vpop.f32.mrf.mxu0
  %v7350 = vadd.f32 %v7261, %v7349
  %v7351 = vpop.f32.mrf.mxu0
  %v7352 = vadd.f32 %v7263, %v7351
  %7353 = vmatmul.bf16.gmra.mxu0 %v2814
  %v7354 = vpop.f32.mrf.mxu0
  %v7355 = vadd.f32 %v7266, %v7354
  %v7356 = vpop.f32.mrf.mxu0
  %v7357 = vadd.f32 %v7268, %v7356
  %7358 = vmatmul.bf16.gmra.mxu0 %v2816
  %v7359 = vpop.f32.mrf.mxu0
  %v7360 = vadd.f32 %v7271, %v7359
  %v7361 = vpop.f32.mrf.mxu0
  %v7362 = vadd.f32 %v7273, %v7361
  %7363 = vmatmul.bf16.gmra.mxu0 %v2818
  %v7364 = vpop.f32.mrf.mxu0
  %v7365 = vadd.f32 %v7276, %v7364
  %v7366 = vpop.f32.mrf.mxu0
  %v7367 = vadd.f32 %v7278, %v7366
  %7368 = vmatmul.bf16.gmra.mxu0 %v2820
  %v7369 = vpop.f32.mrf.mxu0
  %v7370 = vadd.f32 %v7281, %v7369
  %v7371 = vpop.f32.mrf.mxu0
  %v7372 = vadd.f32 %v7283, %v7371
  %7373 = vmatmul.bf16.gmra.mxu0 %v2822
  %v7374 = vpop.f32.mrf.mxu0
  %v7375 = vadd.f32 %v7286, %v7374
  %v7376 = vpop.f32.mrf.mxu0
  %v7377 = vadd.f32 %v7288, %v7376
  %7378 = vmatmul.bf16.gmra.mxu0 %v2824
  %v7379 = vpop.f32.mrf.mxu0
  %v7380 = vadd.f32 %v7291, %v7379
  %v7381 = vpop.f32.mrf.mxu0
  %v7382 = vadd.f32 %v7293, %v7381
  %7383 = vmatmul.bf16.gmra.mxu0 %v2826
  %v7384 = vpop.f32.mrf.mxu0
  %v7385 = vadd.f32 %v7296, %v7384
  %v7386 = vpop.f32.mrf.mxu0
  %v7387 = vadd.f32 %v7298, %v7386
  %7388 = vmatmul.bf16.gmra.mxu0 %v2828
  %v7389 = vpop.f32.mrf.mxu0
  %v7390 = vadd.f32 %v7301, %v7389
  %v7391 = vpop.f32.mrf.mxu0
  %v7392 = vadd.f32 %v7303, %v7391
  %7393 = vmatmul.bf16.gmra.mxu0 %v2830
  %v7394 = vpop.f32.mrf.mxu0
  %v7395 = vadd.f32 %v7306, %v7394
  %v7396 = vpop.f32.mrf.mxu0
  %v7397 = vadd.f32 %v7308, %v7396
  %7398 = vmatmul.bf16.gmra.mxu0 %v2832
  %v7399 = vpop.f32.mrf.mxu0
  %v7400 = vadd.f32 %v7311, %v7399
  %v7401 = vpop.f32.mrf.mxu0
  %v7402 = vadd.f32 %v7313, %v7401
  %7403 = vmatmul.bf16.gmra.mxu0 %v2834
  %v7404 = vpop.f32.mrf.mxu0
  %v7405 = vadd.f32 %v7316, %v7404
  %v7406 = vpop.f32.mrf.mxu0
  %v7407 = vadd.f32 %v7318, %v7406
  %7408 = vmatmul.bf16.gmra.mxu0 %v2836
  %v7409 = vpop.f32.mrf.mxu0
  %v7410 = vadd.f32 %v7321, %v7409
  %v7411 = vpop.f32.mrf.mxu0
  %v7412 = vadd.f32 %v7323, %v7411
  %7413 = vmatmul.bf16.gmra.mxu0 %v2838
  %v7414 = vpop.f32.mrf.mxu0
  %v7415 = vadd.f32 %v7326, %v7414
  %v7416 = vpop.f32.mrf.mxu0
  %v7417 = vadd.f32 %v7328, %v7416
  %7418 = vmatmul.bf16.gmra.mxu0 %v2840
  %v7419 = vpop.f32.mrf.mxu0
  %v7420 = vadd.f32 %v7331, %v7419
  %v7421 = vpop.f32.mrf.mxu0
  %v7422 = vadd.f32 %v7333, %v7421
  %7423 = vdwg.mxu0
  %7424 = vmatpush.bf16.msra.mxu0 %v4257
  %7425 = vmatpush.bf16.msra.mxu0 %v4253
  %7426 = vmatpush.bf16.msra.mxu0 %v4249
  %7427 = vmatpush.bf16.msra.mxu0 %v4245
  %7428 = vmatpush.bf16.msra.mxu0 %v4241
  %7429 = vmatpush.bf16.msra.mxu0 %v4237
  %7430 = vmatpush.bf16.msra.mxu0 %v4233
  %7431 = vmatpush.bf16.msra.mxu0 %v4229
  %7432 = vmatmul.bf16.gmra.mxu0 %v2809
  %v7433 = vpop.f32.mrf.mxu0
  %v7434 = vadd.f32 %v6811, %v7433
  %v7435 = vpop.f32.mrf.mxu0
  %v7436 = vadd.f32 %v6813, %v7435
  %7437 = vmatmul.bf16.gmra.mxu0 %v2811
  %v7438 = vpop.f32.mrf.mxu0
  %v7439 = vadd.f32 %v6816, %v7438
  %v7440 = vpop.f32.mrf.mxu0
  %v7441 = vadd.f32 %v6818, %v7440
  %7442 = vmatmul.bf16.gmra.mxu0 %v2813
  %v7443 = vpop.f32.mrf.mxu0
  %v7444 = vadd.f32 %v6821, %v7443
  %v7445 = vpop.f32.mrf.mxu0
  %v7446 = vadd.f32 %v6823, %v7445
  %7447 = vmatmul.bf16.gmra.mxu0 %v2815
  %v7448 = vpop.f32.mrf.mxu0
  %v7449 = vadd.f32 %v6826, %v7448
  %v7450 = vpop.f32.mrf.mxu0
  %v7451 = vadd.f32 %v6828, %v7450
  %7452 = vmatmul.bf16.gmra.mxu0 %v2817
  %v7453 = vpop.f32.mrf.mxu0
  %v7454 = vadd.f32 %v6831, %v7453
  %v7455 = vpop.f32.mrf.mxu0
  %v7456 = vadd.f32 %v6833, %v7455
  %7457 = vmatmul.bf16.gmra.mxu0 %v2819
  %v7458 = vpop.f32.mrf.mxu0
  %v7459 = vadd.f32 %v6836, %v7458
  %v7460 = vpop.f32.mrf.mxu0
  %v7461 = vadd.f32 %v6838, %v7460
  %7462 = vmatmul.bf16.gmra.mxu0 %v2821
  %v7463 = vpop.f32.mrf.mxu0
  %v7464 = vadd.f32 %v6841, %v7463
  %v7465 = vpop.f32.mrf.mxu0
  %v7466 = vadd.f32 %v6843, %v7465
  %7467 = vmatmul.bf16.gmra.mxu0 %v2823
  %v7468 = vpop.f32.mrf.mxu0
  %v7469 = vadd.f32 %v6846, %v7468
  %v7470 = vpop.f32.mrf.mxu0
  %v7471 = vadd.f32 %v6848, %v7470
  %7472 = vmatmul.bf16.gmra.mxu0 %v2825
  %v7473 = vpop.f32.mrf.mxu0
  %v7474 = vadd.f32 %v6851, %v7473
  %v7475 = vpop.f32.mrf.mxu0
  %v7476 = vadd.f32 %v6853, %v7475
  %7477 = vmatmul.bf16.gmra.mxu0 %v2827
  %v7478 = vpop.f32.mrf.mxu0
  %v7479 = vadd.f32 %v6856, %v7478
  %v7480 = vpop.f32.mrf.mxu0
  %v7481 = vadd.f32 %v6858, %v7480
  %7482 = vmatmul.bf16.gmra.mxu0 %v2829
  %v7483 = vpop.f32.mrf.mxu0
  %v7484 = vadd.f32 %v6861, %v7483
  %v7485 = vpop.f32.mrf.mxu0
  %v7486 = vadd.f32 %v6863, %v7485
  %7487 = vmatmul.bf16.gmra.mxu0 %v2831
  %v7488 = vpop.f32.mrf.mxu0
  %v7489 = vadd.f32 %v6866, %v7488
  %v7490 = vpop.f32.mrf.mxu0
  %v7491 = vadd.f32 %v6868, %v7490
  %7492 = vmatmul.bf16.gmra.mxu0 %v2833
  %v7493 = vpop.f32.mrf.mxu0
  %v7494 = vadd.f32 %v6871, %v7493
  %v7495 = vpop.f32.mrf.mxu0
  %v7496 = vadd.f32 %v6873, %v7495
  %7497 = vmatmul.bf16.gmra.mxu0 %v2835
  %v7498 = vpop.f32.mrf.mxu0
  %v7499 = vadd.f32 %v6876, %v7498
  %v7500 = vpop.f32.mrf.mxu0
  %v7501 = vadd.f32 %v6878, %v7500
  %7502 = vmatmul.bf16.gmra.mxu0 %v2837
  %v7503 = vpop.f32.mrf.mxu0
  %v7504 = vadd.f32 %v6881, %v7503
  %v7505 = vpop.f32.mrf.mxu0
  %v7506 = vadd.f32 %v6883, %v7505
  %7507 = vmatmul.bf16.gmra.mxu0 %v2839
  %v7508 = vpop.f32.mrf.mxu0
  %v7509 = vadd.f32 %v6886, %v7508
  %v7510 = vpop.f32.mrf.mxu0
  %v7511 = vadd.f32 %v6888, %v7510
  %7512 = vdwg.mxu0
  %7513 = vmatpush.bf16.msra.mxu0 %v4289
  %7514 = vmatpush.bf16.msra.mxu0 %v4285
  %7515 = vmatpush.bf16.msra.mxu0 %v4281
  %7516 = vmatpush.bf16.msra.mxu0 %v4277
  %7517 = vmatpush.bf16.msra.mxu0 %v4273
  %7518 = vmatpush.bf16.msra.mxu0 %v4269
  %7519 = vmatpush.bf16.msra.mxu0 %v4265
  %7520 = vmatpush.bf16.msra.mxu0 %v4261
  %7521 = vmatmul.bf16.gmra.mxu0 %v2810
  %v7522 = vpop.f32.mrf.mxu0
  %v7523 = vadd.f32 %v7434, %v7522
  %v7524 = vpop.f32.mrf.mxu0
  %v7525 = vadd.f32 %v7436, %v7524
  %7526 = vmatmul.bf16.gmra.mxu0 %v2812
  %v7527 = vpop.f32.mrf.mxu0
  %v7528 = vadd.f32 %v7439, %v7527
  %v7529 = vpop.f32.mrf.mxu0
  %v7530 = vadd.f32 %v7441, %v7529
  %7531 = vmatmul.bf16.gmra.mxu0 %v2814
  %v7532 = vpop.f32.mrf.mxu0
  %v7533 = vadd.f32 %v7444, %v7532
  %v7534 = vpop.f32.mrf.mxu0
  %v7535 = vadd.f32 %v7446, %v7534
  %7536 = vmatmul.bf16.gmra.mxu0 %v2816
  %v7537 = vpop.f32.mrf.mxu0
  %v7538 = vadd.f32 %v7449, %v7537
  %v7539 = vpop.f32.mrf.mxu0
  %v7540 = vadd.f32 %v7451, %v7539
  %7541 = vmatmul.bf16.gmra.mxu0 %v2818
  %v7542 = vpop.f32.mrf.mxu0
  %v7543 = vadd.f32 %v7454, %v7542
  %v7544 = vpop.f32.mrf.mxu0
  %v7545 = vadd.f32 %v7456, %v7544
  %7546 = vmatmul.bf16.gmra.mxu0 %v2820
  %v7547 = vpop.f32.mrf.mxu0
  %v7548 = vadd.f32 %v7459, %v7547
  %v7549 = vpop.f32.mrf.mxu0
  %v7550 = vadd.f32 %v7461, %v7549
  %7551 = vmatmul.bf16.gmra.mxu0 %v2822
  %v7552 = vpop.f32.mrf.mxu0
  %v7553 = vadd.f32 %v7464, %v7552
  %v7554 = vpop.f32.mrf.mxu0
  %v7555 = vadd.f32 %v7466, %v7554
  %7556 = vmatmul.bf16.gmra.mxu0 %v2824
  %v7557 = vpop.f32.mrf.mxu0
  %v7558 = vadd.f32 %v7469, %v7557
  %v7559 = vpop.f32.mrf.mxu0
  %v7560 = vadd.f32 %v7471, %v7559
  %7561 = vmatmul.bf16.gmra.mxu0 %v2826
  %v7562 = vpop.f32.mrf.mxu0
  %v7563 = vadd.f32 %v7474, %v7562
  %v7564 = vpop.f32.mrf.mxu0
  %v7565 = vadd.f32 %v7476, %v7564
  %7566 = vmatmul.bf16.gmra.mxu0 %v2828
  %v7567 = vpop.f32.mrf.mxu0
  %v7568 = vadd.f32 %v7479, %v7567
  %v7569 = vpop.f32.mrf.mxu0
  %v7570 = vadd.f32 %v7481, %v7569
  %7571 = vmatmul.bf16.gmra.mxu0 %v2830
  %v7572 = vpop.f32.mrf.mxu0
  %v7573 = vadd.f32 %v7484, %v7572
  %v7574 = vpop.f32.mrf.mxu0
  %v7575 = vadd.f32 %v7486, %v7574
  %7576 = vmatmul.bf16.gmra.mxu0 %v2832
  %v7577 = vpop.f32.mrf.mxu0
  %v7578 = vadd.f32 %v7489, %v7577
  %v7579 = vpop.f32.mrf.mxu0
  %v7580 = vadd.f32 %v7491, %v7579
  %7581 = vmatmul.bf16.gmra.mxu0 %v2834
  %v7582 = vpop.f32.mrf.mxu0
  %v7583 = vadd.f32 %v7494, %v7582
  %v7584 = vpop.f32.mrf.mxu0
  %v7585 = vadd.f32 %v7496, %v7584
  %7586 = vmatmul.bf16.gmra.mxu0 %v2836
  %v7587 = vpop.f32.mrf.mxu0
  %v7588 = vadd.f32 %v7499, %v7587
  %v7589 = vpop.f32.mrf.mxu0
  %v7590 = vadd.f32 %v7501, %v7589
  %7591 = vmatmul.bf16.gmra.mxu0 %v2838
  %v7592 = vpop.f32.mrf.mxu0
  %v7593 = vadd.f32 %v7504, %v7592
  %v7594 = vpop.f32.mrf.mxu0
  %v7595 = vadd.f32 %v7506, %v7594
  %7596 = vmatmul.bf16.gmra.mxu0 %v2840
  %v7597 = vpop.f32.mrf.mxu0
  %v7598 = vadd.f32 %v7509, %v7597
  %v7599 = vpop.f32.mrf.mxu0
  %v7600 = vadd.f32 %v7511, %v7599
  %7601 = vdwg.mxu0
  %7602 = vmatpush.bf16.msra.mxu0 %v4258
  %7603 = vmatpush.bf16.msra.mxu0 %v4254
  %7604 = vmatpush.bf16.msra.mxu0 %v4250
  %7605 = vmatpush.bf16.msra.mxu0 %v4246
  %7606 = vmatpush.bf16.msra.mxu0 %v4242
  %7607 = vmatpush.bf16.msra.mxu0 %v4238
  %7608 = vmatpush.bf16.msra.mxu0 %v4234
  %7609 = vmatpush.bf16.msra.mxu0 %v4230
  %7610 = vmatmul.bf16.gmra.mxu0 %v2809
  %v7611 = vpop.f32.mrf.mxu0
  %v7612 = vadd.f32 %v6989, %v7611
  %v7613 = vpop.f32.mrf.mxu0
  %v7614 = vadd.f32 %v6991, %v7613
  %7615 = vmatmul.bf16.gmra.mxu0 %v2811
  %v7616 = vpop.f32.mrf.mxu0
  %v7617 = vadd.f32 %v6994, %v7616
  %v7618 = vpop.f32.mrf.mxu0
  %v7619 = vadd.f32 %v6996, %v7618
  %7620 = vmatmul.bf16.gmra.mxu0 %v2813
  %v7621 = vpop.f32.mrf.mxu0
  %v7622 = vadd.f32 %v6999, %v7621
  %v7623 = vpop.f32.mrf.mxu0
  %v7624 = vadd.f32 %v7001, %v7623
  %7625 = vmatmul.bf16.gmra.mxu0 %v2815
  %v7626 = vpop.f32.mrf.mxu0
  %v7627 = vadd.f32 %v7004, %v7626
  %v7628 = vpop.f32.mrf.mxu0
  %v7629 = vadd.f32 %v7006, %v7628
  %7630 = vmatmul.bf16.gmra.mxu0 %v2817
  %v7631 = vpop.f32.mrf.mxu0
  %v7632 = vadd.f32 %v7009, %v7631
  %v7633 = vpop.f32.mrf.mxu0
  %v7634 = vadd.f32 %v7011, %v7633
  %7635 = vmatmul.bf16.gmra.mxu0 %v2819
  %v7636 = vpop.f32.mrf.mxu0
  %v7637 = vadd.f32 %v7014, %v7636
  %v7638 = vpop.f32.mrf.mxu0
  %v7639 = vadd.f32 %v7016, %v7638
  %7640 = vmatmul.bf16.gmra.mxu0 %v2821
  %v7641 = vpop.f32.mrf.mxu0
  %v7642 = vadd.f32 %v7019, %v7641
  %v7643 = vpop.f32.mrf.mxu0
  %v7644 = vadd.f32 %v7021, %v7643
  %7645 = vmatmul.bf16.gmra.mxu0 %v2823
  %v7646 = vpop.f32.mrf.mxu0
  %v7647 = vadd.f32 %v7024, %v7646
  %v7648 = vpop.f32.mrf.mxu0
  %v7649 = vadd.f32 %v7026, %v7648
  %7650 = vmatmul.bf16.gmra.mxu0 %v2825
  %v7651 = vpop.f32.mrf.mxu0
  %v7652 = vadd.f32 %v7029, %v7651
  %v7653 = vpop.f32.mrf.mxu0
  %v7654 = vadd.f32 %v7031, %v7653
  %7655 = vmatmul.bf16.gmra.mxu0 %v2827
  %v7656 = vpop.f32.mrf.mxu0
  %v7657 = vadd.f32 %v7034, %v7656
  %v7658 = vpop.f32.mrf.mxu0
  %v7659 = vadd.f32 %v7036, %v7658
  %7660 = vmatmul.bf16.gmra.mxu0 %v2829
  %v7661 = vpop.f32.mrf.mxu0
  %v7662 = vadd.f32 %v7039, %v7661
  %v7663 = vpop.f32.mrf.mxu0
  %v7664 = vadd.f32 %v7041, %v7663
  %7665 = vmatmul.bf16.gmra.mxu0 %v2831
  %v7666 = vpop.f32.mrf.mxu0
  %v7667 = vadd.f32 %v7044, %v7666
  %v7668 = vpop.f32.mrf.mxu0
  %v7669 = vadd.f32 %v7046, %v7668
  %7670 = vmatmul.bf16.gmra.mxu0 %v2833
  %v7671 = vpop.f32.mrf.mxu0
  %v7672 = vadd.f32 %v7049, %v7671
  %v7673 = vpop.f32.mrf.mxu0
  %v7674 = vadd.f32 %v7051, %v7673
  %7675 = vmatmul.bf16.gmra.mxu0 %v2835
  %v7676 = vpop.f32.mrf.mxu0
  %v7677 = vadd.f32 %v7054, %v7676
  %v7678 = vpop.f32.mrf.mxu0
  %v7679 = vadd.f32 %v7056, %v7678
  %7680 = vmatmul.bf16.gmra.mxu0 %v2837
  %v7681 = vpop.f32.mrf.mxu0
  %v7682 = vadd.f32 %v7059, %v7681
  %v7683 = vpop.f32.mrf.mxu0
  %v7684 = vadd.f32 %v7061, %v7683
  %7685 = vmatmul.bf16.gmra.mxu0 %v2839
  %v7686 = vpop.f32.mrf.mxu0
  %v7687 = vadd.f32 %v7064, %v7686
  %v7688 = vpop.f32.mrf.mxu0
  %v7689 = vadd.f32 %v7066, %v7688
  %7690 = vdwg.mxu0
  %7691 = vmatpush.bf16.msra.mxu0 %v4290
  %7692 = vmatpush.bf16.msra.mxu0 %v4286
  %7693 = vmatpush.bf16.msra.mxu0 %v4282
  %7694 = vmatpush.bf16.msra.mxu0 %v4278
  %7695 = vmatpush.bf16.msra.mxu0 %v4274
  %7696 = vmatpush.bf16.msra.mxu0 %v4270
  %7697 = vmatpush.bf16.msra.mxu0 %v4266
  %7698 = vmatpush.bf16.msra.mxu0 %v4262
  %7699 = vmatmul.bf16.gmra.mxu0 %v2810
  %v7700 = vpop.f32.mrf.mxu0
  %v7701 = vadd.f32 %v7612, %v7700
  %v7702 = vpop.f32.mrf.mxu0
  %v7703 = vadd.f32 %v7614, %v7702
  %7704 = vmatmul.bf16.gmra.mxu0 %v2812
  %v7705 = vpop.f32.mrf.mxu0
  %v7706 = vadd.f32 %v7617, %v7705
  %v7707 = vpop.f32.mrf.mxu0
  %v7708 = vadd.f32 %v7619, %v7707
  %7709 = vmatmul.bf16.gmra.mxu0 %v2814
  %v7710 = vpop.f32.mrf.mxu0
  %v7711 = vadd.f32 %v7622, %v7710
  %v7712 = vpop.f32.mrf.mxu0
  %v7713 = vadd.f32 %v7624, %v7712
  %7714 = vmatmul.bf16.gmra.mxu0 %v2816
  %v7715 = vpop.f32.mrf.mxu0
  %v7716 = vadd.f32 %v7627, %v7715
  %v7717 = vpop.f32.mrf.mxu0
  %v7718 = vadd.f32 %v7629, %v7717
  %7719 = vmatmul.bf16.gmra.mxu0 %v2818
  %v7720 = vpop.f32.mrf.mxu0
  %v7721 = vadd.f32 %v7632, %v7720
  %v7722 = vpop.f32.mrf.mxu0
  %v7723 = vadd.f32 %v7634, %v7722
  %7724 = vmatmul.bf16.gmra.mxu0 %v2820
  %v7725 = vpop.f32.mrf.mxu0
  %v7726 = vadd.f32 %v7637, %v7725
  %v7727 = vpop.f32.mrf.mxu0
  %v7728 = vadd.f32 %v7639, %v7727
  %7729 = vmatmul.bf16.gmra.mxu0 %v2822
  %v7730 = vpop.f32.mrf.mxu0
  %v7731 = vadd.f32 %v7642, %v7730
  %v7732 = vpop.f32.mrf.mxu0
  %v7733 = vadd.f32 %v7644, %v7732
  %7734 = vmatmul.bf16.gmra.mxu0 %v2824
  %v7735 = vpop.f32.mrf.mxu0
  %v7736 = vadd.f32 %v7647, %v7735
  %v7737 = vpop.f32.mrf.mxu0
  %v7738 = vadd.f32 %v7649, %v7737
  %7739 = vmatmul.bf16.gmra.mxu0 %v2826
  %v7740 = vpop.f32.mrf.mxu0
  %v7741 = vadd.f32 %v7652, %v7740
  %v7742 = vpop.f32.mrf.mxu0
  %v7743 = vadd.f32 %v7654, %v7742
  %7744 = vmatmul.bf16.gmra.mxu0 %v2828
  %v7745 = vpop.f32.mrf.mxu0
  %v7746 = vadd.f32 %v7657, %v7745
  %v7747 = vpop.f32.mrf.mxu0
  %v7748 = vadd.f32 %v7659, %v7747
  %7749 = vmatmul.bf16.gmra.mxu0 %v2830
  %v7750 = vpop.f32.mrf.mxu0
  %v7751 = vadd.f32 %v7662, %v7750
  %v7752 = vpop.f32.mrf.mxu0
  %v7753 = vadd.f32 %v7664, %v7752
  %7754 = vmatmul.bf16.gmra.mxu0 %v2832
  %v7755 = vpop.f32.mrf.mxu0
  %v7756 = vadd.f32 %v7667, %v7755
  %v7757 = vpop.f32.mrf.mxu0
  %v7758 = vadd.f32 %v7669, %v7757
  %7759 = vmatmul.bf16.gmra.mxu0 %v2834
  %v7760 = vpop.f32.mrf.mxu0
  %v7761 = vadd.f32 %v7672, %v7760
  %v7762 = vpop.f32.mrf.mxu0
  %v7763 = vadd.f32 %v7674, %v7762
  %7764 = vmatmul.bf16.gmra.mxu0 %v2836
  %v7765 = vpop.f32.mrf.mxu0
  %v7766 = vadd.f32 %v7677, %v7765
  %v7767 = vpop.f32.mrf.mxu0
  %v7768 = vadd.f32 %v7679, %v7767
  %7769 = vmatmul.bf16.gmra.mxu0 %v2838
  %v7770 = vpop.f32.mrf.mxu0
  %v7771 = vadd.f32 %v7682, %v7770
  %v7772 = vpop.f32.mrf.mxu0
  %v7773 = vadd.f32 %v7684, %v7772
  %7774 = vmatmul.bf16.gmra.mxu0 %v2840
  %v7775 = vpop.f32.mrf.mxu0
  %v7776 = vadd.f32 %v7687, %v7775
  %v7777 = vpop.f32.mrf.mxu0
  %v7778 = vadd.f32 %v7689, %v7777
  %7779 = vdwg.mxu0
  %7780 = vmatpush.bf16.msra.mxu0 %v5352
  %7781 = vmatpush.bf16.msra.mxu0 %v5348
  %7782 = vmatpush.bf16.msra.mxu0 %v5344
  %7783 = vmatpush.bf16.msra.mxu0 %v5340
  %7784 = vmatpush.bf16.msra.mxu0 %v5336
  %7785 = vmatpush.bf16.msra.mxu0 %v5332
  %7786 = vmatpush.bf16.msra.mxu0 %v5328
  %7787 = vmatpush.bf16.msra.mxu0 %v5324
  %7788 = vmatmul.bf16.gmra.mxu0 %v2813
  %v7789 = vpop.f32.mrf.mxu0
  %v7790 = vadd.f32 0.0, %v7789
  %v7791 = vpop.f32.mrf.mxu0
  %v7792 = vadd.f32 0.0, %v7791
  %7793 = vmatmul.bf16.gmra.mxu0 %v2815
  %v7794 = vpop.f32.mrf.mxu0
  %v7795 = vadd.f32 0.0, %v7794
  %v7796 = vpop.f32.mrf.mxu0
  %v7797 = vadd.f32 0.0, %v7796
  %7798 = vmatmul.bf16.gmra.mxu0 %v2817
  %v7799 = vpop.f32.mrf.mxu0
  %v7800 = vadd.f32 0.0, %v7799
  %v7801 = vpop.f32.mrf.mxu0
  %v7802 = vadd.f32 0.0, %v7801
  %7803 = vmatmul.bf16.gmra.mxu0 %v2819
  %v7804 = vpop.f32.mrf.mxu0
  %v7805 = vadd.f32 0.0, %v7804
  %v7806 = vpop.f32.mrf.mxu0
  %v7807 = vadd.f32 0.0, %v7806
  %7808 = vmatmul.bf16.gmra.mxu0 %v2821
  %v7809 = vpop.f32.mrf.mxu0
  %v7810 = vadd.f32 0.0, %v7809
  %v7811 = vpop.f32.mrf.mxu0
  %v7812 = vadd.f32 0.0, %v7811
  %7813 = vmatmul.bf16.gmra.mxu0 %v2823
  %v7814 = vpop.f32.mrf.mxu0
  %v7815 = vadd.f32 0.0, %v7814
  %v7816 = vpop.f32.mrf.mxu0
  %v7817 = vadd.f32 0.0, %v7816
  %7818 = vmatmul.bf16.gmra.mxu0 %v2825
  %v7819 = vpop.f32.mrf.mxu0
  %v7820 = vadd.f32 0.0, %v7819
  %v7821 = vpop.f32.mrf.mxu0
  %v7822 = vadd.f32 0.0, %v7821
  %7823 = vmatmul.bf16.gmra.mxu0 %v2827
  %v7824 = vpop.f32.mrf.mxu0
  %v7825 = vadd.f32 0.0, %v7824
  %v7826 = vpop.f32.mrf.mxu0
  %v7827 = vadd.f32 0.0, %v7826
  %7828 = vmatmul.bf16.gmra.mxu0 %v2829
  %v7829 = vpop.f32.mrf.mxu0
  %v7830 = vadd.f32 0.0, %v7829
  %v7831 = vpop.f32.mrf.mxu0
  %v7832 = vadd.f32 0.0, %v7831
  %7833 = vmatmul.bf16.gmra.mxu0 %v2831
  %v7834 = vpop.f32.mrf.mxu0
  %v7835 = vadd.f32 0.0, %v7834
  %v7836 = vpop.f32.mrf.mxu0
  %v7837 = vadd.f32 0.0, %v7836
  %7838 = vmatmul.bf16.gmra.mxu0 %v2833
  %v7839 = vpop.f32.mrf.mxu0
  %v7840 = vadd.f32 0.0, %v7839
  %v7841 = vpop.f32.mrf.mxu0
  %v7842 = vadd.f32 0.0, %v7841
  %7843 = vmatmul.bf16.gmra.mxu0 %v2835
  %v7844 = vpop.f32.mrf.mxu0
  %v7845 = vadd.f32 0.0, %v7844
  %v7846 = vpop.f32.mrf.mxu0
  %v7847 = vadd.f32 0.0, %v7846
  %7848 = vmatmul.bf16.gmra.mxu0 %v2837
  %v7849 = vpop.f32.mrf.mxu0
  %v7850 = vadd.f32 0.0, %v7849
  %v7851 = vpop.f32.mrf.mxu0
  %v7852 = vadd.f32 0.0, %v7851
  %7853 = vmatmul.bf16.gmra.mxu0 %v2839
  %v7854 = vpop.f32.mrf.mxu0
  %v7855 = vadd.f32 0.0, %v7854
  %v7856 = vpop.f32.mrf.mxu0
  %v7857 = vadd.f32 0.0, %v7856
  %7858 = vmatmul.bf16.gmra.mxu0 %v2873
  %v7859 = vpop.f32.mrf.mxu0
  %v7860 = vadd.f32 0.0, %v7859
  %v7861 = vpop.f32.mrf.mxu0
  %v7862 = vadd.f32 0.0, %v7861
  %7863 = vmatmul.bf16.gmra.mxu0 %v2873
  %v7864 = vpop.f32.mrf.mxu0
  %v7865 = vadd.f32 0.0, %v7864
  %v7866 = vpop.f32.mrf.mxu0
  %v7867 = vadd.f32 0.0, %v7866
  %7868 = vdwg.mxu0
  %7869 = vmatpush.bf16.msra.mxu0 %v5384
  %7870 = vmatpush.bf16.msra.mxu0 %v5380
  %7871 = vmatpush.bf16.msra.mxu0 %v5376
  %7872 = vmatpush.bf16.msra.mxu0 %v5372
  %7873 = vmatpush.bf16.msra.mxu0 %v5368
  %7874 = vmatpush.bf16.msra.mxu0 %v5364
  %7875 = vmatpush.bf16.msra.mxu0 %v5360
  %7876 = vmatpush.bf16.msra.mxu0 %v5356
  %7877 = vmatmul.bf16.gmra.mxu0 %v2814
  %v7878 = vpop.f32.mrf.mxu0
  %v7879 = vadd.f32 %v7790, %v7878
  %v7880 = vpop.f32.mrf.mxu0
  %v7881 = vadd.f32 %v7792, %v7880
  %7882 = vmatmul.bf16.gmra.mxu0 %v2816
  %v7883 = vpop.f32.mrf.mxu0
  %v7884 = vadd.f32 %v7795, %v7883
  %v7885 = vpop.f32.mrf.mxu0
  %v7886 = vadd.f32 %v7797, %v7885
  %7887 = vmatmul.bf16.gmra.mxu0 %v2818
  %v7888 = vpop.f32.mrf.mxu0
  %v7889 = vadd.f32 %v7800, %v7888
  %v7890 = vpop.f32.mrf.mxu0
  %v7891 = vadd.f32 %v7802, %v7890
  %7892 = vmatmul.bf16.gmra.mxu0 %v2820
  %v7893 = vpop.f32.mrf.mxu0
  %v7894 = vadd.f32 %v7805, %v7893
  %v7895 = vpop.f32.mrf.mxu0
  %v7896 = vadd.f32 %v7807, %v7895
  %7897 = vmatmul.bf16.gmra.mxu0 %v2822
  %v7898 = vpop.f32.mrf.mxu0
  %v7899 = vadd.f32 %v7810, %v7898
  %v7900 = vpop.f32.mrf.mxu0
  %v7901 = vadd.f32 %v7812, %v7900
  %7902 = vmatmul.bf16.gmra.mxu0 %v2824
  %v7903 = vpop.f32.mrf.mxu0
  %v7904 = vadd.f32 %v7815, %v7903
  %v7905 = vpop.f32.mrf.mxu0
  %v7906 = vadd.f32 %v7817, %v7905
  %7907 = vmatmul.bf16.gmra.mxu0 %v2826
  %v7908 = vpop.f32.mrf.mxu0
  %v7909 = vadd.f32 %v7820, %v7908
  %v7910 = vpop.f32.mrf.mxu0
  %v7911 = vadd.f32 %v7822, %v7910
  %7912 = vmatmul.bf16.gmra.mxu0 %v2828
  %v7913 = vpop.f32.mrf.mxu0
  %v7914 = vadd.f32 %v7825, %v7913
  %v7915 = vpop.f32.mrf.mxu0
  %v7916 = vadd.f32 %v7827, %v7915
  %7917 = vmatmul.bf16.gmra.mxu0 %v2830
  %v7918 = vpop.f32.mrf.mxu0
  %v7919 = vadd.f32 %v7830, %v7918
  %v7920 = vpop.f32.mrf.mxu0
  %v7921 = vadd.f32 %v7832, %v7920
  %7922 = vmatmul.bf16.gmra.mxu0 %v2832
  %v7923 = vpop.f32.mrf.mxu0
  %v7924 = vadd.f32 %v7835, %v7923
  %v7925 = vpop.f32.mrf.mxu0
  %v7926 = vadd.f32 %v7837, %v7925
  %7927 = vmatmul.bf16.gmra.mxu0 %v2834
  %v7928 = vpop.f32.mrf.mxu0
  %v7929 = vadd.f32 %v7840, %v7928
  %v7930 = vpop.f32.mrf.mxu0
  %v7931 = vadd.f32 %v7842, %v7930
  %7932 = vmatmul.bf16.gmra.mxu0 %v2836
  %v7933 = vpop.f32.mrf.mxu0
  %v7934 = vadd.f32 %v7845, %v7933
  %v7935 = vpop.f32.mrf.mxu0
  %v7936 = vadd.f32 %v7847, %v7935
  %7937 = vmatmul.bf16.gmra.mxu0 %v2838
  %v7938 = vpop.f32.mrf.mxu0
  %v7939 = vadd.f32 %v7850, %v7938
  %v7940 = vpop.f32.mrf.mxu0
  %v7941 = vadd.f32 %v7852, %v7940
  %7942 = vmatmul.bf16.gmra.mxu0 %v2840
  %v7943 = vpop.f32.mrf.mxu0
  %v7944 = vadd.f32 %v7855, %v7943
  %v7945 = vpop.f32.mrf.mxu0
  %v7946 = vadd.f32 %v7857, %v7945
  %7947 = vmatmul.bf16.gmra.mxu0 %v2873
  %v7948 = vpop.f32.mrf.mxu0
  %v7949 = vadd.f32 %v7860, %v7948
  %v7950 = vpop.f32.mrf.mxu0
  %v7951 = vadd.f32 %v7862, %v7950
  %7952 = vmatmul.bf16.gmra.mxu0 %v2873
  %v7953 = vpop.f32.mrf.mxu0
  %v7954 = vadd.f32 %v7865, %v7953
  %v7955 = vpop.f32.mrf.mxu0
  %v7956 = vadd.f32 %v7867, %v7955
  %7957 = vdwg.mxu0
  %7958 = vmatpush.bf16.msra.mxu0 %v5353
  %7959 = vmatpush.bf16.msra.mxu0 %v5349
  %7960 = vmatpush.bf16.msra.mxu0 %v5345
  %7961 = vmatpush.bf16.msra.mxu0 %v5341
  %7962 = vmatpush.bf16.msra.mxu0 %v5337
  %7963 = vmatpush.bf16.msra.mxu0 %v5333
  %7964 = vmatpush.bf16.msra.mxu0 %v5329
  %7965 = vmatpush.bf16.msra.mxu0 %v5325
  %7966 = vmatmul.bf16.gmra.mxu0 %v2813
  %v7967 = vpop.f32.mrf.mxu0
  %v7968 = vadd.f32 0.0, %v7967
  %v7969 = vpop.f32.mrf.mxu0
  %v7970 = vadd.f32 0.0, %v7969
  %7971 = vmatmul.bf16.gmra.mxu0 %v2815
  %v7972 = vpop.f32.mrf.mxu0
  %v7973 = vadd.f32 0.0, %v7972
  %v7974 = vpop.f32.mrf.mxu0
  %v7975 = vadd.f32 0.0, %v7974
  %7976 = vmatmul.bf16.gmra.mxu0 %v2817
  %v7977 = vpop.f32.mrf.mxu0
  %v7978 = vadd.f32 0.0, %v7977
  %v7979 = vpop.f32.mrf.mxu0
  %v7980 = vadd.f32 0.0, %v7979
  %7981 = vmatmul.bf16.gmra.mxu0 %v2819
  %v7982 = vpop.f32.mrf.mxu0
  %v7983 = vadd.f32 0.0, %v7982
  %v7984 = vpop.f32.mrf.mxu0
  %v7985 = vadd.f32 0.0, %v7984
  %7986 = vmatmul.bf16.gmra.mxu0 %v2821
  %v7987 = vpop.f32.mrf.mxu0
  %v7988 = vadd.f32 0.0, %v7987
  %v7989 = vpop.f32.mrf.mxu0
  %v7990 = vadd.f32 0.0, %v7989
  %7991 = vmatmul.bf16.gmra.mxu0 %v2823
  %v7992 = vpop.f32.mrf.mxu0
  %v7993 = vadd.f32 0.0, %v7992
  %v7994 = vpop.f32.mrf.mxu0
  %v7995 = vadd.f32 0.0, %v7994
  %7996 = vmatmul.bf16.gmra.mxu0 %v2825
  %v7997 = vpop.f32.mrf.mxu0
  %v7998 = vadd.f32 0.0, %v7997
  %v7999 = vpop.f32.mrf.mxu0
  %v8000 = vadd.f32 0.0, %v7999
  %8001 = vmatmul.bf16.gmra.mxu0 %v2827
  %v8002 = vpop.f32.mrf.mxu0
  %v8003 = vadd.f32 0.0, %v8002
  %v8004 = vpop.f32.mrf.mxu0
  %v8005 = vadd.f32 0.0, %v8004
  %8006 = vmatmul.bf16.gmra.mxu0 %v2829
  %v8007 = vpop.f32.mrf.mxu0
  %v8008 = vadd.f32 0.0, %v8007
  %v8009 = vpop.f32.mrf.mxu0
  %v8010 = vadd.f32 0.0, %v8009
  %8011 = vmatmul.bf16.gmra.mxu0 %v2831
  %v8012 = vpop.f32.mrf.mxu0
  %v8013 = vadd.f32 0.0, %v8012
  %v8014 = vpop.f32.mrf.mxu0
  %v8015 = vadd.f32 0.0, %v8014
  %8016 = vmatmul.bf16.gmra.mxu0 %v2833
  %v8017 = vpop.f32.mrf.mxu0
  %v8018 = vadd.f32 0.0, %v8017
  %v8019 = vpop.f32.mrf.mxu0
  %v8020 = vadd.f32 0.0, %v8019
  %8021 = vmatmul.bf16.gmra.mxu0 %v2835
  %v8022 = vpop.f32.mrf.mxu0
  %v8023 = vadd.f32 0.0, %v8022
  %v8024 = vpop.f32.mrf.mxu0
  %v8025 = vadd.f32 0.0, %v8024
  %8026 = vmatmul.bf16.gmra.mxu0 %v2837
  %v8027 = vpop.f32.mrf.mxu0
  %v8028 = vadd.f32 0.0, %v8027
  %v8029 = vpop.f32.mrf.mxu0
  %v8030 = vadd.f32 0.0, %v8029
  %8031 = vmatmul.bf16.gmra.mxu0 %v2839
  %v8032 = vpop.f32.mrf.mxu0
  %v8033 = vadd.f32 0.0, %v8032
  %v8034 = vpop.f32.mrf.mxu0
  %v8035 = vadd.f32 0.0, %v8034
  %8036 = vmatmul.bf16.gmra.mxu0 %v2873
  %v8037 = vpop.f32.mrf.mxu0
  %v8038 = vadd.f32 0.0, %v8037
  %v8039 = vpop.f32.mrf.mxu0
  %v8040 = vadd.f32 0.0, %v8039
  %8041 = vmatmul.bf16.gmra.mxu0 %v2873
  %v8042 = vpop.f32.mrf.mxu0
  %v8043 = vadd.f32 0.0, %v8042
  %v8044 = vpop.f32.mrf.mxu0
  %v8045 = vadd.f32 0.0, %v8044
  %8046 = vdwg.mxu0
  %8047 = vmatpush.bf16.msra.mxu0 %v5385
  %8048 = vmatpush.bf16.msra.mxu0 %v5381
  %8049 = vmatpush.bf16.msra.mxu0 %v5377
  %8050 = vmatpush.bf16.msra.mxu0 %v5373
  %8051 = vmatpush.bf16.msra.mxu0 %v5369
  %8052 = vmatpush.bf16.msra.mxu0 %v5365
  %8053 = vmatpush.bf16.msra.mxu0 %v5361
  %8054 = vmatpush.bf16.msra.mxu0 %v5357
  %8055 = vmatmul.bf16.gmra.mxu0 %v2814
  %v8056 = vpop.f32.mrf.mxu0
  %v8057 = vadd.f32 %v7968, %v8056
  %v8058 = vpop.f32.mrf.mxu0
  %v8059 = vadd.f32 %v7970, %v8058
  %8060 = vmatmul.bf16.gmra.mxu0 %v2816
  %v8061 = vpop.f32.mrf.mxu0
  %v8062 = vadd.f32 %v7973, %v8061
  %v8063 = vpop.f32.mrf.mxu0
  %v8064 = vadd.f32 %v7975, %v8063
  %8065 = vmatmul.bf16.gmra.mxu0 %v2818
  %v8066 = vpop.f32.mrf.mxu0
  %v8067 = vadd.f32 %v7978, %v8066
  %v8068 = vpop.f32.mrf.mxu0
  %v8069 = vadd.f32 %v7980, %v8068
  %8070 = vmatmul.bf16.gmra.mxu0 %v2820
  %v8071 = vpop.f32.mrf.mxu0
  %v8072 = vadd.f32 %v7983, %v8071
  %v8073 = vpop.f32.mrf.mxu0
  %v8074 = vadd.f32 %v7985, %v8073
  %8075 = vmatmul.bf16.gmra.mxu0 %v2822
  %v8076 = vpop.f32.mrf.mxu0
  %v8077 = vadd.f32 %v7988, %v8076
  %v8078 = vpop.f32.mrf.mxu0
  %v8079 = vadd.f32 %v7990, %v8078
  %8080 = vmatmul.bf16.gmra.mxu0 %v2824
  %v8081 = vpop.f32.mrf.mxu0
  %v8082 = vadd.f32 %v7993, %v8081
  %v8083 = vpop.f32.mrf.mxu0
  %v8084 = vadd.f32 %v7995, %v8083
  %8085 = vmatmul.bf16.gmra.mxu0 %v2826
  %v8086 = vpop.f32.mrf.mxu0
  %v8087 = vadd.f32 %v7998, %v8086
  %v8088 = vpop.f32.mrf.mxu0
  %v8089 = vadd.f32 %v8000, %v8088
  %8090 = vmatmul.bf16.gmra.mxu0 %v2828
  %v8091 = vpop.f32.mrf.mxu0
  %v8092 = vadd.f32 %v8003, %v8091
  %v8093 = vpop.f32.mrf.mxu0
  %v8094 = vadd.f32 %v8005, %v8093
  %8095 = vmatmul.bf16.gmra.mxu0 %v2830
  %v8096 = vpop.f32.mrf.mxu0
  %v8097 = vadd.f32 %v8008, %v8096
  %v8098 = vpop.f32.mrf.mxu0
  %v8099 = vadd.f32 %v8010, %v8098
  %8100 = vmatmul.bf16.gmra.mxu0 %v2832
  %v8101 = vpop.f32.mrf.mxu0
  %v8102 = vadd.f32 %v8013, %v8101
  %v8103 = vpop.f32.mrf.mxu0
  %v8104 = vadd.f32 %v8015, %v8103
  %8105 = vmatmul.bf16.gmra.mxu0 %v2834
  %v8106 = vpop.f32.mrf.mxu0
  %v8107 = vadd.f32 %v8018, %v8106
  %v8108 = vpop.f32.mrf.mxu0
  %v8109 = vadd.f32 %v8020, %v8108
  %8110 = vmatmul.bf16.gmra.mxu0 %v2836
  %v8111 = vpop.f32.mrf.mxu0
  %v8112 = vadd.f32 %v8023, %v8111
  %v8113 = vpop.f32.mrf.mxu0
  %v8114 = vadd.f32 %v8025, %v8113
  %8115 = vmatmul.bf16.gmra.mxu0 %v2838
  %v8116 = vpop.f32.mrf.mxu0
  %v8117 = vadd.f32 %v8028, %v8116
  %v8118 = vpop.f32.mrf.mxu0
  %v8119 = vadd.f32 %v8030, %v8118
  %8120 = vmatmul.bf16.gmra.mxu0 %v2840
  %v8121 = vpop.f32.mrf.mxu0
  %v8122 = vadd.f32 %v8033, %v8121
  %v8123 = vpop.f32.mrf.mxu0
  %v8124 = vadd.f32 %v8035, %v8123
  %8125 = vmatmul.bf16.gmra.mxu0 %v2873
  %v8126 = vpop.f32.mrf.mxu0
  %v8127 = vadd.f32 %v8038, %v8126
  %v8128 = vpop.f32.mrf.mxu0
  %v8129 = vadd.f32 %v8040, %v8128
  %8130 = vmatmul.bf16.gmra.mxu0 %v2873
  %v8131 = vpop.f32.mrf.mxu0
  %v8132 = vadd.f32 %v8043, %v8131
  %v8133 = vpop.f32.mrf.mxu0
  %v8134 = vadd.f32 %v8045, %v8133
  %8135 = vdwg.mxu0
  %8136 = vmatpush.bf16.msra.mxu0 %v5354
  %8137 = vmatpush.bf16.msra.mxu0 %v5350
  %8138 = vmatpush.bf16.msra.mxu0 %v5346
  %8139 = vmatpush.bf16.msra.mxu0 %v5342
  %8140 = vmatpush.bf16.msra.mxu0 %v5338
  %8141 = vmatpush.bf16.msra.mxu0 %v5334
  %8142 = vmatpush.bf16.msra.mxu0 %v5330
  %8143 = vmatpush.bf16.msra.mxu0 %v5326
  %8144 = vmatmul.bf16.gmra.mxu0 %v2813
  %v8145 = vpop.f32.mrf.mxu0
  %v8146 = vadd.f32 0.0, %v8145
  %v8147 = vpop.f32.mrf.mxu0
  %v8148 = vadd.f32 0.0, %v8147
  %8149 = vmatmul.bf16.gmra.mxu0 %v2815
  %v8150 = vpop.f32.mrf.mxu0
  %v8151 = vadd.f32 0.0, %v8150
  %v8152 = vpop.f32.mrf.mxu0
  %v8153 = vadd.f32 0.0, %v8152
  %8154 = vmatmul.bf16.gmra.mxu0 %v2817
  %v8155 = vpop.f32.mrf.mxu0
  %v8156 = vadd.f32 0.0, %v8155
  %v8157 = vpop.f32.mrf.mxu0
  %v8158 = vadd.f32 0.0, %v8157
  %8159 = vmatmul.bf16.gmra.mxu0 %v2819
  %v8160 = vpop.f32.mrf.mxu0
  %v8161 = vadd.f32 0.0, %v8160
  %v8162 = vpop.f32.mrf.mxu0
  %v8163 = vadd.f32 0.0, %v8162
  %8164 = vmatmul.bf16.gmra.mxu0 %v2821
  %v8165 = vpop.f32.mrf.mxu0
  %v8166 = vadd.f32 0.0, %v8165
  %v8167 = vpop.f32.mrf.mxu0
  %v8168 = vadd.f32 0.0, %v8167
  %8169 = vmatmul.bf16.gmra.mxu0 %v2823
  %v8170 = vpop.f32.mrf.mxu0
  %v8171 = vadd.f32 0.0, %v8170
  %v8172 = vpop.f32.mrf.mxu0
  %v8173 = vadd.f32 0.0, %v8172
  %8174 = vmatmul.bf16.gmra.mxu0 %v2825
  %v8175 = vpop.f32.mrf.mxu0
  %v8176 = vadd.f32 0.0, %v8175
  %v8177 = vpop.f32.mrf.mxu0
  %v8178 = vadd.f32 0.0, %v8177
  %8179 = vmatmul.bf16.gmra.mxu0 %v2827
  %v8180 = vpop.f32.mrf.mxu0
  %v8181 = vadd.f32 0.0, %v8180
  %v8182 = vpop.f32.mrf.mxu0
  %v8183 = vadd.f32 0.0, %v8182
  %8184 = vmatmul.bf16.gmra.mxu0 %v2829
  %v8185 = vpop.f32.mrf.mxu0
  %v8186 = vadd.f32 0.0, %v8185
  %v8187 = vpop.f32.mrf.mxu0
  %v8188 = vadd.f32 0.0, %v8187
  %8189 = vmatmul.bf16.gmra.mxu0 %v2831
  %v8190 = vpop.f32.mrf.mxu0
  %v8191 = vadd.f32 0.0, %v8190
  %v8192 = vpop.f32.mrf.mxu0
  %v8193 = vadd.f32 0.0, %v8192
  %8194 = vmatmul.bf16.gmra.mxu0 %v2833
  %v8195 = vpop.f32.mrf.mxu0
  %v8196 = vadd.f32 0.0, %v8195
  %v8197 = vpop.f32.mrf.mxu0
  %v8198 = vadd.f32 0.0, %v8197
  %8199 = vmatmul.bf16.gmra.mxu0 %v2835
  %v8200 = vpop.f32.mrf.mxu0
  %v8201 = vadd.f32 0.0, %v8200
  %v8202 = vpop.f32.mrf.mxu0
  %v8203 = vadd.f32 0.0, %v8202
  %8204 = vmatmul.bf16.gmra.mxu0 %v2837
  %v8205 = vpop.f32.mrf.mxu0
  %v8206 = vadd.f32 0.0, %v8205
  %v8207 = vpop.f32.mrf.mxu0
  %v8208 = vadd.f32 0.0, %v8207
  %8209 = vmatmul.bf16.gmra.mxu0 %v2839
  %v8210 = vpop.f32.mrf.mxu0
  %v8211 = vadd.f32 0.0, %v8210
  %v8212 = vpop.f32.mrf.mxu0
  %v8213 = vadd.f32 0.0, %v8212
  %8214 = vmatmul.bf16.gmra.mxu0 %v2873
  %v8215 = vpop.f32.mrf.mxu0
  %v8216 = vadd.f32 0.0, %v8215
  %v8217 = vpop.f32.mrf.mxu0
  %v8218 = vadd.f32 0.0, %v8217
  %8219 = vmatmul.bf16.gmra.mxu0 %v2873
  %v8220 = vpop.f32.mrf.mxu0
  %v8221 = vadd.f32 0.0, %v8220
  %v8222 = vpop.f32.mrf.mxu0
  %v8223 = vadd.f32 0.0, %v8222
  %8224 = vdwg.mxu0
  %8225 = vmatpush.bf16.msra.mxu0 %v5386
  %8226 = vmatpush.bf16.msra.mxu0 %v5382
  %8227 = vmatpush.bf16.msra.mxu0 %v5378
  %8228 = vmatpush.bf16.msra.mxu0 %v5374
  %8229 = vmatpush.bf16.msra.mxu0 %v5370
  %8230 = vmatpush.bf16.msra.mxu0 %v5366
  %8231 = vmatpush.bf16.msra.mxu0 %v5362
  %8232 = vmatpush.bf16.msra.mxu0 %v5358
  %8233 = vmatmul.bf16.gmra.mxu0 %v2814
  %v8234 = vpop.f32.mrf.mxu0
  %v8235 = vadd.f32 %v8146, %v8234
  %v8236 = vpop.f32.mrf.mxu0
  %v8237 = vadd.f32 %v8148, %v8236
  %8238 = vmatmul.bf16.gmra.mxu0 %v2816
  %v8239 = vpop.f32.mrf.mxu0
  %v8240 = vadd.f32 %v8151, %v8239
  %v8241 = vpop.f32.mrf.mxu0
  %v8242 = vadd.f32 %v8153, %v8241
  %8243 = vmatmul.bf16.gmra.mxu0 %v2818
  %v8244 = vpop.f32.mrf.mxu0
  %v8245 = vadd.f32 %v8156, %v8244
  %v8246 = vpop.f32.mrf.mxu0
  %v8247 = vadd.f32 %v8158, %v8246
  %8248 = vmatmul.bf16.gmra.mxu0 %v2820
  %v8249 = vpop.f32.mrf.mxu0
  %v8250 = vadd.f32 %v8161, %v8249
  %v8251 = vpop.f32.mrf.mxu0
  %v8252 = vadd.f32 %v8163, %v8251
  %8253 = vmatmul.bf16.gmra.mxu0 %v2822
  %v8254 = vpop.f32.mrf.mxu0
  %v8255 = vadd.f32 %v8166, %v8254
  %v8256 = vpop.f32.mrf.mxu0
  %v8257 = vadd.f32 %v8168, %v8256
  %8258 = vmatmul.bf16.gmra.mxu0 %v2824
  %v8259 = vpop.f32.mrf.mxu0
  %v8260 = vadd.f32 %v8171, %v8259
  %v8261 = vpop.f32.mrf.mxu0
  %v8262 = vadd.f32 %v8173, %v8261
  %8263 = vmatmul.bf16.gmra.mxu0 %v2826
  %v8264 = vpop.f32.mrf.mxu0
  %v8265 = vadd.f32 %v8176, %v8264
  %v8266 = vpop.f32.mrf.mxu0
  %v8267 = vadd.f32 %v8178, %v8266
  %8268 = vmatmul.bf16.gmra.mxu0 %v2828
  %v8269 = vpop.f32.mrf.mxu0
  %v8270 = vadd.f32 %v8181, %v8269
  %v8271 = vpop.f32.mrf.mxu0
  %v8272 = vadd.f32 %v8183, %v8271
  %8273 = vmatmul.bf16.gmra.mxu0 %v2830
  %v8274 = vpop.f32.mrf.mxu0
  %v8275 = vadd.f32 %v8186, %v8274
  %v8276 = vpop.f32.mrf.mxu0
  %v8277 = vadd.f32 %v8188, %v8276
  %8278 = vmatmul.bf16.gmra.mxu0 %v2832
  %v8279 = vpop.f32.mrf.mxu0
  %v8280 = vadd.f32 %v8191, %v8279
  %v8281 = vpop.f32.mrf.mxu0
  %v8282 = vadd.f32 %v8193, %v8281
  %8283 = vmatmul.bf16.gmra.mxu0 %v2834
  %v8284 = vpop.f32.mrf.mxu0
  %v8285 = vadd.f32 %v8196, %v8284
  %v8286 = vpop.f32.mrf.mxu0
  %v8287 = vadd.f32 %v8198, %v8286
  %8288 = vmatmul.bf16.gmra.mxu0 %v2836
  %v8289 = vpop.f32.mrf.mxu0
  %v8290 = vadd.f32 %v8201, %v8289
  %v8291 = vpop.f32.mrf.mxu0
  %v8292 = vadd.f32 %v8203, %v8291
  %8293 = vmatmul.bf16.gmra.mxu0 %v2838
  %v8294 = vpop.f32.mrf.mxu0
  %v8295 = vadd.f32 %v8206, %v8294
  %v8296 = vpop.f32.mrf.mxu0
  %v8297 = vadd.f32 %v8208, %v8296
  %8298 = vmatmul.bf16.gmra.mxu0 %v2840
  %v8299 = vpop.f32.mrf.mxu0
  %v8300 = vadd.f32 %v8211, %v8299
  %v8301 = vpop.f32.mrf.mxu0
  %v8302 = vadd.f32 %v8213, %v8301
  %8303 = vmatmul.bf16.gmra.mxu0 %v2873
  %v8304 = vpop.f32.mrf.mxu0
  %v8305 = vadd.f32 %v8216, %v8304
  %v8306 = vpop.f32.mrf.mxu0
  %v8307 = vadd.f32 %v8218, %v8306
  %8308 = vmatmul.bf16.gmra.mxu0 %v2873
  %v8309 = vpop.f32.mrf.mxu0
  %v8310 = vadd.f32 %v8221, %v8309
  %v8311 = vpop.f32.mrf.mxu0
  %v8312 = vadd.f32 %v8223, %v8311
  %8313 = vdwg.mxu0
  %8314 = vmatpush.bf16.msra.mxu0 %v5355
  %8315 = vmatpush.bf16.msra.mxu0 %v5351
  %8316 = vmatpush.bf16.msra.mxu0 %v5347
  %8317 = vmatpush.bf16.msra.mxu0 %v5343
  %8318 = vmatpush.bf16.msra.mxu0 %v5339
  %8319 = vmatpush.bf16.msra.mxu0 %v5335
  %8320 = vmatpush.bf16.msra.mxu0 %v5331
  %8321 = vmatpush.bf16.msra.mxu0 %v5327
  %8322 = vmatmul.bf16.gmra.mxu0 %v2813
  %v8323 = vpop.f32.mrf.mxu0
  %v8324 = vadd.f32 0.0, %v8323
  %v8325 = vpop.f32.mrf.mxu0
  %v8326 = vadd.f32 0.0, %v8325
  %8327 = vmatmul.bf16.gmra.mxu0 %v2815
  %v8328 = vpop.f32.mrf.mxu0
  %v8329 = vadd.f32 0.0, %v8328
  %v8330 = vpop.f32.mrf.mxu0
  %v8331 = vadd.f32 0.0, %v8330
  %8332 = vmatmul.bf16.gmra.mxu0 %v2817
  %v8333 = vpop.f32.mrf.mxu0
  %v8334 = vadd.f32 0.0, %v8333
  %v8335 = vpop.f32.mrf.mxu0
  %v8336 = vadd.f32 0.0, %v8335
  %8337 = vmatmul.bf16.gmra.mxu0 %v2819
  %v8338 = vpop.f32.mrf.mxu0
  %v8339 = vadd.f32 0.0, %v8338
  %v8340 = vpop.f32.mrf.mxu0
  %v8341 = vadd.f32 0.0, %v8340
  %8342 = vmatmul.bf16.gmra.mxu0 %v2821
  %v8343 = vpop.f32.mrf.mxu0
  %v8344 = vadd.f32 0.0, %v8343
  %v8345 = vpop.f32.mrf.mxu0
  %v8346 = vadd.f32 0.0, %v8345
  %8347 = vmatmul.bf16.gmra.mxu0 %v2823
  %v8348 = vpop.f32.mrf.mxu0
  %v8349 = vadd.f32 0.0, %v8348
  %v8350 = vpop.f32.mrf.mxu0
  %v8351 = vadd.f32 0.0, %v8350
  %8352 = vmatmul.bf16.gmra.mxu0 %v2825
  %v8353 = vpop.f32.mrf.mxu0
  %v8354 = vadd.f32 0.0, %v8353
  %v8355 = vpop.f32.mrf.mxu0
  %v8356 = vadd.f32 0.0, %v8355
  %8357 = vmatmul.bf16.gmra.mxu0 %v2827
  %v8358 = vpop.f32.mrf.mxu0
  %v8359 = vadd.f32 0.0, %v8358
  %v8360 = vpop.f32.mrf.mxu0
  %v8361 = vadd.f32 0.0, %v8360
  %8362 = vmatmul.bf16.gmra.mxu0 %v2829
  %v8363 = vpop.f32.mrf.mxu0
  %v8364 = vadd.f32 0.0, %v8363
  %v8365 = vpop.f32.mrf.mxu0
  %v8366 = vadd.f32 0.0, %v8365
  %8367 = vmatmul.bf16.gmra.mxu0 %v2831
  %v8368 = vpop.f32.mrf.mxu0
  %v8369 = vadd.f32 0.0, %v8368
  %v8370 = vpop.f32.mrf.mxu0
  %v8371 = vadd.f32 0.0, %v8370
  %8372 = vmatmul.bf16.gmra.mxu0 %v2833
  %v8373 = vpop.f32.mrf.mxu0
  %v8374 = vadd.f32 0.0, %v8373
  %v8375 = vpop.f32.mrf.mxu0
  %v8376 = vadd.f32 0.0, %v8375
  %8377 = vmatmul.bf16.gmra.mxu0 %v2835
  %v8378 = vpop.f32.mrf.mxu0
  %v8379 = vadd.f32 0.0, %v8378
  %v8380 = vpop.f32.mrf.mxu0
  %v8381 = vadd.f32 0.0, %v8380
  %8382 = vmatmul.bf16.gmra.mxu0 %v2837
  %v8383 = vpop.f32.mrf.mxu0
  %v8384 = vadd.f32 0.0, %v8383
  %v8385 = vpop.f32.mrf.mxu0
  %v8386 = vadd.f32 0.0, %v8385
  %8387 = vmatmul.bf16.gmra.mxu0 %v2839
  %v8388 = vpop.f32.mrf.mxu0
  %v8389 = vadd.f32 0.0, %v8388
  %v8390 = vpop.f32.mrf.mxu0
  %v8391 = vadd.f32 0.0, %v8390
  %8392 = vmatmul.bf16.gmra.mxu0 %v2873
  %v8393 = vpop.f32.mrf.mxu0
  %v8394 = vadd.f32 0.0, %v8393
  %v8395 = vpop.f32.mrf.mxu0
  %v8396 = vadd.f32 0.0, %v8395
  %8397 = vmatmul.bf16.gmra.mxu0 %v2873
  %v8398 = vpop.f32.mrf.mxu0
  %v8399 = vadd.f32 0.0, %v8398
  %v8400 = vpop.f32.mrf.mxu0
  %v8401 = vadd.f32 0.0, %v8400
  %8402 = vdwg.mxu0
  %8403 = vmatpush.bf16.msra.mxu0 %v5387
  %8404 = vmatpush.bf16.msra.mxu0 %v5383
  %8405 = vmatpush.bf16.msra.mxu0 %v5379
  %8406 = vmatpush.bf16.msra.mxu0 %v5375
  %8407 = vmatpush.bf16.msra.mxu0 %v5371
  %8408 = vmatpush.bf16.msra.mxu0 %v5367
  %8409 = vmatpush.bf16.msra.mxu0 %v5363
  %8410 = vmatpush.bf16.msra.mxu0 %v5359
  %8411 = vmatmul.bf16.gmra.mxu0 %v2814
  %v8412 = vpop.f32.mrf.mxu0
  %v8413 = vadd.f32 %v8324, %v8412
  %v8414 = vpop.f32.mrf.mxu0
  %v8415 = vadd.f32 %v8326, %v8414
  %8416 = vmatmul.bf16.gmra.mxu0 %v2816
  %v8417 = vpop.f32.mrf.mxu0
  %v8418 = vadd.f32 %v8329, %v8417
  %v8419 = vpop.f32.mrf.mxu0
  %v8420 = vadd.f32 %v8331, %v8419
  %8421 = vmatmul.bf16.gmra.mxu0 %v2818
  %v8422 = vpop.f32.mrf.mxu0
  %v8423 = vadd.f32 %v8334, %v8422
  %v8424 = vpop.f32.mrf.mxu0
  %v8425 = vadd.f32 %v8336, %v8424
  %8426 = vmatmul.bf16.gmra.mxu0 %v2820
  %v8427 = vpop.f32.mrf.mxu0
  %v8428 = vadd.f32 %v8339, %v8427
  %v8429 = vpop.f32.mrf.mxu0
  %v8430 = vadd.f32 %v8341, %v8429
  %8431 = vmatmul.bf16.gmra.mxu0 %v2822
  %v8432 = vpop.f32.mrf.mxu0
  %v8433 = vadd.f32 %v8344, %v8432
  %v8434 = vpop.f32.mrf.mxu0
  %v8435 = vadd.f32 %v8346, %v8434
  %8436 = vmatmul.bf16.gmra.mxu0 %v2824
  %v8437 = vpop.f32.mrf.mxu0
  %v8438 = vadd.f32 %v8349, %v8437
  %v8439 = vpop.f32.mrf.mxu0
  %v8440 = vadd.f32 %v8351, %v8439
  %8441 = vmatmul.bf16.gmra.mxu0 %v2826
  %v8442 = vpop.f32.mrf.mxu0
  %v8443 = vadd.f32 %v8354, %v8442
  %v8444 = vpop.f32.mrf.mxu0
  %v8445 = vadd.f32 %v8356, %v8444
  %8446 = vmatmul.bf16.gmra.mxu0 %v2828
  %v8447 = vpop.f32.mrf.mxu0
  %v8448 = vadd.f32 %v8359, %v8447
  %v8449 = vpop.f32.mrf.mxu0
  %v8450 = vadd.f32 %v8361, %v8449
  %8451 = vmatmul.bf16.gmra.mxu0 %v2830
  %v8452 = vpop.f32.mrf.mxu0
  %v8453 = vadd.f32 %v8364, %v8452
  %v8454 = vpop.f32.mrf.mxu0
  %v8455 = vadd.f32 %v8366, %v8454
  %8456 = vmatmul.bf16.gmra.mxu0 %v2832
  %v8457 = vpop.f32.mrf.mxu0
  %v8458 = vadd.f32 %v8369, %v8457
  %v8459 = vpop.f32.mrf.mxu0
  %v8460 = vadd.f32 %v8371, %v8459
  %8461 = vmatmul.bf16.gmra.mxu0 %v2834
  %v8462 = vpop.f32.mrf.mxu0
  %v8463 = vadd.f32 %v8374, %v8462
  %v8464 = vpop.f32.mrf.mxu0
  %v8465 = vadd.f32 %v8376, %v8464
  %8466 = vmatmul.bf16.gmra.mxu0 %v2836
  %v8467 = vpop.f32.mrf.mxu0
  %v8468 = vadd.f32 %v8379, %v8467
  %v8469 = vpop.f32.mrf.mxu0
  %v8470 = vadd.f32 %v8381, %v8469
  %8471 = vmatmul.bf16.gmra.mxu0 %v2838
  %v8472 = vpop.f32.mrf.mxu0
  %v8473 = vadd.f32 %v8384, %v8472
  %v8474 = vpop.f32.mrf.mxu0
  %v8475 = vadd.f32 %v8386, %v8474
  %8476 = vmatmul.bf16.gmra.mxu0 %v2840
  %v8477 = vpop.f32.mrf.mxu0
  %v8478 = vadd.f32 %v8389, %v8477
  %v8479 = vpop.f32.mrf.mxu0
  %v8480 = vadd.f32 %v8391, %v8479
  %8481 = vmatmul.bf16.gmra.mxu0 %v2873
  %v8482 = vpop.f32.mrf.mxu0
  %v8483 = vadd.f32 %v8394, %v8482
  %v8484 = vpop.f32.mrf.mxu0
  %v8485 = vadd.f32 %v8396, %v8484
  %8486 = vmatmul.bf16.gmra.mxu0 %v2873
  %v8487 = vpop.f32.mrf.mxu0
  %v8488 = vadd.f32 %v8399, %v8487
  %v8489 = vpop.f32.mrf.mxu0
  %v8490 = vadd.f32 %v8401, %v8489
  %8491 = vdwg.mxu0
  %v8492 = vadd.f32 %v7167, %v7879
  %v8493 = vadd.f32 %v7345, %v8057
  %v8494 = vadd.f32 %v7523, %v8235
  %v8495 = vadd.f32 %v7701, %v8413
  %v8496 = vadd.f32 %v7169, %v7881
  %v8497 = vadd.f32 %v7347, %v8059
  %v8498 = vadd.f32 %v7525, %v8237
  %v8499 = vadd.f32 %v7703, %v8415
  %v8500 = vadd.f32 %v7172, %v7884
  %v8501 = vadd.f32 %v7350, %v8062
  %v8502 = vadd.f32 %v7528, %v8240
  %v8503 = vadd.f32 %v7706, %v8418
  %v8504 = vadd.f32 %v7174, %v7886
  %v8505 = vadd.f32 %v7352, %v8064
  %v8506 = vadd.f32 %v7530, %v8242
  %v8507 = vadd.f32 %v7708, %v8420
  %v8508 = vadd.f32 %v7177, %v7889
  %v8509 = vadd.f32 %v7355, %v8067
  %v8510 = vadd.f32 %v7533, %v8245
  %v8511 = vadd.f32 %v7711, %v8423
  %v8512 = vadd.f32 %v7179, %v7891
  %v8513 = vadd.f32 %v7357, %v8069
  %v8514 = vadd.f32 %v7535, %v8247
  %v8515 = vadd.f32 %v7713, %v8425
  %v8516 = vadd.f32 %v7182, %v7894
  %v8517 = vadd.f32 %v7360, %v8072
  %v8518 = vadd.f32 %v7538, %v8250
  %v8519 = vadd.f32 %v7716, %v8428
  %v8520 = vadd.f32 %v7184, %v7896
  %v8521 = vadd.f32 %v7362, %v8074
  %v8522 = vadd.f32 %v7540, %v8252
  %v8523 = vadd.f32 %v7718, %v8430
  %v8524 = vadd.f32 %v7187, %v7899
  %v8525 = vadd.f32 %v7365, %v8077
  %v8526 = vadd.f32 %v7543, %v8255
  %v8527 = vadd.f32 %v7721, %v8433
  %v8528 = vadd.f32 %v7189, %v7901
  %v8529 = vadd.f32 %v7367, %v8079
  %v8530 = vadd.f32 %v7545, %v8257
  %v8531 = vadd.f32 %v7723, %v8435
  %v8532 = vadd.f32 %v7192, %v7904
  %v8533 = vadd.f32 %v7370, %v8082
  %v8534 = vadd.f32 %v7548, %v8260
  %v8535 = vadd.f32 %v7726, %v8438
  %v8536 = vadd.f32 %v7194, %v7906
  %v8537 = vadd.f32 %v7372, %v8084
  %v8538 = vadd.f32 %v7550, %v8262
  %v8539 = vadd.f32 %v7728, %v8440
  %v8540 = vadd.f32 %v7197, %v7909
  %v8541 = vadd.f32 %v7375, %v8087
  %v8542 = vadd.f32 %v7553, %v8265
  %v8543 = vadd.f32 %v7731, %v8443
  %v8544 = vadd.f32 %v7199, %v7911
  %v8545 = vadd.f32 %v7377, %v8089
  %v8546 = vadd.f32 %v7555, %v8267
  %v8547 = vadd.f32 %v7733, %v8445
  %v8548 = vadd.f32 %v7202, %v7914
  %v8549 = vadd.f32 %v7380, %v8092
  %v8550 = vadd.f32 %v7558, %v8270
  %v8551 = vadd.f32 %v7736, %v8448
  %v8552 = vadd.f32 %v7204, %v7916
  %v8553 = vadd.f32 %v7382, %v8094
  %v8554 = vadd.f32 %v7560, %v8272
  %v8555 = vadd.f32 %v7738, %v8450
  %v8556 = vadd.f32 %v7207, %v7919
  %v8557 = vadd.f32 %v7385, %v8097
  %v8558 = vadd.f32 %v7563, %v8275
  %v8559 = vadd.f32 %v7741, %v8453
  %v8560 = vadd.f32 %v7209, %v7921
  %v8561 = vadd.f32 %v7387, %v8099
  %v8562 = vadd.f32 %v7565, %v8277
  %v8563 = vadd.f32 %v7743, %v8455
  %v8564 = vadd.f32 %v7212, %v7924
  %v8565 = vadd.f32 %v7390, %v8102
  %v8566 = vadd.f32 %v7568, %v8280
  %v8567 = vadd.f32 %v7746, %v8458
  %v8568 = vadd.f32 %v7214, %v7926
  %v8569 = vadd.f32 %v7392, %v8104
  %v8570 = vadd.f32 %v7570, %v8282
  %v8571 = vadd.f32 %v7748, %v8460
  %v8572 = vadd.f32 %v7217, %v7929
  %v8573 = vadd.f32 %v7395, %v8107
  %v8574 = vadd.f32 %v7573, %v8285
  %v8575 = vadd.f32 %v7751, %v8463
  %v8576 = vadd.f32 %v7219, %v7931
  %v8577 = vadd.f32 %v7397, %v8109
  %v8578 = vadd.f32 %v7575, %v8287
  %v8579 = vadd.f32 %v7753, %v8465
  %v8580 = vadd.f32 %v7222, %v7934
  %v8581 = vadd.f32 %v7400, %v8112
  %v8582 = vadd.f32 %v7578, %v8290
  %v8583 = vadd.f32 %v7756, %v8468
  %v8584 = vadd.f32 %v7224, %v7936
  %v8585 = vadd.f32 %v7402, %v8114
  %v8586 = vadd.f32 %v7580, %v8292
  %v8587 = vadd.f32 %v7758, %v8470
  %v8588 = vadd.f32 %v7227, %v7939
  %v8589 = vadd.f32 %v7405, %v8117
  %v8590 = vadd.f32 %v7583, %v8295
  %v8591 = vadd.f32 %v7761, %v8473
  %v8592 = vadd.f32 %v7229, %v7941
  %v8593 = vadd.f32 %v7407, %v8119
  %v8594 = vadd.f32 %v7585, %v8297
  %v8595 = vadd.f32 %v7763, %v8475
  %v8596 = vadd.f32 %v7232, %v7944
  %v8597 = vadd.f32 %v7410, %v8122
  %v8598 = vadd.f32 %v7588, %v8300
  %v8599 = vadd.f32 %v7766, %v8478
  %v8600 = vadd.f32 %v7234, %v7946
  %v8601 = vadd.f32 %v7412, %v8124
  %v8602 = vadd.f32 %v7590, %v8302
  %v8603 = vadd.f32 %v7768, %v8480
  %v8604 = vadd.f32 %v7237, %v7949
  %v8605 = vadd.f32 %v7415, %v8127
  %v8606 = vadd.f32 %v7593, %v8305
  %v8607 = vadd.f32 %v7771, %v8483
  %v8608 = vadd.f32 %v7239, %v7951
  %v8609 = vadd.f32 %v7417, %v8129
  %v8610 = vadd.f32 %v7595, %v8307
  %v8611 = vadd.f32 %v7773, %v8485
  %v8612 = vadd.f32 %v7242, %v7954
  %v8613 = vadd.f32 %v7420, %v8132
  %v8614 = vadd.f32 %v7598, %v8310
  %v8615 = vadd.f32 %v7776, %v8488
  %v8616 = vadd.f32 %v7244, %v7956
  %v8617 = vadd.f32 %v7422, %v8134
  %v8618 = vadd.f32 %v7600, %v8312
  %v8619 = vadd.f32 %v7778, %v8490
  %v8620 = vmax.f32 %v8492, %v8494
  %v8621 = vmax.f32 %v8493, %v8495
  %v8622 = vmax.f32 %v8496, %v8498
  %v8623 = vmax.f32 %v8497, %v8499
  %v8624 = vmax.f32 %v8500, %v8502
  %v8625 = vmax.f32 %v8501, %v8503
  %v8626 = vmax.f32 %v8504, %v8506
  %v8627 = vmax.f32 %v8505, %v8507
  %v8628 = vmax.f32 %v8508, %v8510
  %v8629 = vmax.f32 %v8509, %v8511
  %v8630 = vmax.f32 %v8512, %v8514
  %v8631 = vmax.f32 %v8513, %v8515
  %v8632 = vmax.f32 %v8516, %v8518
  %v8633 = vmax.f32 %v8517, %v8519
  %v8634 = vmax.f32 %v8520, %v8522
  %v8635 = vmax.f32 %v8521, %v8523
  %v8636 = vmax.f32 %v8524, %v8526
  %v8637 = vmax.f32 %v8525, %v8527
  %v8638 = vmax.f32 %v8528, %v8530
  %v8639 = vmax.f32 %v8529, %v8531
  %v8640 = vmax.f32 %v8532, %v8534
  %v8641 = vmax.f32 %v8533, %v8535
  %v8642 = vmax.f32 %v8536, %v8538
  %v8643 = vmax.f32 %v8537, %v8539
  %v8644 = vmax.f32 %v8540, %v8542
  %v8645 = vmax.f32 %v8541, %v8543
  %v8646 = vmax.f32 %v8544, %v8546
  %v8647 = vmax.f32 %v8545, %v8547
  %v8648 = vmax.f32 %v8548, %v8550
  %v8649 = vmax.f32 %v8549, %v8551
  %v8650 = vmax.f32 %v8552, %v8554
  %v8651 = vmax.f32 %v8553, %v8555
  %v8652 = vmax.f32 %v8556, %v8558
  %v8653 = vmax.f32 %v8557, %v8559
  %v8654 = vmax.f32 %v8560, %v8562
  %v8655 = vmax.f32 %v8561, %v8563
  %v8656 = vmax.f32 %v8564, %v8566
  %v8657 = vmax.f32 %v8565, %v8567
  %v8658 = vmax.f32 %v8568, %v8570
  %v8659 = vmax.f32 %v8569, %v8571
  %v8660 = vmax.f32 %v8572, %v8574
  %v8661 = vmax.f32 %v8573, %v8575
  %v8662 = vmax.f32 %v8576, %v8578
  %v8663 = vmax.f32 %v8577, %v8579
  %v8664 = vmax.f32 %v8580, %v8582
  %v8665 = vmax.f32 %v8581, %v8583
  %v8666 = vmax.f32 %v8584, %v8586
  %v8667 = vmax.f32 %v8585, %v8587
  %v8668 = vmax.f32 %v8588, %v8590
  %v8669 = vmax.f32 %v8589, %v8591
  %v8670 = vmax.f32 %v8592, %v8594
  %v8671 = vmax.f32 %v8593, %v8595
  %v8672 = vmax.f32 %v8596, %v8598
  %v8673 = vmax.f32 %v8597, %v8599
  %v8674 = vmax.f32 %v8600, %v8602
  %v8675 = vmax.f32 %v8601, %v8603
  %v8676 = vmax.f32 %v8604, %v8606
  %v8677 = vmax.f32 %v8605, %v8607
  %v8678 = vmax.f32 %v8608, %v8610
  %v8679 = vmax.f32 %v8609, %v8611
  %v8680 = vmax.f32 %v8612, %v8614
  %v8681 = vmax.f32 %v8613, %v8615
  %v8682 = vmax.f32 %v8616, %v8618
  %v8683 = vmax.f32 %v8617, %v8619
  %v8684 = vmax.f32 %v6292, %v8620
  %v8685 = vmax.f32 %v6293, %v8621
  %v8686 = vmax.f32 %v6294, %v8622
  %v8687 = vmax.f32 %v6295, %v8623
  %v8688 = vmax.f32 %v6296, %v8624
  %v8689 = vmax.f32 %v6297, %v8625
  %v8690 = vmax.f32 %v6298, %v8626
  %v8691 = vmax.f32 %v6299, %v8627
  %v8692 = vmax.f32 %v6300, %v8628
  %v8693 = vmax.f32 %v6301, %v8629
  %v8694 = vmax.f32 %v6302, %v8630
  %v8695 = vmax.f32 %v6303, %v8631
  %v8696 = vmax.f32 %v6304, %v8632
  %v8697 = vmax.f32 %v6305, %v8633
  %v8698 = vmax.f32 %v6306, %v8634
  %v8699 = vmax.f32 %v6307, %v8635
  %v8700 = vmax.f32 %v6308, %v8636
  %v8701 = vmax.f32 %v6309, %v8637
  %v8702 = vmax.f32 %v6310, %v8638
  %v8703 = vmax.f32 %v6311, %v8639
  %v8704 = vmax.f32 %v6312, %v8640
  %v8705 = vmax.f32 %v6313, %v8641
  %v8706 = vmax.f32 %v6314, %v8642
  %v8707 = vmax.f32 %v6315, %v8643
  %v8708 = vmax.f32 %v6316, %v8644
  %v8709 = vmax.f32 %v6317, %v8645
  %v8710 = vmax.f32 %v6318, %v8646
  %v8711 = vmax.f32 %v6319, %v8647
  %v8712 = vmax.f32 %v6320, %v8648
  %v8713 = vmax.f32 %v6321, %v8649
  %v8714 = vmax.f32 %v6322, %v8650
  %v8715 = vmax.f32 %v6323, %v8651
  %v8716 = vmax.f32 %v6324, %v8652
  %v8717 = vmax.f32 %v6325, %v8653
  %v8718 = vmax.f32 %v6326, %v8654
  %v8719 = vmax.f32 %v6327, %v8655
  %v8720 = vmax.f32 %v6328, %v8656
  %v8721 = vmax.f32 %v6329, %v8657
  %v8722 = vmax.f32 %v6330, %v8658
  %v8723 = vmax.f32 %v6331, %v8659
  %v8724 = vmax.f32 %v6332, %v8660
  %v8725 = vmax.f32 %v6333, %v8661
  %v8726 = vmax.f32 %v6334, %v8662
  %v8727 = vmax.f32 %v6335, %v8663
  %v8728 = vmax.f32 %v6336, %v8664
  %v8729 = vmax.f32 %v6337, %v8665
  %v8730 = vmax.f32 %v6338, %v8666
  %v8731 = vmax.f32 %v6339, %v8667
  %v8732 = vmax.f32 %v6340, %v8668
  %v8733 = vmax.f32 %v6341, %v8669
  %v8734 = vmax.f32 %v6342, %v8670
  %v8735 = vmax.f32 %v6343, %v8671
  %v8736 = vmax.f32 %v6344, %v8672
  %v8737 = vmax.f32 %v6345, %v8673
  %v8738 = vmax.f32 %v6346, %v8674
  %v8739 = vmax.f32 %v6347, %v8675
  %v8740 = vmax.f32 %v6348, %v8676
  %v8741 = vmax.f32 %v6349, %v8677
  %v8742 = vmax.f32 %v6350, %v8678
  %v8743 = vmax.f32 %v6351, %v8679
  %v8744 = vmax.f32 %v6352, %v8680
  %v8745 = vmax.f32 %v6353, %v8681
  %v8746 = vmax.f32 %v6354, %v8682
  %v8747 = vmax.f32 %v6355, %v8683
  %v8748 = vld [vmem:[%s4] sm:$0x3]
  %v8750 = vperm.slane %v8748, 0
  %v8751 = vperm.slane %v8748, 1
  %v8754 = vadd.f32 %v8684, %v8750
  %v8755 = vadd.f32 %v8685, %v8751
  %v8756 = vadd.f32 %v8686, %v8750
  %v8757 = vadd.f32 %v8687, %v8751
  %v8758 = vadd.f32 %v8688, %v8750
  %v8759 = vadd.f32 %v8689, %v8751
  %v8760 = vadd.f32 %v8690, %v8750
  %v8761 = vadd.f32 %v8691, %v8751
  %v8762 = vadd.f32 %v8692, %v8750
  %v8763 = vadd.f32 %v8693, %v8751
  %v8764 = vadd.f32 %v8694, %v8750
  %v8765 = vadd.f32 %v8695, %v8751
  %v8766 = vadd.f32 %v8696, %v8750
  %v8767 = vadd.f32 %v8697, %v8751
  %v8768 = vadd.f32 %v8698, %v8750
  %v8769 = vadd.f32 %v8699, %v8751
  %v8770 = vadd.f32 %v8700, %v8750
  %v8771 = vadd.f32 %v8701, %v8751
  %v8772 = vadd.f32 %v8702, %v8750
  %v8773 = vadd.f32 %v8703, %v8751
  %v8774 = vadd.f32 %v8704, %v8750
  %v8775 = vadd.f32 %v8705, %v8751
  %v8776 = vadd.f32 %v8706, %v8750
  %v8777 = vadd.f32 %v8707, %v8751
  %v8778 = vadd.f32 %v8708, %v8750
  %v8779 = vadd.f32 %v8709, %v8751
  %v8780 = vadd.f32 %v8710, %v8750
  %v8781 = vadd.f32 %v8711, %v8751
  %v8782 = vadd.f32 %v8712, %v8750
  %v8783 = vadd.f32 %v8713, %v8751
  %v8784 = vadd.f32 %v8714, %v8750
  %v8785 = vadd.f32 %v8715, %v8751
  %v8786 = vadd.f32 %v8716, %v8750
  %v8787 = vadd.f32 %v8717, %v8751
  %v8788 = vadd.f32 %v8718, %v8750
  %v8789 = vadd.f32 %v8719, %v8751
  %v8790 = vadd.f32 %v8720, %v8750
  %v8791 = vadd.f32 %v8721, %v8751
  %v8792 = vadd.f32 %v8722, %v8750
  %v8793 = vadd.f32 %v8723, %v8751
  %v8794 = vadd.f32 %v8724, %v8750
  %v8795 = vadd.f32 %v8725, %v8751
  %v8796 = vadd.f32 %v8726, %v8750
  %v8797 = vadd.f32 %v8727, %v8751
  %v8798 = vadd.f32 %v8728, %v8750
  %v8799 = vadd.f32 %v8729, %v8751
  %v8800 = vadd.f32 %v8730, %v8750
  %v8801 = vadd.f32 %v8731, %v8751
  %v8802 = vadd.f32 %v8732, %v8750
  %v8803 = vadd.f32 %v8733, %v8751
  %v8804 = vadd.f32 %v8734, %v8750
  %v8805 = vadd.f32 %v8735, %v8751
  %v8806 = vadd.f32 %v8736, %v8750
  %v8807 = vadd.f32 %v8737, %v8751
  %v8808 = vadd.f32 %v8738, %v8750
  %v8809 = vadd.f32 %v8739, %v8751
  %v8810 = vadd.f32 %v8740, %v8750
  %v8811 = vadd.f32 %v8741, %v8751
  %v8812 = vadd.f32 %v8742, %v8750
  %v8813 = vadd.f32 %v8743, %v8751
  %v8814 = vadd.f32 %v8744, %v8750
  %v8815 = vadd.f32 %v8745, %v8751
  %v8816 = vadd.f32 %v8746, %v8750
  %v8817 = vadd.f32 %v8747, %v8751
  %v8818 = vmax.f32 %v8754, 0.0
  %v8819 = vmax.f32 %v8755, 0.0
  %v8820 = vmax.f32 %v8756, 0.0
  %v8821 = vmax.f32 %v8757, 0.0
  %v8822 = vmax.f32 %v8758, 0.0
  %v8823 = vmax.f32 %v8759, 0.0
  %v8824 = vmax.f32 %v8760, 0.0
  %v8825 = vmax.f32 %v8761, 0.0
  %v8826 = vmax.f32 %v8762, 0.0
  %v8827 = vmax.f32 %v8763, 0.0
  %v8828 = vmax.f32 %v8764, 0.0
  %v8829 = vmax.f32 %v8765, 0.0
  %v8830 = vmax.f32 %v8766, 0.0
  %v8831 = vmax.f32 %v8767, 0.0
  %v8832 = vmax.f32 %v8768, 0.0
  %v8833 = vmax.f32 %v8769, 0.0
  %v8834 = vmax.f32 %v8770, 0.0
  %v8835 = vmax.f32 %v8771, 0.0
  %v8836 = vmax.f32 %v8772, 0.0
  %v8837 = vmax.f32 %v8773, 0.0
  %v8838 = vmax.f32 %v8774, 0.0
  %v8839 = vmax.f32 %v8775, 0.0
  %v8840 = vmax.f32 %v8776, 0.0
  %v8841 = vmax.f32 %v8777, 0.0
  %v8842 = vmax.f32 %v8778, 0.0
  %v8843 = vmax.f32 %v8779, 0.0
  %v8844 = vmax.f32 %v8780, 0.0
  %v8845 = vmax.f32 %v8781, 0.0
  %v8846 = vmax.f32 %v8782, 0.0
  %v8847 = vmax.f32 %v8783, 0.0
  %v8848 = vmax.f32 %v8784, 0.0
  %v8849 = vmax.f32 %v8785, 0.0
  %v8850 = vmax.f32 %v8786, 0.0
  %v8851 = vmax.f32 %v8787, 0.0
  %v8852 = vmax.f32 %v8788, 0.0
  %v8853 = vmax.f32 %v8789, 0.0
  %v8854 = vmax.f32 %v8790, 0.0
  %v8855 = vmax.f32 %v8791, 0.0
  %v8856 = vmax.f32 %v8792, 0.0
  %v8857 = vmax.f32 %v8793, 0.0
  %v8858 = vmax.f32 %v8794, 0.0
  %v8859 = vmax.f32 %v8795, 0.0
  %v8860 = vmax.f32 %v8796, 0.0
  %v8861 = vmax.f32 %v8797, 0.0
  %v8862 = vmax.f32 %v8798, 0.0
  %v8863 = vmax.f32 %v8799, 0.0
  %v8864 = vmax.f32 %v8800, 0.0
  %v8865 = vmax.f32 %v8801, 0.0
  %v8866 = vmax.f32 %v8802, 0.0
  %v8867 = vmax.f32 %v8803, 0.0
  %v8868 = vmax.f32 %v8804, 0.0
  %v8869 = vmax.f32 %v8805, 0.0
  %v8870 = vmax.f32 %v8806, 0.0
  %v8871 = vmax.f32 %v8807, 0.0
  %v8872 = vmax.f32 %v8808, 0.0
  %v8873 = vmax.f32 %v8809, 0.0
  %v8874 = vmax.f32 %v8810, 0.0
  %v8875 = vmax.f32 %v8811, 0.0
  %v8876 = vmax.f32 %v8812, 0.0
  %v8877 = vmax.f32 %v8813, 0.0
  %v8878 = vmax.f32 %v8814, 0.0
  %v8879 = vmax.f32 %v8815, 0.0
  %v8880 = vmax.f32 %v8816, 0.0
  %v8881 = vmax.f32 %v8817, 0.0
  %v8882 = vpack.c.bf16 %v8819, %v8818
  %v8883 = vpack.c.bf16 %v8821, %v8820
  %v8884 = vpack.c.bf16 %v8823, %v8822
  %v8885 = vpack.c.bf16 %v8825, %v8824
  %v8886 = vpack.c.bf16 %v8827, %v8826
  %v8887 = vpack.c.bf16 %v8829, %v8828
  %v8888 = vpack.c.bf16 %v8831, %v8830
  %v8889 = vpack.c.bf16 %v8833, %v8832
  %v8890 = vpack.c.bf16 %v8835, %v8834
  %v8891 = vpack.c.bf16 %v8837, %v8836
  %v8892 = vpack.c.bf16 %v8839, %v8838
  %v8893 = vpack.c.bf16 %v8841, %v8840
  %v8894 = vpack.c.bf16 %v8843, %v8842
  %v8895 = vpack.c.bf16 %v8845, %v8844
  %v8896 = vpack.c.bf16 %v8847, %v8846
  %v8897 = vpack.c.bf16 %v8849, %v8848
  %v8898 = vpack.c.bf16 %v8851, %v8850
  %v8899 = vpack.c.bf16 %v8853, %v8852
  %v8900 = vpack.c.bf16 %v8855, %v8854
  %v8901 = vpack.c.bf16 %v8857, %v8856
  %v8902 = vpack.c.bf16 %v8859, %v8858
  %v8903 = vpack.c.bf16 %v8861, %v8860
  %v8904 = vpack.c.bf16 %v8863, %v8862
  %v8905 = vpack.c.bf16 %v8865, %v8864
  %v8906 = vpack.c.bf16 %v8867, %v8866
  %v8907 = vpack.c.bf16 %v8869, %v8868
  %v8908 = vpack.c.bf16 %v8871, %v8870
  %v8909 = vpack.c.bf16 %v8873, %v8872
  %v8910 = vpack.c.bf16 %v8875, %v8874
  %v8911 = vpack.c.bf16 %v8877, %v8876
  %v8912 = vpack.c.bf16 %v8879, %v8878
  %v8913 = vpack.c.bf16 %v8881, %v8880
  %v8914 = vld [vmem:[%s5] sm:$0xf]
  %v8915 = vld [vmem:[%s5 + $0x4] sm:$0xf]
  %v8916 = vld [vmem:[%s5 + $0x8] sm:$0xf]
  %v8917 = vld [vmem:[%s5 + $0xc] sm:$0xf]
  %v8918 = vld [vmem:[%s5 + $0x10] sm:$0xf]
  %v8919 = vld [vmem:[%s5 + $0x14] sm:$0xf]
  %v8920 = vld [vmem:[%s5 + $0x18] sm:$0xf]
  %v8921 = vld [vmem:[%s5 + $0x1c] sm:$0xf]
  %v8922 = vld [vmem:[%s5 + $0x20] sm:$0xf]
  %v8923 = vld [vmem:[%s5 + $0x24] sm:$0xf]
  %v8924 = vld [vmem:[%s5 + $0x28] sm:$0xf]
  %v8925 = vld [vmem:[%s5 + $0x2c] sm:$0xf]
  %v8926 = vld [vmem:[%s5 + $0x30] sm:$0xf]
  %v8927 = vld [vmem:[%s5 + $0x34] sm:$0xf]
  %v8928 = vld [vmem:[%s5 + $0x38] sm:$0xf]
  %v8929 = vld [vmem:[%s5 + $0x3c] sm:$0xf]
  %v8930 = vld [vmem:[%s5 + $0x40] sm:$0xf]
  %v8931 = vld [vmem:[%s5 + $0x44] sm:$0xf]
  %v8932 = vld [vmem:[%s5 + $0x48] sm:$0xf]
  %v8933 = vld [vmem:[%s5 + $0x4c] sm:$0xf]
  %v8934 = vld [vmem:[%s5 + $0x50] sm:$0xf]
  %v8935 = vld [vmem:[%s5 + $0x54] sm:$0xf]
  %v8936 = vld [vmem:[%s5 + $0x58] sm:$0xf]
  %v8937 = vld [vmem:[%s5 + $0x5c] sm:$0xf]
  %v8938 = vld [vmem:[%s5 + $0x60] sm:$0xf]
  %v8939 = vld [vmem:[%s5 + $0x64] sm:$0xf]
  %v8940 = vld [vmem:[%s5 + $0x68] sm:$0xf]
  %v8941 = vld [vmem:[%s5 + $0x6c] sm:$0xf]
  %v8942 = vld [vmem:[%s5 + $0x70] sm:$0xf]
  %v8943 = vld [vmem:[%s5 + $0x74] sm:$0xf]
  %v8944 = vld [vmem:[%s5 + $0x78] sm:$0xf]
  %v8945 = vld [vmem:[%s5 + $0x7c] sm:$0xf]
  %s8946 = scalar_lea.vmem %s5, 128
  %v8947 = vld [vmem:[%s8946] sm:$0xf]
  %v8948 = vld [vmem:[%s8946 + $0x4] sm:$0xf]
  %v8949 = vld [vmem:[%s8946 + $0x8] sm:$0xf]
  %v8950 = vld [vmem:[%s8946 + $0xc] sm:$0xf]
  %v8951 = vld [vmem:[%s8946 + $0x10] sm:$0xf]
  %v8952 = vld [vmem:[%s8946 + $0x14] sm:$0xf]
  %v8953 = vld [vmem:[%s8946 + $0x18] sm:$0xf]
  %v8954 = vld [vmem:[%s8946 + $0x1c] sm:$0xf]
  %v8955 = vld [vmem:[%s8946 + $0x20] sm:$0xf]
  %v8956 = vld [vmem:[%s8946 + $0x24] sm:$0xf]
  %v8957 = vld [vmem:[%s8946 + $0x28] sm:$0xf]
  %v8958 = vld [vmem:[%s8946 + $0x2c] sm:$0xf]
  %v8959 = vld [vmem:[%s8946 + $0x30] sm:$0xf]
  %v8960 = vld [vmem:[%s8946 + $0x34] sm:$0xf]
  %v8961 = vld [vmem:[%s8946 + $0x38] sm:$0xf]
  %v8962 = vld [vmem:[%s8946 + $0x3c] sm:$0xf]
  %v8963 = vld [vmem:[%s8946 + $0x40] sm:$0xf]
  %v8964 = vld [vmem:[%s8946 + $0x44] sm:$0xf]
  %v8965 = vld [vmem:[%s8946 + $0x48] sm:$0xf]
  %v8966 = vld [vmem:[%s8946 + $0x4c] sm:$0xf]
  %v8967 = vld [vmem:[%s8946 + $0x50] sm:$0xf]
  %v8968 = vld [vmem:[%s8946 + $0x54] sm:$0xf]
  %v8969 = vld [vmem:[%s8946 + $0x58] sm:$0xf]
  %v8970 = vld [vmem:[%s8946 + $0x5c] sm:$0xf]
  %v8971 = vld [vmem:[%s8946 + $0x60] sm:$0xf]
  %v8972 = vld [vmem:[%s8946 + $0x64] sm:$0xf]
  %v8973 = vld [vmem:[%s8946 + $0x68] sm:$0xf]
  %v8974 = vld [vmem:[%s8946 + $0x6c] sm:$0xf]
  %v8975 = vld [vmem:[%s8946 + $0x70] sm:$0xf]
  %v8976 = vld [vmem:[%s8946 + $0x74] sm:$0xf]
  %v8977 = vld [vmem:[%s8946 + $0x78] sm:$0xf]
  %v8978 = vld [vmem:[%s8946 + $0x7c] sm:$0xf]
  %v8983 = vunpack.c.l.b16 %v8886
  %v8984 = vunpack.c.h.b16 %v8886
  %v8985 = vunpack.c.l.b16 %v8887
  %v8986 = vunpack.c.h.b16 %v8887
  %v8987 = vunpack.c.l.b16 %v8888
  %v8988 = vunpack.c.h.b16 %v8888
  %v8989 = vunpack.c.l.b16 %v8889
  %v8990 = vunpack.c.h.b16 %v8889
  %v8991 = vpack.c.b16 %v8985, %v8983
  %v8992 = vpack.c.b16 %v8986, %v8984
  %v8993 = vpack.c.b16 %v8989, %v8987
  %v8994 = vpack.c.b16 %v8990, %v8988
  %v9031 = vunpack.c.l.b16 %v8947
  %v9032 = vunpack.c.l.b16 %v8948
  %v9033 = vunpack.c.l.b16 %v8949
  %v9034 = vunpack.c.l.b16 %v8950
  %v9035 = vunpack.c.l.b16 %v8951
  %v9036 = vunpack.c.l.b16 %v8952
  %v9037 = vunpack.c.l.b16 %v8953
  %v9038 = vunpack.c.l.b16 %v8954
  %v9039 = vunpack.c.l.b16 %v8955
  %v9040 = vunpack.c.l.b16 %v8956
  %v9041 = vunpack.c.l.b16 %v8957
  %v9042 = vunpack.c.l.b16 %v8958
  %v9043 = vunpack.c.l.b16 %v8959
  %v9044 = vunpack.c.l.b16 %v8960
  %v9045 = vunpack.c.l.b16 %v8961
  %v9046 = vunpack.c.l.b16 %v8962
  %v9047 = vunpack.c.l.b16 %v8963
  %v9048 = vunpack.c.l.b16 %v8964
  %v9049 = vunpack.c.l.b16 %v8965
  %v9050 = vunpack.c.l.b16 %v8966
  %v9051 = vunpack.c.l.b16 %v8967
  %v9052 = vunpack.c.l.b16 %v8968
  %v9053 = vunpack.c.l.b16 %v8969
  %v9054 = vunpack.c.l.b16 %v8970
  %v9055 = vunpack.c.l.b16 %v8971
  %v9056 = vunpack.c.l.b16 %v8972
  %v9057 = vunpack.c.l.b16 %v8973
  %v9058 = vunpack.c.l.b16 %v8974
  %v9059 = vunpack.c.l.b16 %v8975
  %v9060 = vunpack.c.l.b16 %v8976
  %v9061 = vunpack.c.l.b16 %v8977
  %v9062 = vunpack.c.l.b16 %v8978
  %v9063 = vpack.c.b16 %v9032, %v9031
  %v9064 = vpack.c.b16 %v9034, %v9033
  %v9065 = vpack.c.b16 %v9036, %v9035
  %v9066 = vpack.c.b16 %v9038, %v9037
  %v9067 = vpack.c.b16 %v9040, %v9039
  %v9068 = vpack.c.b16 %v9042, %v9041
  %v9069 = vpack.c.b16 %v9044, %v9043
  %v9070 = vpack.c.b16 %v9046, %v9045
  %v9071 = vpack.c.b16 %v9048, %v9047
  %v9072 = vpack.c.b16 %v9050, %v9049
  %v9073 = vpack.c.b16 %v9052, %v9051
  %v9074 = vpack.c.b16 %v9054, %v9053
  %v9075 = vpack.c.b16 %v9056, %v9055
  %v9076 = vpack.c.b16 %v9058, %v9057
  %v9077 = vpack.c.b16 %v9060, %v9059
  %v9078 = vpack.c.b16 %v9062, %v9061
  %9095 = vmatpush.bf16.msra.mxu0 %v9070
  %9096 = vmatpush.bf16.msra.mxu0 %v9069
  %9097 = vmatpush.bf16.msra.mxu0 %v9068
  %9098 = vmatpush.bf16.msra.mxu0 %v9067
  %9099 = vmatpush.bf16.msra.mxu0 %v9066
  %9100 = vmatpush.bf16.msra.mxu0 %v9065
  %9101 = vmatpush.bf16.msra.mxu0 %v9064
  %9102 = vmatpush.bf16.msra.mxu0 %v9063
  %9103 = vmatmul.bf16.gmra.mxu0 %v8991
  %v9104 = vpop.f32.mrf.mxu0
  %v9105 = vadd.f32 0.0, %v9104
  %v9106 = vpop.f32.mrf.mxu0
  %v9107 = vadd.f32 0.0, %v9106
  %9108 = vmatmul.bf16.gmra.mxu0 %v8993
  %v9109 = vpop.f32.mrf.mxu0
  %v9110 = vadd.f32 0.0, %v9109
  %v9111 = vpop.f32.mrf.mxu0
  %v9112 = vadd.f32 0.0, %v9111
  %9113 = vdwg.mxu0
  %9114 = vmatpush.bf16.msra.mxu0 %v9078
  %9115 = vmatpush.bf16.msra.mxu0 %v9077
  %9116 = vmatpush.bf16.msra.mxu0 %v9076
  %9117 = vmatpush.bf16.msra.mxu0 %v9075
  %9118 = vmatpush.bf16.msra.mxu0 %v9074
  %9119 = vmatpush.bf16.msra.mxu0 %v9073
  %9120 = vmatpush.bf16.msra.mxu0 %v9072
  %9121 = vmatpush.bf16.msra.mxu0 %v9071
  %9122 = vmatmul.bf16.gmra.mxu0 %v8992
  %v9123 = vpop.f32.mrf.mxu0
  %v9124 = vadd.f32 %v9105, %v9123
  %v9125 = vpop.f32.mrf.mxu0
  %v9126 = vadd.f32 %v9107, %v9125
  %9127 = vmatmul.bf16.gmra.mxu0 %v8994
  %v9128 = vpop.f32.mrf.mxu0
  %v9129 = vadd.f32 %v9110, %v9128
  %v9130 = vpop.f32.mrf.mxu0
  %v9131 = vadd.f32 %v9112, %v9130
  %9132 = vdwg.mxu0
  %v9137 = vunpack.c.l.b16 %v8882
  %v9138 = vunpack.c.h.b16 %v8882
  %v9139 = vunpack.c.l.b16 %v8883
  %v9140 = vunpack.c.h.b16 %v8883
  %v9141 = vunpack.c.l.b16 %v8884
  %v9142 = vunpack.c.h.b16 %v8884
  %v9143 = vunpack.c.l.b16 %v8885
  %v9144 = vunpack.c.h.b16 %v8885
  %v9145 = vpack.c.b16 %v9139, %v9137
  %v9146 = vpack.c.b16 %v9140, %v9138
  %v9147 = vpack.c.b16 %v9143, %v9141
  %v9148 = vpack.c.b16 %v9144, %v9142
  %v9185 = vunpack.c.l.b16 %v8914
  %v9186 = vunpack.c.l.b16 %v8915
  %v9187 = vunpack.c.l.b16 %v8916
  %v9188 = vunpack.c.l.b16 %v8917
  %v9189 = vunpack.c.l.b16 %v8918
  %v9190 = vunpack.c.l.b16 %v8919
  %v9191 = vunpack.c.l.b16 %v8920
  %v9192 = vunpack.c.l.b16 %v8921
  %v9193 = vunpack.c.l.b16 %v8922
  %v9194 = vunpack.c.l.b16 %v8923
  %v9195 = vunpack.c.l.b16 %v8924
  %v9196 = vunpack.c.l.b16 %v8925
  %v9197 = vunpack.c.l.b16 %v8926
  %v9198 = vunpack.c.l.b16 %v8927
  %v9199 = vunpack.c.l.b16 %v8928
  %v9200 = vunpack.c.l.b16 %v8929
  %v9201 = vunpack.c.l.b16 %v8930
  %v9202 = vunpack.c.l.b16 %v8931
  %v9203 = vunpack.c.l.b16 %v8932
  %v9204 = vunpack.c.l.b16 %v8933
  %v9205 = vunpack.c.l.b16 %v8934
  %v9206 = vunpack.c.l.b16 %v8935
  %v9207 = vunpack.c.l.b16 %v8936
  %v9208 = vunpack.c.l.b16 %v8937
  %v9209 = vunpack.c.l.b16 %v8938
  %v9210 = vunpack.c.l.b16 %v8939
  %v9211 = vunpack.c.l.b16 %v8940
  %v9212 = vunpack.c.l.b16 %v8941
  %v9213 = vunpack.c.l.b16 %v8942
  %v9214 = vunpack.c.l.b16 %v8943
  %v9215 = vunpack.c.l.b16 %v8944
  %v9216 = vunpack.c.l.b16 %v8945
  %v9217 = vpack.c.b16 %v9186, %v9185
  %v9218 = vpack.c.b16 %v9188, %v9187
  %v9219 = vpack.c.b16 %v9190, %v9189
  %v9220 = vpack.c.b16 %v9192, %v9191
  %v9221 = vpack.c.b16 %v9194, %v9193
  %v9222 = vpack.c.b16 %v9196, %v9195
  %v9223 = vpack.c.b16 %v9198, %v9197
  %v9224 = vpack.c.b16 %v9200, %v9199
  %v9225 = vpack.c.b16 %v9202, %v9201
  %v9226 = vpack.c.b16 %v9204, %v9203
  %v9227 = vpack.c.b16 %v9206, %v9205
  %v9228 = vpack.c.b16 %v9208, %v9207
  %v9229 = vpack.c.b16 %v9210, %v9209
  %v9230 = vpack.c.b16 %v9212, %v9211
  %v9231 = vpack.c.b16 %v9214, %v9213
  %v9232 = vpack.c.b16 %v9216, %v9215
  %9249 = vmatpush.bf16.msra.mxu0 %v9224
  %9250 = vmatpush.bf16.msra.mxu0 %v9223
  %9251 = vmatpush.bf16.msra.mxu0 %v9222
  %9252 = vmatpush.bf16.msra.mxu0 %v9221
  %9253 = vmatpush.bf16.msra.mxu0 %v9220
  %9254 = vmatpush.bf16.msra.mxu0 %v9219
  %9255 = vmatpush.bf16.msra.mxu0 %v9218
  %9256 = vmatpush.bf16.msra.mxu0 %v9217
  %9257 = vmatmul.bf16.gmra.mxu0 %v9145
  %v9258 = vpop.f32.mrf.mxu0
  %v9259 = vadd.f32 %v9124, %v9258
  %v9260 = vpop.f32.mrf.mxu0
  %v9261 = vadd.f32 %v9126, %v9260
  %9262 = vmatmul.bf16.gmra.mxu0 %v9147
  %v9263 = vpop.f32.mrf.mxu0
  %v9264 = vadd.f32 %v9129, %v9263
  %v9265 = vpop.f32.mrf.mxu0
  %v9266 = vadd.f32 %v9131, %v9265
  %9267 = vdwg.mxu0
  %9268 = vmatpush.bf16.msra.mxu0 %v9232
  %9269 = vmatpush.bf16.msra.mxu0 %v9231
  %9270 = vmatpush.bf16.msra.mxu0 %v9230
  %9271 = vmatpush.bf16.msra.mxu0 %v9229
  %9272 = vmatpush.bf16.msra.mxu0 %v9228
  %9273 = vmatpush.bf16.msra.mxu0 %v9227
  %9274 = vmatpush.bf16.msra.mxu0 %v9226
  %9275 = vmatpush.bf16.msra.mxu0 %v9225
  %9276 = vmatmul.bf16.gmra.mxu0 %v9146
  %v9277 = vpop.f32.mrf.mxu0
  %v9278 = vadd.f32 %v9259, %v9277
  %v9279 = vpop.f32.mrf.mxu0
  %v9280 = vadd.f32 %v9261, %v9279
  %9281 = vmatmul.bf16.gmra.mxu0 %v9148
  %v9282 = vpop.f32.mrf.mxu0
  %v9283 = vadd.f32 %v9264, %v9282
  %v9284 = vpop.f32.mrf.mxu0
  %v9285 = vadd.f32 %v9266, %v9284
  %9286 = vdwg.mxu0
  %s9287 = scalar_lea.vmem %s5, 256
  %v9288 = vld [vmem:[%s9287] sm:$0xf]
  %v9289 = vld [vmem:[%s9287 + $0x4] sm:$0xf]
  %v9290 = vld [vmem:[%s9287 + $0x8] sm:$0xf]
  %v9291 = vld [vmem:[%s9287 + $0xc] sm:$0xf]
  %v9292 = vld [vmem:[%s9287 + $0x10] sm:$0xf]
  %v9293 = vld [vmem:[%s9287 + $0x14] sm:$0xf]
  %v9294 = vld [vmem:[%s9287 + $0x18] sm:$0xf]
  %v9295 = vld [vmem:[%s9287 + $0x1c] sm:$0xf]
  %v9296 = vld [vmem:[%s9287 + $0x20] sm:$0xf]
  %v9297 = vld [vmem:[%s9287 + $0x24] sm:$0xf]
  %v9298 = vld [vmem:[%s9287 + $0x28] sm:$0xf]
  %v9299 = vld [vmem:[%s9287 + $0x2c] sm:$0xf]
  %v9300 = vld [vmem:[%s9287 + $0x30] sm:$0xf]
  %v9301 = vld [vmem:[%s9287 + $0x34] sm:$0xf]
  %v9302 = vld [vmem:[%s9287 + $0x38] sm:$0xf]
  %v9303 = vld [vmem:[%s9287 + $0x3c] sm:$0xf]
  %v9304 = vld [vmem:[%s9287 + $0x40] sm:$0xf]
  %v9305 = vld [vmem:[%s9287 + $0x44] sm:$0xf]
  %v9306 = vld [vmem:[%s9287 + $0x48] sm:$0xf]
  %v9307 = vld [vmem:[%s9287 + $0x4c] sm:$0xf]
  %v9308 = vld [vmem:[%s9287 + $0x50] sm:$0xf]
  %v9309 = vld [vmem:[%s9287 + $0x54] sm:$0xf]
  %v9310 = vld [vmem:[%s9287 + $0x58] sm:$0xf]
  %v9311 = vld [vmem:[%s9287 + $0x5c] sm:$0xf]
  %v9312 = vld [vmem:[%s9287 + $0x60] sm:$0xf]
  %v9313 = vld [vmem:[%s9287 + $0x64] sm:$0xf]
  %v9314 = vld [vmem:[%s9287 + $0x68] sm:$0xf]
  %v9315 = vld [vmem:[%s9287 + $0x6c] sm:$0xf]
  %v9316 = vld [vmem:[%s9287 + $0x70] sm:$0xf]
  %v9317 = vld [vmem:[%s9287 + $0x74] sm:$0xf]
  %v9318 = vld [vmem:[%s9287 + $0x78] sm:$0xf]
  %v9319 = vld [vmem:[%s9287 + $0x7c] sm:$0xf]
  %v9324 = vunpack.c.l.b16 %v8890
  %v9325 = vunpack.c.h.b16 %v8890
  %v9326 = vunpack.c.l.b16 %v8891
  %v9327 = vunpack.c.h.b16 %v8891
  %v9328 = vunpack.c.l.b16 %v8892
  %v9329 = vunpack.c.h.b16 %v8892
  %v9330 = vunpack.c.l.b16 %v8893
  %v9331 = vunpack.c.h.b16 %v8893
  %v9332 = vpack.c.b16 %v9326, %v9324
  %v9333 = vpack.c.b16 %v9327, %v9325
  %v9334 = vpack.c.b16 %v9330, %v9328
  %v9335 = vpack.c.b16 %v9331, %v9329
  %v9372 = vunpack.c.l.b16 %v9288
  %v9373 = vunpack.c.l.b16 %v9289
  %v9374 = vunpack.c.l.b16 %v9290
  %v9375 = vunpack.c.l.b16 %v9291
  %v9376 = vunpack.c.l.b16 %v9292
  %v9377 = vunpack.c.l.b16 %v9293
  %v9378 = vunpack.c.l.b16 %v9294
  %v9379 = vunpack.c.l.b16 %v9295
  %v9380 = vunpack.c.l.b16 %v9296
  %v9381 = vunpack.c.l.b16 %v9297
  %v9382 = vunpack.c.l.b16 %v9298
  %v9383 = vunpack.c.l.b16 %v9299
  %v9384 = vunpack.c.l.b16 %v9300
  %v9385 = vunpack.c.l.b16 %v9301
  %v9386 = vunpack.c.l.b16 %v9302
  %v9387 = vunpack.c.l.b16 %v9303
  %v9388 = vunpack.c.l.b16 %v9304
  %v9389 = vunpack.c.l.b16 %v9305
  %v9390 = vunpack.c.l.b16 %v9306
  %v9391 = vunpack.c.l.b16 %v9307
  %v9392 = vunpack.c.l.b16 %v9308
  %v9393 = vunpack.c.l.b16 %v9309
  %v9394 = vunpack.c.l.b16 %v9310
  %v9395 = vunpack.c.l.b16 %v9311
  %v9396 = vunpack.c.l.b16 %v9312
  %v9397 = vunpack.c.l.b16 %v9313
  %v9398 = vunpack.c.l.b16 %v9314
  %v9399 = vunpack.c.l.b16 %v9315
  %v9400 = vunpack.c.l.b16 %v9316
  %v9401 = vunpack.c.l.b16 %v9317
  %v9402 = vunpack.c.l.b16 %v9318
  %v9403 = vunpack.c.l.b16 %v9319
  %v9404 = vpack.c.b16 %v9373, %v9372
  %v9405 = vpack.c.b16 %v9375, %v9374
  %v9406 = vpack.c.b16 %v9377, %v9376
  %v9407 = vpack.c.b16 %v9379, %v9378
  %v9408 = vpack.c.b16 %v9381, %v9380
  %v9409 = vpack.c.b16 %v9383, %v9382
  %v9410 = vpack.c.b16 %v9385, %v9384
  %v9411 = vpack.c.b16 %v9387, %v9386
  %v9412 = vpack.c.b16 %v9389, %v9388
  %v9413 = vpack.c.b16 %v9391, %v9390
  %v9414 = vpack.c.b16 %v9393, %v9392
  %v9415 = vpack.c.b16 %v9395, %v9394
  %v9416 = vpack.c.b16 %v9397, %v9396
  %v9417 = vpack.c.b16 %v9399, %v9398
  %v9418 = vpack.c.b16 %v9401, %v9400
  %v9419 = vpack.c.b16 %v9403, %v9402
  %9436 = vmatpush.bf16.msra.mxu0 %v9411
  %9437 = vmatpush.bf16.msra.mxu0 %v9410
  %9438 = vmatpush.bf16.msra.mxu0 %v9409
  %9439 = vmatpush.bf16.msra.mxu0 %v9408
  %9440 = vmatpush.bf16.msra.mxu0 %v9407
  %9441 = vmatpush.bf16.msra.mxu0 %v9406
  %9442 = vmatpush.bf16.msra.mxu0 %v9405
  %9443 = vmatpush.bf16.msra.mxu0 %v9404
  %9444 = vmatmul.bf16.gmra.mxu0 %v9332
  %v9445 = vpop.f32.mrf.mxu0
  %v9446 = vadd.f32 0.0, %v9445
  %v9447 = vpop.f32.mrf.mxu0
  %v9448 = vadd.f32 0.0, %v9447
  %9449 = vmatmul.bf16.gmra.mxu0 %v9334
  %v9450 = vpop.f32.mrf.mxu0
  %v9451 = vadd.f32 0.0, %v9450
  %v9452 = vpop.f32.mrf.mxu0
  %v9453 = vadd.f32 0.0, %v9452
  %9454 = vdwg.mxu0
  %9455 = vmatpush.bf16.msra.mxu0 %v9419
  %9456 = vmatpush.bf16.msra.mxu0 %v9418
  %9457 = vmatpush.bf16.msra.mxu0 %v9417
  %9458 = vmatpush.bf16.msra.mxu0 %v9416
  %9459 = vmatpush.bf16.msra.mxu0 %v9415
  %9460 = vmatpush.bf16.msra.mxu0 %v9414
  %9461 = vmatpush.bf16.msra.mxu0 %v9413
  %9462 = vmatpush.bf16.msra.mxu0 %v9412
  %9463 = vmatmul.bf16.gmra.mxu0 %v9333
  %v9464 = vpop.f32.mrf.mxu0
  %v9465 = vadd.f32 %v9446, %v9464
  %v9466 = vpop.f32.mrf.mxu0
  %v9467 = vadd.f32 %v9448, %v9466
  %9468 = vmatmul.bf16.gmra.mxu0 %v9335
  %v9469 = vpop.f32.mrf.mxu0
  %v9470 = vadd.f32 %v9451, %v9469
  %v9471 = vpop.f32.mrf.mxu0
  %v9472 = vadd.f32 %v9453, %v9471
  %9473 = vdwg.mxu0
  %v9474 = vadd.f32 %v9278, %v9465
  %v9475 = vadd.f32 %v9280, %v9467
  %v9476 = vadd.f32 %v9283, %v9470
  %v9477 = vadd.f32 %v9285, %v9472
  %s9478 = scalar_lea.vmem %s5, 384
  %v9479 = vld [vmem:[%s9478] sm:$0xf]
  %v9480 = vld [vmem:[%s9478 + $0x4] sm:$0xf]
  %v9481 = vld [vmem:[%s9478 + $0x8] sm:$0xf]
  %v9482 = vld [vmem:[%s9478 + $0xc] sm:$0xf]
  %v9483 = vld [vmem:[%s9478 + $0x10] sm:$0xf]
  %v9484 = vld [vmem:[%s9478 + $0x14] sm:$0xf]
  %v9485 = vld [vmem:[%s9478 + $0x18] sm:$0xf]
  %v9486 = vld [vmem:[%s9478 + $0x1c] sm:$0xf]
  %v9487 = vld [vmem:[%s9478 + $0x20] sm:$0xf]
  %v9488 = vld [vmem:[%s9478 + $0x24] sm:$0xf]
  %v9489 = vld [vmem:[%s9478 + $0x28] sm:$0xf]
  %v9490 = vld [vmem:[%s9478 + $0x2c] sm:$0xf]
  %v9491 = vld [vmem:[%s9478 + $0x30] sm:$0xf]
  %v9492 = vld [vmem:[%s9478 + $0x34] sm:$0xf]
  %v9493 = vld [vmem:[%s9478 + $0x38] sm:$0xf]
  %v9494 = vld [vmem:[%s9478 + $0x3c] sm:$0xf]
  %v9495 = vld [vmem:[%s9478 + $0x40] sm:$0xf]
  %v9496 = vld [vmem:[%s9478 + $0x44] sm:$0xf]
  %v9497 = vld [vmem:[%s9478 + $0x48] sm:$0xf]
  %v9498 = vld [vmem:[%s9478 + $0x4c] sm:$0xf]
  %v9499 = vld [vmem:[%s9478 + $0x50] sm:$0xf]
  %v9500 = vld [vmem:[%s9478 + $0x54] sm:$0xf]
  %v9501 = vld [vmem:[%s9478 + $0x58] sm:$0xf]
  %v9502 = vld [vmem:[%s9478 + $0x5c] sm:$0xf]
  %v9503 = vld [vmem:[%s9478 + $0x60] sm:$0xf]
  %v9504 = vld [vmem:[%s9478 + $0x64] sm:$0xf]
  %v9505 = vld [vmem:[%s9478 + $0x68] sm:$0xf]
  %v9506 = vld [vmem:[%s9478 + $0x6c] sm:$0xf]
  %v9507 = vld [vmem:[%s9478 + $0x70] sm:$0xf]
  %v9508 = vld [vmem:[%s9478 + $0x74] sm:$0xf]
  %v9509 = vld [vmem:[%s9478 + $0x78] sm:$0xf]
  %v9510 = vld [vmem:[%s9478 + $0x7c] sm:$0xf]
  %v9515 = vunpack.c.l.b16 %v8894
  %v9516 = vunpack.c.h.b16 %v8894
  %v9517 = vunpack.c.l.b16 %v8895
  %v9518 = vunpack.c.h.b16 %v8895
  %v9519 = vunpack.c.l.b16 %v8896
  %v9520 = vunpack.c.h.b16 %v8896
  %v9521 = vunpack.c.l.b16 %v8897
  %v9522 = vunpack.c.h.b16 %v8897
  %v9523 = vpack.c.b16 %v9517, %v9515
  %v9524 = vpack.c.b16 %v9518, %v9516
  %v9525 = vpack.c.b16 %v9521, %v9519
  %v9526 = vpack.c.b16 %v9522, %v9520
  %v9563 = vunpack.c.l.b16 %v9479
  %v9564 = vunpack.c.l.b16 %v9480
  %v9565 = vunpack.c.l.b16 %v9481
  %v9566 = vunpack.c.l.b16 %v9482
  %v9567 = vunpack.c.l.b16 %v9483
  %v9568 = vunpack.c.l.b16 %v9484
  %v9569 = vunpack.c.l.b16 %v9485
  %v9570 = vunpack.c.l.b16 %v9486
  %v9571 = vunpack.c.l.b16 %v9487
  %v9572 = vunpack.c.l.b16 %v9488
  %v9573 = vunpack.c.l.b16 %v9489
  %v9574 = vunpack.c.l.b16 %v9490
  %v9575 = vunpack.c.l.b16 %v9491
  %v9576 = vunpack.c.l.b16 %v9492
  %v9577 = vunpack.c.l.b16 %v9493
  %v9578 = vunpack.c.l.b16 %v9494
  %v9579 = vunpack.c.l.b16 %v9495
  %v9580 = vunpack.c.l.b16 %v9496
  %v9581 = vunpack.c.l.b16 %v9497
  %v9582 = vunpack.c.l.b16 %v9498
  %v9583 = vunpack.c.l.b16 %v9499
  %v9584 = vunpack.c.l.b16 %v9500
  %v9585 = vunpack.c.l.b16 %v9501
  %v9586 = vunpack.c.l.b16 %v9502
  %v9587 = vunpack.c.l.b16 %v9503
  %v9588 = vunpack.c.l.b16 %v9504
  %v9589 = vunpack.c.l.b16 %v9505
  %v9590 = vunpack.c.l.b16 %v9506
  %v9591 = vunpack.c.l.b16 %v9507
  %v9592 = vunpack.c.l.b16 %v9508
  %v9593 = vunpack.c.l.b16 %v9509
  %v9594 = vunpack.c.l.b16 %v9510
  %v9595 = vpack.c.b16 %v9564, %v9563
  %v9596 = vpack.c.b16 %v9566, %v9565
  %v9597 = vpack.c.b16 %v9568, %v9567
  %v9598 = vpack.c.b16 %v9570, %v9569
  %v9599 = vpack.c.b16 %v9572, %v9571
  %v9600 = vpack.c.b16 %v9574, %v9573
  %v9601 = vpack.c.b16 %v9576, %v9575
  %v9602 = vpack.c.b16 %v9578, %v9577
  %v9603 = vpack.c.b16 %v9580, %v9579
  %v9604 = vpack.c.b16 %v9582, %v9581
  %v9605 = vpack.c.b16 %v9584, %v9583
  %v9606 = vpack.c.b16 %v9586, %v9585
  %v9607 = vpack.c.b16 %v9588, %v9587
  %v9608 = vpack.c.b16 %v9590, %v9589
  %v9609 = vpack.c.b16 %v9592, %v9591
  %v9610 = vpack.c.b16 %v9594, %v9593
  %9627 = vmatpush.bf16.msra.mxu0 %v9602
  %9628 = vmatpush.bf16.msra.mxu0 %v9601
  %9629 = vmatpush.bf16.msra.mxu0 %v9600
  %9630 = vmatpush.bf16.msra.mxu0 %v9599
  %9631 = vmatpush.bf16.msra.mxu0 %v9598
  %9632 = vmatpush.bf16.msra.mxu0 %v9597
  %9633 = vmatpush.bf16.msra.mxu0 %v9596
  %9634 = vmatpush.bf16.msra.mxu0 %v9595
  %9635 = vmatmul.bf16.gmra.mxu0 %v9523
  %v9636 = vpop.f32.mrf.mxu0
  %v9637 = vadd.f32 0.0, %v9636
  %v9638 = vpop.f32.mrf.mxu0
  %v9639 = vadd.f32 0.0, %v9638
  %9640 = vmatmul.bf16.gmra.mxu0 %v9525
  %v9641 = vpop.f32.mrf.mxu0
  %v9642 = vadd.f32 0.0, %v9641
  %v9643 = vpop.f32.mrf.mxu0
  %v9644 = vadd.f32 0.0, %v9643
  %9645 = vdwg.mxu0
  %9646 = vmatpush.bf16.msra.mxu0 %v9610
  %9647 = vmatpush.bf16.msra.mxu0 %v9609
  %9648 = vmatpush.bf16.msra.mxu0 %v9608
  %9649 = vmatpush.bf16.msra.mxu0 %v9607
  %9650 = vmatpush.bf16.msra.mxu0 %v9606
  %9651 = vmatpush.bf16.msra.mxu0 %v9605
  %9652 = vmatpush.bf16.msra.mxu0 %v9604
  %9653 = vmatpush.bf16.msra.mxu0 %v9603
  %9654 = vmatmul.bf16.gmra.mxu0 %v9524
  %v9655 = vpop.f32.mrf.mxu0
  %v9656 = vadd.f32 %v9637, %v9655
  %v9657 = vpop.f32.mrf.mxu0
  %v9658 = vadd.f32 %v9639, %v9657
  %9659 = vmatmul.bf16.gmra.mxu0 %v9526
  %v9660 = vpop.f32.mrf.mxu0
  %v9661 = vadd.f32 %v9642, %v9660
  %v9662 = vpop.f32.mrf.mxu0
  %v9663 = vadd.f32 %v9644, %v9662
  %9664 = vdwg.mxu0
  %v9665 = vadd.f32 %v9474, %v9656
  %v9666 = vadd.f32 %v9475, %v9658
  %v9667 = vadd.f32 %v9476, %v9661
  %v9668 = vadd.f32 %v9477, %v9663
  %s9669 = scalar_lea.vmem %s5, 512
  %v9670 = vld [vmem:[%s9669] sm:$0xf]
  %v9671 = vld [vmem:[%s9669 + $0x4] sm:$0xf]
  %v9672 = vld [vmem:[%s9669 + $0x8] sm:$0xf]
  %v9673 = vld [vmem:[%s9669 + $0xc] sm:$0xf]
  %v9674 = vld [vmem:[%s9669 + $0x10] sm:$0xf]
  %v9675 = vld [vmem:[%s9669 + $0x14] sm:$0xf]
  %v9676 = vld [vmem:[%s9669 + $0x18] sm:$0xf]
  %v9677 = vld [vmem:[%s9669 + $0x1c] sm:$0xf]
  %v9678 = vld [vmem:[%s9669 + $0x20] sm:$0xf]
  %v9679 = vld [vmem:[%s9669 + $0x24] sm:$0xf]
  %v9680 = vld [vmem:[%s9669 + $0x28] sm:$0xf]
  %v9681 = vld [vmem:[%s9669 + $0x2c] sm:$0xf]
  %v9682 = vld [vmem:[%s9669 + $0x30] sm:$0xf]
  %v9683 = vld [vmem:[%s9669 + $0x34] sm:$0xf]
  %v9684 = vld [vmem:[%s9669 + $0x38] sm:$0xf]
  %v9685 = vld [vmem:[%s9669 + $0x3c] sm:$0xf]
  %v9686 = vld [vmem:[%s9669 + $0x40] sm:$0xf]
  %v9687 = vld [vmem:[%s9669 + $0x44] sm:$0xf]
  %v9688 = vld [vmem:[%s9669 + $0x48] sm:$0xf]
  %v9689 = vld [vmem:[%s9669 + $0x4c] sm:$0xf]
  %v9690 = vld [vmem:[%s9669 + $0x50] sm:$0xf]
  %v9691 = vld [vmem:[%s9669 + $0x54] sm:$0xf]
  %v9692 = vld [vmem:[%s9669 + $0x58] sm:$0xf]
  %v9693 = vld [vmem:[%s9669 + $0x5c] sm:$0xf]
  %v9694 = vld [vmem:[%s9669 + $0x60] sm:$0xf]
  %v9695 = vld [vmem:[%s9669 + $0x64] sm:$0xf]
  %v9696 = vld [vmem:[%s9669 + $0x68] sm:$0xf]
  %v9697 = vld [vmem:[%s9669 + $0x6c] sm:$0xf]
  %v9698 = vld [vmem:[%s9669 + $0x70] sm:$0xf]
  %v9699 = vld [vmem:[%s9669 + $0x74] sm:$0xf]
  %v9700 = vld [vmem:[%s9669 + $0x78] sm:$0xf]
  %v9701 = vld [vmem:[%s9669 + $0x7c] sm:$0xf]
  %v9706 = vunpack.c.l.b16 %v8898
  %v9707 = vunpack.c.h.b16 %v8898
  %v9708 = vunpack.c.l.b16 %v8899
  %v9709 = vunpack.c.h.b16 %v8899
  %v9710 = vunpack.c.l.b16 %v8900
  %v9711 = vunpack.c.h.b16 %v8900
  %v9712 = vunpack.c.l.b16 %v8901
  %v9713 = vunpack.c.h.b16 %v8901
  %v9714 = vpack.c.b16 %v9708, %v9706
  %v9715 = vpack.c.b16 %v9709, %v9707
  %v9716 = vpack.c.b16 %v9712, %v9710
  %v9717 = vpack.c.b16 %v9713, %v9711
  %v9754 = vunpack.c.l.b16 %v9670
  %v9755 = vunpack.c.l.b16 %v9671
  %v9756 = vunpack.c.l.b16 %v9672
  %v9757 = vunpack.c.l.b16 %v9673
  %v9758 = vunpack.c.l.b16 %v9674
  %v9759 = vunpack.c.l.b16 %v9675
  %v9760 = vunpack.c.l.b16 %v9676
  %v9761 = vunpack.c.l.b16 %v9677
  %v9762 = vunpack.c.l.b16 %v9678
  %v9763 = vunpack.c.l.b16 %v9679
  %v9764 = vunpack.c.l.b16 %v9680
  %v9765 = vunpack.c.l.b16 %v9681
  %v9766 = vunpack.c.l.b16 %v9682
  %v9767 = vunpack.c.l.b16 %v9683
  %v9768 = vunpack.c.l.b16 %v9684
  %v9769 = vunpack.c.l.b16 %v9685
  %v9770 = vunpack.c.l.b16 %v9686
  %v9771 = vunpack.c.l.b16 %v9687
  %v9772 = vunpack.c.l.b16 %v9688
  %v9773 = vunpack.c.l.b16 %v9689
  %v9774 = vunpack.c.l.b16 %v9690
  %v9775 = vunpack.c.l.b16 %v9691
  %v9776 = vunpack.c.l.b16 %v9692
  %v9777 = vunpack.c.l.b16 %v9693
  %v9778 = vunpack.c.l.b16 %v9694
  %v9779 = vunpack.c.l.b16 %v9695
  %v9780 = vunpack.c.l.b16 %v9696
  %v9781 = vunpack.c.l.b16 %v9697
  %v9782 = vunpack.c.l.b16 %v9698
  %v9783 = vunpack.c.l.b16 %v9699
  %v9784 = vunpack.c.l.b16 %v9700
  %v9785 = vunpack.c.l.b16 %v9701
  %v9786 = vpack.c.b16 %v9755, %v9754
  %v9787 = vpack.c.b16 %v9757, %v9756
  %v9788 = vpack.c.b16 %v9759, %v9758
  %v9789 = vpack.c.b16 %v9761, %v9760
  %v9790 = vpack.c.b16 %v9763, %v9762
  %v9791 = vpack.c.b16 %v9765, %v9764
  %v9792 = vpack.c.b16 %v9767, %v9766
  %v9793 = vpack.c.b16 %v9769, %v9768
  %v9794 = vpack.c.b16 %v9771, %v9770
  %v9795 = vpack.c.b16 %v9773, %v9772
  %v9796 = vpack.c.b16 %v9775, %v9774
  %v9797 = vpack.c.b16 %v9777, %v9776
  %v9798 = vpack.c.b16 %v9779, %v9778
  %v9799 = vpack.c.b16 %v9781, %v9780
  %v9800 = vpack.c.b16 %v9783, %v9782
  %v9801 = vpack.c.b16 %v9785, %v9784
  %9818 = vmatpush.bf16.msra.mxu0 %v9793
  %9819 = vmatpush.bf16.msra.mxu0 %v9792
  %9820 = vmatpush.bf16.msra.mxu0 %v9791
  %9821 = vmatpush.bf16.msra.mxu0 %v9790
  %9822 = vmatpush.bf16.msra.mxu0 %v9789
  %9823 = vmatpush.bf16.msra.mxu0 %v9788
  %9824 = vmatpush.bf16.msra.mxu0 %v9787
  %9825 = vmatpush.bf16.msra.mxu0 %v9786
  %9826 = vmatmul.bf16.gmra.mxu0 %v9714
  %v9827 = vpop.f32.mrf.mxu0
  %v9828 = vadd.f32 0.0, %v9827
  %v9829 = vpop.f32.mrf.mxu0
  %v9830 = vadd.f32 0.0, %v9829
  %9831 = vmatmul.bf16.gmra.mxu0 %v9716
  %v9832 = vpop.f32.mrf.mxu0
  %v9833 = vadd.f32 0.0, %v9832
  %v9834 = vpop.f32.mrf.mxu0
  %v9835 = vadd.f32 0.0, %v9834
  %9836 = vdwg.mxu0
  %9837 = vmatpush.bf16.msra.mxu0 %v9801
  %9838 = vmatpush.bf16.msra.mxu0 %v9800
  %9839 = vmatpush.bf16.msra.mxu0 %v9799
  %9840 = vmatpush.bf16.msra.mxu0 %v9798
  %9841 = vmatpush.bf16.msra.mxu0 %v9797
  %9842 = vmatpush.bf16.msra.mxu0 %v9796
  %9843 = vmatpush.bf16.msra.mxu0 %v9795
  %9844 = vmatpush.bf16.msra.mxu0 %v9794
  %9845 = vmatmul.bf16.gmra.mxu0 %v9715
  %v9846 = vpop.f32.mrf.mxu0
  %v9847 = vadd.f32 %v9828, %v9846
  %v9848 = vpop.f32.mrf.mxu0
  %v9849 = vadd.f32 %v9830, %v9848
  %9850 = vmatmul.bf16.gmra.mxu0 %v9717
  %v9851 = vpop.f32.mrf.mxu0
  %v9852 = vadd.f32 %v9833, %v9851
  %v9853 = vpop.f32.mrf.mxu0
  %v9854 = vadd.f32 %v9835, %v9853
  %9855 = vdwg.mxu0
  %v9856 = vadd.f32 %v9665, %v9847
  %v9857 = vadd.f32 %v9666, %v9849
  %v9858 = vadd.f32 %v9667, %v9852
  %v9859 = vadd.f32 %v9668, %v9854
  %s9860 = scalar_lea.vmem %s5, 640
  %v9861 = vld [vmem:[%s9860] sm:$0xf]
  %v9862 = vld [vmem:[%s9860 + $0x4] sm:$0xf]
  %v9863 = vld [vmem:[%s9860 + $0x8] sm:$0xf]
  %v9864 = vld [vmem:[%s9860 + $0xc] sm:$0xf]
  %v9865 = vld [vmem:[%s9860 + $0x10] sm:$0xf]
  %v9866 = vld [vmem:[%s9860 + $0x14] sm:$0xf]
  %v9867 = vld [vmem:[%s9860 + $0x18] sm:$0xf]
  %v9868 = vld [vmem:[%s9860 + $0x1c] sm:$0xf]
  %v9869 = vld [vmem:[%s9860 + $0x20] sm:$0xf]
  %v9870 = vld [vmem:[%s9860 + $0x24] sm:$0xf]
  %v9871 = vld [vmem:[%s9860 + $0x28] sm:$0xf]
  %v9872 = vld [vmem:[%s9860 + $0x2c] sm:$0xf]
  %v9873 = vld [vmem:[%s9860 + $0x30] sm:$0xf]
  %v9874 = vld [vmem:[%s9860 + $0x34] sm:$0xf]
  %v9875 = vld [vmem:[%s9860 + $0x38] sm:$0xf]
  %v9876 = vld [vmem:[%s9860 + $0x3c] sm:$0xf]
  %v9877 = vld [vmem:[%s9860 + $0x40] sm:$0xf]
  %v9878 = vld [vmem:[%s9860 + $0x44] sm:$0xf]
  %v9879 = vld [vmem:[%s9860 + $0x48] sm:$0xf]
  %v9880 = vld [vmem:[%s9860 + $0x4c] sm:$0xf]
  %v9881 = vld [vmem:[%s9860 + $0x50] sm:$0xf]
  %v9882 = vld [vmem:[%s9860 + $0x54] sm:$0xf]
  %v9883 = vld [vmem:[%s9860 + $0x58] sm:$0xf]
  %v9884 = vld [vmem:[%s9860 + $0x5c] sm:$0xf]
  %v9885 = vld [vmem:[%s9860 + $0x60] sm:$0xf]
  %v9886 = vld [vmem:[%s9860 + $0x64] sm:$0xf]
  %v9887 = vld [vmem:[%s9860 + $0x68] sm:$0xf]
  %v9888 = vld [vmem:[%s9860 + $0x6c] sm:$0xf]
  %v9889 = vld [vmem:[%s9860 + $0x70] sm:$0xf]
  %v9890 = vld [vmem:[%s9860 + $0x74] sm:$0xf]
  %v9891 = vld [vmem:[%s9860 + $0x78] sm:$0xf]
  %v9892 = vld [vmem:[%s9860 + $0x7c] sm:$0xf]
  %v9897 = vunpack.c.l.b16 %v8902
  %v9898 = vunpack.c.h.b16 %v8902
  %v9899 = vunpack.c.l.b16 %v8903
  %v9900 = vunpack.c.h.b16 %v8903
  %v9901 = vunpack.c.l.b16 %v8904
  %v9902 = vunpack.c.h.b16 %v8904
  %v9903 = vunpack.c.l.b16 %v8905
  %v9904 = vunpack.c.h.b16 %v8905
  %v9905 = vpack.c.b16 %v9899, %v9897
  %v9906 = vpack.c.b16 %v9900, %v9898
  %v9907 = vpack.c.b16 %v9903, %v9901
  %v9908 = vpack.c.b16 %v9904, %v9902
  %v9945 = vunpack.c.l.b16 %v9861
  %v9946 = vunpack.c.l.b16 %v9862
  %v9947 = vunpack.c.l.b16 %v9863
  %v9948 = vunpack.c.l.b16 %v9864
  %v9949 = vunpack.c.l.b16 %v9865
  %v9950 = vunpack.c.l.b16 %v9866
  %v9951 = vunpack.c.l.b16 %v9867
  %v9952 = vunpack.c.l.b16 %v9868
  %v9953 = vunpack.c.l.b16 %v9869
  %v9954 = vunpack.c.l.b16 %v9870
  %v9955 = vunpack.c.l.b16 %v9871
  %v9956 = vunpack.c.l.b16 %v9872
  %v9957 = vunpack.c.l.b16 %v9873
  %v9958 = vunpack.c.l.b16 %v9874
  %v9959 = vunpack.c.l.b16 %v9875
  %v9960 = vunpack.c.l.b16 %v9876
  %v9961 = vunpack.c.l.b16 %v9877
  %v9962 = vunpack.c.l.b16 %v9878
  %v9963 = vunpack.c.l.b16 %v9879
  %v9964 = vunpack.c.l.b16 %v9880
  %v9965 = vunpack.c.l.b16 %v9881
  %v9966 = vunpack.c.l.b16 %v9882
  %v9967 = vunpack.c.l.b16 %v9883
  %v9968 = vunpack.c.l.b16 %v9884
  %v9969 = vunpack.c.l.b16 %v9885
  %v9970 = vunpack.c.l.b16 %v9886
  %v9971 = vunpack.c.l.b16 %v9887
  %v9972 = vunpack.c.l.b16 %v9888
  %v9973 = vunpack.c.l.b16 %v9889
  %v9974 = vunpack.c.l.b16 %v9890
  %v9975 = vunpack.c.l.b16 %v9891
  %v9976 = vunpack.c.l.b16 %v9892
  %v9977 = vpack.c.b16 %v9946, %v9945
  %v9978 = vpack.c.b16 %v9948, %v9947
  %v9979 = vpack.c.b16 %v9950, %v9949
  %v9980 = vpack.c.b16 %v9952, %v9951
  %v9981 = vpack.c.b16 %v9954, %v9953
  %v9982 = vpack.c.b16 %v9956, %v9955
  %v9983 = vpack.c.b16 %v9958, %v9957
  %v9984 = vpack.c.b16 %v9960, %v9959
  %v9985 = vpack.c.b16 %v9962, %v9961
  %v9986 = vpack.c.b16 %v9964, %v9963
  %v9987 = vpack.c.b16 %v9966, %v9965
  %v9988 = vpack.c.b16 %v9968, %v9967
  %v9989 = vpack.c.b16 %v9970, %v9969
  %v9990 = vpack.c.b16 %v9972, %v9971
  %v9991 = vpack.c.b16 %v9974, %v9973
  %v9992 = vpack.c.b16 %v9976, %v9975
  %10009 = vmatpush.bf16.msra.mxu0 %v9984
  %10010 = vmatpush.bf16.msra.mxu0 %v9983
  %10011 = vmatpush.bf16.msra.mxu0 %v9982
  %10012 = vmatpush.bf16.msra.mxu0 %v9981
  %10013 = vmatpush.bf16.msra.mxu0 %v9980
  %10014 = vmatpush.bf16.msra.mxu0 %v9979
  %10015 = vmatpush.bf16.msra.mxu0 %v9978
  %10016 = vmatpush.bf16.msra.mxu0 %v9977
  %10017 = vmatmul.bf16.gmra.mxu0 %v9905
  %v10018 = vpop.f32.mrf.mxu0
  %v10019 = vadd.f32 0.0, %v10018
  %v10020 = vpop.f32.mrf.mxu0
  %v10021 = vadd.f32 0.0, %v10020
  %10022 = vmatmul.bf16.gmra.mxu0 %v9907
  %v10023 = vpop.f32.mrf.mxu0
  %v10024 = vadd.f32 0.0, %v10023
  %v10025 = vpop.f32.mrf.mxu0
  %v10026 = vadd.f32 0.0, %v10025
  %10027 = vdwg.mxu0
  %10028 = vmatpush.bf16.msra.mxu0 %v9992
  %10029 = vmatpush.bf16.msra.mxu0 %v9991
  %10030 = vmatpush.bf16.msra.mxu0 %v9990
  %10031 = vmatpush.bf16.msra.mxu0 %v9989
  %10032 = vmatpush.bf16.msra.mxu0 %v9988
  %10033 = vmatpush.bf16.msra.mxu0 %v9987
  %10034 = vmatpush.bf16.msra.mxu0 %v9986
  %10035 = vmatpush.bf16.msra.mxu0 %v9985
  %10036 = vmatmul.bf16.gmra.mxu0 %v9906
  %v10037 = vpop.f32.mrf.mxu0
  %v10038 = vadd.f32 %v10019, %v10037
  %v10039 = vpop.f32.mrf.mxu0
  %v10040 = vadd.f32 %v10021, %v10039
  %10041 = vmatmul.bf16.gmra.mxu0 %v9908
  %v10042 = vpop.f32.mrf.mxu0
  %v10043 = vadd.f32 %v10024, %v10042
  %v10044 = vpop.f32.mrf.mxu0
  %v10045 = vadd.f32 %v10026, %v10044
  %10046 = vdwg.mxu0
  %v10047 = vadd.f32 %v9856, %v10038
  %v10048 = vadd.f32 %v9857, %v10040
  %v10049 = vadd.f32 %v9858, %v10043
  %v10050 = vadd.f32 %v9859, %v10045
  %s10051 = scalar_lea.vmem %s5, 768
  %v10052 = vld [vmem:[%s10051] sm:$0xf]
  %v10053 = vld [vmem:[%s10051 + $0x4] sm:$0xf]
  %v10054 = vld [vmem:[%s10051 + $0x8] sm:$0xf]
  %v10055 = vld [vmem:[%s10051 + $0xc] sm:$0xf]
  %v10056 = vld [vmem:[%s10051 + $0x10] sm:$0xf]
  %v10057 = vld [vmem:[%s10051 + $0x14] sm:$0xf]
  %v10058 = vld [vmem:[%s10051 + $0x18] sm:$0xf]
  %v10059 = vld [vmem:[%s10051 + $0x1c] sm:$0xf]
  %v10060 = vld [vmem:[%s10051 + $0x20] sm:$0xf]
  %v10061 = vld [vmem:[%s10051 + $0x24] sm:$0xf]
  %v10062 = vld [vmem:[%s10051 + $0x28] sm:$0xf]
  %v10063 = vld [vmem:[%s10051 + $0x2c] sm:$0xf]
  %v10064 = vld [vmem:[%s10051 + $0x30] sm:$0xf]
  %v10065 = vld [vmem:[%s10051 + $0x34] sm:$0xf]
  %v10066 = vld [vmem:[%s10051 + $0x38] sm:$0xf]
  %v10067 = vld [vmem:[%s10051 + $0x3c] sm:$0xf]
  %v10068 = vld [vmem:[%s10051 + $0x40] sm:$0xf]
  %v10069 = vld [vmem:[%s10051 + $0x44] sm:$0xf]
  %v10070 = vld [vmem:[%s10051 + $0x48] sm:$0xf]
  %v10071 = vld [vmem:[%s10051 + $0x4c] sm:$0xf]
  %v10072 = vld [vmem:[%s10051 + $0x50] sm:$0xf]
  %v10073 = vld [vmem:[%s10051 + $0x54] sm:$0xf]
  %v10074 = vld [vmem:[%s10051 + $0x58] sm:$0xf]
  %v10075 = vld [vmem:[%s10051 + $0x5c] sm:$0xf]
  %v10076 = vld [vmem:[%s10051 + $0x60] sm:$0xf]
  %v10077 = vld [vmem:[%s10051 + $0x64] sm:$0xf]
  %v10078 = vld [vmem:[%s10051 + $0x68] sm:$0xf]
  %v10079 = vld [vmem:[%s10051 + $0x6c] sm:$0xf]
  %v10080 = vld [vmem:[%s10051 + $0x70] sm:$0xf]
  %v10081 = vld [vmem:[%s10051 + $0x74] sm:$0xf]
  %v10082 = vld [vmem:[%s10051 + $0x78] sm:$0xf]
  %v10083 = vld [vmem:[%s10051 + $0x7c] sm:$0xf]
  %v10088 = vunpack.c.l.b16 %v8906
  %v10089 = vunpack.c.h.b16 %v8906
  %v10090 = vunpack.c.l.b16 %v8907
  %v10091 = vunpack.c.h.b16 %v8907
  %v10092 = vunpack.c.l.b16 %v8908
  %v10093 = vunpack.c.h.b16 %v8908
  %v10094 = vunpack.c.l.b16 %v8909
  %v10095 = vunpack.c.h.b16 %v8909
  %v10096 = vpack.c.b16 %v10090, %v10088
  %v10097 = vpack.c.b16 %v10091, %v10089
  %v10098 = vpack.c.b16 %v10094, %v10092
  %v10099 = vpack.c.b16 %v10095, %v10093
  %v10136 = vunpack.c.l.b16 %v10052
  %v10137 = vunpack.c.l.b16 %v10053
  %v10138 = vunpack.c.l.b16 %v10054
  %v10139 = vunpack.c.l.b16 %v10055
  %v10140 = vunpack.c.l.b16 %v10056
  %v10141 = vunpack.c.l.b16 %v10057
  %v10142 = vunpack.c.l.b16 %v10058
  %v10143 = vunpack.c.l.b16 %v10059
  %v10144 = vunpack.c.l.b16 %v10060
  %v10145 = vunpack.c.l.b16 %v10061
  %v10146 = vunpack.c.l.b16 %v10062
  %v10147 = vunpack.c.l.b16 %v10063
  %v10148 = vunpack.c.l.b16 %v10064
  %v10149 = vunpack.c.l.b16 %v10065
  %v10150 = vunpack.c.l.b16 %v10066
  %v10151 = vunpack.c.l.b16 %v10067
  %v10152 = vunpack.c.l.b16 %v10068
  %v10153 = vunpack.c.l.b16 %v10069
  %v10154 = vunpack.c.l.b16 %v10070
  %v10155 = vunpack.c.l.b16 %v10071
  %v10156 = vunpack.c.l.b16 %v10072
  %v10157 = vunpack.c.l.b16 %v10073
  %v10158 = vunpack.c.l.b16 %v10074
  %v10159 = vunpack.c.l.b16 %v10075
  %v10160 = vunpack.c.l.b16 %v10076
  %v10161 = vunpack.c.l.b16 %v10077
  %v10162 = vunpack.c.l.b16 %v10078
  %v10163 = vunpack.c.l.b16 %v10079
  %v10164 = vunpack.c.l.b16 %v10080
  %v10165 = vunpack.c.l.b16 %v10081
  %v10166 = vunpack.c.l.b16 %v10082
  %v10167 = vunpack.c.l.b16 %v10083
  %v10168 = vpack.c.b16 %v10137, %v10136
  %v10169 = vpack.c.b16 %v10139, %v10138
  %v10170 = vpack.c.b16 %v10141, %v10140
  %v10171 = vpack.c.b16 %v10143, %v10142
  %v10172 = vpack.c.b16 %v10145, %v10144
  %v10173 = vpack.c.b16 %v10147, %v10146
  %v10174 = vpack.c.b16 %v10149, %v10148
  %v10175 = vpack.c.b16 %v10151, %v10150
  %v10176 = vpack.c.b16 %v10153, %v10152
  %v10177 = vpack.c.b16 %v10155, %v10154
  %v10178 = vpack.c.b16 %v10157, %v10156
  %v10179 = vpack.c.b16 %v10159, %v10158
  %v10180 = vpack.c.b16 %v10161, %v10160
  %v10181 = vpack.c.b16 %v10163, %v10162
  %v10182 = vpack.c.b16 %v10165, %v10164
  %v10183 = vpack.c.b16 %v10167, %v10166
  %10200 = vmatpush.bf16.msra.mxu0 %v10175
  %10201 = vmatpush.bf16.msra.mxu0 %v10174
  %10202 = vmatpush.bf16.msra.mxu0 %v10173
  %10203 = vmatpush.bf16.msra.mxu0 %v10172
  %10204 = vmatpush.bf16.msra.mxu0 %v10171
  %10205 = vmatpush.bf16.msra.mxu0 %v10170
  %10206 = vmatpush.bf16.msra.mxu0 %v10169
  %10207 = vmatpush.bf16.msra.mxu0 %v10168
  %10208 = vmatmul.bf16.gmra.mxu0 %v10096
  %v10209 = vpop.f32.mrf.mxu0
  %v10210 = vadd.f32 0.0, %v10209
  %v10211 = vpop.f32.mrf.mxu0
  %v10212 = vadd.f32 0.0, %v10211
  %10213 = vmatmul.bf16.gmra.mxu0 %v10098
  %v10214 = vpop.f32.mrf.mxu0
  %v10215 = vadd.f32 0.0, %v10214
  %v10216 = vpop.f32.mrf.mxu0
  %v10217 = vadd.f32 0.0, %v10216
  %10218 = vdwg.mxu0
  %10219 = vmatpush.bf16.msra.mxu0 %v10183
  %10220 = vmatpush.bf16.msra.mxu0 %v10182
  %10221 = vmatpush.bf16.msra.mxu0 %v10181
  %10222 = vmatpush.bf16.msra.mxu0 %v10180
  %10223 = vmatpush.bf16.msra.mxu0 %v10179
  %10224 = vmatpush.bf16.msra.mxu0 %v10178
  %10225 = vmatpush.bf16.msra.mxu0 %v10177
  %10226 = vmatpush.bf16.msra.mxu0 %v10176
  %10227 = vmatmul.bf16.gmra.mxu0 %v10097
  %v10228 = vpop.f32.mrf.mxu0
  %v10229 = vadd.f32 %v10210, %v10228
  %v10230 = vpop.f32.mrf.mxu0
  %v10231 = vadd.f32 %v10212, %v10230
  %10232 = vmatmul.bf16.gmra.mxu0 %v10099
  %v10233 = vpop.f32.mrf.mxu0
  %v10234 = vadd.f32 %v10215, %v10233
  %v10235 = vpop.f32.mrf.mxu0
  %v10236 = vadd.f32 %v10217, %v10235
  %10237 = vdwg.mxu0
  %v10238 = vadd.f32 %v10047, %v10229
  %v10239 = vadd.f32 %v10048, %v10231
  %v10240 = vadd.f32 %v10049, %v10234
  %v10241 = vadd.f32 %v10050, %v10236
  %s10242 = scalar_lea.vmem %s5, 896
  %v10243 = vld [vmem:[%s10242] sm:$0xf]
  %v10244 = vld [vmem:[%s10242 + $0x4] sm:$0xf]
  %v10245 = vld [vmem:[%s10242 + $0x8] sm:$0xf]
  %v10246 = vld [vmem:[%s10242 + $0xc] sm:$0xf]
  %v10247 = vld [vmem:[%s10242 + $0x10] sm:$0xf]
  %v10248 = vld [vmem:[%s10242 + $0x14] sm:$0xf]
  %v10249 = vld [vmem:[%s10242 + $0x18] sm:$0xf]
  %v10250 = vld [vmem:[%s10242 + $0x1c] sm:$0xf]
  %v10251 = vld [vmem:[%s10242 + $0x20] sm:$0xf]
  %v10252 = vld [vmem:[%s10242 + $0x24] sm:$0xf]
  %v10253 = vld [vmem:[%s10242 + $0x28] sm:$0xf]
  %v10254 = vld [vmem:[%s10242 + $0x2c] sm:$0xf]
  %v10255 = vld [vmem:[%s10242 + $0x30] sm:$0xf]
  %v10256 = vld [vmem:[%s10242 + $0x34] sm:$0xf]
  %v10257 = vld [vmem:[%s10242 + $0x38] sm:$0xf]
  %v10258 = vld [vmem:[%s10242 + $0x3c] sm:$0xf]
  %v10259 = vld [vmem:[%s10242 + $0x40] sm:$0xf]
  %v10260 = vld [vmem:[%s10242 + $0x44] sm:$0xf]
  %v10261 = vld [vmem:[%s10242 + $0x48] sm:$0xf]
  %v10262 = vld [vmem:[%s10242 + $0x4c] sm:$0xf]
  %v10263 = vld [vmem:[%s10242 + $0x50] sm:$0xf]
  %v10264 = vld [vmem:[%s10242 + $0x54] sm:$0xf]
  %v10265 = vld [vmem:[%s10242 + $0x58] sm:$0xf]
  %v10266 = vld [vmem:[%s10242 + $0x5c] sm:$0xf]
  %v10267 = vld [vmem:[%s10242 + $0x60] sm:$0xf]
  %v10268 = vld [vmem:[%s10242 + $0x64] sm:$0xf]
  %v10269 = vld [vmem:[%s10242 + $0x68] sm:$0xf]
  %v10270 = vld [vmem:[%s10242 + $0x6c] sm:$0xf]
  %v10271 = vld [vmem:[%s10242 + $0x70] sm:$0xf]
  %v10272 = vld [vmem:[%s10242 + $0x74] sm:$0xf]
  %v10273 = vld [vmem:[%s10242 + $0x78] sm:$0xf]
  %v10274 = vld [vmem:[%s10242 + $0x7c] sm:$0xf]
  %v10279 = vunpack.c.l.b16 %v8910
  %v10280 = vunpack.c.h.b16 %v8910
  %v10281 = vunpack.c.l.b16 %v8911
  %v10282 = vunpack.c.h.b16 %v8911
  %v10283 = vunpack.c.l.b16 %v8912
  %v10284 = vunpack.c.h.b16 %v8912
  %v10285 = vunpack.c.l.b16 %v8913
  %v10286 = vunpack.c.h.b16 %v8913
  %v10287 = vpack.c.b16 %v10281, %v10279
  %v10288 = vpack.c.b16 %v10282, %v10280
  %v10289 = vpack.c.b16 %v10285, %v10283
  %v10290 = vpack.c.b16 %v10286, %v10284
  %v10327 = vunpack.c.l.b16 %v10243
  %v10328 = vunpack.c.l.b16 %v10244
  %v10329 = vunpack.c.l.b16 %v10245
  %v10330 = vunpack.c.l.b16 %v10246
  %v10331 = vunpack.c.l.b16 %v10247
  %v10332 = vunpack.c.l.b16 %v10248
  %v10333 = vunpack.c.l.b16 %v10249
  %v10334 = vunpack.c.l.b16 %v10250
  %v10335 = vunpack.c.l.b16 %v10251
  %v10336 = vunpack.c.l.b16 %v10252
  %v10337 = vunpack.c.l.b16 %v10253
  %v10338 = vunpack.c.l.b16 %v10254
  %v10339 = vunpack.c.l.b16 %v10255
  %v10340 = vunpack.c.l.b16 %v10256
  %v10341 = vunpack.c.l.b16 %v10257
  %v10342 = vunpack.c.l.b16 %v10258
  %v10343 = vunpack.c.l.b16 %v10259
  %v10344 = vunpack.c.l.b16 %v10260
  %v10345 = vunpack.c.l.b16 %v10261
  %v10346 = vunpack.c.l.b16 %v10262
  %v10347 = vunpack.c.l.b16 %v10263
  %v10348 = vunpack.c.l.b16 %v10264
  %v10349 = vunpack.c.l.b16 %v10265
  %v10350 = vunpack.c.l.b16 %v10266
  %v10351 = vunpack.c.l.b16 %v10267
  %v10352 = vunpack.c.l.b16 %v10268
  %v10353 = vunpack.c.l.b16 %v10269
  %v10354 = vunpack.c.l.b16 %v10270
  %v10355 = vunpack.c.l.b16 %v10271
  %v10356 = vunpack.c.l.b16 %v10272
  %v10357 = vunpack.c.l.b16 %v10273
  %v10358 = vunpack.c.l.b16 %v10274
  %v10359 = vpack.c.b16 %v10328, %v10327
  %v10360 = vpack.c.b16 %v10330, %v10329
  %v10361 = vpack.c.b16 %v10332, %v10331
  %v10362 = vpack.c.b16 %v10334, %v10333
  %v10363 = vpack.c.b16 %v10336, %v10335
  %v10364 = vpack.c.b16 %v10338, %v10337
  %v10365 = vpack.c.b16 %v10340, %v10339
  %v10366 = vpack.c.b16 %v10342, %v10341
  %v10367 = vpack.c.b16 %v10344, %v10343
  %v10368 = vpack.c.b16 %v10346, %v10345
  %v10369 = vpack.c.b16 %v10348, %v10347
  %v10370 = vpack.c.b16 %v10350, %v10349
  %v10371 = vpack.c.b16 %v10352, %v10351
  %v10372 = vpack.c.b16 %v10354, %v10353
  %v10373 = vpack.c.b16 %v10356, %v10355
  %v10374 = vpack.c.b16 %v10358, %v10357
  %10391 = vmatpush.bf16.msra.mxu0 %v10366
  %10392 = vmatpush.bf16.msra.mxu0 %v10365
  %10393 = vmatpush.bf16.msra.mxu0 %v10364
  %10394 = vmatpush.bf16.msra.mxu0 %v10363
  %10395 = vmatpush.bf16.msra.mxu0 %v10362
  %10396 = vmatpush.bf16.msra.mxu0 %v10361
  %10397 = vmatpush.bf16.msra.mxu0 %v10360
  %10398 = vmatpush.bf16.msra.mxu0 %v10359
  %10399 = vmatmul.bf16.gmra.mxu0 %v10287
  %v10400 = vpop.f32.mrf.mxu0
  %v10401 = vadd.f32 0.0, %v10400
  %v10402 = vpop.f32.mrf.mxu0
  %v10403 = vadd.f32 0.0, %v10402
  %10404 = vmatmul.bf16.gmra.mxu0 %v10289
  %v10405 = vpop.f32.mrf.mxu0
  %v10406 = vadd.f32 0.0, %v10405
  %v10407 = vpop.f32.mrf.mxu0
  %v10408 = vadd.f32 0.0, %v10407
  %10409 = vdwg.mxu0
  %10410 = vmatpush.bf16.msra.mxu0 %v10374
  %10411 = vmatpush.bf16.msra.mxu0 %v10373
  %10412 = vmatpush.bf16.msra.mxu0 %v10372
  %10413 = vmatpush.bf16.msra.mxu0 %v10371
  %10414 = vmatpush.bf16.msra.mxu0 %v10370
  %10415 = vmatpush.bf16.msra.mxu0 %v10369
  %10416 = vmatpush.bf16.msra.mxu0 %v10368
  %10417 = vmatpush.bf16.msra.mxu0 %v10367
  %10418 = vmatmul.bf16.gmra.mxu0 %v10288
  %v10419 = vpop.f32.mrf.mxu0
  %v10420 = vadd.f32 %v10401, %v10419
  %v10421 = vpop.f32.mrf.mxu0
  %v10422 = vadd.f32 %v10403, %v10421
  %10423 = vmatmul.bf16.gmra.mxu0 %v10290
  %v10424 = vpop.f32.mrf.mxu0
  %v10425 = vadd.f32 %v10406, %v10424
  %v10426 = vpop.f32.mrf.mxu0
  %v10427 = vadd.f32 %v10408, %v10426
  %10428 = vdwg.mxu0
  %v10429 = vadd.f32 %v10238, %v10420
  %v10430 = vadd.f32 %v10239, %v10422
  %v10431 = vadd.f32 %v10240, %v10425
  %v10432 = vadd.f32 %v10241, %v10427
  %v10433 = vld [vmem:[%s6] sm:$0x1]
  %v10435 = vperm.slane %v10433, 0
  %v10437 = vadd.f32 %v10429, %v10435
  %v10438 = vadd.f32 %v10430, %v10435
  %v10439 = vadd.f32 %v10431, %v10435
  %v10440 = vadd.f32 %v10432, %v10435
  %v10441 = vmax.f32 %v10437, 0.0
  %v10442 = vmax.f32 %v10438, 0.0
  %v10443 = vmax.f32 %v10439, 0.0
  %v10444 = vmax.f32 %v10440, 0.0
  %v10445 = vld [vmem:[%s7] sm:$0xf]
  %v10446 = vld [vmem:[%s7 + $0x4] sm:$0xf]
  %v10447 = vld [vmem:[%s7 + $0x8] sm:$0xf]
  %v10448 = vld [vmem:[%s7 + $0xc] sm:$0xf]
  %v10449 = vld [vmem:[%s7 + $0x10] sm:$0xf]
  %v10450 = vld [vmem:[%s7 + $0x14] sm:$0xf]
  %v10451 = vld [vmem:[%s7 + $0x18] sm:$0xf]
  %v10452 = vld [vmem:[%s7 + $0x1c] sm:$0xf]
  %v10453 = vld [vmem:[%s7 + $0x20] sm:$0xf]
  %v10454 = vld [vmem:[%s7 + $0x24] sm:$0xf]
  %v10455 = vld [vmem:[%s7 + $0x28] sm:$0xf]
  %v10456 = vld [vmem:[%s7 + $0x2c] sm:$0xf]
  %v10457 = vld [vmem:[%s7 + $0x30] sm:$0xf]
  %v10458 = vld [vmem:[%s7 + $0x34] sm:$0xf]
  %v10459 = vld [vmem:[%s7 + $0x38] sm:$0xf]
  %v10460 = vld [vmem:[%s7 + $0x3c] sm:$0xf]
  %v10461 = vpack.c.bf16 %v10442, %v10441
  %v10462 = vpack.c.bf16 %v10444, %v10443
  %v10463 = vld [vmem:[%s8] sm:$0x1]
  %v10465 = vperm.slane %v10463, 0
  %v10483 = vunpack.c.l.b16 %v10445
  %v10484 = vunpack.c.l.b16 %v10446
  %v10485 = vunpack.c.l.b16 %v10447
  %v10486 = vunpack.c.l.b16 %v10448
  %v10487 = vunpack.c.l.b16 %v10449
  %v10488 = vunpack.c.l.b16 %v10450
  %v10489 = vunpack.c.l.b16 %v10451
  %v10490 = vunpack.c.l.b16 %v10452
  %v10491 = vunpack.c.l.b16 %v10453
  %v10492 = vunpack.c.l.b16 %v10454
  %v10493 = vunpack.c.l.b16 %v10455
  %v10494 = vunpack.c.l.b16 %v10456
  %v10495 = vunpack.c.l.b16 %v10457
  %v10496 = vunpack.c.l.b16 %v10458
  %v10497 = vunpack.c.l.b16 %v10459
  %v10498 = vunpack.c.l.b16 %v10460
  %v10499 = vpack.c.b16 %v10484, %v10483
  %v10500 = vpack.c.b16 %v10486, %v10485
  %v10501 = vpack.c.b16 %v10488, %v10487
  %v10502 = vpack.c.b16 %v10490, %v10489
  %v10503 = vpack.c.b16 %v10492, %v10491
  %v10504 = vpack.c.b16 %v10494, %v10493
  %v10505 = vpack.c.b16 %v10496, %v10495
  %v10506 = vpack.c.b16 %v10498, %v10497
  %10515 = vmatpush.bf16.msra.mxu0 %v10506
  %10516 = vmatpush.bf16.msra.mxu0 %v10505
  %10517 = vmatpush.bf16.msra.mxu0 %v10504
  %10518 = vmatpush.bf16.msra.mxu0 %v10503
  %10519 = vmatpush.bf16.msra.mxu0 %v10502
  %10520 = vmatpush.bf16.msra.mxu0 %v10501
  %10521 = vmatpush.bf16.msra.mxu0 %v10500
  %10522 = vmatpush.bf16.msra.mxu0 %v10499
  %10523 = vmatmul.bf16.gmra.mxu0 %v10461
  %v10524 = vpop.f32.mrf.mxu0
  %v10525 = vadd.f32 %v10465, %v10524
  %v10526 = vpop.f32.mrf.mxu0
  %v10527 = vadd.f32 %v10465, %v10526
  %10528 = vmatmul.bf16.gmra.mxu0 %v10462
  %v10529 = vpop.f32.mrf.mxu0
  %v10530 = vadd.f32 %v10465, %v10529
  %v10531 = vpop.f32.mrf.mxu0
  %v10532 = vadd.f32 %v10465, %v10531
  %10533 = vdwg.mxu0
  %10534 = vst [vmem:[%s9] sm:$0xff] %v10525
  %10535 = vst [vmem:[%s9 + $0x8] sm:$0xff] %v10527
  %10536 = vst [vmem:[%s9 + $0x10] sm:$0xff] %v10530
  %10537 = vst [vmem:[%s9 + $0x18] sm:$0xff] %v10532
  // Predicated region
  $region38: #{cnn_char_forward.1} parent=0 // pred_check
    _
  $region39: #{cnn_char_forward.1} parent=0 // pred_check_branch
    %10539 = sbr.rel (0) target = $region41
  $region40: #{cnn_char_forward.1} parent=0 // pred_region
    _
  $region41: #{cnn_char_forward.1} parent=0 // pred_fallthru
    _
  // Predicated region
  $region42: #{cnn_char_forward.1} parent=0 // pred_check
    _
  $region43: #{cnn_char_forward.1} parent=0 // pred_check_branch
    %10541 = sbr.rel (0) target = $region45
  $region44: #{cnn_char_forward.1} parent=0 // pred_region
    _
  $region45: #{cnn_char_forward.1} parent=0 // pred_fallthru
    _

</llo_original>
